<compile_context>
chip_gen: v5e
topology: v5e:2x2
jax: 0.10.0
libtpu: 0.0.40
codegen_flags: <defaults>
</compile_context>

<pallas_src>
import functools
import math

import jax
import jax.numpy as jnp
from jax.experimental import pallas as pl
from jax.experimental.pallas import tpu as pltpu


def _stage_factors(scale):
    if scale == 3:
        return [3]
    if scale in (2, 4, 8):
        return [2] * int(math.log2(scale))
    return []          # empty body -> identity, matching the PyTorch module


def _repack_conv_weight(w_torch, b_torch, r):
    """PyTorch OIHW conv weight (r*r*C, C, 3, 3) -> im2col weight (9*C, r*r*C).

    Row ((kh*3 + kw)*C + cin) matches the im2col column order built in the kernel.
    Output column (i*r*C + j*C + c) holds PyTorch output channel o = c*r*r + i*r + j
    (the PixelShuffle decomposition), so the kernel can write an (H, r, W, r*C) slab
    and PixelShuffle becomes a free contiguous reshape.
    """
    crr, cin, kh, kw = w_torch.shape
    c = crr // (r * r)
    w = jnp.transpose(w_torch, (2, 3, 1, 0))            # (kh, kw, cin, o)
    w = w.reshape(kh, kw, cin, c, r, r)                 # o -> (c, i, j)
    w = jnp.transpose(w, (0, 1, 2, 4, 5, 3))            # (kh, kw, cin, i, j, c)
    w = w.reshape(kh * kw * cin, r * r * c)             # (9C, r*r*C)
    b = b_torch.reshape(c, r, r)                        # (c, i, j)
    b = jnp.transpose(b, (1, 2, 0)).reshape(1, r * r * c)
    return w, b


def _conv_relu_ps_kernel(x_ref, w_ref, b_ref, out_ref, pad_ref, *, H, W, C, r):
    """Fused 3x3 conv (pad=1) + bias + ReLU + PixelShuffle(r), one image per grid step.

    x_ref  : (1, H, W, C)        input image block (NHWC)
    w_ref  : (9C, r*r*C)         im2col weight, columns ordered (i, j, c)
    b_ref  : (1, r*r*C)          bias in the same column order
    out_ref: (1, H, r, W, r*C)   out[0, h, i, w, j*C + c] = shuffled output pixel
    pad_ref: (H+2, W+2, C) f32   VMEM scratch: zero-padded image (no HBM pad pass)
    """
    f32 = pad_ref.dtype
    # Re-zero only the 1-pixel border each step; the interior is fully overwritten
    # below.  (Not gated on program_id: stays correct if the batch axis is split
    # across TensorCores, since each core's scratch sees the zeroing every step.)
    pad_ref[0:1, :, :] = jnp.zeros((1, W + 2, C), f32)
    pad_ref[H + 1:H + 2, :, :] = jnp.zeros((1, W + 2, C), f32)
    pad_ref[:, 0:1, :] = jnp.zeros((H + 2, 1, C), f32)
    pad_ref[:, W + 1:W + 2, :] = jnp.zeros((H + 2, 1, C), f32)
    pad_ref[1:H + 1, 1:W + 1, :] = x_ref[0].astype(f32)
    xp = pad_ref[...]

    # im2col: one K = 9*C contraction instead of nine K = C matmuls.
    cols = [xp[dy:dy + H, dx:dx + W, :] for dy in range(3) for dx in range(3)]
    x_mat = jnp.concatenate(cols, axis=-1).reshape(H * W, 9 * C)

    # Single MXU push for all r*r output phases, then bias + ReLU.
    y = jnp.dot(x_mat, w_ref[...], preferred_element_type=jnp.float32)
    y = jnp.maximum(y + b_ref[...], 0.0)

    rC = r * C
    for i in range(r):                                   # r static stores (PixelShuffle rows)
        out_ref[0, :, i, :, :] = (
            y[:, i * rC:(i + 1) * rC].reshape(H, W, rC).astype(out_ref.dtype))


def _round_up(x, m):
    return -(-x // m) * m


def _padded_bytes(shape, itemsize):
    """VMEM footprint with (8, 128) tiling of the minor two dims."""
    s = list(shape)
    if len(s) >= 2:
        s[-2] = _round_up(s[-2], 8)
    s[-1] = _round_up(s[-1], 128)
    n = 1
    for d in s:
        n *= d
    return n * itemsize


def _conv_relu_shuffle_stage(x_nhwc, w_kernel, b_kernel, r):
    N, H, W, C = x_nhwc.shape
    K = 9 * C
    rC = r * C
    rrC = r * r * C
    it = x_nhwc.dtype.itemsize

    vmem_est = (
        2 * _padded_bytes((H, W, C), it)                # double-buffered input block
        + 2 * _padded_bytes((H, r, W, rC), it)          # double-buffered output block
        + _padded_bytes((K, rrC), 4)                    # resident weight
        + _padded_bytes((1, rrC), 4)                    # resident bias
        + _padded_bytes((H + 2, W + 2, C), 4)           # pad scratch
        + _padded_bytes((H * W, K), 4)                  # x_mat intermediate
        + _padded_bytes((H * W, rrC), 4)                # y intermediate
        + (8 << 20)                                     # headroom for relayout temporaries
    )
    vmem_limit = int(min(64 << 20, max(32 << 20, vmem_est)))

    cost = pl.CostEstimate(
        flops=int(2 * N * H * W * K * rrC),
        transcendentals=0,
        bytes_accessed=int(it * (N * H * W * C + N * H * r * W * rC)
                           + 4 * (K * rrC + rrC)),
    )

    out6 = pl.pallas_call(
        functools.partial(_conv_relu_ps_kernel, H=H, W=W, C=C, r=r),
        out_shape=jax.ShapeDtypeStruct((N, H, r, W, rC), x_nhwc.dtype),
        grid_spec=pltpu.PrefetchScalarGridSpec(
            num_scalar_prefetch=0,
            grid=(N,),
            in_specs=[
                pl.BlockSpec((1, H, W, C), lambda n: (n, 0, 0, 0)),
                pl.BlockSpec((K, rrC), lambda n: (0, 0)),
                pl.BlockSpec((1, rrC), lambda n: (0, 0)),
            ],
            out_specs=pl.BlockSpec((1, H, r, W, rC), lambda n: (n, 0, 0, 0, 0)),
            scratch_shapes=[pltpu.VMEM((H + 2, W + 2, C), jnp.float32)],
        ),
        compiler_params=pltpu.CompilerParams(
            dimension_semantics=("parallel",),
            vmem_limit_bytes=vmem_limit,
        ),
        cost_estimate=cost,
    )(x_nhwc, w_kernel, b_kernel)

    # Free contiguous reshape == PixelShuffle(r): (N,H,r,W,r*C) -> (N, r*H, r*W, C).
    return out6.reshape(N, H * r, W * r, C)


def upsample_block(x_nchw, params, *, scale):
    """x_nchw: (N, C, H, W). params: per-stage {'w': (r*r*C,C,3,3) OIHW, 'b': (r*r*C,)}."""
    rs = _stage_factors(scale)
    assert len(rs) == len(params)
    if not rs:
        return x_nchw
    x = jnp.transpose(x_nchw, (0, 2, 3, 1))             # NCHW -> NHWC once
    for r, p in zip(rs, params):
        w_k, b_k = _repack_conv_weight(p['w'], p['b'], r)
        x = _conv_relu_shuffle_stage(x, w_k, b_k, r)
    return jnp.transpose(x, (0, 3, 1, 2))               # back to NCHW


def init_params(key, C, scale):
    """Deterministic synthetic parameters in the PyTorch layout."""
    params = []
    for r in _stage_factors(scale):
        key, kw, kb = jax.random.split(key, 3)
        params.append(dict(
            w=jax.random.normal(kw, (r * r * C, C, 3, 3), jnp.float32) * 0.05,
            b=jax.random.normal(kb, (r * r * C,), jnp.float32) * 0.05,
        ))
    return params


def upsample_block_ref(x, params, *, scale):
    """Pure-JAX/XLA reference of the PyTorch module (correctness check)."""
    out = x
    for r, p in zip(_stage_factors(scale), params):
        z = jax.lax.conv_general_dilated(
            out, p['w'], window_strides=(1, 1), padding=((1, 1), (1, 1)),
            dimension_numbers=('NCHW', 'OIHW', 'NCHW'),
            precision=jax.lax.Precision.HIGHEST)
        z = jnp.maximum(z + p['b'][None, :, None, None], 0.0)
        n, crr, h, w = z.shape
        c = crr // (r * r)
        z = z.reshape(n, c, r, r, h, w)
        z = jnp.transpose(z, (0, 1, 4, 2, 5, 3)).reshape(n, c, h * r, w * r)
        out = z
    return out


if __name__ == "__main__":
    key = jax.random.PRNGKey(0)
    kx, kp, kx3, kp3 = jax.random.split(key, 4)

    # scale = 4 -> two fused [conv 3x3 -> ReLU -> PixelShuffle(2)] stages.
    N, C, H, W = 2, 16, 16, 16
    scale = 4
    x = jax.random.normal(kx, (N, C, H, W), jnp.float32)
    params = init_params(kp, C, scale)

    run = jax.jit(functools.partial(upsample_block, scale=scale))
    out = jax.block_until_ready(run(x, params))
    assert out.shape == (N, C, H * scale, W * scale), out.shape
    assert bool(jnp.isfinite(out).all())
    ref = upsample_block_ref(x, params, scale=scale)
    err = float(jnp.max(jnp.abs(out - ref)))
    assert err < 1e-3, f"scale=4 max abs err {err}"

    # scale = 3 -> single stage with r = 3 (exercises the other branch).
    x3 = jax.random.normal(kx3, (N, C, 8, 8), jnp.float32)
    params3 = init_params(kp3, C, 3)
    out3 = jax.block_until_ready(
        jax.jit(functools.partial(upsample_block, scale=3))(x3, params3))
    assert out3.shape == (N, C, 24, 24), out3.shape
    ref3 = upsample_block_ref(x3, params3, scale=3)
    err3 = float(jnp.max(jnp.abs(out3 - ref3)))
    assert err3 < 1e-3, f"scale=3 max abs err {err3}"

    print("KERNEL_OK")
</pallas_src>

<mosaic_0001>
module attributes {stable_mosaic.version = 11 : i64} {
  func.func @_conv_relu_ps_kernel(%arg0: i32, %arg1: memref<1x16x16x16xf32, #tpu.memory_space<vmem>>, %arg2: memref<144x64xf32, #tpu.memory_space<vmem>>, %arg3: memref<1x64xf32, #tpu.memory_space<vmem>>, %arg4: memref<1x16x2x16x32xf32, #tpu.memory_space<vmem>>, %arg5: memref<18x18x16xf32, #tpu.memory_space<vmem>>) attributes {dimension_semantics = [#tpu.dimension_semantics<parallel>], iteration_bounds = array<i64: 2>, scalar_prefetch = 0 : i64, scratch_operands = 1 : i64, tpu.core_type = #tpu.core_type<tc>, window_params = [{transform_indices = @transform_0, window_bounds = array<i64: 1, 16, 16, 16>}, {pipeline_mode = #tpu.pipeline_mode<synchronous>, transform_indices = @transform_1, window_bounds = array<i64: 144, 64>}, {pipeline_mode = #tpu.pipeline_mode<synchronous>, transform_indices = @transform_2, window_bounds = array<i64: 1, 64>}, {transform_indices = @transform_3, window_bounds = array<i64: 1, 16, 2, 16, 32>}]} {
    %cst = arith.constant 0.000000e+00 : f32
    %0 = vector.broadcast %cst : f32 to vector<1x18x16xf32>
    %c0 = arith.constant 0 : index
    %c0_0 = arith.constant 0 : index
    %c0_1 = arith.constant 0 : index
    %1 = vector.load %arg5[%c0, %c0_0, %c0_1] : memref<18x18x16xf32, #tpu.memory_space<vmem>>, vector<1x18x16xf32>
    tpu.vector_store %arg5[%c0, %c0_0, %c0_1], %0 {strides = array<i32>} : memref<18x18x16xf32, #tpu.memory_space<vmem>>, vector<1x18x16xf32>,
    %cst_2 = arith.constant 0.000000e+00 : f32
    %2 = vector.broadcast %cst_2 : f32 to vector<1x18x16xf32>
    %c17 = arith.constant 17 : index
    %c0_3 = arith.constant 0 : index
    %c0_4 = arith.constant 0 : index
    %3 = vector.load %arg5[%c17, %c0_3, %c0_4] : memref<18x18x16xf32, #tpu.memory_space<vmem>>, vector<1x18x16xf32>
    tpu.vector_store %arg5[%c17, %c0_3, %c0_4], %2 {strides = array<i32>} : memref<18x18x16xf32, #tpu.memory_space<vmem>>, vector<1x18x16xf32>,
    %cst_5 = arith.constant 0.000000e+00 : f32
    %4 = vector.broadcast %cst_5 : f32 to vector<18x1x16xf32>
    %c0_6 = arith.constant 0 : index
    %c0_7 = arith.constant 0 : index
    %c0_8 = arith.constant 0 : index
    %5 = vector.load %arg5[%c0_6, %c0_7, %c0_8] : memref<18x18x16xf32, #tpu.memory_space<vmem>>, vector<18x1x16xf32>
    tpu.vector_store %arg5[%c0_6, %c0_7, %c0_8], %4 {strides = array<i32>} : memref<18x18x16xf32, #tpu.memory_space<vmem>>, vector<18x1x16xf32>,
    %cst_9 = arith.constant 0.000000e+00 : f32
    %6 = vector.broadcast %cst_9 : f32 to vector<18x1x16xf32>
    %c0_10 = arith.constant 0 : index
    %c17_11 = arith.constant 17 : index
    %c0_12 = arith.constant 0 : index
    %7 = vector.load %arg5[%c0_10, %c17_11, %c0_12] : memref<18x18x16xf32, #tpu.memory_space<vmem>>, vector<18x1x16xf32>
    tpu.vector_store %arg5[%c0_10, %c17_11, %c0_12], %6 {strides = array<i32>} : memref<18x18x16xf32, #tpu.memory_space<vmem>>, vector<18x1x16xf32>,
    %c0_13 = arith.constant 0 : index
    %c0_14 = arith.constant 0 : index
    %c0_15 = arith.constant 0 : index
    %c0_16 = arith.constant 0 : index
    %8 = vector.load %arg1[%c0_13, %c0_14, %c0_15, %c0_16] : memref<1x16x16x16xf32, #tpu.memory_space<vmem>>, vector<1x16x16x16xf32>
    %9 = vector.shape_cast %8 : vector<1x16x16x16xf32> to vector<16x16x16xf32>
    %c1 = arith.constant 1 : index
    %c1_17 = arith.constant 1 : index
    %c0_18 = arith.constant 0 : index
    %10 = vector.load %arg5[%c1, %c1_17, %c0_18] : memref<18x18x16xf32, #tpu.memory_space<vmem>>, vector<16x16x16xf32>
    tpu.vector_store %arg5[%c1, %c1_17, %c0_18], %9 {strides = array<i32>} : memref<18x18x16xf32, #tpu.memory_space<vmem>>, vector<16x16x16xf32>,
    %c0_19 = arith.constant 0 : index
    %c0_20 = arith.constant 0 : index
    %c0_21 = arith.constant 0 : index
    %11 = vector.load %arg5[%c0_19, %c0_20, %c0_21] : memref<18x18x16xf32, #tpu.memory_space<vmem>>, vector<18x18x16xf32>
    %12 = vector.extract_strided_slice %11 {offsets = [0, 0, 0], sizes = [16, 16, 16], strides = [1, 1, 1]} : vector<18x18x16xf32> to vector<16x16x16xf32>
    %13 = vector.extract_strided_slice %11 {offsets = [0, 1, 0], sizes = [16, 16, 16], strides = [1, 1, 1]} : vector<18x18x16xf32> to vector<16x16x16xf32>
    %14 = vector.extract_strided_slice %11 {offsets = [0, 2, 0], sizes = [16, 16, 16], strides = [1, 1, 1]} : vector<18x18x16xf32> to vector<16x16x16xf32>
    %15 = vector.extract_strided_slice %11 {offsets = [1, 0, 0], sizes = [16, 16, 16], strides = [1, 1, 1]} : vector<18x18x16xf32> to vector<16x16x16xf32>
    %16 = vector.extract_strided_slice %11 {offsets = [1, 1, 0], sizes = [16, 16, 16], strides = [1, 1, 1]} : vector<18x18x16xf32> to vector<16x16x16xf32>
    %17 = vector.extract_strided_slice %11 {offsets = [1, 2, 0], sizes = [16, 16, 16], strides = [1, 1, 1]} : vector<18x18x16xf32> to vector<16x16x16xf32>
    %18 = vector.extract_strided_slice %11 {offsets = [2, 0, 0], sizes = [16, 16, 16], strides = [1, 1, 1]} : vector<18x18x16xf32> to vector<16x16x16xf32>
    %19 = vector.extract_strided_slice %11 {offsets = [2, 1, 0], sizes = [16, 16, 16], strides = [1, 1, 1]} : vector<18x18x16xf32> to vector<16x16x16xf32>
    %20 = vector.extract_strided_slice %11 {offsets = [2, 2, 0], sizes = [16, 16, 16], strides = [1, 1, 1]} : vector<18x18x16xf32> to vector<16x16x16xf32>
    %21 = tpu.concatenate %12, %13, %14, %15, %16, %17, %18, %19, %20 in 2 : vector<16x16x16xf32>, vector<16x16x16xf32>, vector<16x16x16xf32>, vector<16x16x16xf32>, vector<16x16x16xf32>, vector<16x16x16xf32>, vector<16x16x16xf32>, vector<16x16x16xf32>, vector<16x16x16xf32> -> vector<16x16x144xf32>
    %22 = vector.shape_cast %21 : vector<16x16x144xf32> to vector<256x144xf32>
    %c0_22 = arith.constant 0 : index
    %c0_23 = arith.constant 0 : index
    %23 = vector.load %arg2[%c0_22, %c0_23] : memref<144x64xf32, #tpu.memory_space<vmem>>, vector<144x64xf32>
    %cst_24 = arith.constant dense<0.000000e+00> : vector<256x64xf32>
    %24 = tpu.matmul %22, %23, %cst_24 {dimension_numbers = #tpu.dot_dimension_numbers<[1], [0], [0], [1], [0, 0, 1, 1], [], []>} : vector<256x144xf32>, vector<144x64xf32>, vector<256x64xf32> -> vector<256x64xf32>
    %c0_25 = arith.constant 0 : index
    %c0_26 = arith.constant 0 : index
    %25 = vector.load %arg3[%c0_25, %c0_26] : memref<1x64xf32, #tpu.memory_space<vmem>>, vector<1x64xf32>
    %26 = vector.broadcast %25 : vector<1x64xf32> to vector<256x64xf32>
    %27 = arith.addf %24, %26 : vector<256x64xf32>
    %cst_27 = arith.constant 0.000000e+00 : f32
    %28 = vector.broadcast %cst_27 : f32 to vector<256x64xf32>
    %29 = arith.maximumf %27, %28 : vector<256x64xf32>
    %30 = vector.extract_strided_slice %29 {offsets = [0, 0], sizes = [256, 32], strides = [1, 1]} : vector<256x64xf32> to vector<256x32xf32>
    %31 = vector.shape_cast %30 : vector<256x32xf32> to vector<16x16x32xf32>
    %c0_28 = arith.constant 0 : index
    %c0_29 = arith.constant 0 : index
    %c0_30 = arith.constant 0 : index
    %c0_31 = arith.constant 0 : index
    %c0_32 = arith.constant 0 : index
    %32 = vector.load %arg4[%c0_28, %c0_29, %c0_30, %c0_31, %c0_32] : memref<1x16x2x16x32xf32, #tpu.memory_space<vmem>>, vector<1x16x1x16x32xf32>
    %33 = vector.shape_cast %32 : vector<1x16x1x16x32xf32> to vector<16x16x32xf32>
    %34 = vector.shape_cast %31 : vector<16x16x32xf32> to vector<1x16x1x16x32xf32>
    tpu.vector_store %arg4[%c0_28, %c0_29, %c0_30, %c0_31, %c0_32], %34 {strides = array<i32>} : memref<1x16x2x16x32xf32, #tpu.memory_space<vmem>>, vector<1x16x1x16x32xf32>,
    %35 = vector.extract_strided_slice %29 {offsets = [0, 32], sizes = [256, 32], strides = [1, 1]} : vector<256x64xf32> to vector<256x32xf32>
    %36 = vector.shape_cast %35 : vector<256x32xf32> to vector<16x16x32xf32>
    %c0_33 = arith.constant 0 : index
    %c0_34 = arith.constant 0 : index
    %c1_35 = arith.constant 1 : index
    %c0_36 = arith.constant 0 : index
    %c0_37 = arith.constant 0 : index
    %37 = vector.load %arg4[%c0_33, %c0_34, %c1_35, %c0_36, %c0_37] : memref<1x16x2x16x32xf32, #tpu.memory_space<vmem>>, vector<1x16x1x16x32xf32>
    %38 = vector.shape_cast %37 : vector<1x16x1x16x32xf32> to vector<16x16x32xf32>
    %39 = vector.shape_cast %36 : vector<16x16x32xf32> to vector<1x16x1x16x32xf32>
    tpu.vector_store %arg4[%c0_33, %c0_34, %c1_35, %c0_36, %c0_37], %39 {strides = array<i32>} : memref<1x16x2x16x32xf32, #tpu.memory_space<vmem>>, vector<1x16x1x16x32xf32>,
    return
  }
  func.func @transform_0(%arg0: i32) -> (i32, i32, i32, i32) {
    %c0_i32 = arith.constant 0 : i32
    %c0_i32_0 = arith.constant 0 : i32
    %c0_i32_1 = arith.constant 0 : i32
    %c0_i32_2 = arith.constant 0 : i32
    return %arg0, %c0_i32, %c0_i32_0, %c0_i32_1 : i32, i32, i32, i32
  }
  func.func @transform_1(%arg0: i32) -> (i32, i32) {
    %c0_i32 = arith.constant 0 : i32
    %c0_i32_0 = arith.constant 0 : i32
    %c0_i32_1 = arith.constant 0 : i32
    return %c0_i32, %c0_i32_0 : i32, i32
  }
  func.func @transform_2(%arg0: i32) -> (i32, i32) {
    %c0_i32 = arith.constant 0 : i32
    %c0_i32_0 = arith.constant 0 : i32
    %c0_i32_1 = arith.constant 0 : i32
    return %c0_i32, %c0_i32_0 : i32, i32
  }
  func.func @transform_3(%arg0: i32) -> (i32, i32, i32, i32, i32) {
    %c0_i32 = arith.constant 0 : i32
    %c0_i32_0 = arith.constant 0 : i32
    %c0_i32_1 = arith.constant 0 : i32
    %c0_i32_2 = arith.constant 0 : i32
    %c0_i32_3 = arith.constant 0 : i32
    return %arg0, %c0_i32, %c0_i32_0, %c0_i32_1, %c0_i32_2 : i32, i32, i32, i32, i32
  }
}

module attributes {stable_mosaic.version = 11 : i64} {
  func.func @_conv_relu_ps_kernel(%arg0: i32, %arg1: memref<1x32x32x16xf32, #tpu.memory_space<vmem>>, %arg2: memref<144x64xf32, #tpu.memory_space<vmem>>, %arg3: memref<1x64xf32, #tpu.memory_space<vmem>>, %arg4: memref<1x32x2x32x32xf32, #tpu.memory_space<vmem>>, %arg5: memref<34x34x16xf32, #tpu.memory_space<vmem>>) attributes {dimension_semantics = [#tpu.dimension_semantics<parallel>], iteration_bounds = array<i64: 2>, scalar_prefetch = 0 : i64, scratch_operands = 1 : i64, tpu.core_type = #tpu.core_type<tc>, window_params = [{transform_indices = @transform_0, window_bounds = array<i64: 1, 32, 32, 16>}, {pipeline_mode = #tpu.pipeline_mode<synchronous>, transform_indices = @transform_1, window_bounds = array<i64: 144, 64>}, {pipeline_mode = #tpu.pipeline_mode<synchronous>, transform_indices = @transform_2, window_bounds = array<i64: 1, 64>}, {transform_indices = @transform_3, window_bounds = array<i64: 1, 32, 2, 32, 32>}]} {
    %cst = arith.constant 0.000000e+00 : f32
    %0 = vector.broadcast %cst : f32 to vector<1x34x16xf32>
    %c0 = arith.constant 0 : index
    %c0_0 = arith.constant 0 : index
    %c0_1 = arith.constant 0 : index
    %1 = vector.load %arg5[%c0, %c0_0, %c0_1] : memref<34x34x16xf32, #tpu.memory_space<vmem>>, vector<1x34x16xf32>
    tpu.vector_store %arg5[%c0, %c0_0, %c0_1], %0 {strides = array<i32>} : memref<34x34x16xf32, #tpu.memory_space<vmem>>, vector<1x34x16xf32>,
    %cst_2 = arith.constant 0.000000e+00 : f32
    %2 = vector.broadcast %cst_2 : f32 to vector<1x34x16xf32>
    %c33 = arith.constant 33 : index
    %c0_3 = arith.constant 0 : index
    %c0_4 = arith.constant 0 : index
    %3 = vector.load %arg5[%c33, %c0_3, %c0_4] : memref<34x34x16xf32, #tpu.memory_space<vmem>>, vector<1x34x16xf32>
    tpu.vector_store %arg5[%c33, %c0_3, %c0_4], %2 {strides = array<i32>} : memref<34x34x16xf32, #tpu.memory_space<vmem>>, vector<1x34x16xf32>,
    %cst_5 = arith.constant 0.000000e+00 : f32
    %4 = vector.broadcast %cst_5 : f32 to vector<34x1x16xf32>
    %c0_6 = arith.constant 0 : index
    %c0_7 = arith.constant 0 : index
    %c0_8 = arith.constant 0 : index
    %5 = vector.load %arg5[%c0_6, %c0_7, %c0_8] : memref<34x34x16xf32, #tpu.memory_space<vmem>>, vector<34x1x16xf32>
    tpu.vector_store %arg5[%c0_6, %c0_7, %c0_8], %4 {strides = array<i32>} : memref<34x34x16xf32, #tpu.memory_space<vmem>>, vector<34x1x16xf32>,
    %cst_9 = arith.constant 0.000000e+00 : f32
    %6 = vector.broadcast %cst_9 : f32 to vector<34x1x16xf32>
    %c0_10 = arith.constant 0 : index
    %c33_11 = arith.constant 33 : index
    %c0_12 = arith.constant 0 : index
    %7 = vector.load %arg5[%c0_10, %c33_11, %c0_12] : memref<34x34x16xf32, #tpu.memory_space<vmem>>, vector<34x1x16xf32>
    tpu.vector_store %arg5[%c0_10, %c33_11, %c0_12], %6 {strides = array<i32>} : memref<34x34x16xf32, #tpu.memory_space<vmem>>, vector<34x1x16xf32>,
    %c0_13 = arith.constant 0 : index
    %c0_14 = arith.constant 0 : index
    %c0_15 = arith.constant 0 : index
    %c0_16 = arith.constant 0 : index
    %8 = vector.load %arg1[%c0_13, %c0_14, %c0_15, %c0_16] : memref<1x32x32x16xf32, #tpu.memory_space<vmem>>, vector<1x32x32x16xf32>
    %9 = vector.shape_cast %8 : vector<1x32x32x16xf32> to vector<32x32x16xf32>
    %c1 = arith.constant 1 : index
    %c1_17 = arith.constant 1 : index
    %c0_18 = arith.constant 0 : index
    %10 = vector.load %arg5[%c1, %c1_17, %c0_18] : memref<34x34x16xf32, #tpu.memory_space<vmem>>, vector<32x32x16xf32>
    tpu.vector_store %arg5[%c1, %c1_17, %c0_18], %9 {strides = array<i32>} : memref<34x34x16xf32, #tpu.memory_space<vmem>>, vector<32x32x16xf32>,
    %c0_19 = arith.constant 0 : index
    %c0_20 = arith.constant 0 : index
    %c0_21 = arith.constant 0 : index
    %11 = vector.load %arg5[%c0_19, %c0_20, %c0_21] : memref<34x34x16xf32, #tpu.memory_space<vmem>>, vector<34x34x16xf32>
    %12 = vector.extract_strided_slice %11 {offsets = [0, 0, 0], sizes = [32, 32, 16], strides = [1, 1, 1]} : vector<34x34x16xf32> to vector<32x32x16xf32>
    %13 = vector.extract_strided_slice %11 {offsets = [0, 1, 0], sizes = [32, 32, 16], strides = [1, 1, 1]} : vector<34x34x16xf32> to vector<32x32x16xf32>
    %14 = vector.extract_strided_slice %11 {offsets = [0, 2, 0], sizes = [32, 32, 16], strides = [1, 1, 1]} : vector<34x34x16xf32> to vector<32x32x16xf32>
    %15 = vector.extract_strided_slice %11 {offsets = [1, 0, 0], sizes = [32, 32, 16], strides = [1, 1, 1]} : vector<34x34x16xf32> to vector<32x32x16xf32>
    %16 = vector.extract_strided_slice %11 {offsets = [1, 1, 0], sizes = [32, 32, 16], strides = [1, 1, 1]} : vector<34x34x16xf32> to vector<32x32x16xf32>
    %17 = vector.extract_strided_slice %11 {offsets = [1, 2, 0], sizes = [32, 32, 16], strides = [1, 1, 1]} : vector<34x34x16xf32> to vector<32x32x16xf32>
    %18 = vector.extract_strided_slice %11 {offsets = [2, 0, 0], sizes = [32, 32, 16], strides = [1, 1, 1]} : vector<34x34x16xf32> to vector<32x32x16xf32>
    %19 = vector.extract_strided_slice %11 {offsets = [2, 1, 0], sizes = [32, 32, 16], strides = [1, 1, 1]} : vector<34x34x16xf32> to vector<32x32x16xf32>
    %20 = vector.extract_strided_slice %11 {offsets = [2, 2, 0], sizes = [32, 32, 16], strides = [1, 1, 1]} : vector<34x34x16xf32> to vector<32x32x16xf32>
    %21 = tpu.concatenate %12, %13, %14, %15, %16, %17, %18, %19, %20 in 2 : vector<32x32x16xf32>, vector<32x32x16xf32>, vector<32x32x16xf32>, vector<32x32x16xf32>, vector<32x32x16xf32>, vector<32x32x16xf32>, vector<32x32x16xf32>, vector<32x32x16xf32>, vector<32x32x16xf32> -> vector<32x32x144xf32>
    %22 = vector.shape_cast %21 : vector<32x32x144xf32> to vector<1024x144xf32>
    %c0_22 = arith.constant 0 : index
    %c0_23 = arith.constant 0 : index
    %23 = vector.load %arg2[%c0_22, %c0_23] : memref<144x64xf32, #tpu.memory_space<vmem>>, vector<144x64xf32>
    %cst_24 = arith.constant dense<0.000000e+00> : vector<1024x64xf32>
    %24 = tpu.matmul %22, %23, %cst_24 {dimension_numbers = #tpu.dot_dimension_numbers<[1], [0], [0], [1], [0, 0, 1, 1], [], []>} : vector<1024x144xf32>, vector<144x64xf32>, vector<1024x64xf32> -> vector<1024x64xf32>
    %c0_25 = arith.constant 0 : index
    %c0_26 = arith.constant 0 : index
    %25 = vector.load %arg3[%c0_25, %c0_26] : memref<1x64xf32, #tpu.memory_space<vmem>>, vector<1x64xf32>
    %26 = vector.broadcast %25 : vector<1x64xf32> to vector<1024x64xf32>
    %27 = arith.addf %24, %26 : vector<1024x64xf32>
    %cst_27 = arith.constant 0.000000e+00 : f32
    %28 = vector.broadcast %cst_27 : f32 to vector<1024x64xf32>
    %29 = arith.maximumf %27, %28 : vector<1024x64xf32>
    %30 = vector.extract_strided_slice %29 {offsets = [0, 0], sizes = [1024, 32], strides = [1, 1]} : vector<1024x64xf32> to vector<1024x32xf32>
    %31 = vector.shape_cast %30 : vector<1024x32xf32> to vector<32x32x32xf32>
    %c0_28 = arith.constant 0 : index
    %c0_29 = arith.constant 0 : index
    %c0_30 = arith.constant 0 : index
    %c0_31 = arith.constant 0 : index
    %c0_32 = arith.constant 0 : index
    %32 = vector.load %arg4[%c0_28, %c0_29, %c0_30, %c0_31, %c0_32] : memref<1x32x2x32x32xf32, #tpu.memory_space<vmem>>, vector<1x32x1x32x32xf32>
    %33 = vector.shape_cast %32 : vector<1x32x1x32x32xf32> to vector<32x32x32xf32>
    %34 = vector.shape_cast %31 : vector<32x32x32xf32> to vector<1x32x1x32x32xf32>
    tpu.vector_store %arg4[%c0_28, %c0_29, %c0_30, %c0_31, %c0_32], %34 {strides = array<i32>} : memref<1x32x2x32x32xf32, #tpu.memory_space<vmem>>, vector<1x32x1x32x32xf32>,
    %35 = vector.extract_strided_slice %29 {offsets = [0, 32], sizes = [1024, 32], strides = [1, 1]} : vector<1024x64xf32> to vector<1024x32xf32>
    %36 = vector.shape_cast %35 : vector<1024x32xf32> to vector<32x32x32xf32>
    %c0_33 = arith.constant 0 : index
    %c0_34 = arith.constant 0 : index
    %c1_35 = arith.constant 1 : index
    %c0_36 = arith.constant 0 : index
    %c0_37 = arith.constant 0 : index
    %37 = vector.load %arg4[%c0_33, %c0_34, %c1_35, %c0_36, %c0_37] : memref<1x32x2x32x32xf32, #tpu.memory_space<vmem>>, vector<1x32x1x32x32xf32>
    %38 = vector.shape_cast %37 : vector<1x32x1x32x32xf32> to vector<32x32x32xf32>
    %39 = vector.shape_cast %36 : vector<32x32x32xf32> to vector<1x32x1x32x32xf32>
    tpu.vector_store %arg4[%c0_33, %c0_34, %c1_35, %c0_36, %c0_37], %39 {strides = array<i32>} : memref<1x32x2x32x32xf32, #tpu.memory_space<vmem>>, vector<1x32x1x32x32xf32>,
    return
  }
  func.func @transform_0(%arg0: i32) -> (i32, i32, i32, i32) {
    %c0_i32 = arith.constant 0 : i32
    %c0_i32_0 = arith.constant 0 : i32
    %c0_i32_1 = arith.constant 0 : i32
    %c0_i32_2 = arith.constant 0 : i32
    return %arg0, %c0_i32, %c0_i32_0, %c0_i32_1 : i32, i32, i32, i32
  }
  func.func @transform_1(%arg0: i32) -> (i32, i32) {
    %c0_i32 = arith.constant 0 : i32
    %c0_i32_0 = arith.constant 0 : i32
    %c0_i32_1 = arith.constant 0 : i32
    return %c0_i32, %c0_i32_0 : i32, i32
  }
  func.func @transform_2(%arg0: i32) -> (i32, i32) {
    %c0_i32 = arith.constant 0 : i32
    %c0_i32_0 = arith.constant 0 : i32
    %c0_i32_1 = arith.constant 0 : i32
    return %c0_i32, %c0_i32_0 : i32, i32
  }
  func.func @transform_3(%arg0: i32) -> (i32, i32, i32, i32, i32) {
    %c0_i32 = arith.constant 0 : i32
    %c0_i32_0 = arith.constant 0 : i32
    %c0_i32_1 = arith.constant 0 : i32
    %c0_i32_2 = arith.constant 0 : i32
    %c0_i32_3 = arith.constant 0 : i32
    return %arg0, %c0_i32, %c0_i32_0, %c0_i32_1, %c0_i32_2 : i32, i32, i32, i32, i32
  }
}

</mosaic_0001>

<llo_original>
// kernel: upsample_block.2
$region0: #{upsample_block.2}
  #allocation0 [shape = 'u32[]', space=smem, size = 0x4, offset = 0x4, fixed_abs, tag = 'smem constant byte address 0x4 - core index']
  #allocation1 [shape = 'u32[72,128]{1,0:T(1,128)}', space=vmem, size = 0x9000, scoped, tag = 'internal scratch']
  #allocation2 [shape = 'f32[18,18,16]{2,1,0:T(8,128)}', space=vmem, size = 0x36000, scoped, tag = 'scratch operand']
  %s0 = inlined_call_operand.vmem [shape: f32[2,16,16,16], index: 0, kind: input, shape index: {}]
  %s1 = inlined_call_operand.vmem [shape: f32[144,64], index: 1, kind: input, shape index: {}]
  %s2 = inlined_call_operand.vmem [shape: f32[1,64], index: 2, kind: input, shape index: {}]
  %s3 = inlined_call_operand.vmem [shape: f32[2,16,2,16,32], index: 3, kind: output, shape index: {}]
  %s4 = sld [smem:[#allocation0]]
  $region45: #{upsample_block.2} parent=0
    _
  %s6 = ssub.s32 1, %s4
  %s7 = scalar_select 0, %s6, %s4
  loop: start=0, step=1, limit=4
  $region2: #{upsample_block.2} parent=0 // loop_pre_header
    _
  $region3: #{upsample_block.2} parent=0 // loop_header
    %s9 = sphi 0, %s13
    %p10 = scmp.ge.s32.totalorder %s9, 4
    %s19 = sphi 0, %s21
    %s22 = sphi 0, %s19
    %s23 = sphi 0, %s22
    %s39 = sphi 0, %s23
    %s43 = sphi 0, %s43
    %s45 = sphi 0, %s43
    %s46 = sphi 0, %s45
    %s60 = sphi 0, %s46
    %s64 = sphi 0, %s64
    %s66 = sphi 0, %s64
    %s67 = sphi 0, %s66
    %s81 = sphi 0, %s67
    %s87 = sphi 0, %s89
    %s90 = sphi 0, %s87
    %s91 = sphi 0, %s90
    %s107 = sphi 0, %s91
  $region4: #{upsample_block.2} parent=0 // loop_header_branch
    %12 = sbr.rel (%p10) target = $region8
  $region5: #{upsample_block.2} parent=0 // loop_body
    %s14 = ssub.s32 %s9, 1
    %s15 = ssub.s32 %s9, 2
    %s16 = sadd.s32 %s9, 1
    %s17 = ssub.s32 %s9, %s16
    %p18 = scmp.eq.s32.totalorder %s17, 0
    %s20 = sadd.s32 %s19, 1
    %s21 = scalar_select %p18, %s19, %s20
    %p24 = pneg %p18
    %p25 = scmp.eq.s32.totalorder %s9, 1
    %p26 = por %p24, %p25
    %p27 = scmp.ne.s32.totalorder %s19, %s22
    %p28 = scmp.eq.s32.totalorder %s9, 0
    %p29 = por %p27, %p28
    %p30 = scmp.ne.s32.totalorder %s19, %s22
    %p31 = scmp.eq.s32.totalorder %s14, 1
    %p32 = por %p30, %p31
    %p33 = scmp.ne.s32.totalorder %s22, %s23
    %p34 = scmp.eq.s32.totalorder %s14, 0
    %p35 = por %p33, %p34
    %p36 = scmp.ne.s32.totalorder %s22, %s23
    %p37 = scmp.eq.s32.totalorder %s15, 1
    %p38 = por %p36, %p37
    %p40 = scmp.ne.s32.totalorder %s23, %s39
    %p41 = scmp.eq.s32.totalorder %s15, 0
    %p42 = por %p40, %p41
    %s44 = sadd.s32 %s43, 1
    %p47 = scmp.eq.s32.totalorder %s9, 1
    %p48 = scmp.ne.s32.totalorder %s43, %s45
    %p49 = scmp.eq.s32.totalorder %s9, 0
    %p50 = por %p48, %p49
    %p51 = scmp.ne.s32.totalorder %s43, %s45
    %p52 = scmp.eq.s32.totalorder %s14, 1
    %p53 = por %p51, %p52
    %p54 = scmp.ne.s32.totalorder %s45, %s46
    %p55 = scmp.eq.s32.totalorder %s14, 0
    %p56 = por %p54, %p55
    %p57 = scmp.ne.s32.totalorder %s45, %s46
    %p58 = scmp.eq.s32.totalorder %s15, 1
    %p59 = por %p57, %p58
    %p61 = scmp.ne.s32.totalorder %s46, %s60
    %p62 = scmp.eq.s32.totalorder %s15, 0
    %p63 = por %p61, %p62
    %s65 = sadd.s32 %s64, 1
    %p68 = scmp.eq.s32.totalorder %s9, 1
    %p69 = scmp.ne.s32.totalorder %s64, %s66
    %p70 = scmp.eq.s32.totalorder %s9, 0
    %p71 = por %p69, %p70
    %p72 = scmp.ne.s32.totalorder %s64, %s66
    %p73 = scmp.eq.s32.totalorder %s14, 1
    %p74 = por %p72, %p73
    %p75 = scmp.ne.s32.totalorder %s66, %s67
    %p76 = scmp.eq.s32.totalorder %s14, 0
    %p77 = por %p75, %p76
    %p78 = scmp.ne.s32.totalorder %s66, %s67
    %p79 = scmp.eq.s32.totalorder %s15, 1
    %p80 = por %p78, %p79
    %p82 = scmp.ne.s32.totalorder %s67, %s81
    %p83 = scmp.eq.s32.totalorder %s15, 0
    %p84 = por %p82, %p83
    %s85 = ssub.s32 %s9, %s16
    %p86 = scmp.eq.s32.totalorder %s85, 0
    %s88 = sadd.s32 %s87, 1
    %s89 = scalar_select %p86, %s87, %s88
    %p92 = pneg %p86
    %p93 = scmp.eq.s32.totalorder %s9, 1
    %p94 = por %p92, %p93
    %p95 = scmp.ne.s32.totalorder %s87, %s90
    %p96 = scmp.eq.s32.totalorder %s9, 0
    %p97 = por %p95, %p96
    %p98 = scmp.ne.s32.totalorder %s87, %s90
    %p99 = scmp.eq.s32.totalorder %s14, 1
    %p100 = por %p98, %p99
    %p101 = scmp.ne.s32.totalorder %s90, %s91
    %p102 = scmp.eq.s32.totalorder %s14, 0
    %p103 = por %p101, %p102
    %p104 = scmp.ne.s32.totalorder %s90, %s91
    %p105 = scmp.eq.s32.totalorder %s15, 1
    %p106 = por %p104, %p105
    %p108 = scmp.ne.s32.totalorder %s91, %s107
    %p109 = scmp.eq.s32.totalorder %s15, 0
    %p110 = por %p108, %p109
    %p111 = scmp.le.s32.totalorder 1, %s9
    %p112 = scmp.lt.s32.totalorder %s9, 3
    %p113 = pnand %p111, %p112
    %p114 = pneg %p113
    // Predicated region
    $region9: #{upsample_block.2} parent=5 // pred_check
      _
    $region10: #{upsample_block.2} parent=5 // pred_check_branch
      %116 = sbr.rel (%p113) target = $region12
    $region11: #{upsample_block.2} parent=5 // pred_region
      %s117 = ssub.s32 %s9, 1
      // Predicated region
      $region13: #{upsample_block.2} parent=11 // pred_check
        %p118 = pneg %p56
      $region14: #{upsample_block.2} parent=11 // pred_check_branch
        %120 = sbr.rel (%p118) target = $region16
      $region15: #{upsample_block.2} parent=11 // pred_region
        _
      $region16: #{upsample_block.2} parent=11 // pred_fallthru
        _
      // Predicated region
      $region17: #{upsample_block.2} parent=11 // pred_check
        %p121 = pneg %p77
      $region18: #{upsample_block.2} parent=11 // pred_check_branch
        %123 = sbr.rel (%p121) target = $region20
      $region19: #{upsample_block.2} parent=11 // pred_region
        _
      $region20: #{upsample_block.2} parent=11 // pred_fallthru
        _
    $region12: #{upsample_block.2} parent=5 // pred_fallthru
      _
    %p124 = scmp.lt.s32.totalorder %s9, 2
    // Predicated region
    $region21: #{upsample_block.2} parent=5 // pred_check
      %p125 = pneg %p124
    $region22: #{upsample_block.2} parent=5 // pred_check_branch
      %127 = sbr.rel (%p125) target = $region24
    $region23: #{upsample_block.2} parent=5 // pred_region
      // Predicated region
      $region25: #{upsample_block.2} parent=23 // pred_check
        %p128 = pneg %p29
      $region26: #{upsample_block.2} parent=23 // pred_check_branch
        %130 = sbr.rel (%p128) target = $region28
      $region27: #{upsample_block.2} parent=23 // pred_region
        %p131 = scmp.lt.s32.totalorder %s9, 1
        %s132 = scalar_select %p131, %s9, 1
        %s133 = smul.addr %s132, 32
        %s134 = smul.addr %s133, 8
        %s135 = scalar_lea.vmem %s0, %s134
      $region28: #{upsample_block.2} parent=23 // pred_fallthru
        _
    $region24: #{upsample_block.2} parent=5 // pred_fallthru
      _
    %p136 = scmp.le.s32.totalorder 1, %s9
    %p137 = scmp.lt.s32.totalorder %s9, 3
    %p138 = pnand %p136, %p137
    %p139 = pneg %p138
    // Predicated region
    $region29: #{upsample_block.2} parent=5 // pred_check
      _
    $region30: #{upsample_block.2} parent=5 // pred_check_branch
      %141 = sbr.rel (%p138) target = $region32
    $region31: #{upsample_block.2} parent=5 // pred_region
      %s142 = ssub.s32 %s9, 1
      %p143 = scmp.lt.s32.totalorder %s14, 1
      %s144 = scalar_select %p143, %s14, 1
      %s145 = smul.addr %s144, 32
      %s146 = smul.addr %s145, 8
      %s147 = scalar_lea.vmem %s0, %s146
      %p148 = pneg %p35
      %p149 = pneg %p32
      %p150 = pneg %p56
      %p151 = pneg %p53
      %p152 = pneg %p77
      %p153 = pneg %p74
      %p154 = pneg %p103
      %p155 = pneg %p100
      %p156 = scmp.lt.s32.totalorder %s14, 1
      %s157 = scalar_select %p156, %s14, 1
      %s158 = smul.addr %s157, 64
      %s159 = smul.addr %s158, 8
      %s160 = scalar_lea.vmem %s3, %s159
      %p161 = scmp.lt.s32.totalorder %s14, 1
      %s162 = scalar_select %p161, %s14, 1
      %s163 = smul.addr %s162, 32
      %s164 = smul.addr %s163, 8
      %s165 = scalar_lea.vmem %s0, %s164
      %p166 = scmp.lt.s32.totalorder %s14, 1
      %s167 = scalar_select %p166, %s14, 1
      %s168 = smul.addr %s167, 64
      %s169 = smul.addr %s168, 8
      %s170 = scalar_lea.vmem %s3, %s169
      %vm171 = vcmask 130048
      %172 = vst.msk [vmem:[#allocation2] sm:$0xff] %vm171, 0.0
      %173 = vst.msk [vmem:[#allocation2 + $0x8] sm:$0xff] %vm171, 0.0
      %vm174 = vcmask 123904
      %175 = vst.msk [vmem:[#allocation2 + $0x10] sm:$0x3] %vm174, 0.0
      %s176 = scalar_lea.vmem [#allocation2], 408
      %177 = vst.msk [vmem:[%s176] sm:$0xff] %vm171, 0.0
      %178 = vst.msk [vmem:[%s176 + $0x8] sm:$0xff] %vm171, 0.0
      %179 = vst.msk [vmem:[%s176 + $0x10] sm:$0x3] %vm174, 0.0
      %vm180 = vcmask 122880
      %181 = vst.msk [vmem:[#allocation2] sm:$0x1] %vm180, 0.0
      %182 = vst.msk [vmem:[#allocation2 + $0x18] sm:$0x1] %vm180, 0.0
      %183 = vst.msk [vmem:[#allocation2 + $0x30] sm:$0x1] %vm180, 0.0
      %184 = vst.msk [vmem:[#allocation2 + $0x48] sm:$0x1] %vm180, 0.0
      %185 = vst.msk [vmem:[#allocation2 + $0x60] sm:$0x1] %vm180, 0.0
      %186 = vst.msk [vmem:[#allocation2 + $0x78] sm:$0x1] %vm180, 0.0
      %187 = vst.msk [vmem:[#allocation2 + $0x90] sm:$0x1] %vm180, 0.0
      %188 = vst.msk [vmem:[#allocation2 + $0xa8] sm:$0x1] %vm180, 0.0
      %189 = vst.msk [vmem:[#allocation2 + $0xc0] sm:$0x1] %vm180, 0.0
      %190 = vst.msk [vmem:[#allocation2 + $0xd8] sm:$0x1] %vm180, 0.0
      %191 = vst.msk [vmem:[#allocation2 + $0xf0] sm:$0x1] %vm180, 0.0
      %192 = vst.msk [vmem:[#allocation2 + $0x108] sm:$0x1] %vm180, 0.0
      %193 = vst.msk [vmem:[#allocation2 + $0x120] sm:$0x1] %vm180, 0.0
      %194 = vst.msk [vmem:[#allocation2 + $0x138] sm:$0x1] %vm180, 0.0
      %195 = vst.msk [vmem:[#allocation2 + $0x150] sm:$0x1] %vm180, 0.0
      %196 = vst.msk [vmem:[#allocation2 + $0x168] sm:$0x1] %vm180, 0.0
      %197 = vst.msk [vmem:[#allocation2 + $0x180] sm:$0x1] %vm180, 0.0
      %198 = vst.msk [vmem:[#allocation2 + $0x198] sm:$0x1] %vm180, 0.0
      %199 = vst.msk [vmem:[#allocation2 + $0x11] sm:$0x1] %vm180, 0.0
      %200 = vst.msk [vmem:[#allocation2 + $0x29] sm:$0x1] %vm180, 0.0
      %201 = vst.msk [vmem:[#allocation2 + $0x41] sm:$0x1] %vm180, 0.0
      %202 = vst.msk [vmem:[#allocation2 + $0x59] sm:$0x1] %vm180, 0.0
      %203 = vst.msk [vmem:[#allocation2 + $0x71] sm:$0x1] %vm180, 0.0
      %204 = vst.msk [vmem:[#allocation2 + $0x89] sm:$0x1] %vm180, 0.0
      %205 = vst.msk [vmem:[#allocation2 + $0xa1] sm:$0x1] %vm180, 0.0
      %206 = vst.msk [vmem:[#allocation2 + $0xb9] sm:$0x1] %vm180, 0.0
      %207 = vst.msk [vmem:[#allocation2 + $0xd1] sm:$0x1] %vm180, 0.0
      %208 = vst.msk [vmem:[#allocation2 + $0xe9] sm:$0x1] %vm180, 0.0
      %209 = vst.msk [vmem:[#allocation2 + $0x101] sm:$0x1] %vm180, 0.0
      %210 = vst.msk [vmem:[#allocation2 + $0x119] sm:$0x1] %vm180, 0.0
      %211 = vst.msk [vmem:[#allocation2 + $0x131] sm:$0x1] %vm180, 0.0
      %212 = vst.msk [vmem:[#allocation2 + $0x149] sm:$0x1] %vm180, 0.0
      %213 = vst.msk [vmem:[#allocation2 + $0x161] sm:$0x1] %vm180, 0.0
      %214 = vst.msk [vmem:[#allocation2 + $0x179] sm:$0x1] %vm180, 0.0
      %215 = vst.msk [vmem:[#allocation2 + $0x191] sm:$0x1] %vm180, 0.0
      %216 = vst.msk [vmem:[#allocation2 + $0x1a9] sm:$0x1] %vm180, 0.0
      %v217 = vld [vmem:[%s165] sm:$0xff]
      %v218 = vld [vmem:[%s165 + $0x8] sm:$0xff]
      %v219 = vld [vmem:[%s165 + $0x10] sm:$0xff]
      %v220 = vld [vmem:[%s165 + $0x18] sm:$0xff]
      %v221 = vld [vmem:[%s165 + $0x20] sm:$0xff]
      %v222 = vld [vmem:[%s165 + $0x28] sm:$0xff]
      %v223 = vld [vmem:[%s165 + $0x30] sm:$0xff]
      %v224 = vld [vmem:[%s165 + $0x38] sm:$0xff]
      %v225 = vld [vmem:[%s165 + $0x40] sm:$0xff]
      %v226 = vld [vmem:[%s165 + $0x48] sm:$0xff]
      %v227 = vld [vmem:[%s165 + $0x50] sm:$0xff]
      %v228 = vld [vmem:[%s165 + $0x58] sm:$0xff]
      %v229 = vld [vmem:[%s165 + $0x60] sm:$0xff]
      %v230 = vld [vmem:[%s165 + $0x68] sm:$0xff]
      %v231 = vld [vmem:[%s165 + $0x70] sm:$0xff]
      %v232 = vld [vmem:[%s165 + $0x78] sm:$0xff]
      %v233 = vld [vmem:[%s165 + $0x80] sm:$0xff]
      %v234 = vld [vmem:[%s165 + $0x88] sm:$0xff]
      %v235 = vld [vmem:[%s165 + $0x90] sm:$0xff]
      %v236 = vld [vmem:[%s165 + $0x98] sm:$0xff]
      %v237 = vld [vmem:[%s165 + $0xa0] sm:$0xff]
      %v238 = vld [vmem:[%s165 + $0xa8] sm:$0xff]
      %v239 = vld [vmem:[%s165 + $0xb0] sm:$0xff]
      %v240 = vld [vmem:[%s165 + $0xb8] sm:$0xff]
      %v241 = vld [vmem:[%s165 + $0xc0] sm:$0xff]
      %v242 = vld [vmem:[%s165 + $0xc8] sm:$0xff]
      %v243 = vld [vmem:[%s165 + $0xd0] sm:$0xff]
      %v244 = vld [vmem:[%s165 + $0xd8] sm:$0xff]
      %v245 = vld [vmem:[%s165 + $0xe0] sm:$0xff]
      %v246 = vld [vmem:[%s165 + $0xe8] sm:$0xff]
      %v247 = vld [vmem:[%s165 + $0xf0] sm:$0xff]
      %v248 = vld [vmem:[%s165 + $0xf8] sm:$0xff]
      %s249 = scalar_lea.vmem [#allocation2], 24
      %250 = vst.msk [vmem:[%s249 + $0x1] sm:$0xff] %vm171, %v217
      %251 = vst.msk [vmem:[%s249 + $0x9] sm:$0xff] %vm171, %v218
      %252 = vst.msk [vmem:[%s249 + $0x19] sm:$0xff] %vm171, %v219
      %253 = vst.msk [vmem:[%s249 + $0x21] sm:$0xff] %vm171, %v220
      %254 = vst.msk [vmem:[%s249 + $0x31] sm:$0xff] %vm171, %v221
      %255 = vst.msk [vmem:[%s249 + $0x39] sm:$0xff] %vm171, %v222
      %256 = vst.msk [vmem:[%s249 + $0x49] sm:$0xff] %vm171, %v223
      %257 = vst.msk [vmem:[%s249 + $0x51] sm:$0xff] %vm171, %v224
      %258 = vst.msk [vmem:[%s249 + $0x61] sm:$0xff] %vm171, %v225
      %259 = vst.msk [vmem:[%s249 + $0x69] sm:$0xff] %vm171, %v226
      %260 = vst.msk [vmem:[%s249 + $0x79] sm:$0xff] %vm171, %v227
      %261 = vst.msk [vmem:[%s249 + $0x81] sm:$0xff] %vm171, %v228
      %262 = vst.msk [vmem:[%s249 + $0x91] sm:$0xff] %vm171, %v229
      %263 = vst.msk [vmem:[%s249 + $0x99] sm:$0xff] %vm171, %v230
      %264 = vst.msk [vmem:[%s249 + $0xa9] sm:$0xff] %vm171, %v231
      %265 = vst.msk [vmem:[%s249 + $0xb1] sm:$0xff] %vm171, %v232
      %266 = vst.msk [vmem:[%s249 + $0xc1] sm:$0xff] %vm171, %v233
      %267 = vst.msk [vmem:[%s249 + $0xc9] sm:$0xff] %vm171, %v234
      %268 = vst.msk [vmem:[%s249 + $0xd9] sm:$0xff] %vm171, %v235
      %269 = vst.msk [vmem:[%s249 + $0xe1] sm:$0xff] %vm171, %v236
      %270 = vst.msk [vmem:[%s249 + $0xf1] sm:$0xff] %vm171, %v237
      %271 = vst.msk [vmem:[%s249 + $0xf9] sm:$0xff] %vm171, %v238
      %272 = vst.msk [vmem:[%s249 + $0x109] sm:$0xff] %vm171, %v239
      %273 = vst.msk [vmem:[%s249 + $0x111] sm:$0xff] %vm171, %v240
      %274 = vst.msk [vmem:[%s249 + $0x121] sm:$0xff] %vm171, %v241
      %275 = vst.msk [vmem:[%s249 + $0x129] sm:$0xff] %vm171, %v242
      %276 = vst.msk [vmem:[%s249 + $0x139] sm:$0xff] %vm171, %v243
      %277 = vst.msk [vmem:[%s249 + $0x141] sm:$0xff] %vm171, %v244
      %278 = vst.msk [vmem:[%s249 + $0x151] sm:$0xff] %vm171, %v245
      %279 = vst.msk [vmem:[%s249 + $0x159] sm:$0xff] %vm171, %v246
      %280 = vst.msk [vmem:[%s249 + $0x169] sm:$0xff] %vm171, %v247
      %281 = vst.msk [vmem:[%s249 + $0x171] sm:$0xff] %vm171, %v248
      %v282 = vld [vmem:[#allocation2] sm:$0xff]
      %v283 = vld [vmem:[#allocation2 + $0x8] sm:$0xff]
      %v284 = vld [vmem:[#allocation2 + $0x10] sm:$0x3]
      %v285 = vld [vmem:[#allocation2 + $0x18] sm:$0xff]
      %v286 = vld [vmem:[#allocation2 + $0x20] sm:$0xff]
      %v287 = vld [vmem:[#allocation2 + $0x28] sm:$0x3]
      %v288 = vld [vmem:[#allocation2 + $0x30] sm:$0xff]
      %v289 = vld [vmem:[#allocation2 + $0x38] sm:$0xff]
      %v290 = vld [vmem:[#allocation2 + $0x40] sm:$0x3]
      %v291 = vld [vmem:[#allocation2 + $0x48] sm:$0xff]
      %v292 = vld [vmem:[#allocation2 + $0x50] sm:$0xff]
      %v293 = vld [vmem:[#allocation2 + $0x58] sm:$0x3]
      %v294 = vld [vmem:[#allocation2 + $0x60] sm:$0xff]
      %v295 = vld [vmem:[#allocation2 + $0x68] sm:$0xff]
      %v296 = vld [vmem:[#allocation2 + $0x70] sm:$0x3]
      %v297 = vld [vmem:[#allocation2 + $0x78] sm:$0xff]
      %v298 = vld [vmem:[#allocation2 + $0x80] sm:$0xff]
      %v299 = vld [vmem:[#allocation2 + $0x88] sm:$0x3]
      %v300 = vld [vmem:[#allocation2 + $0x90] sm:$0xff]
      %v301 = vld [vmem:[#allocation2 + $0x98] sm:$0xff]
      %v302 = vld [vmem:[#allocation2 + $0xa0] sm:$0x3]
      %v303 = vld [vmem:[#allocation2 + $0xa8] sm:$0xff]
      %v304 = vld [vmem:[#allocation2 + $0xb0] sm:$0xff]
      %v305 = vld [vmem:[#allocation2 + $0xb8] sm:$0x3]
      %v306 = vld [vmem:[#allocation2 + $0xc0] sm:$0xff]
      %v307 = vld [vmem:[#allocation2 + $0xc8] sm:$0xff]
      %v308 = vld [vmem:[#allocation2 + $0xd0] sm:$0x3]
      %v309 = vld [vmem:[#allocation2 + $0xd8] sm:$0xff]
      %v310 = vld [vmem:[#allocation2 + $0xe0] sm:$0xff]
      %v311 = vld [vmem:[#allocation2 + $0xe8] sm:$0x3]
      %v312 = vld [vmem:[#allocation2 + $0xf0] sm:$0xff]
      %v313 = vld [vmem:[#allocation2 + $0xf8] sm:$0xff]
      %v314 = vld [vmem:[#allocation2 + $0x100] sm:$0x3]
      %v315 = vld [vmem:[#allocation2 + $0x108] sm:$0xff]
      %v316 = vld [vmem:[#allocation2 + $0x110] sm:$0xff]
      %v317 = vld [vmem:[#allocation2 + $0x118] sm:$0x3]
      %v318 = vld [vmem:[#allocation2 + $0x120] sm:$0xff]
      %v319 = vld [vmem:[#allocation2 + $0x128] sm:$0xff]
      %v320 = vld [vmem:[#allocation2 + $0x130] sm:$0x3]
      %v321 = vld [vmem:[#allocation2 + $0x138] sm:$0xff]
      %v322 = vld [vmem:[#allocation2 + $0x140] sm:$0xff]
      %v323 = vld [vmem:[#allocation2 + $0x148] sm:$0x3]
      %v324 = vld [vmem:[#allocation2 + $0x150] sm:$0xff]
      %v325 = vld [vmem:[#allocation2 + $0x158] sm:$0xff]
      %v326 = vld [vmem:[#allocation2 + $0x160] sm:$0x3]
      %v327 = vld [vmem:[#allocation2 + $0x168] sm:$0xff]
      %v328 = vld [vmem:[#allocation2 + $0x170] sm:$0xff]
      %v329 = vld [vmem:[#allocation2 + $0x178] sm:$0x3]
      %v330 = vld [vmem:[#allocation2 + $0x180] sm:$0xff]
      %v331 = vld [vmem:[#allocation2 + $0x188] sm:$0xff]
      %v332 = vld [vmem:[#allocation2 + $0x190] sm:$0x3]
      %v333 = vld [vmem:[#allocation2 + $0x198] sm:$0xff]
      %v334 = vld [vmem:[#allocation2 + $0x1a0] sm:$0xff]
      %v335 = vld [vmem:[#allocation2 + $0x1a8] sm:$0x3]
      %vm384 = vcmask 1046528
      %v385 = vrot.slane %v282, 1
      %v386 = vrot.slane %v283, 1
      %v387 = vsel %vm384, %v385, %v386
      %v388 = vrot.slane %v284, 1
      %v389 = vsel %vm384, %v386, %v388
      %v390 = vrot.slane %v285, 1
      %v391 = vrot.slane %v286, 1
      %v392 = vsel %vm384, %v390, %v391
      %v393 = vrot.slane %v287, 1
      %v394 = vsel %vm384, %v391, %v393
      %v395 = vrot.slane %v288, 1
      %v396 = vrot.slane %v289, 1
      %v397 = vsel %vm384, %v395, %v396
      %v398 = vrot.slane %v290, 1
      %v399 = vsel %vm384, %v396, %v398
      %v400 = vrot.slane %v291, 1
      %v401 = vrot.slane %v292, 1
      %v402 = vsel %vm384, %v400, %v401
      %v403 = vrot.slane %v293, 1
      %v404 = vsel %vm384, %v401, %v403
      %v405 = vrot.slane %v294, 1
      %v406 = vrot.slane %v295, 1
      %v407 = vsel %vm384, %v405, %v406
      %v408 = vrot.slane %v296, 1
      %v409 = vsel %vm384, %v406, %v408
      %v410 = vrot.slane %v297, 1
      %v411 = vrot.slane %v298, 1
      %v412 = vsel %vm384, %v410, %v411
      %v413 = vrot.slane %v299, 1
      %v414 = vsel %vm384, %v411, %v413
      %v415 = vrot.slane %v300, 1
      %v416 = vrot.slane %v301, 1
      %v417 = vsel %vm384, %v415, %v416
      %v418 = vrot.slane %v302, 1
      %v419 = vsel %vm384, %v416, %v418
      %v420 = vrot.slane %v303, 1
      %v421 = vrot.slane %v304, 1
      %v422 = vsel %vm384, %v420, %v421
      %v423 = vrot.slane %v305, 1
      %v424 = vsel %vm384, %v421, %v423
      %v425 = vrot.slane %v306, 1
      %v426 = vrot.slane %v307, 1
      %v427 = vsel %vm384, %v425, %v426
      %v428 = vrot.slane %v308, 1
      %v429 = vsel %vm384, %v426, %v428
      %v430 = vrot.slane %v309, 1
      %v431 = vrot.slane %v310, 1
      %v432 = vsel %vm384, %v430, %v431
      %v433 = vrot.slane %v311, 1
      %v434 = vsel %vm384, %v431, %v433
      %v435 = vrot.slane %v312, 1
      %v436 = vrot.slane %v313, 1
      %v437 = vsel %vm384, %v435, %v436
      %v438 = vrot.slane %v314, 1
      %v439 = vsel %vm384, %v436, %v438
      %v440 = vrot.slane %v315, 1
      %v441 = vrot.slane %v316, 1
      %v442 = vsel %vm384, %v440, %v441
      %v443 = vrot.slane %v317, 1
      %v444 = vsel %vm384, %v441, %v443
      %v445 = vrot.slane %v318, 1
      %v446 = vrot.slane %v319, 1
      %v447 = vsel %vm384, %v445, %v446
      %v448 = vrot.slane %v320, 1
      %v449 = vsel %vm384, %v446, %v448
      %v450 = vrot.slane %v321, 1
      %v451 = vrot.slane %v322, 1
      %v452 = vsel %vm384, %v450, %v451
      %v453 = vrot.slane %v323, 1
      %v454 = vsel %vm384, %v451, %v453
      %v455 = vrot.slane %v324, 1
      %v456 = vrot.slane %v325, 1
      %v457 = vsel %vm384, %v455, %v456
      %v458 = vrot.slane %v326, 1
      %v459 = vsel %vm384, %v456, %v458
      %v460 = vrot.slane %v327, 1
      %v461 = vrot.slane %v328, 1
      %v462 = vsel %vm384, %v460, %v461
      %v463 = vrot.slane %v329, 1
      %v464 = vsel %vm384, %v461, %v463
      %465 = vrot.lane.b32.xlu0 %v387, 16
      %v466 = vpop.permute.xlu0 %465
      %467 = vrot.lane.b32.xlu0 %v389, 16
      %v468 = vpop.permute.xlu0 %467
      %469 = vrot.lane.b32.xlu0 %v392, 16
      %v470 = vpop.permute.xlu0 %469
      %471 = vrot.lane.b32.xlu0 %v394, 16
      %v472 = vpop.permute.xlu0 %471
      %473 = vrot.lane.b32.xlu0 %v397, 16
      %v474 = vpop.permute.xlu0 %473
      %475 = vrot.lane.b32.xlu0 %v399, 16
      %v476 = vpop.permute.xlu0 %475
      %477 = vrot.lane.b32.xlu0 %v402, 16
      %v478 = vpop.permute.xlu0 %477
      %479 = vrot.lane.b32.xlu0 %v404, 16
      %v480 = vpop.permute.xlu0 %479
      %481 = vrot.lane.b32.xlu0 %v407, 16
      %v482 = vpop.permute.xlu0 %481
      %483 = vrot.lane.b32.xlu0 %v409, 16
      %v484 = vpop.permute.xlu0 %483
      %485 = vrot.lane.b32.xlu0 %v412, 16
      %v486 = vpop.permute.xlu0 %485
      %487 = vrot.lane.b32.xlu0 %v414, 16
      %v488 = vpop.permute.xlu0 %487
      %489 = vrot.lane.b32.xlu0 %v417, 16
      %v490 = vpop.permute.xlu0 %489
      %491 = vrot.lane.b32.xlu0 %v419, 16
      %v492 = vpop.permute.xlu0 %491
      %493 = vrot.lane.b32.xlu0 %v422, 16
      %v494 = vpop.permute.xlu0 %493
      %495 = vrot.lane.b32.xlu0 %v424, 16
      %v496 = vpop.permute.xlu0 %495
      %497 = vrot.lane.b32.xlu0 %v427, 16
      %v498 = vpop.permute.xlu0 %497
      %499 = vrot.lane.b32.xlu0 %v429, 16
      %v500 = vpop.permute.xlu0 %499
      %501 = vrot.lane.b32.xlu0 %v432, 16
      %v502 = vpop.permute.xlu0 %501
      %503 = vrot.lane.b32.xlu0 %v434, 16
      %v504 = vpop.permute.xlu0 %503
      %505 = vrot.lane.b32.xlu0 %v437, 16
      %v506 = vpop.permute.xlu0 %505
      %507 = vrot.lane.b32.xlu0 %v439, 16
      %v508 = vpop.permute.xlu0 %507
      %509 = vrot.lane.b32.xlu0 %v442, 16
      %v510 = vpop.permute.xlu0 %509
      %511 = vrot.lane.b32.xlu0 %v444, 16
      %v512 = vpop.permute.xlu0 %511
      %513 = vrot.lane.b32.xlu0 %v447, 16
      %v514 = vpop.permute.xlu0 %513
      %515 = vrot.lane.b32.xlu0 %v449, 16
      %v516 = vpop.permute.xlu0 %515
      %517 = vrot.lane.b32.xlu0 %v452, 16
      %v518 = vpop.permute.xlu0 %517
      %519 = vrot.lane.b32.xlu0 %v454, 16
      %v520 = vpop.permute.xlu0 %519
      %521 = vrot.lane.b32.xlu0 %v457, 16
      %v522 = vpop.permute.xlu0 %521
      %523 = vrot.lane.b32.xlu0 %v459, 16
      %v524 = vpop.permute.xlu0 %523
      %525 = vrot.lane.b32.xlu0 %v462, 16
      %v526 = vpop.permute.xlu0 %525
      %527 = vrot.lane.b32.xlu0 %v464, 16
      %v528 = vpop.permute.xlu0 %527
      %vm561 = vcmask 1045504
      %v562 = vrot.slane %v282, 2
      %v563 = vrot.slane %v283, 2
      %v564 = vsel %vm561, %v562, %v563
      %v565 = vrot.slane %v284, 2
      %v566 = vsel %vm561, %v563, %v565
      %v567 = vrot.slane %v285, 2
      %v568 = vrot.slane %v286, 2
      %v569 = vsel %vm561, %v567, %v568
      %v570 = vrot.slane %v287, 2
      %v571 = vsel %vm561, %v568, %v570
      %v572 = vrot.slane %v288, 2
      %v573 = vrot.slane %v289, 2
      %v574 = vsel %vm561, %v572, %v573
      %v575 = vrot.slane %v290, 2
      %v576 = vsel %vm561, %v573, %v575
      %v577 = vrot.slane %v291, 2
      %v578 = vrot.slane %v292, 2
      %v579 = vsel %vm561, %v577, %v578
      %v580 = vrot.slane %v293, 2
      %v581 = vsel %vm561, %v578, %v580
      %v582 = vrot.slane %v294, 2
      %v583 = vrot.slane %v295, 2
      %v584 = vsel %vm561, %v582, %v583
      %v585 = vrot.slane %v296, 2
      %v586 = vsel %vm561, %v583, %v585
      %v587 = vrot.slane %v297, 2
      %v588 = vrot.slane %v298, 2
      %v589 = vsel %vm561, %v587, %v588
      %v590 = vrot.slane %v299, 2
      %v591 = vsel %vm561, %v588, %v590
      %v592 = vrot.slane %v300, 2
      %v593 = vrot.slane %v301, 2
      %v594 = vsel %vm561, %v592, %v593
      %v595 = vrot.slane %v302, 2
      %v596 = vsel %vm561, %v593, %v595
      %v597 = vrot.slane %v303, 2
      %v598 = vrot.slane %v304, 2
      %v599 = vsel %vm561, %v597, %v598
      %v600 = vrot.slane %v305, 2
      %v601 = vsel %vm561, %v598, %v600
      %v602 = vrot.slane %v306, 2
      %v603 = vrot.slane %v307, 2
      %v604 = vsel %vm561, %v602, %v603
      %v605 = vrot.slane %v308, 2
      %v606 = vsel %vm561, %v603, %v605
      %v607 = vrot.slane %v309, 2
      %v608 = vrot.slane %v310, 2
      %v609 = vsel %vm561, %v607, %v608
      %v610 = vrot.slane %v311, 2
      %v611 = vsel %vm561, %v608, %v610
      %v612 = vrot.slane %v312, 2
      %v613 = vrot.slane %v313, 2
      %v614 = vsel %vm561, %v612, %v613
      %v615 = vrot.slane %v314, 2
      %v616 = vsel %vm561, %v613, %v615
      %v617 = vrot.slane %v315, 2
      %v618 = vrot.slane %v316, 2
      %v619 = vsel %vm561, %v617, %v618
      %v620 = vrot.slane %v317, 2
      %v621 = vsel %vm561, %v618, %v620
      %v622 = vrot.slane %v318, 2
      %v623 = vrot.slane %v319, 2
      %v624 = vsel %vm561, %v622, %v623
      %v625 = vrot.slane %v320, 2
      %v626 = vsel %vm561, %v623, %v625
      %v627 = vrot.slane %v321, 2
      %v628 = vrot.slane %v322, 2
      %v629 = vsel %vm561, %v627, %v628
      %v630 = vrot.slane %v323, 2
      %v631 = vsel %vm561, %v628, %v630
      %v632 = vrot.slane %v324, 2
      %v633 = vrot.slane %v325, 2
      %v634 = vsel %vm561, %v632, %v633
      %v635 = vrot.slane %v326, 2
      %v636 = vsel %vm561, %v633, %v635
      %v637 = vrot.slane %v327, 2
      %v638 = vrot.slane %v328, 2
      %v639 = vsel %vm561, %v637, %v638
      %v640 = vrot.slane %v329, 2
      %v641 = vsel %vm561, %v638, %v640
      %642 = vrot.lane.b32.xlu0 %v564, 32
      %v643 = vpop.permute.xlu0 %642
      %644 = vrot.lane.b32.xlu0 %v566, 32
      %v645 = vpop.permute.xlu0 %644
      %646 = vrot.lane.b32.xlu0 %v569, 32
      %v647 = vpop.permute.xlu0 %646
      %648 = vrot.lane.b32.xlu0 %v571, 32
      %v649 = vpop.permute.xlu0 %648
      %650 = vrot.lane.b32.xlu0 %v574, 32
      %v651 = vpop.permute.xlu0 %650
      %652 = vrot.lane.b32.xlu0 %v576, 32
      %v653 = vpop.permute.xlu0 %652
      %654 = vrot.lane.b32.xlu0 %v579, 32
      %v655 = vpop.permute.xlu0 %654
      %656 = vrot.lane.b32.xlu0 %v581, 32
      %v657 = vpop.permute.xlu0 %656
      %658 = vrot.lane.b32.xlu0 %v584, 32
      %v659 = vpop.permute.xlu0 %658
      %660 = vrot.lane.b32.xlu0 %v586, 32
      %v661 = vpop.permute.xlu0 %660
      %662 = vrot.lane.b32.xlu0 %v589, 32
      %v663 = vpop.permute.xlu0 %662
      %664 = vrot.lane.b32.xlu0 %v591, 32
      %v665 = vpop.permute.xlu0 %664
      %666 = vrot.lane.b32.xlu0 %v594, 32
      %v667 = vpop.permute.xlu0 %666
      %668 = vrot.lane.b32.xlu0 %v596, 32
      %v669 = vpop.permute.xlu0 %668
      %670 = vrot.lane.b32.xlu0 %v599, 32
      %v671 = vpop.permute.xlu0 %670
      %672 = vrot.lane.b32.xlu0 %v601, 32
      %v673 = vpop.permute.xlu0 %672
      %674 = vrot.lane.b32.xlu0 %v604, 32
      %v675 = vpop.permute.xlu0 %674
      %676 = vrot.lane.b32.xlu0 %v606, 32
      %v677 = vpop.permute.xlu0 %676
      %678 = vrot.lane.b32.xlu0 %v609, 32
      %v679 = vpop.permute.xlu0 %678
      %680 = vrot.lane.b32.xlu0 %v611, 32
      %v681 = vpop.permute.xlu0 %680
      %682 = vrot.lane.b32.xlu0 %v614, 32
      %v683 = vpop.permute.xlu0 %682
      %684 = vrot.lane.b32.xlu0 %v616, 32
      %v685 = vpop.permute.xlu0 %684
      %686 = vrot.lane.b32.xlu0 %v619, 32
      %v687 = vpop.permute.xlu0 %686
      %688 = vrot.lane.b32.xlu0 %v621, 32
      %v689 = vpop.permute.xlu0 %688
      %690 = vrot.lane.b32.xlu0 %v624, 32
      %v691 = vpop.permute.xlu0 %690
      %692 = vrot.lane.b32.xlu0 %v626, 32
      %v693 = vpop.permute.xlu0 %692
      %694 = vrot.lane.b32.xlu0 %v629, 32
      %v695 = vpop.permute.xlu0 %694
      %696 = vrot.lane.b32.xlu0 %v631, 32
      %v697 = vpop.permute.xlu0 %696
      %698 = vrot.lane.b32.xlu0 %v634, 32
      %v699 = vpop.permute.xlu0 %698
      %700 = vrot.lane.b32.xlu0 %v636, 32
      %v701 = vpop.permute.xlu0 %700
      %702 = vrot.lane.b32.xlu0 %v639, 32
      %v703 = vpop.permute.xlu0 %702
      %704 = vrot.lane.b32.xlu0 %v641, 32
      %v705 = vpop.permute.xlu0 %704
      %740 = vrot.lane.b32.xlu0 %v285, 48
      %v741 = vpop.permute.xlu0 %740
      %742 = vrot.lane.b32.xlu0 %v286, 48
      %v743 = vpop.permute.xlu0 %742
      %744 = vrot.lane.b32.xlu0 %v288, 48
      %v745 = vpop.permute.xlu0 %744
      %746 = vrot.lane.b32.xlu0 %v289, 48
      %v747 = vpop.permute.xlu0 %746
      %748 = vrot.lane.b32.xlu0 %v291, 48
      %v749 = vpop.permute.xlu0 %748
      %750 = vrot.lane.b32.xlu0 %v292, 48
      %v751 = vpop.permute.xlu0 %750
      %752 = vrot.lane.b32.xlu0 %v294, 48
      %v753 = vpop.permute.xlu0 %752
      %754 = vrot.lane.b32.xlu0 %v295, 48
      %v755 = vpop.permute.xlu0 %754
      %756 = vrot.lane.b32.xlu0 %v297, 48
      %v757 = vpop.permute.xlu0 %756
      %758 = vrot.lane.b32.xlu0 %v298, 48
      %v759 = vpop.permute.xlu0 %758
      %760 = vrot.lane.b32.xlu0 %v300, 48
      %v761 = vpop.permute.xlu0 %760
      %762 = vrot.lane.b32.xlu0 %v301, 48
      %v763 = vpop.permute.xlu0 %762
      %764 = vrot.lane.b32.xlu0 %v303, 48
      %v765 = vpop.permute.xlu0 %764
      %766 = vrot.lane.b32.xlu0 %v304, 48
      %v767 = vpop.permute.xlu0 %766
      %768 = vrot.lane.b32.xlu0 %v306, 48
      %v769 = vpop.permute.xlu0 %768
      %770 = vrot.lane.b32.xlu0 %v307, 48
      %v771 = vpop.permute.xlu0 %770
      %772 = vrot.lane.b32.xlu0 %v309, 48
      %v773 = vpop.permute.xlu0 %772
      %774 = vrot.lane.b32.xlu0 %v310, 48
      %v775 = vpop.permute.xlu0 %774
      %776 = vrot.lane.b32.xlu0 %v312, 48
      %v777 = vpop.permute.xlu0 %776
      %778 = vrot.lane.b32.xlu0 %v313, 48
      %v779 = vpop.permute.xlu0 %778
      %780 = vrot.lane.b32.xlu0 %v315, 48
      %v781 = vpop.permute.xlu0 %780
      %782 = vrot.lane.b32.xlu0 %v316, 48
      %v783 = vpop.permute.xlu0 %782
      %784 = vrot.lane.b32.xlu0 %v318, 48
      %v785 = vpop.permute.xlu0 %784
      %786 = vrot.lane.b32.xlu0 %v319, 48
      %v787 = vpop.permute.xlu0 %786
      %788 = vrot.lane.b32.xlu0 %v321, 48
      %v789 = vpop.permute.xlu0 %788
      %790 = vrot.lane.b32.xlu0 %v322, 48
      %v791 = vpop.permute.xlu0 %790
      %792 = vrot.lane.b32.xlu0 %v324, 48
      %v793 = vpop.permute.xlu0 %792
      %794 = vrot.lane.b32.xlu0 %v325, 48
      %v795 = vpop.permute.xlu0 %794
      %796 = vrot.lane.b32.xlu0 %v327, 48
      %v797 = vpop.permute.xlu0 %796
      %798 = vrot.lane.b32.xlu0 %v328, 48
      %v799 = vpop.permute.xlu0 %798
      %800 = vrot.lane.b32.xlu0 %v330, 48
      %v801 = vpop.permute.xlu0 %800
      %802 = vrot.lane.b32.xlu0 %v331, 48
      %v803 = vpop.permute.xlu0 %802
      %v837 = vrot.slane %v330, 1
      %v838 = vrot.slane %v331, 1
      %v839 = vsel %vm384, %v837, %v838
      %v840 = vrot.slane %v332, 1
      %v841 = vsel %vm384, %v838, %v840
      %842 = vrot.lane.b32.xlu0 %v392, 64
      %v843 = vpop.permute.xlu0 %842
      %844 = vrot.lane.b32.xlu0 %v394, 64
      %v845 = vpop.permute.xlu0 %844
      %846 = vrot.lane.b32.xlu0 %v397, 64
      %v847 = vpop.permute.xlu0 %846
      %848 = vrot.lane.b32.xlu0 %v399, 64
      %v849 = vpop.permute.xlu0 %848
      %850 = vrot.lane.b32.xlu0 %v402, 64
      %v851 = vpop.permute.xlu0 %850
      %852 = vrot.lane.b32.xlu0 %v404, 64
      %v853 = vpop.permute.xlu0 %852
      %854 = vrot.lane.b32.xlu0 %v407, 64
      %v855 = vpop.permute.xlu0 %854
      %856 = vrot.lane.b32.xlu0 %v409, 64
      %v857 = vpop.permute.xlu0 %856
      %858 = vrot.lane.b32.xlu0 %v412, 64
      %v859 = vpop.permute.xlu0 %858
      %860 = vrot.lane.b32.xlu0 %v414, 64
      %v861 = vpop.permute.xlu0 %860
      %862 = vrot.lane.b32.xlu0 %v417, 64
      %v863 = vpop.permute.xlu0 %862
      %864 = vrot.lane.b32.xlu0 %v419, 64
      %v865 = vpop.permute.xlu0 %864
      %866 = vrot.lane.b32.xlu0 %v422, 64
      %v867 = vpop.permute.xlu0 %866
      %868 = vrot.lane.b32.xlu0 %v424, 64
      %v869 = vpop.permute.xlu0 %868
      %870 = vrot.lane.b32.xlu0 %v427, 64
      %v871 = vpop.permute.xlu0 %870
      %872 = vrot.lane.b32.xlu0 %v429, 64
      %v873 = vpop.permute.xlu0 %872
      %874 = vrot.lane.b32.xlu0 %v432, 64
      %v875 = vpop.permute.xlu0 %874
      %876 = vrot.lane.b32.xlu0 %v434, 64
      %v877 = vpop.permute.xlu0 %876
      %878 = vrot.lane.b32.xlu0 %v437, 64
      %v879 = vpop.permute.xlu0 %878
      %880 = vrot.lane.b32.xlu0 %v439, 64
      %v881 = vpop.permute.xlu0 %880
      %882 = vrot.lane.b32.xlu0 %v442, 64
      %v883 = vpop.permute.xlu0 %882
      %884 = vrot.lane.b32.xlu0 %v444, 64
      %v885 = vpop.permute.xlu0 %884
      %886 = vrot.lane.b32.xlu0 %v447, 64
      %v887 = vpop.permute.xlu0 %886
      %888 = vrot.lane.b32.xlu0 %v449, 64
      %v889 = vpop.permute.xlu0 %888
      %890 = vrot.lane.b32.xlu0 %v452, 64
      %v891 = vpop.permute.xlu0 %890
      %892 = vrot.lane.b32.xlu0 %v454, 64
      %v893 = vpop.permute.xlu0 %892
      %894 = vrot.lane.b32.xlu0 %v457, 64
      %v895 = vpop.permute.xlu0 %894
      %896 = vrot.lane.b32.xlu0 %v459, 64
      %v897 = vpop.permute.xlu0 %896
      %898 = vrot.lane.b32.xlu0 %v462, 64
      %v899 = vpop.permute.xlu0 %898
      %900 = vrot.lane.b32.xlu0 %v464, 64
      %v901 = vpop.permute.xlu0 %900
      %902 = vrot.lane.b32.xlu0 %v839, 64
      %v903 = vpop.permute.xlu0 %902
      %904 = vrot.lane.b32.xlu0 %v841, 64
      %v905 = vpop.permute.xlu0 %904
      %v938 = vrot.slane %v330, 2
      %v939 = vrot.slane %v331, 2
      %v940 = vsel %vm561, %v938, %v939
      %v941 = vrot.slane %v332, 2
      %v942 = vsel %vm561, %v939, %v941
      %943 = vrot.lane.b32.xlu0 %v569, 80
      %v944 = vpop.permute.xlu0 %943
      %945 = vrot.lane.b32.xlu0 %v571, 80
      %v946 = vpop.permute.xlu0 %945
      %947 = vrot.lane.b32.xlu0 %v574, 80
      %v948 = vpop.permute.xlu0 %947
      %949 = vrot.lane.b32.xlu0 %v576, 80
      %v950 = vpop.permute.xlu0 %949
      %951 = vrot.lane.b32.xlu0 %v579, 80
      %v952 = vpop.permute.xlu0 %951
      %953 = vrot.lane.b32.xlu0 %v581, 80
      %v954 = vpop.permute.xlu0 %953
      %955 = vrot.lane.b32.xlu0 %v584, 80
      %v956 = vpop.permute.xlu0 %955
      %957 = vrot.lane.b32.xlu0 %v586, 80
      %v958 = vpop.permute.xlu0 %957
      %959 = vrot.lane.b32.xlu0 %v589, 80
      %v960 = vpop.permute.xlu0 %959
      %961 = vrot.lane.b32.xlu0 %v591, 80
      %v962 = vpop.permute.xlu0 %961
      %963 = vrot.lane.b32.xlu0 %v594, 80
      %v964 = vpop.permute.xlu0 %963
      %965 = vrot.lane.b32.xlu0 %v596, 80
      %v966 = vpop.permute.xlu0 %965
      %967 = vrot.lane.b32.xlu0 %v599, 80
      %v968 = vpop.permute.xlu0 %967
      %969 = vrot.lane.b32.xlu0 %v601, 80
      %v970 = vpop.permute.xlu0 %969
      %971 = vrot.lane.b32.xlu0 %v604, 80
      %v972 = vpop.permute.xlu0 %971
      %973 = vrot.lane.b32.xlu0 %v606, 80
      %v974 = vpop.permute.xlu0 %973
      %975 = vrot.lane.b32.xlu0 %v609, 80
      %v976 = vpop.permute.xlu0 %975
      %977 = vrot.lane.b32.xlu0 %v611, 80
      %v978 = vpop.permute.xlu0 %977
      %979 = vrot.lane.b32.xlu0 %v614, 80
      %v980 = vpop.permute.xlu0 %979
      %981 = vrot.lane.b32.xlu0 %v616, 80
      %v982 = vpop.permute.xlu0 %981
      %983 = vrot.lane.b32.xlu0 %v619, 80
      %v984 = vpop.permute.xlu0 %983
      %985 = vrot.lane.b32.xlu0 %v621, 80
      %v986 = vpop.permute.xlu0 %985
      %987 = vrot.lane.b32.xlu0 %v624, 80
      %v988 = vpop.permute.xlu0 %987
      %989 = vrot.lane.b32.xlu0 %v626, 80
      %v990 = vpop.permute.xlu0 %989
      %991 = vrot.lane.b32.xlu0 %v629, 80
      %v992 = vpop.permute.xlu0 %991
      %993 = vrot.lane.b32.xlu0 %v631, 80
      %v994 = vpop.permute.xlu0 %993
      %995 = vrot.lane.b32.xlu0 %v634, 80
      %v996 = vpop.permute.xlu0 %995
      %997 = vrot.lane.b32.xlu0 %v636, 80
      %v998 = vpop.permute.xlu0 %997
      %999 = vrot.lane.b32.xlu0 %v639, 80
      %v1000 = vpop.permute.xlu0 %999
      %1001 = vrot.lane.b32.xlu0 %v641, 80
      %v1002 = vpop.permute.xlu0 %1001
      %1003 = vrot.lane.b32.xlu0 %v940, 80
      %v1004 = vpop.permute.xlu0 %1003
      %1005 = vrot.lane.b32.xlu0 %v942, 80
      %v1006 = vpop.permute.xlu0 %1005
      %1041 = vrot.lane.b32.xlu0 %v288, 96
      %v1042 = vpop.permute.xlu0 %1041
      %1043 = vrot.lane.b32.xlu0 %v289, 96
      %v1044 = vpop.permute.xlu0 %1043
      %1045 = vrot.lane.b32.xlu0 %v291, 96
      %v1046 = vpop.permute.xlu0 %1045
      %1047 = vrot.lane.b32.xlu0 %v292, 96
      %v1048 = vpop.permute.xlu0 %1047
      %1049 = vrot.lane.b32.xlu0 %v294, 96
      %v1050 = vpop.permute.xlu0 %1049
      %1051 = vrot.lane.b32.xlu0 %v295, 96
      %v1052 = vpop.permute.xlu0 %1051
      %1053 = vrot.lane.b32.xlu0 %v297, 96
      %v1054 = vpop.permute.xlu0 %1053
      %1055 = vrot.lane.b32.xlu0 %v298, 96
      %v1056 = vpop.permute.xlu0 %1055
      %1057 = vrot.lane.b32.xlu0 %v300, 96
      %v1058 = vpop.permute.xlu0 %1057
      %1059 = vrot.lane.b32.xlu0 %v301, 96
      %v1060 = vpop.permute.xlu0 %1059
      %1061 = vrot.lane.b32.xlu0 %v303, 96
      %v1062 = vpop.permute.xlu0 %1061
      %1063 = vrot.lane.b32.xlu0 %v304, 96
      %v1064 = vpop.permute.xlu0 %1063
      %1065 = vrot.lane.b32.xlu0 %v306, 96
      %v1066 = vpop.permute.xlu0 %1065
      %1067 = vrot.lane.b32.xlu0 %v307, 96
      %v1068 = vpop.permute.xlu0 %1067
      %1069 = vrot.lane.b32.xlu0 %v309, 96
      %v1070 = vpop.permute.xlu0 %1069
      %1071 = vrot.lane.b32.xlu0 %v310, 96
      %v1072 = vpop.permute.xlu0 %1071
      %1073 = vrot.lane.b32.xlu0 %v312, 96
      %v1074 = vpop.permute.xlu0 %1073
      %1075 = vrot.lane.b32.xlu0 %v313, 96
      %v1076 = vpop.permute.xlu0 %1075
      %1077 = vrot.lane.b32.xlu0 %v315, 96
      %v1078 = vpop.permute.xlu0 %1077
      %1079 = vrot.lane.b32.xlu0 %v316, 96
      %v1080 = vpop.permute.xlu0 %1079
      %1081 = vrot.lane.b32.xlu0 %v318, 96
      %v1082 = vpop.permute.xlu0 %1081
      %1083 = vrot.lane.b32.xlu0 %v319, 96
      %v1084 = vpop.permute.xlu0 %1083
      %1085 = vrot.lane.b32.xlu0 %v321, 96
      %v1086 = vpop.permute.xlu0 %1085
      %1087 = vrot.lane.b32.xlu0 %v322, 96
      %v1088 = vpop.permute.xlu0 %1087
      %1089 = vrot.lane.b32.xlu0 %v324, 96
      %v1090 = vpop.permute.xlu0 %1089
      %1091 = vrot.lane.b32.xlu0 %v325, 96
      %v1092 = vpop.permute.xlu0 %1091
      %1093 = vrot.lane.b32.xlu0 %v327, 96
      %v1094 = vpop.permute.xlu0 %1093
      %1095 = vrot.lane.b32.xlu0 %v328, 96
      %v1096 = vpop.permute.xlu0 %1095
      %1097 = vrot.lane.b32.xlu0 %v330, 96
      %v1098 = vpop.permute.xlu0 %1097
      %1099 = vrot.lane.b32.xlu0 %v331, 96
      %v1100 = vpop.permute.xlu0 %1099
      %1101 = vrot.lane.b32.xlu0 %v333, 96
      %v1102 = vpop.permute.xlu0 %1101
      %1103 = vrot.lane.b32.xlu0 %v334, 96
      %v1104 = vpop.permute.xlu0 %1103
      %v1138 = vrot.slane %v333, 1
      %v1139 = vrot.slane %v334, 1
      %v1140 = vsel %vm384, %v1138, %v1139
      %v1141 = vrot.slane %v335, 1
      %v1142 = vsel %vm384, %v1139, %v1141
      %1143 = vrot.lane.b32.xlu0 %v397, 112
      %v1144 = vpop.permute.xlu0 %1143
      %1145 = vrot.lane.b32.xlu0 %v399, 112
      %v1146 = vpop.permute.xlu0 %1145
      %1147 = vrot.lane.b32.xlu0 %v402, 112
      %v1148 = vpop.permute.xlu0 %1147
      %1149 = vrot.lane.b32.xlu0 %v404, 112
      %v1150 = vpop.permute.xlu0 %1149
      %1151 = vrot.lane.b32.xlu0 %v407, 112
      %v1152 = vpop.permute.xlu0 %1151
      %1153 = vrot.lane.b32.xlu0 %v409, 112
      %v1154 = vpop.permute.xlu0 %1153
      %1155 = vrot.lane.b32.xlu0 %v412, 112
      %v1156 = vpop.permute.xlu0 %1155
      %1157 = vrot.lane.b32.xlu0 %v414, 112
      %v1158 = vpop.permute.xlu0 %1157
      %1159 = vrot.lane.b32.xlu0 %v417, 112
      %v1160 = vpop.permute.xlu0 %1159
      %1161 = vrot.lane.b32.xlu0 %v419, 112
      %v1162 = vpop.permute.xlu0 %1161
      %1163 = vrot.lane.b32.xlu0 %v422, 112
      %v1164 = vpop.permute.xlu0 %1163
      %1165 = vrot.lane.b32.xlu0 %v424, 112
      %v1166 = vpop.permute.xlu0 %1165
      %1167 = vrot.lane.b32.xlu0 %v427, 112
      %v1168 = vpop.permute.xlu0 %1167
      %1169 = vrot.lane.b32.xlu0 %v429, 112
      %v1170 = vpop.permute.xlu0 %1169
      %1171 = vrot.lane.b32.xlu0 %v432, 112
      %v1172 = vpop.permute.xlu0 %1171
      %1173 = vrot.lane.b32.xlu0 %v434, 112
      %v1174 = vpop.permute.xlu0 %1173
      %1175 = vrot.lane.b32.xlu0 %v437, 112
      %v1176 = vpop.permute.xlu0 %1175
      %1177 = vrot.lane.b32.xlu0 %v439, 112
      %v1178 = vpop.permute.xlu0 %1177
      %1179 = vrot.lane.b32.xlu0 %v442, 112
      %v1180 = vpop.permute.xlu0 %1179
      %1181 = vrot.lane.b32.xlu0 %v444, 112
      %v1182 = vpop.permute.xlu0 %1181
      %1183 = vrot.lane.b32.xlu0 %v447, 112
      %v1184 = vpop.permute.xlu0 %1183
      %1185 = vrot.lane.b32.xlu0 %v449, 112
      %v1186 = vpop.permute.xlu0 %1185
      %1187 = vrot.lane.b32.xlu0 %v452, 112
      %v1188 = vpop.permute.xlu0 %1187
      %1189 = vrot.lane.b32.xlu0 %v454, 112
      %v1190 = vpop.permute.xlu0 %1189
      %1191 = vrot.lane.b32.xlu0 %v457, 112
      %v1192 = vpop.permute.xlu0 %1191
      %1193 = vrot.lane.b32.xlu0 %v459, 112
      %v1194 = vpop.permute.xlu0 %1193
      %1195 = vrot.lane.b32.xlu0 %v462, 112
      %v1196 = vpop.permute.xlu0 %1195
      %1197 = vrot.lane.b32.xlu0 %v464, 112
      %v1198 = vpop.permute.xlu0 %1197
      %1199 = vrot.lane.b32.xlu0 %v839, 112
      %v1200 = vpop.permute.xlu0 %1199
      %1201 = vrot.lane.b32.xlu0 %v841, 112
      %v1202 = vpop.permute.xlu0 %1201
      %1203 = vrot.lane.b32.xlu0 %v1140, 112
      %v1204 = vpop.permute.xlu0 %1203
      %1205 = vrot.lane.b32.xlu0 %v1142, 112
      %v1206 = vpop.permute.xlu0 %1205
      %v1239 = vrot.slane %v333, 2
      %v1240 = vrot.slane %v334, 2
      %v1241 = vsel %vm561, %v1239, %v1240
      %v1242 = vrot.slane %v335, 2
      %v1243 = vsel %vm561, %v1240, %v1242
      %v1244 = vsel %vm171, %v282, %v466
      %v1245 = vsel %vm171, %v283, %v468
      %v1246 = vsel %vm171, %v285, %v470
      %v1247 = vsel %vm171, %v286, %v472
      %v1248 = vsel %vm171, %v288, %v474
      %v1249 = vsel %vm171, %v289, %v476
      %v1250 = vsel %vm171, %v291, %v478
      %v1251 = vsel %vm171, %v292, %v480
      %v1252 = vsel %vm171, %v294, %v482
      %v1253 = vsel %vm171, %v295, %v484
      %v1254 = vsel %vm171, %v297, %v486
      %v1255 = vsel %vm171, %v298, %v488
      %v1256 = vsel %vm171, %v300, %v490
      %v1257 = vsel %vm171, %v301, %v492
      %v1258 = vsel %vm171, %v303, %v494
      %v1259 = vsel %vm171, %v304, %v496
      %v1260 = vsel %vm171, %v306, %v498
      %v1261 = vsel %vm171, %v307, %v500
      %v1262 = vsel %vm171, %v309, %v502
      %v1263 = vsel %vm171, %v310, %v504
      %v1264 = vsel %vm171, %v312, %v506
      %v1265 = vsel %vm171, %v313, %v508
      %v1266 = vsel %vm171, %v315, %v510
      %v1267 = vsel %vm171, %v316, %v512
      %v1268 = vsel %vm171, %v318, %v514
      %v1269 = vsel %vm171, %v319, %v516
      %v1270 = vsel %vm171, %v321, %v518
      %v1271 = vsel %vm171, %v322, %v520
      %v1272 = vsel %vm171, %v324, %v522
      %v1273 = vsel %vm171, %v325, %v524
      %v1274 = vsel %vm171, %v327, %v526
      %v1275 = vsel %vm171, %v328, %v528
      %vm1276 = vcmask 261120
      %v1277 = vsel %vm1276, %v1244, %v643
      %v1278 = vsel %vm1276, %v1245, %v645
      %v1279 = vsel %vm1276, %v1246, %v647
      %v1280 = vsel %vm1276, %v1247, %v649
      %v1281 = vsel %vm1276, %v1248, %v651
      %v1282 = vsel %vm1276, %v1249, %v653
      %v1283 = vsel %vm1276, %v1250, %v655
      %v1284 = vsel %vm1276, %v1251, %v657
      %v1285 = vsel %vm1276, %v1252, %v659
      %v1286 = vsel %vm1276, %v1253, %v661
      %v1287 = vsel %vm1276, %v1254, %v663
      %v1288 = vsel %vm1276, %v1255, %v665
      %v1289 = vsel %vm1276, %v1256, %v667
      %v1290 = vsel %vm1276, %v1257, %v669
      %v1291 = vsel %vm1276, %v1258, %v671
      %v1292 = vsel %vm1276, %v1259, %v673
      %v1293 = vsel %vm1276, %v1260, %v675
      %v1294 = vsel %vm1276, %v1261, %v677
      %v1295 = vsel %vm1276, %v1262, %v679
      %v1296 = vsel %vm1276, %v1263, %v681
      %v1297 = vsel %vm1276, %v1264, %v683
      %v1298 = vsel %vm1276, %v1265, %v685
      %v1299 = vsel %vm1276, %v1266, %v687
      %v1300 = vsel %vm1276, %v1267, %v689
      %v1301 = vsel %vm1276, %v1268, %v691
      %v1302 = vsel %vm1276, %v1269, %v693
      %v1303 = vsel %vm1276, %v1270, %v695
      %v1304 = vsel %vm1276, %v1271, %v697
      %v1305 = vsel %vm1276, %v1272, %v699
      %v1306 = vsel %vm1276, %v1273, %v701
      %v1307 = vsel %vm1276, %v1274, %v703
      %v1308 = vsel %vm1276, %v1275, %v705
      %vm1309 = vcmask 392192
      %v1310 = vsel %vm1309, %v1277, %v741
      %v1311 = vsel %vm1309, %v1278, %v743
      %v1312 = vsel %vm1309, %v1279, %v745
      %v1313 = vsel %vm1309, %v1280, %v747
      %v1314 = vsel %vm1309, %v1281, %v749
      %v1315 = vsel %vm1309, %v1282, %v751
      %v1316 = vsel %vm1309, %v1283, %v753
      %v1317 = vsel %vm1309, %v1284, %v755
      %v1318 = vsel %vm1309, %v1285, %v757
      %v1319 = vsel %vm1309, %v1286, %v759
      %v1320 = vsel %vm1309, %v1287, %v761
      %v1321 = vsel %vm1309, %v1288, %v763
      %v1322 = vsel %vm1309, %v1289, %v765
      %v1323 = vsel %vm1309, %v1290, %v767
      %v1324 = vsel %vm1309, %v1291, %v769
      %v1325 = vsel %vm1309, %v1292, %v771
      %v1326 = vsel %vm1309, %v1293, %v773
      %v1327 = vsel %vm1309, %v1294, %v775
      %v1328 = vsel %vm1309, %v1295, %v777
      %v1329 = vsel %vm1309, %v1296, %v779
      %v1330 = vsel %vm1309, %v1297, %v781
      %v1331 = vsel %vm1309, %v1298, %v783
      %v1332 = vsel %vm1309, %v1299, %v785
      %v1333 = vsel %vm1309, %v1300, %v787
      %v1334 = vsel %vm1309, %v1301, %v789
      %v1335 = vsel %vm1309, %v1302, %v791
      %v1336 = vsel %vm1309, %v1303, %v793
      %v1337 = vsel %vm1309, %v1304, %v795
      %v1338 = vsel %vm1309, %v1305, %v797
      %v1339 = vsel %vm1309, %v1306, %v799
      %v1340 = vsel %vm1309, %v1307, %v801
      %v1341 = vsel %vm1309, %v1308, %v803
      %vm1342 = vcmask 523264
      %v1343 = vsel %vm1342, %v1310, %v843
      %v1344 = vsel %vm1342, %v1311, %v845
      %v1345 = vsel %vm1342, %v1312, %v847
      %v1346 = vsel %vm1342, %v1313, %v849
      %v1347 = vsel %vm1342, %v1314, %v851
      %v1348 = vsel %vm1342, %v1315, %v853
      %v1349 = vsel %vm1342, %v1316, %v855
      %v1350 = vsel %vm1342, %v1317, %v857
      %v1351 = vsel %vm1342, %v1318, %v859
      %v1352 = vsel %vm1342, %v1319, %v861
      %v1353 = vsel %vm1342, %v1320, %v863
      %v1354 = vsel %vm1342, %v1321, %v865
      %v1355 = vsel %vm1342, %v1322, %v867
      %v1356 = vsel %vm1342, %v1323, %v869
      %v1357 = vsel %vm1342, %v1324, %v871
      %v1358 = vsel %vm1342, %v1325, %v873
      %v1359 = vsel %vm1342, %v1326, %v875
      %v1360 = vsel %vm1342, %v1327, %v877
      %v1361 = vsel %vm1342, %v1328, %v879
      %v1362 = vsel %vm1342, %v1329, %v881
      %v1363 = vsel %vm1342, %v1330, %v883
      %v1364 = vsel %vm1342, %v1331, %v885
      %v1365 = vsel %vm1342, %v1332, %v887
      %v1366 = vsel %vm1342, %v1333, %v889
      %v1367 = vsel %vm1342, %v1334, %v891
      %v1368 = vsel %vm1342, %v1335, %v893
      %v1369 = vsel %vm1342, %v1336, %v895
      %v1370 = vsel %vm1342, %v1337, %v897
      %v1371 = vsel %vm1342, %v1338, %v899
      %v1372 = vsel %vm1342, %v1339, %v901
      %v1373 = vsel %vm1342, %v1340, %v903
      %v1374 = vsel %vm1342, %v1341, %v905
      %vm1375 = vcmask 654336
      %v1376 = vsel %vm1375, %v1343, %v944
      %v1377 = vsel %vm1375, %v1344, %v946
      %v1378 = vsel %vm1375, %v1345, %v948
      %v1379 = vsel %vm1375, %v1346, %v950
      %v1380 = vsel %vm1375, %v1347, %v952
      %v1381 = vsel %vm1375, %v1348, %v954
      %v1382 = vsel %vm1375, %v1349, %v956
      %v1383 = vsel %vm1375, %v1350, %v958
      %v1384 = vsel %vm1375, %v1351, %v960
      %v1385 = vsel %vm1375, %v1352, %v962
      %v1386 = vsel %vm1375, %v1353, %v964
      %v1387 = vsel %vm1375, %v1354, %v966
      %v1388 = vsel %vm1375, %v1355, %v968
      %v1389 = vsel %vm1375, %v1356, %v970
      %v1390 = vsel %vm1375, %v1357, %v972
      %v1391 = vsel %vm1375, %v1358, %v974
      %v1392 = vsel %vm1375, %v1359, %v976
      %v1393 = vsel %vm1375, %v1360, %v978
      %v1394 = vsel %vm1375, %v1361, %v980
      %v1395 = vsel %vm1375, %v1362, %v982
      %v1396 = vsel %vm1375, %v1363, %v984
      %v1397 = vsel %vm1375, %v1364, %v986
      %v1398 = vsel %vm1375, %v1365, %v988
      %v1399 = vsel %vm1375, %v1366, %v990
      %v1400 = vsel %vm1375, %v1367, %v992
      %v1401 = vsel %vm1375, %v1368, %v994
      %v1402 = vsel %vm1375, %v1369, %v996
      %v1403 = vsel %vm1375, %v1370, %v998
      %v1404 = vsel %vm1375, %v1371, %v1000
      %v1405 = vsel %vm1375, %v1372, %v1002
      %v1406 = vsel %vm1375, %v1373, %v1004
      %v1407 = vsel %vm1375, %v1374, %v1006
      %vm1408 = vcmask 785408
      %v1409 = vsel %vm1408, %v1376, %v1042
      %v1410 = vsel %vm1408, %v1377, %v1044
      %v1411 = vsel %vm1408, %v1378, %v1046
      %v1412 = vsel %vm1408, %v1379, %v1048
      %v1413 = vsel %vm1408, %v1380, %v1050
      %v1414 = vsel %vm1408, %v1381, %v1052
      %v1415 = vsel %vm1408, %v1382, %v1054
      %v1416 = vsel %vm1408, %v1383, %v1056
      %v1417 = vsel %vm1408, %v1384, %v1058
      %v1418 = vsel %vm1408, %v1385, %v1060
      %v1419 = vsel %vm1408, %v1386, %v1062
      %v1420 = vsel %vm1408, %v1387, %v1064
      %v1421 = vsel %vm1408, %v1388, %v1066
      %v1422 = vsel %vm1408, %v1389, %v1068
      %v1423 = vsel %vm1408, %v1390, %v1070
      %v1424 = vsel %vm1408, %v1391, %v1072
      %v1425 = vsel %vm1408, %v1392, %v1074
      %v1426 = vsel %vm1408, %v1393, %v1076
      %v1427 = vsel %vm1408, %v1394, %v1078
      %v1428 = vsel %vm1408, %v1395, %v1080
      %v1429 = vsel %vm1408, %v1396, %v1082
      %v1430 = vsel %vm1408, %v1397, %v1084
      %v1431 = vsel %vm1408, %v1398, %v1086
      %v1432 = vsel %vm1408, %v1399, %v1088
      %v1433 = vsel %vm1408, %v1400, %v1090
      %v1434 = vsel %vm1408, %v1401, %v1092
      %v1435 = vsel %vm1408, %v1402, %v1094
      %v1436 = vsel %vm1408, %v1403, %v1096
      %v1437 = vsel %vm1408, %v1404, %v1098
      %v1438 = vsel %vm1408, %v1405, %v1100
      %v1439 = vsel %vm1408, %v1406, %v1102
      %v1440 = vsel %vm1408, %v1407, %v1104
      %vm1441 = vcmask 916480
      %v1442 = vsel %vm1441, %v1409, %v1144
      %v1443 = vsel %vm1441, %v1410, %v1146
      %v1444 = vsel %vm1441, %v1411, %v1148
      %v1445 = vsel %vm1441, %v1412, %v1150
      %v1446 = vsel %vm1441, %v1413, %v1152
      %v1447 = vsel %vm1441, %v1414, %v1154
      %v1448 = vsel %vm1441, %v1415, %v1156
      %v1449 = vsel %vm1441, %v1416, %v1158
      %v1450 = vsel %vm1441, %v1417, %v1160
      %v1451 = vsel %vm1441, %v1418, %v1162
      %v1452 = vsel %vm1441, %v1419, %v1164
      %v1453 = vsel %vm1441, %v1420, %v1166
      %v1454 = vsel %vm1441, %v1421, %v1168
      %v1455 = vsel %vm1441, %v1422, %v1170
      %v1456 = vsel %vm1441, %v1423, %v1172
      %v1457 = vsel %vm1441, %v1424, %v1174
      %v1458 = vsel %vm1441, %v1425, %v1176
      %v1459 = vsel %vm1441, %v1426, %v1178
      %v1460 = vsel %vm1441, %v1427, %v1180
      %v1461 = vsel %vm1441, %v1428, %v1182
      %v1462 = vsel %vm1441, %v1429, %v1184
      %v1463 = vsel %vm1441, %v1430, %v1186
      %v1464 = vsel %vm1441, %v1431, %v1188
      %v1465 = vsel %vm1441, %v1432, %v1190
      %v1466 = vsel %vm1441, %v1433, %v1192
      %v1467 = vsel %vm1441, %v1434, %v1194
      %v1468 = vsel %vm1441, %v1435, %v1196
      %v1469 = vsel %vm1441, %v1436, %v1198
      %v1470 = vsel %vm1441, %v1437, %v1200
      %v1471 = vsel %vm1441, %v1438, %v1202
      %v1472 = vsel %vm1441, %v1439, %v1204
      %v1473 = vsel %vm1441, %v1440, %v1206
      %v1474 = vld [vmem:[%s1] sm:$0xff]
      %v1475 = vld [vmem:[%s1 + $0x8] sm:$0xff]
      %v1476 = vld [vmem:[%s1 + $0x10] sm:$0xff]
      %v1477 = vld [vmem:[%s1 + $0x18] sm:$0xff]
      %v1478 = vld [vmem:[%s1 + $0x20] sm:$0xff]
      %v1479 = vld [vmem:[%s1 + $0x28] sm:$0xff]
      %v1480 = vld [vmem:[%s1 + $0x30] sm:$0xff]
      %v1481 = vld [vmem:[%s1 + $0x38] sm:$0xff]
      %v1482 = vld [vmem:[%s1 + $0x40] sm:$0xff]
      %v1483 = vld [vmem:[%s1 + $0x48] sm:$0xff]
      %v1484 = vld [vmem:[%s1 + $0x50] sm:$0xff]
      %v1485 = vld [vmem:[%s1 + $0x58] sm:$0xff]
      %v1486 = vld [vmem:[%s1 + $0x60] sm:$0xff]
      %v1487 = vld [vmem:[%s1 + $0x68] sm:$0xff]
      %v1488 = vld [vmem:[%s1 + $0x70] sm:$0xff]
      %v1489 = vld [vmem:[%s1 + $0x78] sm:$0xff]
      %v1490 = vld [vmem:[%s1 + $0x80] sm:$0xff]
      %v1491 = vld [vmem:[%s1 + $0x88] sm:$0xff]
      %v1492 = vld [vmem:[%s2] sm:$0x1]
      %v1494 = vperm.slane %v1492, 0
      %v1496 = vsel %vm171, %v574, 0
      %v1498 = vsel %vm171, %v576, 0
      %v1500 = vsel %vm171, %v579, 0
      %v1502 = vsel %vm171, %v581, 0
      %v1504 = vsel %vm171, %v584, 0
      %v1506 = vsel %vm171, %v586, 0
      %v1508 = vsel %vm171, %v589, 0
      %v1510 = vsel %vm171, %v591, 0
      %v1512 = vsel %vm171, %v594, 0
      %v1514 = vsel %vm171, %v596, 0
      %v1516 = vsel %vm171, %v599, 0
      %v1518 = vsel %vm171, %v601, 0
      %v1520 = vsel %vm171, %v604, 0
      %v1522 = vsel %vm171, %v606, 0
      %v1524 = vsel %vm171, %v609, 0
      %v1526 = vsel %vm171, %v611, 0
      %v1528 = vsel %vm171, %v614, 0
      %v1530 = vsel %vm171, %v616, 0
      %v1532 = vsel %vm171, %v619, 0
      %v1534 = vsel %vm171, %v621, 0
      %v1536 = vsel %vm171, %v624, 0
      %v1538 = vsel %vm171, %v626, 0
      %v1540 = vsel %vm171, %v629, 0
      %v1542 = vsel %vm171, %v631, 0
      %v1544 = vsel %vm171, %v634, 0
      %v1546 = vsel %vm171, %v636, 0
      %v1548 = vsel %vm171, %v639, 0
      %v1550 = vsel %vm171, %v641, 0
      %v1552 = vsel %vm171, %v940, 0
      %v1554 = vsel %vm171, %v942, 0
      %v1556 = vsel %vm171, %v1241, 0
      %v1558 = vsel %vm171, %v1243, 0
      %1560 = vmatpush.msra.mxu0 %v1489
      %1561 = vmatpush.msra.mxu0 %v1488
      %1562 = vmatpush.msra.mxu0 %v1487
      %1563 = vmatpush.msra.mxu0 %v1486
      %1564 = vmatpush.msra.mxu0 %v1485
      %1565 = vmatpush.msra.mxu0 %v1484
      %1566 = vmatpush.msra.mxu0 %v1483
      %1567 = vmatpush.msra.mxu0 %v1482
      %1568 = vmatpush.msra.mxu0 %v1481
      %1569 = vmatpush.msra.mxu0 %v1480
      %1570 = vmatpush.msra.mxu0 %v1479
      %1571 = vmatpush.msra.mxu0 %v1478
      %1572 = vmatpush.msra.mxu0 %v1477
      %1573 = vmatpush.msra.mxu0 %v1476
      %1574 = vmatpush.msra.mxu0 %v1475
      %1575 = vmatpush.msra.mxu0 %v1474
      %1576 = vmatmul.f32.gmra.mxu0 %v1442
      %v1577 = vpop.f32.mrf.mxu0
      %v1578 = vadd.f32 %v1494, %v1577
      %1579 = vmatmul.f32.gmra.mxu0 %v1443
      %v1580 = vpop.f32.mrf.mxu0
      %v1581 = vadd.f32 %v1494, %v1580
      %1582 = vmatmul.f32.gmra.mxu0 %v1444
      %v1583 = vpop.f32.mrf.mxu0
      %v1584 = vadd.f32 %v1494, %v1583
      %1585 = vmatmul.f32.gmra.mxu0 %v1445
      %v1586 = vpop.f32.mrf.mxu0
      %v1587 = vadd.f32 %v1494, %v1586
      %1588 = vmatmul.f32.gmra.mxu0 %v1446
      %v1589 = vpop.f32.mrf.mxu0
      %v1590 = vadd.f32 %v1494, %v1589
      %1591 = vmatmul.f32.gmra.mxu0 %v1447
      %v1592 = vpop.f32.mrf.mxu0
      %v1593 = vadd.f32 %v1494, %v1592
      %1594 = vmatmul.f32.gmra.mxu0 %v1448
      %v1595 = vpop.f32.mrf.mxu0
      %v1596 = vadd.f32 %v1494, %v1595
      %1597 = vmatmul.f32.gmra.mxu0 %v1449
      %v1598 = vpop.f32.mrf.mxu0
      %v1599 = vadd.f32 %v1494, %v1598
      %1600 = vmatmul.f32.gmra.mxu0 %v1450
      %v1601 = vpop.f32.mrf.mxu0
      %v1602 = vadd.f32 %v1494, %v1601
      %1603 = vmatmul.f32.gmra.mxu0 %v1451
      %v1604 = vpop.f32.mrf.mxu0
      %v1605 = vadd.f32 %v1494, %v1604
      %1606 = vmatmul.f32.gmra.mxu0 %v1452
      %v1607 = vpop.f32.mrf.mxu0
      %v1608 = vadd.f32 %v1494, %v1607
      %1609 = vmatmul.f32.gmra.mxu0 %v1453
      %v1610 = vpop.f32.mrf.mxu0
      %v1611 = vadd.f32 %v1494, %v1610
      %1612 = vmatmul.f32.gmra.mxu0 %v1454
      %v1613 = vpop.f32.mrf.mxu0
      %v1614 = vadd.f32 %v1494, %v1613
      %1615 = vmatmul.f32.gmra.mxu0 %v1455
      %v1616 = vpop.f32.mrf.mxu0
      %v1617 = vadd.f32 %v1494, %v1616
      %1618 = vmatmul.f32.gmra.mxu0 %v1456
      %v1619 = vpop.f32.mrf.mxu0
      %v1620 = vadd.f32 %v1494, %v1619
      %1621 = vmatmul.f32.gmra.mxu0 %v1457
      %v1622 = vpop.f32.mrf.mxu0
      %v1623 = vadd.f32 %v1494, %v1622
      %1624 = vmatmul.f32.gmra.mxu0 %v1458
      %v1625 = vpop.f32.mrf.mxu0
      %v1626 = vadd.f32 %v1494, %v1625
      %1627 = vmatmul.f32.gmra.mxu0 %v1459
      %v1628 = vpop.f32.mrf.mxu0
      %v1629 = vadd.f32 %v1494, %v1628
      %1630 = vmatmul.f32.gmra.mxu0 %v1460
      %v1631 = vpop.f32.mrf.mxu0
      %v1632 = vadd.f32 %v1494, %v1631
      %1633 = vmatmul.f32.gmra.mxu0 %v1461
      %v1634 = vpop.f32.mrf.mxu0
      %v1635 = vadd.f32 %v1494, %v1634
      %1636 = vmatmul.f32.gmra.mxu0 %v1462
      %v1637 = vpop.f32.mrf.mxu0
      %v1638 = vadd.f32 %v1494, %v1637
      %1639 = vmatmul.f32.gmra.mxu0 %v1463
      %v1640 = vpop.f32.mrf.mxu0
      %v1641 = vadd.f32 %v1494, %v1640
      %1642 = vmatmul.f32.gmra.mxu0 %v1464
      %v1643 = vpop.f32.mrf.mxu0
      %v1644 = vadd.f32 %v1494, %v1643
      %1645 = vmatmul.f32.gmra.mxu0 %v1465
      %v1646 = vpop.f32.mrf.mxu0
      %v1647 = vadd.f32 %v1494, %v1646
      %1648 = vmatmul.f32.gmra.mxu0 %v1466
      %v1649 = vpop.f32.mrf.mxu0
      %v1650 = vadd.f32 %v1494, %v1649
      %1651 = vmatmul.f32.gmra.mxu0 %v1467
      %v1652 = vpop.f32.mrf.mxu0
      %v1653 = vadd.f32 %v1494, %v1652
      %1654 = vmatmul.f32.gmra.mxu0 %v1468
      %v1655 = vpop.f32.mrf.mxu0
      %v1656 = vadd.f32 %v1494, %v1655
      %1657 = vmatmul.f32.gmra.mxu0 %v1469
      %v1658 = vpop.f32.mrf.mxu0
      %v1659 = vadd.f32 %v1494, %v1658
      %1660 = vmatmul.f32.gmra.mxu0 %v1470
      %v1661 = vpop.f32.mrf.mxu0
      %v1662 = vadd.f32 %v1494, %v1661
      %1663 = vmatmul.f32.gmra.mxu0 %v1471
      %v1664 = vpop.f32.mrf.mxu0
      %v1665 = vadd.f32 %v1494, %v1664
      %1666 = vmatmul.f32.gmra.mxu0 %v1472
      %v1667 = vpop.f32.mrf.mxu0
      %v1668 = vadd.f32 %v1494, %v1667
      %1669 = vmatmul.f32.gmra.mxu0 %v1473
      %v1670 = vpop.f32.mrf.mxu0
      %v1671 = vadd.f32 %v1494, %v1670
      %1672 = vdwg.mxu0
      %1673 = vmatpush.msra.mxu0 0.0
      %1674 = vmatpush.msra.mxu0 0.0
      %1675 = vmatpush.msra.mxu0 0.0
      %1676 = vmatpush.msra.mxu0 0.0
      %1677 = vmatpush.msra.mxu0 0.0
      %1678 = vmatpush.msra.mxu0 0.0
      %1679 = vmatpush.msra.mxu0 0.0
      %1680 = vmatpush.msra.mxu0 0.0
      %1681 = vmatpush.msra.mxu0 0.0
      %1682 = vmatpush.msra.mxu0 0.0
      %1683 = vmatpush.msra.mxu0 0.0
      %1684 = vmatpush.msra.mxu0 0.0
      %1685 = vmatpush.msra.mxu0 0.0
      %1686 = vmatpush.msra.mxu0 0.0
      %1687 = vmatpush.msra.mxu0 %v1491
      %1688 = vmatpush.msra.mxu0 %v1490
      %1689 = vmatmul.f32.gmra.mxu0 %v1496
      %v1690 = vpop.f32.mrf.mxu0
      %v1691 = vadd.f32 %v1578, %v1690
      %1692 = vmatmul.f32.gmra.mxu0 %v1498
      %v1693 = vpop.f32.mrf.mxu0
      %v1694 = vadd.f32 %v1581, %v1693
      %1695 = vmatmul.f32.gmra.mxu0 %v1500
      %v1696 = vpop.f32.mrf.mxu0
      %v1697 = vadd.f32 %v1584, %v1696
      %1698 = vmatmul.f32.gmra.mxu0 %v1502
      %v1699 = vpop.f32.mrf.mxu0
      %v1700 = vadd.f32 %v1587, %v1699
      %1701 = vmatmul.f32.gmra.mxu0 %v1504
      %v1702 = vpop.f32.mrf.mxu0
      %v1703 = vadd.f32 %v1590, %v1702
      %1704 = vmatmul.f32.gmra.mxu0 %v1506
      %v1705 = vpop.f32.mrf.mxu0
      %v1706 = vadd.f32 %v1593, %v1705
      %1707 = vmatmul.f32.gmra.mxu0 %v1508
      %v1708 = vpop.f32.mrf.mxu0
      %v1709 = vadd.f32 %v1596, %v1708
      %1710 = vmatmul.f32.gmra.mxu0 %v1510
      %v1711 = vpop.f32.mrf.mxu0
      %v1712 = vadd.f32 %v1599, %v1711
      %1713 = vmatmul.f32.gmra.mxu0 %v1512
      %v1714 = vpop.f32.mrf.mxu0
      %v1715 = vadd.f32 %v1602, %v1714
      %1716 = vmatmul.f32.gmra.mxu0 %v1514
      %v1717 = vpop.f32.mrf.mxu0
      %v1718 = vadd.f32 %v1605, %v1717
      %1719 = vmatmul.f32.gmra.mxu0 %v1516
      %v1720 = vpop.f32.mrf.mxu0
      %v1721 = vadd.f32 %v1608, %v1720
      %1722 = vmatmul.f32.gmra.mxu0 %v1518
      %v1723 = vpop.f32.mrf.mxu0
      %v1724 = vadd.f32 %v1611, %v1723
      %1725 = vmatmul.f32.gmra.mxu0 %v1520
      %v1726 = vpop.f32.mrf.mxu0
      %v1727 = vadd.f32 %v1614, %v1726
      %1728 = vmatmul.f32.gmra.mxu0 %v1522
      %v1729 = vpop.f32.mrf.mxu0
      %v1730 = vadd.f32 %v1617, %v1729
      %1731 = vmatmul.f32.gmra.mxu0 %v1524
      %v1732 = vpop.f32.mrf.mxu0
      %v1733 = vadd.f32 %v1620, %v1732
      %1734 = vmatmul.f32.gmra.mxu0 %v1526
      %v1735 = vpop.f32.mrf.mxu0
      %v1736 = vadd.f32 %v1623, %v1735
      %1737 = vmatmul.f32.gmra.mxu0 %v1528
      %v1738 = vpop.f32.mrf.mxu0
      %v1739 = vadd.f32 %v1626, %v1738
      %1740 = vmatmul.f32.gmra.mxu0 %v1530
      %v1741 = vpop.f32.mrf.mxu0
      %v1742 = vadd.f32 %v1629, %v1741
      %1743 = vmatmul.f32.gmra.mxu0 %v1532
      %v1744 = vpop.f32.mrf.mxu0
      %v1745 = vadd.f32 %v1632, %v1744
      %1746 = vmatmul.f32.gmra.mxu0 %v1534
      %v1747 = vpop.f32.mrf.mxu0
      %v1748 = vadd.f32 %v1635, %v1747
      %1749 = vmatmul.f32.gmra.mxu0 %v1536
      %v1750 = vpop.f32.mrf.mxu0
      %v1751 = vadd.f32 %v1638, %v1750
      %1752 = vmatmul.f32.gmra.mxu0 %v1538
      %v1753 = vpop.f32.mrf.mxu0
      %v1754 = vadd.f32 %v1641, %v1753
      %1755 = vmatmul.f32.gmra.mxu0 %v1540
      %v1756 = vpop.f32.mrf.mxu0
      %v1757 = vadd.f32 %v1644, %v1756
      %1758 = vmatmul.f32.gmra.mxu0 %v1542
      %v1759 = vpop.f32.mrf.mxu0
      %v1760 = vadd.f32 %v1647, %v1759
      %1761 = vmatmul.f32.gmra.mxu0 %v1544
      %v1762 = vpop.f32.mrf.mxu0
      %v1763 = vadd.f32 %v1650, %v1762
      %1764 = vmatmul.f32.gmra.mxu0 %v1546
      %v1765 = vpop.f32.mrf.mxu0
      %v1766 = vadd.f32 %v1653, %v1765
      %1767 = vmatmul.f32.gmra.mxu0 %v1548
      %v1768 = vpop.f32.mrf.mxu0
      %v1769 = vadd.f32 %v1656, %v1768
      %1770 = vmatmul.f32.gmra.mxu0 %v1550
      %v1771 = vpop.f32.mrf.mxu0
      %v1772 = vadd.f32 %v1659, %v1771
      %1773 = vmatmul.f32.gmra.mxu0 %v1552
      %v1774 = vpop.f32.mrf.mxu0
      %v1775 = vadd.f32 %v1662, %v1774
      %1776 = vmatmul.f32.gmra.mxu0 %v1554
      %v1777 = vpop.f32.mrf.mxu0
      %v1778 = vadd.f32 %v1665, %v1777
      %1779 = vmatmul.f32.gmra.mxu0 %v1556
      %v1780 = vpop.f32.mrf.mxu0
      %v1781 = vadd.f32 %v1668, %v1780
      %1782 = vmatmul.f32.gmra.mxu0 %v1558
      %v1783 = vpop.f32.mrf.mxu0
      %v1784 = vadd.f32 %v1671, %v1783
      %1785 = vdwg.mxu0
      %v1786 = vmax.f32 %v1691, 0.0
      %v1787 = vmax.f32 %v1694, 0.0
      %v1788 = vmax.f32 %v1697, 0.0
      %v1789 = vmax.f32 %v1700, 0.0
      %v1790 = vmax.f32 %v1703, 0.0
      %v1791 = vmax.f32 %v1706, 0.0
      %v1792 = vmax.f32 %v1709, 0.0
      %v1793 = vmax.f32 %v1712, 0.0
      %v1794 = vmax.f32 %v1715, 0.0
      %v1795 = vmax.f32 %v1718, 0.0
      %v1796 = vmax.f32 %v1721, 0.0
      %v1797 = vmax.f32 %v1724, 0.0
      %v1798 = vmax.f32 %v1727, 0.0
      %v1799 = vmax.f32 %v1730, 0.0
      %v1800 = vmax.f32 %v1733, 0.0
      %v1801 = vmax.f32 %v1736, 0.0
      %v1802 = vmax.f32 %v1739, 0.0
      %v1803 = vmax.f32 %v1742, 0.0
      %v1804 = vmax.f32 %v1745, 0.0
      %v1805 = vmax.f32 %v1748, 0.0
      %v1806 = vmax.f32 %v1751, 0.0
      %v1807 = vmax.f32 %v1754, 0.0
      %v1808 = vmax.f32 %v1757, 0.0
      %v1809 = vmax.f32 %v1760, 0.0
      %v1810 = vmax.f32 %v1763, 0.0
      %v1811 = vmax.f32 %v1766, 0.0
      %v1812 = vmax.f32 %v1769, 0.0
      %v1813 = vmax.f32 %v1772, 0.0
      %v1814 = vmax.f32 %v1775, 0.0
      %v1815 = vmax.f32 %v1778, 0.0
      %v1816 = vmax.f32 %v1781, 0.0
      %v1817 = vmax.f32 %v1784, 0.0
      %1818 = vst.msk [vmem:[%s170] sm:$0xff] %vm1276, %v1786
      %1819 = vst.msk [vmem:[%s170 + $0x8] sm:$0xff] %vm1276, %v1787
      %1820 = vst.msk [vmem:[%s170 + $0x20] sm:$0xff] %vm1276, %v1788
      %1821 = vst.msk [vmem:[%s170 + $0x28] sm:$0xff] %vm1276, %v1789
      %1822 = vst.msk [vmem:[%s170 + $0x40] sm:$0xff] %vm1276, %v1790
      %1823 = vst.msk [vmem:[%s170 + $0x48] sm:$0xff] %vm1276, %v1791
      %1824 = vst.msk [vmem:[%s170 + $0x60] sm:$0xff] %vm1276, %v1792
      %1825 = vst.msk [vmem:[%s170 + $0x68] sm:$0xff] %vm1276, %v1793
      %1826 = vst.msk [vmem:[%s170 + $0x80] sm:$0xff] %vm1276, %v1794
      %1827 = vst.msk [vmem:[%s170 + $0x88] sm:$0xff] %vm1276, %v1795
      %1828 = vst.msk [vmem:[%s170 + $0xa0] sm:$0xff] %vm1276, %v1796
      %1829 = vst.msk [vmem:[%s170 + $0xa8] sm:$0xff] %vm1276, %v1797
      %1830 = vst.msk [vmem:[%s170 + $0xc0] sm:$0xff] %vm1276, %v1798
      %1831 = vst.msk [vmem:[%s170 + $0xc8] sm:$0xff] %vm1276, %v1799
      %1832 = vst.msk [vmem:[%s170 + $0xe0] sm:$0xff] %vm1276, %v1800
      %1833 = vst.msk [vmem:[%s170 + $0xe8] sm:$0xff] %vm1276, %v1801
      %1834 = vst.msk [vmem:[%s170 + $0x100] sm:$0xff] %vm1276, %v1802
      %1835 = vst.msk [vmem:[%s170 + $0x108] sm:$0xff] %vm1276, %v1803
      %1836 = vst.msk [vmem:[%s170 + $0x120] sm:$0xff] %vm1276, %v1804
      %1837 = vst.msk [vmem:[%s170 + $0x128] sm:$0xff] %vm1276, %v1805
      %1838 = vst.msk [vmem:[%s170 + $0x140] sm:$0xff] %vm1276, %v1806
      %1839 = vst.msk [vmem:[%s170 + $0x148] sm:$0xff] %vm1276, %v1807
      %1840 = vst.msk [vmem:[%s170 + $0x160] sm:$0xff] %vm1276, %v1808
      %1841 = vst.msk [vmem:[%s170 + $0x168] sm:$0xff] %vm1276, %v1809
      %1842 = vst.msk [vmem:[%s170 + $0x180] sm:$0xff] %vm1276, %v1810
      %1843 = vst.msk [vmem:[%s170 + $0x188] sm:$0xff] %vm1276, %v1811
      %1844 = vst.msk [vmem:[%s170 + $0x1a0] sm:$0xff] %vm1276, %v1812
      %1845 = vst.msk [vmem:[%s170 + $0x1a8] sm:$0xff] %vm1276, %v1813
      %1846 = vst.msk [vmem:[%s170 + $0x1c0] sm:$0xff] %vm1276, %v1814
      %1847 = vst.msk [vmem:[%s170 + $0x1c8] sm:$0xff] %vm1276, %v1815
      %1848 = vst.msk [vmem:[%s170 + $0x1e0] sm:$0xff] %vm1276, %v1816
      %1849 = vst.msk [vmem:[%s170 + $0x1e8] sm:$0xff] %vm1276, %v1817
      %1882 = vrot.lane.b32.xlu0 %v1786, 96
      %v1883 = vpop.permute.xlu0 %1882
      %1884 = vrot.lane.b32.xlu0 %v1787, 96
      %v1885 = vpop.permute.xlu0 %1884
      %1886 = vrot.lane.b32.xlu0 %v1788, 96
      %v1887 = vpop.permute.xlu0 %1886
      %1888 = vrot.lane.b32.xlu0 %v1789, 96
      %v1889 = vpop.permute.xlu0 %1888
      %1890 = vrot.lane.b32.xlu0 %v1790, 96
      %v1891 = vpop.permute.xlu0 %1890
      %1892 = vrot.lane.b32.xlu0 %v1791, 96
      %v1893 = vpop.permute.xlu0 %1892
      %1894 = vrot.lane.b32.xlu0 %v1792, 96
      %v1895 = vpop.permute.xlu0 %1894
      %1896 = vrot.lane.b32.xlu0 %v1793, 96
      %v1897 = vpop.permute.xlu0 %1896
      %1898 = vrot.lane.b32.xlu0 %v1794, 96
      %v1899 = vpop.permute.xlu0 %1898
      %1900 = vrot.lane.b32.xlu0 %v1795, 96
      %v1901 = vpop.permute.xlu0 %1900
      %1902 = vrot.lane.b32.xlu0 %v1796, 96
      %v1903 = vpop.permute.xlu0 %1902
      %1904 = vrot.lane.b32.xlu0 %v1797, 96
      %v1905 = vpop.permute.xlu0 %1904
      %1906 = vrot.lane.b32.xlu0 %v1798, 96
      %v1907 = vpop.permute.xlu0 %1906
      %1908 = vrot.lane.b32.xlu0 %v1799, 96
      %v1909 = vpop.permute.xlu0 %1908
      %1910 = vrot.lane.b32.xlu0 %v1800, 96
      %v1911 = vpop.permute.xlu0 %1910
      %1912 = vrot.lane.b32.xlu0 %v1801, 96
      %v1913 = vpop.permute.xlu0 %1912
      %1914 = vrot.lane.b32.xlu0 %v1802, 96
      %v1915 = vpop.permute.xlu0 %1914
      %1916 = vrot.lane.b32.xlu0 %v1803, 96
      %v1917 = vpop.permute.xlu0 %1916
      %1918 = vrot.lane.b32.xlu0 %v1804, 96
      %v1919 = vpop.permute.xlu0 %1918
      %1920 = vrot.lane.b32.xlu0 %v1805, 96
      %v1921 = vpop.permute.xlu0 %1920
      %1922 = vrot.lane.b32.xlu0 %v1806, 96
      %v1923 = vpop.permute.xlu0 %1922
      %1924 = vrot.lane.b32.xlu0 %v1807, 96
      %v1925 = vpop.permute.xlu0 %1924
      %1926 = vrot.lane.b32.xlu0 %v1808, 96
      %v1927 = vpop.permute.xlu0 %1926
      %1928 = vrot.lane.b32.xlu0 %v1809, 96
      %v1929 = vpop.permute.xlu0 %1928
      %1930 = vrot.lane.b32.xlu0 %v1810, 96
      %v1931 = vpop.permute.xlu0 %1930
      %1932 = vrot.lane.b32.xlu0 %v1811, 96
      %v1933 = vpop.permute.xlu0 %1932
      %1934 = vrot.lane.b32.xlu0 %v1812, 96
      %v1935 = vpop.permute.xlu0 %1934
      %1936 = vrot.lane.b32.xlu0 %v1813, 96
      %v1937 = vpop.permute.xlu0 %1936
      %1938 = vrot.lane.b32.xlu0 %v1814, 96
      %v1939 = vpop.permute.xlu0 %1938
      %1940 = vrot.lane.b32.xlu0 %v1815, 96
      %v1941 = vpop.permute.xlu0 %1940
      %1942 = vrot.lane.b32.xlu0 %v1816, 96
      %v1943 = vpop.permute.xlu0 %1942
      %1944 = vrot.lane.b32.xlu0 %v1817, 96
      %v1945 = vpop.permute.xlu0 %1944
      %s1978 = scalar_lea.vmem %s170, 16
      %1979 = vst.msk [vmem:[%s1978] sm:$0xff] %vm1276, %v1883
      %1980 = vst.msk [vmem:[%s1978 + $0x8] sm:$0xff] %vm1276, %v1885
      %1981 = vst.msk [vmem:[%s1978 + $0x20] sm:$0xff] %vm1276, %v1887
      %1982 = vst.msk [vmem:[%s1978 + $0x28] sm:$0xff] %vm1276, %v1889
      %1983 = vst.msk [vmem:[%s1978 + $0x40] sm:$0xff] %vm1276, %v1891
      %1984 = vst.msk [vmem:[%s1978 + $0x48] sm:$0xff] %vm1276, %v1893
      %1985 = vst.msk [vmem:[%s1978 + $0x60] sm:$0xff] %vm1276, %v1895
      %1986 = vst.msk [vmem:[%s1978 + $0x68] sm:$0xff] %vm1276, %v1897
      %1987 = vst.msk [vmem:[%s1978 + $0x80] sm:$0xff] %vm1276, %v1899
      %1988 = vst.msk [vmem:[%s1978 + $0x88] sm:$0xff] %vm1276, %v1901
      %1989 = vst.msk [vmem:[%s1978 + $0xa0] sm:$0xff] %vm1276, %v1903
      %1990 = vst.msk [vmem:[%s1978 + $0xa8] sm:$0xff] %vm1276, %v1905
      %1991 = vst.msk [vmem:[%s1978 + $0xc0] sm:$0xff] %vm1276, %v1907
      %1992 = vst.msk [vmem:[%s1978 + $0xc8] sm:$0xff] %vm1276, %v1909
      %1993 = vst.msk [vmem:[%s1978 + $0xe0] sm:$0xff] %vm1276, %v1911
      %1994 = vst.msk [vmem:[%s1978 + $0xe8] sm:$0xff] %vm1276, %v1913
      %1995 = vst.msk [vmem:[%s1978 + $0x100] sm:$0xff] %vm1276, %v1915
      %1996 = vst.msk [vmem:[%s1978 + $0x108] sm:$0xff] %vm1276, %v1917
      %1997 = vst.msk [vmem:[%s1978 + $0x120] sm:$0xff] %vm1276, %v1919
      %1998 = vst.msk [vmem:[%s1978 + $0x128] sm:$0xff] %vm1276, %v1921
      %1999 = vst.msk [vmem:[%s1978 + $0x140] sm:$0xff] %vm1276, %v1923
      %2000 = vst.msk [vmem:[%s1978 + $0x148] sm:$0xff] %vm1276, %v1925
      %2001 = vst.msk [vmem:[%s1978 + $0x160] sm:$0xff] %vm1276, %v1927
      %2002 = vst.msk [vmem:[%s1978 + $0x168] sm:$0xff] %vm1276, %v1929
      %2003 = vst.msk [vmem:[%s1978 + $0x180] sm:$0xff] %vm1276, %v1931
      %2004 = vst.msk [vmem:[%s1978 + $0x188] sm:$0xff] %vm1276, %v1933
      %2005 = vst.msk [vmem:[%s1978 + $0x1a0] sm:$0xff] %vm1276, %v1935
      %2006 = vst.msk [vmem:[%s1978 + $0x1a8] sm:$0xff] %vm1276, %v1937
      %2007 = vst.msk [vmem:[%s1978 + $0x1c0] sm:$0xff] %vm1276, %v1939
      %2008 = vst.msk [vmem:[%s1978 + $0x1c8] sm:$0xff] %vm1276, %v1941
      %2009 = vst.msk [vmem:[%s1978 + $0x1e0] sm:$0xff] %vm1276, %v1943
      %2010 = vst.msk [vmem:[%s1978 + $0x1e8] sm:$0xff] %vm1276, %v1945
      %p2011 = scmp.lt.s32.totalorder %s14, 1
      %s2012 = scalar_select %p2011, %s14, 1
      %s2013 = smul.addr %s2012, 64
      %s2014 = smul.addr %s2013, 8
      %s2015 = scalar_lea.vmem %s3, %s2014
      // Predicated region
      $region33: #{upsample_block.2} parent=31 // pred_check
        %p2016 = pneg %p100
      $region34: #{upsample_block.2} parent=31 // pred_check_branch
        %2018 = sbr.rel (%p2016) target = $region36
      $region35: #{upsample_block.2} parent=31 // pred_region
        _
      $region36: #{upsample_block.2} parent=31 // pred_fallthru
        _
    $region32: #{upsample_block.2} parent=5 // pred_fallthru
      _
    %p2019 = scmp.le.s32.totalorder 2, %s9
    // Predicated region
    $region37: #{upsample_block.2} parent=5 // pred_check
      %p2020 = pneg %p2019
    $region38: #{upsample_block.2} parent=5 // pred_check_branch
      %2022 = sbr.rel (%p2020) target = $region40
    $region39: #{upsample_block.2} parent=5 // pred_region
      %s2023 = ssub.s32 %s9, 2
      // Predicated region
      $region41: #{upsample_block.2} parent=39 // pred_check
        %p2024 = pneg %p106
      $region42: #{upsample_block.2} parent=39 // pred_check_branch
        %2026 = sbr.rel (%p2024) target = $region44
      $region43: #{upsample_block.2} parent=39 // pred_region
        %p2027 = scmp.lt.s32.totalorder %s15, 1
        %s2028 = scalar_select %p2027, %s15, 1
        %s2029 = smul.addr %s2028, 64
        %s2030 = smul.addr %s2029, 8
        %s2031 = scalar_lea.vmem %s3, %s2030
      $region44: #{upsample_block.2} parent=39 // pred_fallthru
        _
    $region40: #{upsample_block.2} parent=5 // pred_fallthru
      _
  $region6: #{upsample_block.2} parent=0 // loop_footer
    %s13 = sadd.s32 1, %s9
  $region7: #{upsample_block.2} parent=0 // loop_footer_branch
    %8 = sbr.rel target = $region3
  $region8: #{upsample_block.2} parent=0 // loop_exit
    _

// kernel: upsample_block.3
$region0: #{upsample_block.3}
  #allocation0 [shape = 'u32[]', space=smem, size = 0x4, offset = 0x4, fixed_abs, tag = 'smem constant byte address 0x4 - core index']
  #allocation1 [shape = 'u32[72,128]{1,0:T(1,128)}', space=vmem, size = 0x9000, scoped, tag = 'internal scratch']
  #allocation2 [shape = 'f32[34,34,16]{2,1,0:T(8,128)}', space=vmem, size = 0xaa000, scoped, tag = 'scratch operand']
  %s0 = inlined_call_operand.vmem [shape: f32[2,32,32,16], index: 0, kind: input, shape index: {}]
  %s1 = inlined_call_operand.vmem [shape: f32[144,64], index: 1, kind: input, shape index: {}]
  %s2 = inlined_call_operand.vmem [shape: f32[1,64], index: 2, kind: input, shape index: {}]
  %s3 = inlined_call_operand.vmem [shape: f32[2,32,2,32,32], index: 3, kind: output, shape index: {}]
  %s4 = sld [smem:[#allocation0]]
  $region45: #{upsample_block.3} parent=0
    _
  %s6 = ssub.s32 1, %s4
  %s7 = scalar_select 0, %s6, %s4
  loop: start=0, step=1, limit=4
  $region2: #{upsample_block.3} parent=0 // loop_pre_header
    _
  $region3: #{upsample_block.3} parent=0 // loop_header
    %s9 = sphi 0, %s13
    %p10 = scmp.ge.s32.totalorder %s9, 4
    %s19 = sphi 0, %s21
    %s22 = sphi 0, %s19
    %s23 = sphi 0, %s22
    %s39 = sphi 0, %s23
    %s43 = sphi 0, %s43
    %s45 = sphi 0, %s43
    %s46 = sphi 0, %s45
    %s60 = sphi 0, %s46
    %s64 = sphi 0, %s64
    %s66 = sphi 0, %s64
    %s67 = sphi 0, %s66
    %s81 = sphi 0, %s67
    %s87 = sphi 0, %s89
    %s90 = sphi 0, %s87
    %s91 = sphi 0, %s90
    %s107 = sphi 0, %s91
  $region4: #{upsample_block.3} parent=0 // loop_header_branch
    %12 = sbr.rel (%p10) target = $region8
  $region5: #{upsample_block.3} parent=0 // loop_body
    %s14 = ssub.s32 %s9, 1
    %s15 = ssub.s32 %s9, 2
    %s16 = sadd.s32 %s9, 1
    %s17 = ssub.s32 %s9, %s16
    %p18 = scmp.eq.s32.totalorder %s17, 0
    %s20 = sadd.s32 %s19, 1
    %s21 = scalar_select %p18, %s19, %s20
    %p24 = pneg %p18
    %p25 = scmp.eq.s32.totalorder %s9, 1
    %p26 = por %p24, %p25
    %p27 = scmp.ne.s32.totalorder %s19, %s22
    %p28 = scmp.eq.s32.totalorder %s9, 0
    %p29 = por %p27, %p28
    %p30 = scmp.ne.s32.totalorder %s19, %s22
    %p31 = scmp.eq.s32.totalorder %s14, 1
    %p32 = por %p30, %p31
    %p33 = scmp.ne.s32.totalorder %s22, %s23
    %p34 = scmp.eq.s32.totalorder %s14, 0
    %p35 = por %p33, %p34
    %p36 = scmp.ne.s32.totalorder %s22, %s23
    %p37 = scmp.eq.s32.totalorder %s15, 1
    %p38 = por %p36, %p37
    %p40 = scmp.ne.s32.totalorder %s23, %s39
    %p41 = scmp.eq.s32.totalorder %s15, 0
    %p42 = por %p40, %p41
    %s44 = sadd.s32 %s43, 1
    %p47 = scmp.eq.s32.totalorder %s9, 1
    %p48 = scmp.ne.s32.totalorder %s43, %s45
    %p49 = scmp.eq.s32.totalorder %s9, 0
    %p50 = por %p48, %p49
    %p51 = scmp.ne.s32.totalorder %s43, %s45
    %p52 = scmp.eq.s32.totalorder %s14, 1
    %p53 = por %p51, %p52
    %p54 = scmp.ne.s32.totalorder %s45, %s46
    %p55 = scmp.eq.s32.totalorder %s14, 0
    %p56 = por %p54, %p55
    %p57 = scmp.ne.s32.totalorder %s45, %s46
    %p58 = scmp.eq.s32.totalorder %s15, 1
    %p59 = por %p57, %p58
    %p61 = scmp.ne.s32.totalorder %s46, %s60
    %p62 = scmp.eq.s32.totalorder %s15, 0
    %p63 = por %p61, %p62
    %s65 = sadd.s32 %s64, 1
    %p68 = scmp.eq.s32.totalorder %s9, 1
    %p69 = scmp.ne.s32.totalorder %s64, %s66
    %p70 = scmp.eq.s32.totalorder %s9, 0
    %p71 = por %p69, %p70
    %p72 = scmp.ne.s32.totalorder %s64, %s66
    %p73 = scmp.eq.s32.totalorder %s14, 1
    %p74 = por %p72, %p73
    %p75 = scmp.ne.s32.totalorder %s66, %s67
    %p76 = scmp.eq.s32.totalorder %s14, 0
    %p77 = por %p75, %p76
    %p78 = scmp.ne.s32.totalorder %s66, %s67
    %p79 = scmp.eq.s32.totalorder %s15, 1
    %p80 = por %p78, %p79
    %p82 = scmp.ne.s32.totalorder %s67, %s81
    %p83 = scmp.eq.s32.totalorder %s15, 0
    %p84 = por %p82, %p83
    %s85 = ssub.s32 %s9, %s16
    %p86 = scmp.eq.s32.totalorder %s85, 0
    %s88 = sadd.s32 %s87, 1
    %s89 = scalar_select %p86, %s87, %s88
    %p92 = pneg %p86
    %p93 = scmp.eq.s32.totalorder %s9, 1
    %p94 = por %p92, %p93
    %p95 = scmp.ne.s32.totalorder %s87, %s90
    %p96 = scmp.eq.s32.totalorder %s9, 0
    %p97 = por %p95, %p96
    %p98 = scmp.ne.s32.totalorder %s87, %s90
    %p99 = scmp.eq.s32.totalorder %s14, 1
    %p100 = por %p98, %p99
    %p101 = scmp.ne.s32.totalorder %s90, %s91
    %p102 = scmp.eq.s32.totalorder %s14, 0
    %p103 = por %p101, %p102
    %p104 = scmp.ne.s32.totalorder %s90, %s91
    %p105 = scmp.eq.s32.totalorder %s15, 1
    %p106 = por %p104, %p105
    %p108 = scmp.ne.s32.totalorder %s91, %s107
    %p109 = scmp.eq.s32.totalorder %s15, 0
    %p110 = por %p108, %p109
    %p111 = scmp.le.s32.totalorder 1, %s9
    %p112 = scmp.lt.s32.totalorder %s9, 3
    %p113 = pnand %p111, %p112
    %p114 = pneg %p113
    // Predicated region
    $region9: #{upsample_block.3} parent=5 // pred_check
      _
    $region10: #{upsample_block.3} parent=5 // pred_check_branch
      %116 = sbr.rel (%p113) target = $region12
    $region11: #{upsample_block.3} parent=5 // pred_region
      %s117 = ssub.s32 %s9, 1
      // Predicated region
      $region13: #{upsample_block.3} parent=11 // pred_check
        %p118 = pneg %p56
      $region14: #{upsample_block.3} parent=11 // pred_check_branch
        %120 = sbr.rel (%p118) target = $region16
      $region15: #{upsample_block.3} parent=11 // pred_region
        _
      $region16: #{upsample_block.3} parent=11 // pred_fallthru
        _
      // Predicated region
      $region17: #{upsample_block.3} parent=11 // pred_check
        %p121 = pneg %p77
      $region18: #{upsample_block.3} parent=11 // pred_check_branch
        %123 = sbr.rel (%p121) target = $region20
      $region19: #{upsample_block.3} parent=11 // pred_region
        _
      $region20: #{upsample_block.3} parent=11 // pred_fallthru
        _
    $region12: #{upsample_block.3} parent=5 // pred_fallthru
      _
    %p124 = scmp.lt.s32.totalorder %s9, 2
    // Predicated region
    $region21: #{upsample_block.3} parent=5 // pred_check
      %p125 = pneg %p124
    $region22: #{upsample_block.3} parent=5 // pred_check_branch
      %127 = sbr.rel (%p125) target = $region24
    $region23: #{upsample_block.3} parent=5 // pred_region
      // Predicated region
      $region25: #{upsample_block.3} parent=23 // pred_check
        %p128 = pneg %p29
      $region26: #{upsample_block.3} parent=23 // pred_check_branch
        %130 = sbr.rel (%p128) target = $region28
      $region27: #{upsample_block.3} parent=23 // pred_region
        %p131 = scmp.lt.s32.totalorder %s9, 1
        %s132 = scalar_select %p131, %s9, 1
        %s133 = smul.addr %s132, 128
        %s134 = smul.addr %s133, 8
        %s135 = scalar_lea.vmem %s0, %s134
      $region28: #{upsample_block.3} parent=23 // pred_fallthru
        _
    $region24: #{upsample_block.3} parent=5 // pred_fallthru
      _
    %p136 = scmp.le.s32.totalorder 1, %s9
    %p137 = scmp.lt.s32.totalorder %s9, 3
    %p138 = pnand %p136, %p137
    %p139 = pneg %p138
    // Predicated region
    $region29: #{upsample_block.3} parent=5 // pred_check
      _
    $region30: #{upsample_block.3} parent=5 // pred_check_branch
      %141 = sbr.rel (%p138) target = $region32
    $region31: #{upsample_block.3} parent=5 // pred_region
      %s142 = ssub.s32 %s9, 1
      %p143 = scmp.lt.s32.totalorder %s14, 1
      %s144 = scalar_select %p143, %s14, 1
      %s145 = smul.addr %s144, 128
      %s146 = smul.addr %s145, 8
      %s147 = scalar_lea.vmem %s0, %s146
      %p148 = pneg %p35
      %p149 = pneg %p32
      %p150 = pneg %p56
      %p151 = pneg %p53
      %p152 = pneg %p77
      %p153 = pneg %p74
      %p154 = pneg %p103
      %p155 = pneg %p100
      %p156 = scmp.lt.s32.totalorder %s14, 1
      %s157 = scalar_select %p156, %s14, 1
      %s158 = smul.addr %s157, 256
      %s159 = smul.addr %s158, 8
      %s160 = scalar_lea.vmem %s3, %s159
      %p161 = scmp.lt.s32.totalorder %s14, 1
      %s162 = scalar_select %p161, %s14, 1
      %s163 = smul.addr %s162, 128
      %s164 = smul.addr %s163, 8
      %s165 = scalar_lea.vmem %s0, %s164
      %p166 = scmp.lt.s32.totalorder %s14, 1
      %s167 = scalar_select %p166, %s14, 1
      %s168 = smul.addr %s167, 256
      %s169 = smul.addr %s168, 8
      %s170 = scalar_lea.vmem %s3, %s169
      %vm171 = vcmask 130048
      %172 = vst.msk [vmem:[#allocation2] sm:$0xff] %vm171, 0.0
      %173 = vst.msk [vmem:[#allocation2 + $0x8] sm:$0xff] %vm171, 0.0
      %174 = vst.msk [vmem:[#allocation2 + $0x10] sm:$0xff] %vm171, 0.0
      %175 = vst.msk [vmem:[#allocation2 + $0x18] sm:$0xff] %vm171, 0.0
      %vm176 = vcmask 123904
      %177 = vst.msk [vmem:[#allocation2 + $0x20] sm:$0x3] %vm176, 0.0
      %s178 = scalar_lea.vmem [#allocation2], 1320
      %179 = vst.msk [vmem:[%s178] sm:$0xff] %vm171, 0.0
      %180 = vst.msk [vmem:[%s178 + $0x8] sm:$0xff] %vm171, 0.0
      %181 = vst.msk [vmem:[%s178 + $0x10] sm:$0xff] %vm171, 0.0
      %182 = vst.msk [vmem:[%s178 + $0x18] sm:$0xff] %vm171, 0.0
      %183 = vst.msk [vmem:[%s178 + $0x20] sm:$0x3] %vm176, 0.0
      %vm184 = vcmask 122880
      %185 = vst.msk [vmem:[#allocation2] sm:$0x1] %vm184, 0.0
      %186 = vst.msk [vmem:[#allocation2 + $0x28] sm:$0x1] %vm184, 0.0
      %187 = vst.msk [vmem:[#allocation2 + $0x50] sm:$0x1] %vm184, 0.0
      %188 = vst.msk [vmem:[#allocation2 + $0x78] sm:$0x1] %vm184, 0.0
      %189 = vst.msk [vmem:[#allocation2 + $0xa0] sm:$0x1] %vm184, 0.0
      %190 = vst.msk [vmem:[#allocation2 + $0xc8] sm:$0x1] %vm184, 0.0
      %191 = vst.msk [vmem:[#allocation2 + $0xf0] sm:$0x1] %vm184, 0.0
      %192 = vst.msk [vmem:[#allocation2 + $0x118] sm:$0x1] %vm184, 0.0
      %193 = vst.msk [vmem:[#allocation2 + $0x140] sm:$0x1] %vm184, 0.0
      %194 = vst.msk [vmem:[#allocation2 + $0x168] sm:$0x1] %vm184, 0.0
      %195 = vst.msk [vmem:[#allocation2 + $0x190] sm:$0x1] %vm184, 0.0
      %196 = vst.msk [vmem:[#allocation2 + $0x1b8] sm:$0x1] %vm184, 0.0
      %197 = vst.msk [vmem:[#allocation2 + $0x1e0] sm:$0x1] %vm184, 0.0
      %198 = vst.msk [vmem:[#allocation2 + $0x208] sm:$0x1] %vm184, 0.0
      %199 = vst.msk [vmem:[#allocation2 + $0x230] sm:$0x1] %vm184, 0.0
      %200 = vst.msk [vmem:[#allocation2 + $0x258] sm:$0x1] %vm184, 0.0
      %201 = vst.msk [vmem:[#allocation2 + $0x280] sm:$0x1] %vm184, 0.0
      %202 = vst.msk [vmem:[#allocation2 + $0x2a8] sm:$0x1] %vm184, 0.0
      %203 = vst.msk [vmem:[#allocation2 + $0x2d0] sm:$0x1] %vm184, 0.0
      %204 = vst.msk [vmem:[#allocation2 + $0x2f8] sm:$0x1] %vm184, 0.0
      %205 = vst.msk [vmem:[#allocation2 + $0x320] sm:$0x1] %vm184, 0.0
      %206 = vst.msk [vmem:[#allocation2 + $0x348] sm:$0x1] %vm184, 0.0
      %207 = vst.msk [vmem:[#allocation2 + $0x370] sm:$0x1] %vm184, 0.0
      %208 = vst.msk [vmem:[#allocation2 + $0x398] sm:$0x1] %vm184, 0.0
      %209 = vst.msk [vmem:[#allocation2 + $0x3c0] sm:$0x1] %vm184, 0.0
      %210 = vst.msk [vmem:[#allocation2 + $0x3e8] sm:$0x1] %vm184, 0.0
      %211 = vst.msk [vmem:[#allocation2 + $0x410] sm:$0x1] %vm184, 0.0
      %212 = vst.msk [vmem:[#allocation2 + $0x438] sm:$0x1] %vm184, 0.0
      %213 = vst.msk [vmem:[#allocation2 + $0x460] sm:$0x1] %vm184, 0.0
      %214 = vst.msk [vmem:[#allocation2 + $0x488] sm:$0x1] %vm184, 0.0
      %215 = vst.msk [vmem:[#allocation2 + $0x4b0] sm:$0x1] %vm184, 0.0
      %216 = vst.msk [vmem:[#allocation2 + $0x4d8] sm:$0x1] %vm184, 0.0
      %217 = vst.msk [vmem:[#allocation2 + $0x500] sm:$0x1] %vm184, 0.0
      %218 = vst.msk [vmem:[#allocation2 + $0x528] sm:$0x1] %vm184, 0.0
      %219 = vst.msk [vmem:[#allocation2 + $0x21] sm:$0x1] %vm184, 0.0
      %220 = vst.msk [vmem:[#allocation2 + $0x49] sm:$0x1] %vm184, 0.0
      %221 = vst.msk [vmem:[#allocation2 + $0x71] sm:$0x1] %vm184, 0.0
      %222 = vst.msk [vmem:[#allocation2 + $0x99] sm:$0x1] %vm184, 0.0
      %223 = vst.msk [vmem:[#allocation2 + $0xc1] sm:$0x1] %vm184, 0.0
      %224 = vst.msk [vmem:[#allocation2 + $0xe9] sm:$0x1] %vm184, 0.0
      %225 = vst.msk [vmem:[#allocation2 + $0x111] sm:$0x1] %vm184, 0.0
      %226 = vst.msk [vmem:[#allocation2 + $0x139] sm:$0x1] %vm184, 0.0
      %227 = vst.msk [vmem:[#allocation2 + $0x161] sm:$0x1] %vm184, 0.0
      %228 = vst.msk [vmem:[#allocation2 + $0x189] sm:$0x1] %vm184, 0.0
      %229 = vst.msk [vmem:[#allocation2 + $0x1b1] sm:$0x1] %vm184, 0.0
      %230 = vst.msk [vmem:[#allocation2 + $0x1d9] sm:$0x1] %vm184, 0.0
      %231 = vst.msk [vmem:[#allocation2 + $0x201] sm:$0x1] %vm184, 0.0
      %232 = vst.msk [vmem:[#allocation2 + $0x229] sm:$0x1] %vm184, 0.0
      %233 = vst.msk [vmem:[#allocation2 + $0x251] sm:$0x1] %vm184, 0.0
      %234 = vst.msk [vmem:[#allocation2 + $0x279] sm:$0x1] %vm184, 0.0
      %235 = vst.msk [vmem:[#allocation2 + $0x2a1] sm:$0x1] %vm184, 0.0
      %236 = vst.msk [vmem:[#allocation2 + $0x2c9] sm:$0x1] %vm184, 0.0
      %237 = vst.msk [vmem:[#allocation2 + $0x2f1] sm:$0x1] %vm184, 0.0
      %238 = vst.msk [vmem:[#allocation2 + $0x319] sm:$0x1] %vm184, 0.0
      %239 = vst.msk [vmem:[#allocation2 + $0x341] sm:$0x1] %vm184, 0.0
      %240 = vst.msk [vmem:[#allocation2 + $0x369] sm:$0x1] %vm184, 0.0
      %241 = vst.msk [vmem:[#allocation2 + $0x391] sm:$0x1] %vm184, 0.0
      %242 = vst.msk [vmem:[#allocation2 + $0x3b9] sm:$0x1] %vm184, 0.0
      %243 = vst.msk [vmem:[#allocation2 + $0x3e1] sm:$0x1] %vm184, 0.0
      %244 = vst.msk [vmem:[#allocation2 + $0x409] sm:$0x1] %vm184, 0.0
      %245 = vst.msk [vmem:[#allocation2 + $0x431] sm:$0x1] %vm184, 0.0
      %246 = vst.msk [vmem:[#allocation2 + $0x459] sm:$0x1] %vm184, 0.0
      %247 = vst.msk [vmem:[#allocation2 + $0x481] sm:$0x1] %vm184, 0.0
      %248 = vst.msk [vmem:[#allocation2 + $0x4a9] sm:$0x1] %vm184, 0.0
      %249 = vst.msk [vmem:[#allocation2 + $0x4d1] sm:$0x1] %vm184, 0.0
      %250 = vst.msk [vmem:[#allocation2 + $0x4f9] sm:$0x1] %vm184, 0.0
      %251 = vst.msk [vmem:[#allocation2 + $0x521] sm:$0x1] %vm184, 0.0
      %252 = vst.msk [vmem:[#allocation2 + $0x549] sm:$0x1] %vm184, 0.0
      %v253 = vld [vmem:[%s165] sm:$0xff]
      %v254 = vld [vmem:[%s165 + $0x8] sm:$0xff]
      %v255 = vld [vmem:[%s165 + $0x10] sm:$0xff]
      %v256 = vld [vmem:[%s165 + $0x18] sm:$0xff]
      %v257 = vld [vmem:[%s165 + $0x20] sm:$0xff]
      %v258 = vld [vmem:[%s165 + $0x28] sm:$0xff]
      %v259 = vld [vmem:[%s165 + $0x30] sm:$0xff]
      %v260 = vld [vmem:[%s165 + $0x38] sm:$0xff]
      %v261 = vld [vmem:[%s165 + $0x40] sm:$0xff]
      %v262 = vld [vmem:[%s165 + $0x48] sm:$0xff]
      %v263 = vld [vmem:[%s165 + $0x50] sm:$0xff]
      %v264 = vld [vmem:[%s165 + $0x58] sm:$0xff]
      %v265 = vld [vmem:[%s165 + $0x60] sm:$0xff]
      %v266 = vld [vmem:[%s165 + $0x68] sm:$0xff]
      %v267 = vld [vmem:[%s165 + $0x70] sm:$0xff]
      %v268 = vld [vmem:[%s165 + $0x78] sm:$0xff]
      %v269 = vld [vmem:[%s165 + $0x80] sm:$0xff]
      %v270 = vld [vmem:[%s165 + $0x88] sm:$0xff]
      %v271 = vld [vmem:[%s165 + $0x90] sm:$0xff]
      %v272 = vld [vmem:[%s165 + $0x98] sm:$0xff]
      %v273 = vld [vmem:[%s165 + $0xa0] sm:$0xff]
      %v274 = vld [vmem:[%s165 + $0xa8] sm:$0xff]
      %v275 = vld [vmem:[%s165 + $0xb0] sm:$0xff]
      %v276 = vld [vmem:[%s165 + $0xb8] sm:$0xff]
      %v277 = vld [vmem:[%s165 + $0xc0] sm:$0xff]
      %v278 = vld [vmem:[%s165 + $0xc8] sm:$0xff]
      %v279 = vld [vmem:[%s165 + $0xd0] sm:$0xff]
      %v280 = vld [vmem:[%s165 + $0xd8] sm:$0xff]
      %v281 = vld [vmem:[%s165 + $0xe0] sm:$0xff]
      %v282 = vld [vmem:[%s165 + $0xe8] sm:$0xff]
      %v283 = vld [vmem:[%s165 + $0xf0] sm:$0xff]
      %v284 = vld [vmem:[%s165 + $0xf8] sm:$0xff]
      %v285 = vld [vmem:[%s165 + $0x100] sm:$0xff]
      %v286 = vld [vmem:[%s165 + $0x108] sm:$0xff]
      %v287 = vld [vmem:[%s165 + $0x110] sm:$0xff]
      %v288 = vld [vmem:[%s165 + $0x118] sm:$0xff]
      %v289 = vld [vmem:[%s165 + $0x120] sm:$0xff]
      %v290 = vld [vmem:[%s165 + $0x128] sm:$0xff]
      %v291 = vld [vmem:[%s165 + $0x130] sm:$0xff]
      %v292 = vld [vmem:[%s165 + $0x138] sm:$0xff]
      %v293 = vld [vmem:[%s165 + $0x140] sm:$0xff]
      %v294 = vld [vmem:[%s165 + $0x148] sm:$0xff]
      %v295 = vld [vmem:[%s165 + $0x150] sm:$0xff]
      %v296 = vld [vmem:[%s165 + $0x158] sm:$0xff]
      %v297 = vld [vmem:[%s165 + $0x160] sm:$0xff]
      %v298 = vld [vmem:[%s165 + $0x168] sm:$0xff]
      %v299 = vld [vmem:[%s165 + $0x170] sm:$0xff]
      %v300 = vld [vmem:[%s165 + $0x178] sm:$0xff]
      %v301 = vld [vmem:[%s165 + $0x180] sm:$0xff]
      %v302 = vld [vmem:[%s165 + $0x188] sm:$0xff]
      %v303 = vld [vmem:[%s165 + $0x190] sm:$0xff]
      %v304 = vld [vmem:[%s165 + $0x198] sm:$0xff]
      %v305 = vld [vmem:[%s165 + $0x1a0] sm:$0xff]
      %v306 = vld [vmem:[%s165 + $0x1a8] sm:$0xff]
      %v307 = vld [vmem:[%s165 + $0x1b0] sm:$0xff]
      %v308 = vld [vmem:[%s165 + $0x1b8] sm:$0xff]
      %v309 = vld [vmem:[%s165 + $0x1c0] sm:$0xff]
      %v310 = vld [vmem:[%s165 + $0x1c8] sm:$0xff]
      %v311 = vld [vmem:[%s165 + $0x1d0] sm:$0xff]
      %v312 = vld [vmem:[%s165 + $0x1d8] sm:$0xff]
      %v313 = vld [vmem:[%s165 + $0x1e0] sm:$0xff]
      %v314 = vld [vmem:[%s165 + $0x1e8] sm:$0xff]
      %v315 = vld [vmem:[%s165 + $0x1f0] sm:$0xff]
      %v316 = vld [vmem:[%s165 + $0x1f8] sm:$0xff]
      %v317 = vld [vmem:[%s165 + $0x200] sm:$0xff]
      %v318 = vld [vmem:[%s165 + $0x208] sm:$0xff]
      %v319 = vld [vmem:[%s165 + $0x210] sm:$0xff]
      %v320 = vld [vmem:[%s165 + $0x218] sm:$0xff]
      %v321 = vld [vmem:[%s165 + $0x220] sm:$0xff]
      %v322 = vld [vmem:[%s165 + $0x228] sm:$0xff]
      %v323 = vld [vmem:[%s165 + $0x230] sm:$0xff]
      %v324 = vld [vmem:[%s165 + $0x238] sm:$0xff]
      %v325 = vld [vmem:[%s165 + $0x240] sm:$0xff]
      %v326 = vld [vmem:[%s165 + $0x248] sm:$0xff]
      %v327 = vld [vmem:[%s165 + $0x250] sm:$0xff]
      %v328 = vld [vmem:[%s165 + $0x258] sm:$0xff]
      %v329 = vld [vmem:[%s165 + $0x260] sm:$0xff]
      %v330 = vld [vmem:[%s165 + $0x268] sm:$0xff]
      %v331 = vld [vmem:[%s165 + $0x270] sm:$0xff]
      %v332 = vld [vmem:[%s165 + $0x278] sm:$0xff]
      %v333 = vld [vmem:[%s165 + $0x280] sm:$0xff]
      %v334 = vld [vmem:[%s165 + $0x288] sm:$0xff]
      %v335 = vld [vmem:[%s165 + $0x290] sm:$0xff]
      %v336 = vld [vmem:[%s165 + $0x298] sm:$0xff]
      %v337 = vld [vmem:[%s165 + $0x2a0] sm:$0xff]
      %v338 = vld [vmem:[%s165 + $0x2a8] sm:$0xff]
      %v339 = vld [vmem:[%s165 + $0x2b0] sm:$0xff]
      %v340 = vld [vmem:[%s165 + $0x2b8] sm:$0xff]
      %v341 = vld [vmem:[%s165 + $0x2c0] sm:$0xff]
      %v342 = vld [vmem:[%s165 + $0x2c8] sm:$0xff]
      %v343 = vld [vmem:[%s165 + $0x2d0] sm:$0xff]
      %v344 = vld [vmem:[%s165 + $0x2d8] sm:$0xff]
      %v345 = vld [vmem:[%s165 + $0x2e0] sm:$0xff]
      %v346 = vld [vmem:[%s165 + $0x2e8] sm:$0xff]
      %v347 = vld [vmem:[%s165 + $0x2f0] sm:$0xff]
      %v348 = vld [vmem:[%s165 + $0x2f8] sm:$0xff]
      %v349 = vld [vmem:[%s165 + $0x300] sm:$0xff]
      %v350 = vld [vmem:[%s165 + $0x308] sm:$0xff]
      %v351 = vld [vmem:[%s165 + $0x310] sm:$0xff]
      %v352 = vld [vmem:[%s165 + $0x318] sm:$0xff]
      %v353 = vld [vmem:[%s165 + $0x320] sm:$0xff]
      %v354 = vld [vmem:[%s165 + $0x328] sm:$0xff]
      %v355 = vld [vmem:[%s165 + $0x330] sm:$0xff]
      %v356 = vld [vmem:[%s165 + $0x338] sm:$0xff]
      %v357 = vld [vmem:[%s165 + $0x340] sm:$0xff]
      %v358 = vld [vmem:[%s165 + $0x348] sm:$0xff]
      %v359 = vld [vmem:[%s165 + $0x350] sm:$0xff]
      %v360 = vld [vmem:[%s165 + $0x358] sm:$0xff]
      %v361 = vld [vmem:[%s165 + $0x360] sm:$0xff]
      %v362 = vld [vmem:[%s165 + $0x368] sm:$0xff]
      %v363 = vld [vmem:[%s165 + $0x370] sm:$0xff]
      %v364 = vld [vmem:[%s165 + $0x378] sm:$0xff]
      %v365 = vld [vmem:[%s165 + $0x380] sm:$0xff]
      %v366 = vld [vmem:[%s165 + $0x388] sm:$0xff]
      %v367 = vld [vmem:[%s165 + $0x390] sm:$0xff]
      %v368 = vld [vmem:[%s165 + $0x398] sm:$0xff]
      %v369 = vld [vmem:[%s165 + $0x3a0] sm:$0xff]
      %v370 = vld [vmem:[%s165 + $0x3a8] sm:$0xff]
      %v371 = vld [vmem:[%s165 + $0x3b0] sm:$0xff]
      %v372 = vld [vmem:[%s165 + $0x3b8] sm:$0xff]
      %v373 = vld [vmem:[%s165 + $0x3c0] sm:$0xff]
      %v374 = vld [vmem:[%s165 + $0x3c8] sm:$0xff]
      %v375 = vld [vmem:[%s165 + $0x3d0] sm:$0xff]
      %v376 = vld [vmem:[%s165 + $0x3d8] sm:$0xff]
      %v377 = vld [vmem:[%s165 + $0x3e0] sm:$0xff]
      %v378 = vld [vmem:[%s165 + $0x3e8] sm:$0xff]
      %v379 = vld [vmem:[%s165 + $0x3f0] sm:$0xff]
      %v380 = vld [vmem:[%s165 + $0x3f8] sm:$0xff]
      %s381 = scalar_lea.vmem [#allocation2], 40
      %382 = vst.msk [vmem:[%s381 + $0x1] sm:$0xff] %vm171, %v253
      %383 = vst.msk [vmem:[%s381 + $0x9] sm:$0xff] %vm171, %v254
      %384 = vst.msk [vmem:[%s381 + $0x11] sm:$0xff] %vm171, %v255
      %385 = vst.msk [vmem:[%s381 + $0x19] sm:$0xff] %vm171, %v256
      %386 = vst.msk [vmem:[%s381 + $0x29] sm:$0xff] %vm171, %v257
      %387 = vst.msk [vmem:[%s381 + $0x31] sm:$0xff] %vm171, %v258
      %388 = vst.msk [vmem:[%s381 + $0x39] sm:$0xff] %vm171, %v259
      %389 = vst.msk [vmem:[%s381 + $0x41] sm:$0xff] %vm171, %v260
      %390 = vst.msk [vmem:[%s381 + $0x51] sm:$0xff] %vm171, %v261
      %391 = vst.msk [vmem:[%s381 + $0x59] sm:$0xff] %vm171, %v262
      %392 = vst.msk [vmem:[%s381 + $0x61] sm:$0xff] %vm171, %v263
      %393 = vst.msk [vmem:[%s381 + $0x69] sm:$0xff] %vm171, %v264
      %394 = vst.msk [vmem:[%s381 + $0x79] sm:$0xff] %vm171, %v265
      %395 = vst.msk [vmem:[%s381 + $0x81] sm:$0xff] %vm171, %v266
      %396 = vst.msk [vmem:[%s381 + $0x89] sm:$0xff] %vm171, %v267
      %397 = vst.msk [vmem:[%s381 + $0x91] sm:$0xff] %vm171, %v268
      %398 = vst.msk [vmem:[%s381 + $0xa1] sm:$0xff] %vm171, %v269
      %399 = vst.msk [vmem:[%s381 + $0xa9] sm:$0xff] %vm171, %v270
      %400 = vst.msk [vmem:[%s381 + $0xb1] sm:$0xff] %vm171, %v271
      %401 = vst.msk [vmem:[%s381 + $0xb9] sm:$0xff] %vm171, %v272
      %402 = vst.msk [vmem:[%s381 + $0xc9] sm:$0xff] %vm171, %v273
      %403 = vst.msk [vmem:[%s381 + $0xd1] sm:$0xff] %vm171, %v274
      %404 = vst.msk [vmem:[%s381 + $0xd9] sm:$0xff] %vm171, %v275
      %405 = vst.msk [vmem:[%s381 + $0xe1] sm:$0xff] %vm171, %v276
      %406 = vst.msk [vmem:[%s381 + $0xf1] sm:$0xff] %vm171, %v277
      %407 = vst.msk [vmem:[%s381 + $0xf9] sm:$0xff] %vm171, %v278
      %408 = vst.msk [vmem:[%s381 + $0x101] sm:$0xff] %vm171, %v279
      %409 = vst.msk [vmem:[%s381 + $0x109] sm:$0xff] %vm171, %v280
      %410 = vst.msk [vmem:[%s381 + $0x119] sm:$0xff] %vm171, %v281
      %411 = vst.msk [vmem:[%s381 + $0x121] sm:$0xff] %vm171, %v282
      %412 = vst.msk [vmem:[%s381 + $0x129] sm:$0xff] %vm171, %v283
      %413 = vst.msk [vmem:[%s381 + $0x131] sm:$0xff] %vm171, %v284
      %414 = vst.msk [vmem:[%s381 + $0x141] sm:$0xff] %vm171, %v285
      %415 = vst.msk [vmem:[%s381 + $0x149] sm:$0xff] %vm171, %v286
      %416 = vst.msk [vmem:[%s381 + $0x151] sm:$0xff] %vm171, %v287
      %417 = vst.msk [vmem:[%s381 + $0x159] sm:$0xff] %vm171, %v288
      %418 = vst.msk [vmem:[%s381 + $0x169] sm:$0xff] %vm171, %v289
      %419 = vst.msk [vmem:[%s381 + $0x171] sm:$0xff] %vm171, %v290
      %420 = vst.msk [vmem:[%s381 + $0x179] sm:$0xff] %vm171, %v291
      %421 = vst.msk [vmem:[%s381 + $0x181] sm:$0xff] %vm171, %v292
      %422 = vst.msk [vmem:[%s381 + $0x191] sm:$0xff] %vm171, %v293
      %423 = vst.msk [vmem:[%s381 + $0x199] sm:$0xff] %vm171, %v294
      %424 = vst.msk [vmem:[%s381 + $0x1a1] sm:$0xff] %vm171, %v295
      %425 = vst.msk [vmem:[%s381 + $0x1a9] sm:$0xff] %vm171, %v296
      %426 = vst.msk [vmem:[%s381 + $0x1b9] sm:$0xff] %vm171, %v297
      %427 = vst.msk [vmem:[%s381 + $0x1c1] sm:$0xff] %vm171, %v298
      %428 = vst.msk [vmem:[%s381 + $0x1c9] sm:$0xff] %vm171, %v299
      %429 = vst.msk [vmem:[%s381 + $0x1d1] sm:$0xff] %vm171, %v300
      %430 = vst.msk [vmem:[%s381 + $0x1e1] sm:$0xff] %vm171, %v301
      %431 = vst.msk [vmem:[%s381 + $0x1e9] sm:$0xff] %vm171, %v302
      %432 = vst.msk [vmem:[%s381 + $0x1f1] sm:$0xff] %vm171, %v303
      %433 = vst.msk [vmem:[%s381 + $0x1f9] sm:$0xff] %vm171, %v304
      %434 = vst.msk [vmem:[%s381 + $0x209] sm:$0xff] %vm171, %v305
      %435 = vst.msk [vmem:[%s381 + $0x211] sm:$0xff] %vm171, %v306
      %436 = vst.msk [vmem:[%s381 + $0x219] sm:$0xff] %vm171, %v307
      %437 = vst.msk [vmem:[%s381 + $0x221] sm:$0xff] %vm171, %v308
      %438 = vst.msk [vmem:[%s381 + $0x231] sm:$0xff] %vm171, %v309
      %439 = vst.msk [vmem:[%s381 + $0x239] sm:$0xff] %vm171, %v310
      %440 = vst.msk [vmem:[%s381 + $0x241] sm:$0xff] %vm171, %v311
      %441 = vst.msk [vmem:[%s381 + $0x249] sm:$0xff] %vm171, %v312
      %442 = vst.msk [vmem:[%s381 + $0x259] sm:$0xff] %vm171, %v313
      %443 = vst.msk [vmem:[%s381 + $0x261] sm:$0xff] %vm171, %v314
      %444 = vst.msk [vmem:[%s381 + $0x269] sm:$0xff] %vm171, %v315
      %445 = vst.msk [vmem:[%s381 + $0x271] sm:$0xff] %vm171, %v316
      %446 = vst.msk [vmem:[%s381 + $0x281] sm:$0xff] %vm171, %v317
      %447 = vst.msk [vmem:[%s381 + $0x289] sm:$0xff] %vm171, %v318
      %448 = vst.msk [vmem:[%s381 + $0x291] sm:$0xff] %vm171, %v319
      %449 = vst.msk [vmem:[%s381 + $0x299] sm:$0xff] %vm171, %v320
      %450 = vst.msk [vmem:[%s381 + $0x2a9] sm:$0xff] %vm171, %v321
      %451 = vst.msk [vmem:[%s381 + $0x2b1] sm:$0xff] %vm171, %v322
      %452 = vst.msk [vmem:[%s381 + $0x2b9] sm:$0xff] %vm171, %v323
      %453 = vst.msk [vmem:[%s381 + $0x2c1] sm:$0xff] %vm171, %v324
      %454 = vst.msk [vmem:[%s381 + $0x2d1] sm:$0xff] %vm171, %v325
      %455 = vst.msk [vmem:[%s381 + $0x2d9] sm:$0xff] %vm171, %v326
      %456 = vst.msk [vmem:[%s381 + $0x2e1] sm:$0xff] %vm171, %v327
      %457 = vst.msk [vmem:[%s381 + $0x2e9] sm:$0xff] %vm171, %v328
      %458 = vst.msk [vmem:[%s381 + $0x2f9] sm:$0xff] %vm171, %v329
      %459 = vst.msk [vmem:[%s381 + $0x301] sm:$0xff] %vm171, %v330
      %460 = vst.msk [vmem:[%s381 + $0x309] sm:$0xff] %vm171, %v331
      %461 = vst.msk [vmem:[%s381 + $0x311] sm:$0xff] %vm171, %v332
      %462 = vst.msk [vmem:[%s381 + $0x321] sm:$0xff] %vm171, %v333
      %463 = vst.msk [vmem:[%s381 + $0x329] sm:$0xff] %vm171, %v334
      %464 = vst.msk [vmem:[%s381 + $0x331] sm:$0xff] %vm171, %v335
      %465 = vst.msk [vmem:[%s381 + $0x339] sm:$0xff] %vm171, %v336
      %466 = vst.msk [vmem:[%s381 + $0x349] sm:$0xff] %vm171, %v337
      %467 = vst.msk [vmem:[%s381 + $0x351] sm:$0xff] %vm171, %v338
      %468 = vst.msk [vmem:[%s381 + $0x359] sm:$0xff] %vm171, %v339
      %469 = vst.msk [vmem:[%s381 + $0x361] sm:$0xff] %vm171, %v340
      %470 = vst.msk [vmem:[%s381 + $0x371] sm:$0xff] %vm171, %v341
      %471 = vst.msk [vmem:[%s381 + $0x379] sm:$0xff] %vm171, %v342
      %472 = vst.msk [vmem:[%s381 + $0x381] sm:$0xff] %vm171, %v343
      %473 = vst.msk [vmem:[%s381 + $0x389] sm:$0xff] %vm171, %v344
      %474 = vst.msk [vmem:[%s381 + $0x399] sm:$0xff] %vm171, %v345
      %475 = vst.msk [vmem:[%s381 + $0x3a1] sm:$0xff] %vm171, %v346
      %476 = vst.msk [vmem:[%s381 + $0x3a9] sm:$0xff] %vm171, %v347
      %477 = vst.msk [vmem:[%s381 + $0x3b1] sm:$0xff] %vm171, %v348
      %478 = vst.msk [vmem:[%s381 + $0x3c1] sm:$0xff] %vm171, %v349
      %479 = vst.msk [vmem:[%s381 + $0x3c9] sm:$0xff] %vm171, %v350
      %480 = vst.msk [vmem:[%s381 + $0x3d1] sm:$0xff] %vm171, %v351
      %481 = vst.msk [vmem:[%s381 + $0x3d9] sm:$0xff] %vm171, %v352
      %482 = vst.msk [vmem:[%s381 + $0x3e9] sm:$0xff] %vm171, %v353
      %483 = vst.msk [vmem:[%s381 + $0x3f1] sm:$0xff] %vm171, %v354
      %484 = vst.msk [vmem:[%s381 + $0x3f9] sm:$0xff] %vm171, %v355
      %485 = vst.msk [vmem:[%s381 + $0x401] sm:$0xff] %vm171, %v356
      %486 = vst.msk [vmem:[%s381 + $0x411] sm:$0xff] %vm171, %v357
      %487 = vst.msk [vmem:[%s381 + $0x419] sm:$0xff] %vm171, %v358
      %488 = vst.msk [vmem:[%s381 + $0x421] sm:$0xff] %vm171, %v359
      %489 = vst.msk [vmem:[%s381 + $0x429] sm:$0xff] %vm171, %v360
      %490 = vst.msk [vmem:[%s381 + $0x439] sm:$0xff] %vm171, %v361
      %491 = vst.msk [vmem:[%s381 + $0x441] sm:$0xff] %vm171, %v362
      %492 = vst.msk [vmem:[%s381 + $0x449] sm:$0xff] %vm171, %v363
      %493 = vst.msk [vmem:[%s381 + $0x451] sm:$0xff] %vm171, %v364
      %494 = vst.msk [vmem:[%s381 + $0x461] sm:$0xff] %vm171, %v365
      %495 = vst.msk [vmem:[%s381 + $0x469] sm:$0xff] %vm171, %v366
      %496 = vst.msk [vmem:[%s381 + $0x471] sm:$0xff] %vm171, %v367
      %497 = vst.msk [vmem:[%s381 + $0x479] sm:$0xff] %vm171, %v368
      %498 = vst.msk [vmem:[%s381 + $0x489] sm:$0xff] %vm171, %v369
      %499 = vst.msk [vmem:[%s381 + $0x491] sm:$0xff] %vm171, %v370
      %500 = vst.msk [vmem:[%s381 + $0x499] sm:$0xff] %vm171, %v371
      %501 = vst.msk [vmem:[%s381 + $0x4a1] sm:$0xff] %vm171, %v372
      %502 = vst.msk [vmem:[%s381 + $0x4b1] sm:$0xff] %vm171, %v373
      %503 = vst.msk [vmem:[%s381 + $0x4b9] sm:$0xff] %vm171, %v374
      %504 = vst.msk [vmem:[%s381 + $0x4c1] sm:$0xff] %vm171, %v375
      %505 = vst.msk [vmem:[%s381 + $0x4c9] sm:$0xff] %vm171, %v376
      %506 = vst.msk [vmem:[%s381 + $0x4d9] sm:$0xff] %vm171, %v377
      %507 = vst.msk [vmem:[%s381 + $0x4e1] sm:$0xff] %vm171, %v378
      %508 = vst.msk [vmem:[%s381 + $0x4e9] sm:$0xff] %vm171, %v379
      %509 = vst.msk [vmem:[%s381 + $0x4f1] sm:$0xff] %vm171, %v380
      %v510 = vld [vmem:[#allocation2] sm:$0xff]
      %v511 = vld [vmem:[#allocation2 + $0x8] sm:$0xff]
      %v512 = vld [vmem:[#allocation2 + $0x10] sm:$0xff]
      %v513 = vld [vmem:[#allocation2 + $0x18] sm:$0xff]
      %v514 = vld [vmem:[#allocation2 + $0x20] sm:$0x3]
      %v515 = vld [vmem:[#allocation2 + $0x28] sm:$0xff]
      %v516 = vld [vmem:[#allocation2 + $0x30] sm:$0xff]
      %v517 = vld [vmem:[#allocation2 + $0x38] sm:$0xff]
      %v518 = vld [vmem:[#allocation2 + $0x40] sm:$0xff]
      %v519 = vld [vmem:[#allocation2 + $0x48] sm:$0x3]
      %v520 = vld [vmem:[#allocation2 + $0x50] sm:$0xff]
      %v521 = vld [vmem:[#allocation2 + $0x58] sm:$0xff]
      %v522 = vld [vmem:[#allocation2 + $0x60] sm:$0xff]
      %v523 = vld [vmem:[#allocation2 + $0x68] sm:$0xff]
      %v524 = vld [vmem:[#allocation2 + $0x70] sm:$0x3]
      %v525 = vld [vmem:[#allocation2 + $0x78] sm:$0xff]
      %v526 = vld [vmem:[#allocation2 + $0x80] sm:$0xff]
      %v527 = vld [vmem:[#allocation2 + $0x88] sm:$0xff]
      %v528 = vld [vmem:[#allocation2 + $0x90] sm:$0xff]
      %v529 = vld [vmem:[#allocation2 + $0x98] sm:$0x3]
      %v530 = vld [vmem:[#allocation2 + $0xa0] sm:$0xff]
      %v531 = vld [vmem:[#allocation2 + $0xa8] sm:$0xff]
      %v532 = vld [vmem:[#allocation2 + $0xb0] sm:$0xff]
      %v533 = vld [vmem:[#allocation2 + $0xb8] sm:$0xff]
      %v534 = vld [vmem:[#allocation2 + $0xc0] sm:$0x3]
      %v535 = vld [vmem:[#allocation2 + $0xc8] sm:$0xff]
      %v536 = vld [vmem:[#allocation2 + $0xd0] sm:$0xff]
      %v537 = vld [vmem:[#allocation2 + $0xd8] sm:$0xff]
      %v538 = vld [vmem:[#allocation2 + $0xe0] sm:$0xff]
      %v539 = vld [vmem:[#allocation2 + $0xe8] sm:$0x3]
      %v540 = vld [vmem:[#allocation2 + $0xf0] sm:$0xff]
      %v541 = vld [vmem:[#allocation2 + $0xf8] sm:$0xff]
      %v542 = vld [vmem:[#allocation2 + $0x100] sm:$0xff]
      %v543 = vld [vmem:[#allocation2 + $0x108] sm:$0xff]
      %v544 = vld [vmem:[#allocation2 + $0x110] sm:$0x3]
      %v545 = vld [vmem:[#allocation2 + $0x118] sm:$0xff]
      %v546 = vld [vmem:[#allocation2 + $0x120] sm:$0xff]
      %v547 = vld [vmem:[#allocation2 + $0x128] sm:$0xff]
      %v548 = vld [vmem:[#allocation2 + $0x130] sm:$0xff]
      %v549 = vld [vmem:[#allocation2 + $0x138] sm:$0x3]
      %v550 = vld [vmem:[#allocation2 + $0x140] sm:$0xff]
      %v551 = vld [vmem:[#allocation2 + $0x148] sm:$0xff]
      %v552 = vld [vmem:[#allocation2 + $0x150] sm:$0xff]
      %v553 = vld [vmem:[#allocation2 + $0x158] sm:$0xff]
      %v554 = vld [vmem:[#allocation2 + $0x160] sm:$0x3]
      %v555 = vld [vmem:[#allocation2 + $0x168] sm:$0xff]
      %v556 = vld [vmem:[#allocation2 + $0x170] sm:$0xff]
      %v557 = vld [vmem:[#allocation2 + $0x178] sm:$0xff]
      %v558 = vld [vmem:[#allocation2 + $0x180] sm:$0xff]
      %v559 = vld [vmem:[#allocation2 + $0x188] sm:$0x3]
      %v560 = vld [vmem:[#allocation2 + $0x190] sm:$0xff]
      %v561 = vld [vmem:[#allocation2 + $0x198] sm:$0xff]
      %v562 = vld [vmem:[#allocation2 + $0x1a0] sm:$0xff]
      %v563 = vld [vmem:[#allocation2 + $0x1a8] sm:$0xff]
      %v564 = vld [vmem:[#allocation2 + $0x1b0] sm:$0x3]
      %v565 = vld [vmem:[#allocation2 + $0x1b8] sm:$0xff]
      %v566 = vld [vmem:[#allocation2 + $0x1c0] sm:$0xff]
      %v567 = vld [vmem:[#allocation2 + $0x1c8] sm:$0xff]
      %v568 = vld [vmem:[#allocation2 + $0x1d0] sm:$0xff]
      %v569 = vld [vmem:[#allocation2 + $0x1d8] sm:$0x3]
      %v570 = vld [vmem:[#allocation2 + $0x1e0] sm:$0xff]
      %v571 = vld [vmem:[#allocation2 + $0x1e8] sm:$0xff]
      %v572 = vld [vmem:[#allocation2 + $0x1f0] sm:$0xff]
      %v573 = vld [vmem:[#allocation2 + $0x1f8] sm:$0xff]
      %v574 = vld [vmem:[#allocation2 + $0x200] sm:$0x3]
      %v575 = vld [vmem:[#allocation2 + $0x208] sm:$0xff]
      %v576 = vld [vmem:[#allocation2 + $0x210] sm:$0xff]
      %v577 = vld [vmem:[#allocation2 + $0x218] sm:$0xff]
      %v578 = vld [vmem:[#allocation2 + $0x220] sm:$0xff]
      %v579 = vld [vmem:[#allocation2 + $0x228] sm:$0x3]
      %v580 = vld [vmem:[#allocation2 + $0x230] sm:$0xff]
      %v581 = vld [vmem:[#allocation2 + $0x238] sm:$0xff]
      %v582 = vld [vmem:[#allocation2 + $0x240] sm:$0xff]
      %v583 = vld [vmem:[#allocation2 + $0x248] sm:$0xff]
      %v584 = vld [vmem:[#allocation2 + $0x250] sm:$0x3]
      %v585 = vld [vmem:[#allocation2 + $0x258] sm:$0xff]
      %v586 = vld [vmem:[#allocation2 + $0x260] sm:$0xff]
      %v587 = vld [vmem:[#allocation2 + $0x268] sm:$0xff]
      %v588 = vld [vmem:[#allocation2 + $0x270] sm:$0xff]
      %v589 = vld [vmem:[#allocation2 + $0x278] sm:$0x3]
      %v590 = vld [vmem:[#allocation2 + $0x280] sm:$0xff]
      %v591 = vld [vmem:[#allocation2 + $0x288] sm:$0xff]
      %v592 = vld [vmem:[#allocation2 + $0x290] sm:$0xff]
      %v593 = vld [vmem:[#allocation2 + $0x298] sm:$0xff]
      %v594 = vld [vmem:[#allocation2 + $0x2a0] sm:$0x3]
      %v595 = vld [vmem:[#allocation2 + $0x2a8] sm:$0xff]
      %v596 = vld [vmem:[#allocation2 + $0x2b0] sm:$0xff]
      %v597 = vld [vmem:[#allocation2 + $0x2b8] sm:$0xff]
      %v598 = vld [vmem:[#allocation2 + $0x2c0] sm:$0xff]
      %v599 = vld [vmem:[#allocation2 + $0x2c8] sm:$0x3]
      %v600 = vld [vmem:[#allocation2 + $0x2d0] sm:$0xff]
      %v601 = vld [vmem:[#allocation2 + $0x2d8] sm:$0xff]
      %v602 = vld [vmem:[#allocation2 + $0x2e0] sm:$0xff]
      %v603 = vld [vmem:[#allocation2 + $0x2e8] sm:$0xff]
      %v604 = vld [vmem:[#allocation2 + $0x2f0] sm:$0x3]
      %v605 = vld [vmem:[#allocation2 + $0x2f8] sm:$0xff]
      %v606 = vld [vmem:[#allocation2 + $0x300] sm:$0xff]
      %v607 = vld [vmem:[#allocation2 + $0x308] sm:$0xff]
      %v608 = vld [vmem:[#allocation2 + $0x310] sm:$0xff]
      %v609 = vld [vmem:[#allocation2 + $0x318] sm:$0x3]
      %v610 = vld [vmem:[#allocation2 + $0x320] sm:$0xff]
      %v611 = vld [vmem:[#allocation2 + $0x328] sm:$0xff]
      %v612 = vld [vmem:[#allocation2 + $0x330] sm:$0xff]
      %v613 = vld [vmem:[#allocation2 + $0x338] sm:$0xff]
      %v614 = vld [vmem:[#allocation2 + $0x340] sm:$0x3]
      %v615 = vld [vmem:[#allocation2 + $0x348] sm:$0xff]
      %v616 = vld [vmem:[#allocation2 + $0x350] sm:$0xff]
      %v617 = vld [vmem:[#allocation2 + $0x358] sm:$0xff]
      %v618 = vld [vmem:[#allocation2 + $0x360] sm:$0xff]
      %v619 = vld [vmem:[#allocation2 + $0x368] sm:$0x3]
      %v620 = vld [vmem:[#allocation2 + $0x370] sm:$0xff]
      %v621 = vld [vmem:[#allocation2 + $0x378] sm:$0xff]
      %v622 = vld [vmem:[#allocation2 + $0x380] sm:$0xff]
      %v623 = vld [vmem:[#allocation2 + $0x388] sm:$0xff]
      %v624 = vld [vmem:[#allocation2 + $0x390] sm:$0x3]
      %v625 = vld [vmem:[#allocation2 + $0x398] sm:$0xff]
      %v626 = vld [vmem:[#allocation2 + $0x3a0] sm:$0xff]
      %v627 = vld [vmem:[#allocation2 + $0x3a8] sm:$0xff]
      %v628 = vld [vmem:[#allocation2 + $0x3b0] sm:$0xff]
      %v629 = vld [vmem:[#allocation2 + $0x3b8] sm:$0x3]
      %v630 = vld [vmem:[#allocation2 + $0x3c0] sm:$0xff]
      %v631 = vld [vmem:[#allocation2 + $0x3c8] sm:$0xff]
      %v632 = vld [vmem:[#allocation2 + $0x3d0] sm:$0xff]
      %v633 = vld [vmem:[#allocation2 + $0x3d8] sm:$0xff]
      %v634 = vld [vmem:[#allocation2 + $0x3e0] sm:$0x3]
      %v635 = vld [vmem:[#allocation2 + $0x3e8] sm:$0xff]
      %v636 = vld [vmem:[#allocation2 + $0x3f0] sm:$0xff]
      %v637 = vld [vmem:[#allocation2 + $0x3f8] sm:$0xff]
      %v638 = vld [vmem:[#allocation2 + $0x400] sm:$0xff]
      %v639 = vld [vmem:[#allocation2 + $0x408] sm:$0x3]
      %v640 = vld [vmem:[#allocation2 + $0x410] sm:$0xff]
      %v641 = vld [vmem:[#allocation2 + $0x418] sm:$0xff]
      %v642 = vld [vmem:[#allocation2 + $0x420] sm:$0xff]
      %v643 = vld [vmem:[#allocation2 + $0x428] sm:$0xff]
      %v644 = vld [vmem:[#allocation2 + $0x430] sm:$0x3]
      %v645 = vld [vmem:[#allocation2 + $0x438] sm:$0xff]
      %v646 = vld [vmem:[#allocation2 + $0x440] sm:$0xff]
      %v647 = vld [vmem:[#allocation2 + $0x448] sm:$0xff]
      %v648 = vld [vmem:[#allocation2 + $0x450] sm:$0xff]
      %v649 = vld [vmem:[#allocation2 + $0x458] sm:$0x3]
      %v650 = vld [vmem:[#allocation2 + $0x460] sm:$0xff]
      %v651 = vld [vmem:[#allocation2 + $0x468] sm:$0xff]
      %v652 = vld [vmem:[#allocation2 + $0x470] sm:$0xff]
      %v653 = vld [vmem:[#allocation2 + $0x478] sm:$0xff]
      %v654 = vld [vmem:[#allocation2 + $0x480] sm:$0x3]
      %v655 = vld [vmem:[#allocation2 + $0x488] sm:$0xff]
      %v656 = vld [vmem:[#allocation2 + $0x490] sm:$0xff]
      %v657 = vld [vmem:[#allocation2 + $0x498] sm:$0xff]
      %v658 = vld [vmem:[#allocation2 + $0x4a0] sm:$0xff]
      %v659 = vld [vmem:[#allocation2 + $0x4a8] sm:$0x3]
      %v660 = vld [vmem:[#allocation2 + $0x4b0] sm:$0xff]
      %v661 = vld [vmem:[#allocation2 + $0x4b8] sm:$0xff]
      %v662 = vld [vmem:[#allocation2 + $0x4c0] sm:$0xff]
      %v663 = vld [vmem:[#allocation2 + $0x4c8] sm:$0xff]
      %v664 = vld [vmem:[#allocation2 + $0x4d0] sm:$0x3]
      %v665 = vld [vmem:[#allocation2 + $0x4d8] sm:$0xff]
      %v666 = vld [vmem:[#allocation2 + $0x4e0] sm:$0xff]
      %v667 = vld [vmem:[#allocation2 + $0x4e8] sm:$0xff]
      %v668 = vld [vmem:[#allocation2 + $0x4f0] sm:$0xff]
      %v669 = vld [vmem:[#allocation2 + $0x4f8] sm:$0x3]
      %v670 = vld [vmem:[#allocation2 + $0x500] sm:$0xff]
      %v671 = vld [vmem:[#allocation2 + $0x508] sm:$0xff]
      %v672 = vld [vmem:[#allocation2 + $0x510] sm:$0xff]
      %v673 = vld [vmem:[#allocation2 + $0x518] sm:$0xff]
      %v674 = vld [vmem:[#allocation2 + $0x520] sm:$0x3]
      %v675 = vld [vmem:[#allocation2 + $0x528] sm:$0xff]
      %v676 = vld [vmem:[#allocation2 + $0x530] sm:$0xff]
      %v677 = vld [vmem:[#allocation2 + $0x538] sm:$0xff]
      %v678 = vld [vmem:[#allocation2 + $0x540] sm:$0xff]
      %v679 = vld [vmem:[#allocation2 + $0x548] sm:$0x3]
      %vm840 = vcmask 1046528
      %v841 = vrot.slane %v510, 1
      %v842 = vrot.slane %v511, 1
      %v843 = vsel %vm840, %v841, %v842
      %v844 = vrot.slane %v512, 1
      %v845 = vsel %vm840, %v842, %v844
      %v846 = vrot.slane %v513, 1
      %v847 = vsel %vm840, %v844, %v846
      %v848 = vrot.slane %v514, 1
      %v849 = vsel %vm840, %v846, %v848
      %v850 = vrot.slane %v515, 1
      %v851 = vrot.slane %v516, 1
      %v852 = vsel %vm840, %v850, %v851
      %v853 = vrot.slane %v517, 1
      %v854 = vsel %vm840, %v851, %v853
      %v855 = vrot.slane %v518, 1
      %v856 = vsel %vm840, %v853, %v855
      %v857 = vrot.slane %v519, 1
      %v858 = vsel %vm840, %v855, %v857
      %v859 = vrot.slane %v520, 1
      %v860 = vrot.slane %v521, 1
      %v861 = vsel %vm840, %v859, %v860
      %v862 = vrot.slane %v522, 1
      %v863 = vsel %vm840, %v860, %v862
      %v864 = vrot.slane %v523, 1
      %v865 = vsel %vm840, %v862, %v864
      %v866 = vrot.slane %v524, 1
      %v867 = vsel %vm840, %v864, %v866
      %v868 = vrot.slane %v525, 1
      %v869 = vrot.slane %v526, 1
      %v870 = vsel %vm840, %v868, %v869
      %v871 = vrot.slane %v527, 1
      %v872 = vsel %vm840, %v869, %v871
      %v873 = vrot.slane %v528, 1
      %v874 = vsel %vm840, %v871, %v873
      %v875 = vrot.slane %v529, 1
      %v876 = vsel %vm840, %v873, %v875
      %v877 = vrot.slane %v530, 1
      %v878 = vrot.slane %v531, 1
      %v879 = vsel %vm840, %v877, %v878
      %v880 = vrot.slane %v532, 1
      %v881 = vsel %vm840, %v878, %v880
      %v882 = vrot.slane %v533, 1
      %v883 = vsel %vm840, %v880, %v882
      %v884 = vrot.slane %v534, 1
      %v885 = vsel %vm840, %v882, %v884
      %v886 = vrot.slane %v535, 1
      %v887 = vrot.slane %v536, 1
      %v888 = vsel %vm840, %v886, %v887
      %v889 = vrot.slane %v537, 1
      %v890 = vsel %vm840, %v887, %v889
      %v891 = vrot.slane %v538, 1
      %v892 = vsel %vm840, %v889, %v891
      %v893 = vrot.slane %v539, 1
      %v894 = vsel %vm840, %v891, %v893
      %v895 = vrot.slane %v540, 1
      %v896 = vrot.slane %v541, 1
      %v897 = vsel %vm840, %v895, %v896
      %v898 = vrot.slane %v542, 1
      %v899 = vsel %vm840, %v896, %v898
      %v900 = vrot.slane %v543, 1
      %v901 = vsel %vm840, %v898, %v900
      %v902 = vrot.slane %v544, 1
      %v903 = vsel %vm840, %v900, %v902
      %v904 = vrot.slane %v545, 1
      %v905 = vrot.slane %v546, 1
      %v906 = vsel %vm840, %v904, %v905
      %v907 = vrot.slane %v547, 1
      %v908 = vsel %vm840, %v905, %v907
      %v909 = vrot.slane %v548, 1
      %v910 = vsel %vm840, %v907, %v909
      %v911 = vrot.slane %v549, 1
      %v912 = vsel %vm840, %v909, %v911
      %v913 = vrot.slane %v550, 1
      %v914 = vrot.slane %v551, 1
      %v915 = vsel %vm840, %v913, %v914
      %v916 = vrot.slane %v552, 1
      %v917 = vsel %vm840, %v914, %v916
      %v918 = vrot.slane %v553, 1
      %v919 = vsel %vm840, %v916, %v918
      %v920 = vrot.slane %v554, 1
      %v921 = vsel %vm840, %v918, %v920
      %v922 = vrot.slane %v555, 1
      %v923 = vrot.slane %v556, 1
      %v924 = vsel %vm840, %v922, %v923
      %v925 = vrot.slane %v557, 1
      %v926 = vsel %vm840, %v923, %v925
      %v927 = vrot.slane %v558, 1
      %v928 = vsel %vm840, %v925, %v927
      %v929 = vrot.slane %v559, 1
      %v930 = vsel %vm840, %v927, %v929
      %v931 = vrot.slane %v560, 1
      %v932 = vrot.slane %v561, 1
      %v933 = vsel %vm840, %v931, %v932
      %v934 = vrot.slane %v562, 1
      %v935 = vsel %vm840, %v932, %v934
      %v936 = vrot.slane %v563, 1
      %v937 = vsel %vm840, %v934, %v936
      %v938 = vrot.slane %v564, 1
      %v939 = vsel %vm840, %v936, %v938
      %v940 = vrot.slane %v565, 1
      %v941 = vrot.slane %v566, 1
      %v942 = vsel %vm840, %v940, %v941
      %v943 = vrot.slane %v567, 1
      %v944 = vsel %vm840, %v941, %v943
      %v945 = vrot.slane %v568, 1
      %v946 = vsel %vm840, %v943, %v945
      %v947 = vrot.slane %v569, 1
      %v948 = vsel %vm840, %v945, %v947
      %v949 = vrot.slane %v570, 1
      %v950 = vrot.slane %v571, 1
      %v951 = vsel %vm840, %v949, %v950
      %v952 = vrot.slane %v572, 1
      %v953 = vsel %vm840, %v950, %v952
      %v954 = vrot.slane %v573, 1
      %v955 = vsel %vm840, %v952, %v954
      %v956 = vrot.slane %v574, 1
      %v957 = vsel %vm840, %v954, %v956
      %v958 = vrot.slane %v575, 1
      %v959 = vrot.slane %v576, 1
      %v960 = vsel %vm840, %v958, %v959
      %v961 = vrot.slane %v577, 1
      %v962 = vsel %vm840, %v959, %v961
      %v963 = vrot.slane %v578, 1
      %v964 = vsel %vm840, %v961, %v963
      %v965 = vrot.slane %v579, 1
      %v966 = vsel %vm840, %v963, %v965
      %v967 = vrot.slane %v580, 1
      %v968 = vrot.slane %v581, 1
      %v969 = vsel %vm840, %v967, %v968
      %v970 = vrot.slane %v582, 1
      %v971 = vsel %vm840, %v968, %v970
      %v972 = vrot.slane %v583, 1
      %v973 = vsel %vm840, %v970, %v972
      %v974 = vrot.slane %v584, 1
      %v975 = vsel %vm840, %v972, %v974
      %v976 = vrot.slane %v585, 1
      %v977 = vrot.slane %v586, 1
      %v978 = vsel %vm840, %v976, %v977
      %v979 = vrot.slane %v587, 1
      %v980 = vsel %vm840, %v977, %v979
      %v981 = vrot.slane %v588, 1
      %v982 = vsel %vm840, %v979, %v981
      %v983 = vrot.slane %v589, 1
      %v984 = vsel %vm840, %v981, %v983
      %v985 = vrot.slane %v590, 1
      %v986 = vrot.slane %v591, 1
      %v987 = vsel %vm840, %v985, %v986
      %v988 = vrot.slane %v592, 1
      %v989 = vsel %vm840, %v986, %v988
      %v990 = vrot.slane %v593, 1
      %v991 = vsel %vm840, %v988, %v990
      %v992 = vrot.slane %v594, 1
      %v993 = vsel %vm840, %v990, %v992
      %v994 = vrot.slane %v595, 1
      %v995 = vrot.slane %v596, 1
      %v996 = vsel %vm840, %v994, %v995
      %v997 = vrot.slane %v597, 1
      %v998 = vsel %vm840, %v995, %v997
      %v999 = vrot.slane %v598, 1
      %v1000 = vsel %vm840, %v997, %v999
      %v1001 = vrot.slane %v599, 1
      %v1002 = vsel %vm840, %v999, %v1001
      %v1003 = vrot.slane %v600, 1
      %v1004 = vrot.slane %v601, 1
      %v1005 = vsel %vm840, %v1003, %v1004
      %v1006 = vrot.slane %v602, 1
      %v1007 = vsel %vm840, %v1004, %v1006
      %v1008 = vrot.slane %v603, 1
      %v1009 = vsel %vm840, %v1006, %v1008
      %v1010 = vrot.slane %v604, 1
      %v1011 = vsel %vm840, %v1008, %v1010
      %v1012 = vrot.slane %v605, 1
      %v1013 = vrot.slane %v606, 1
      %v1014 = vsel %vm840, %v1012, %v1013
      %v1015 = vrot.slane %v607, 1
      %v1016 = vsel %vm840, %v1013, %v1015
      %v1017 = vrot.slane %v608, 1
      %v1018 = vsel %vm840, %v1015, %v1017
      %v1019 = vrot.slane %v609, 1
      %v1020 = vsel %vm840, %v1017, %v1019
      %v1021 = vrot.slane %v610, 1
      %v1022 = vrot.slane %v611, 1
      %v1023 = vsel %vm840, %v1021, %v1022
      %v1024 = vrot.slane %v612, 1
      %v1025 = vsel %vm840, %v1022, %v1024
      %v1026 = vrot.slane %v613, 1
      %v1027 = vsel %vm840, %v1024, %v1026
      %v1028 = vrot.slane %v614, 1
      %v1029 = vsel %vm840, %v1026, %v1028
      %v1030 = vrot.slane %v615, 1
      %v1031 = vrot.slane %v616, 1
      %v1032 = vsel %vm840, %v1030, %v1031
      %v1033 = vrot.slane %v617, 1
      %v1034 = vsel %vm840, %v1031, %v1033
      %v1035 = vrot.slane %v618, 1
      %v1036 = vsel %vm840, %v1033, %v1035
      %v1037 = vrot.slane %v619, 1
      %v1038 = vsel %vm840, %v1035, %v1037
      %v1039 = vrot.slane %v620, 1
      %v1040 = vrot.slane %v621, 1
      %v1041 = vsel %vm840, %v1039, %v1040
      %v1042 = vrot.slane %v622, 1
      %v1043 = vsel %vm840, %v1040, %v1042
      %v1044 = vrot.slane %v623, 1
      %v1045 = vsel %vm840, %v1042, %v1044
      %v1046 = vrot.slane %v624, 1
      %v1047 = vsel %vm840, %v1044, %v1046
      %v1048 = vrot.slane %v625, 1
      %v1049 = vrot.slane %v626, 1
      %v1050 = vsel %vm840, %v1048, %v1049
      %v1051 = vrot.slane %v627, 1
      %v1052 = vsel %vm840, %v1049, %v1051
      %v1053 = vrot.slane %v628, 1
      %v1054 = vsel %vm840, %v1051, %v1053
      %v1055 = vrot.slane %v629, 1
      %v1056 = vsel %vm840, %v1053, %v1055
      %v1057 = vrot.slane %v630, 1
      %v1058 = vrot.slane %v631, 1
      %v1059 = vsel %vm840, %v1057, %v1058
      %v1060 = vrot.slane %v632, 1
      %v1061 = vsel %vm840, %v1058, %v1060
      %v1062 = vrot.slane %v633, 1
      %v1063 = vsel %vm840, %v1060, %v1062
      %v1064 = vrot.slane %v634, 1
      %v1065 = vsel %vm840, %v1062, %v1064
      %v1066 = vrot.slane %v635, 1
      %v1067 = vrot.slane %v636, 1
      %v1068 = vsel %vm840, %v1066, %v1067
      %v1069 = vrot.slane %v637, 1
      %v1070 = vsel %vm840, %v1067, %v1069
      %v1071 = vrot.slane %v638, 1
      %v1072 = vsel %vm840, %v1069, %v1071
      %v1073 = vrot.slane %v639, 1
      %v1074 = vsel %vm840, %v1071, %v1073
      %v1075 = vrot.slane %v640, 1
      %v1076 = vrot.slane %v641, 1
      %v1077 = vsel %vm840, %v1075, %v1076
      %v1078 = vrot.slane %v642, 1
      %v1079 = vsel %vm840, %v1076, %v1078
      %v1080 = vrot.slane %v643, 1
      %v1081 = vsel %vm840, %v1078, %v1080
      %v1082 = vrot.slane %v644, 1
      %v1083 = vsel %vm840, %v1080, %v1082
      %v1084 = vrot.slane %v645, 1
      %v1085 = vrot.slane %v646, 1
      %v1086 = vsel %vm840, %v1084, %v1085
      %v1087 = vrot.slane %v647, 1
      %v1088 = vsel %vm840, %v1085, %v1087
      %v1089 = vrot.slane %v648, 1
      %v1090 = vsel %vm840, %v1087, %v1089
      %v1091 = vrot.slane %v649, 1
      %v1092 = vsel %vm840, %v1089, %v1091
      %v1093 = vrot.slane %v650, 1
      %v1094 = vrot.slane %v651, 1
      %v1095 = vsel %vm840, %v1093, %v1094
      %v1096 = vrot.slane %v652, 1
      %v1097 = vsel %vm840, %v1094, %v1096
      %v1098 = vrot.slane %v653, 1
      %v1099 = vsel %vm840, %v1096, %v1098
      %v1100 = vrot.slane %v654, 1
      %v1101 = vsel %vm840, %v1098, %v1100
      %v1102 = vrot.slane %v655, 1
      %v1103 = vrot.slane %v656, 1
      %v1104 = vsel %vm840, %v1102, %v1103
      %v1105 = vrot.slane %v657, 1
      %v1106 = vsel %vm840, %v1103, %v1105
      %v1107 = vrot.slane %v658, 1
      %v1108 = vsel %vm840, %v1105, %v1107
      %v1109 = vrot.slane %v659, 1
      %v1110 = vsel %vm840, %v1107, %v1109
      %v1111 = vrot.slane %v660, 1
      %v1112 = vrot.slane %v661, 1
      %v1113 = vsel %vm840, %v1111, %v1112
      %v1114 = vrot.slane %v662, 1
      %v1115 = vsel %vm840, %v1112, %v1114
      %v1116 = vrot.slane %v663, 1
      %v1117 = vsel %vm840, %v1114, %v1116
      %v1118 = vrot.slane %v664, 1
      %v1119 = vsel %vm840, %v1116, %v1118
      %v1120 = vrot.slane %v665, 1
      %v1121 = vrot.slane %v666, 1
      %v1122 = vsel %vm840, %v1120, %v1121
      %v1123 = vrot.slane %v667, 1
      %v1124 = vsel %vm840, %v1121, %v1123
      %v1125 = vrot.slane %v668, 1
      %v1126 = vsel %vm840, %v1123, %v1125
      %v1127 = vrot.slane %v669, 1
      %v1128 = vsel %vm840, %v1125, %v1127
      %1129 = vrot.lane.b32.xlu0 %v843, 16
      %v1130 = vpop.permute.xlu0 %1129
      %1131 = vrot.lane.b32.xlu0 %v845, 16
      %v1132 = vpop.permute.xlu0 %1131
      %1133 = vrot.lane.b32.xlu0 %v847, 16
      %v1134 = vpop.permute.xlu0 %1133
      %1135 = vrot.lane.b32.xlu0 %v849, 16
      %v1136 = vpop.permute.xlu0 %1135
      %1137 = vrot.lane.b32.xlu0 %v852, 16
      %v1138 = vpop.permute.xlu0 %1137
      %1139 = vrot.lane.b32.xlu0 %v854, 16
      %v1140 = vpop.permute.xlu0 %1139
      %1141 = vrot.lane.b32.xlu0 %v856, 16
      %v1142 = vpop.permute.xlu0 %1141
      %1143 = vrot.lane.b32.xlu0 %v858, 16
      %v1144 = vpop.permute.xlu0 %1143
      %1145 = vrot.lane.b32.xlu0 %v861, 16
      %v1146 = vpop.permute.xlu0 %1145
      %1147 = vrot.lane.b32.xlu0 %v863, 16
      %v1148 = vpop.permute.xlu0 %1147
      %1149 = vrot.lane.b32.xlu0 %v865, 16
      %v1150 = vpop.permute.xlu0 %1149
      %1151 = vrot.lane.b32.xlu0 %v867, 16
      %v1152 = vpop.permute.xlu0 %1151
      %1153 = vrot.lane.b32.xlu0 %v870, 16
      %v1154 = vpop.permute.xlu0 %1153
      %1155 = vrot.lane.b32.xlu0 %v872, 16
      %v1156 = vpop.permute.xlu0 %1155
      %1157 = vrot.lane.b32.xlu0 %v874, 16
      %v1158 = vpop.permute.xlu0 %1157
      %1159 = vrot.lane.b32.xlu0 %v876, 16
      %v1160 = vpop.permute.xlu0 %1159
      %1161 = vrot.lane.b32.xlu0 %v879, 16
      %v1162 = vpop.permute.xlu0 %1161
      %1163 = vrot.lane.b32.xlu0 %v881, 16
      %v1164 = vpop.permute.xlu0 %1163
      %1165 = vrot.lane.b32.xlu0 %v883, 16
      %v1166 = vpop.permute.xlu0 %1165
      %1167 = vrot.lane.b32.xlu0 %v885, 16
      %v1168 = vpop.permute.xlu0 %1167
      %1169 = vrot.lane.b32.xlu0 %v888, 16
      %v1170 = vpop.permute.xlu0 %1169
      %1171 = vrot.lane.b32.xlu0 %v890, 16
      %v1172 = vpop.permute.xlu0 %1171
      %1173 = vrot.lane.b32.xlu0 %v892, 16
      %v1174 = vpop.permute.xlu0 %1173
      %1175 = vrot.lane.b32.xlu0 %v894, 16
      %v1176 = vpop.permute.xlu0 %1175
      %1177 = vrot.lane.b32.xlu0 %v897, 16
      %v1178 = vpop.permute.xlu0 %1177
      %1179 = vrot.lane.b32.xlu0 %v899, 16
      %v1180 = vpop.permute.xlu0 %1179
      %1181 = vrot.lane.b32.xlu0 %v901, 16
      %v1182 = vpop.permute.xlu0 %1181
      %1183 = vrot.lane.b32.xlu0 %v903, 16
      %v1184 = vpop.permute.xlu0 %1183
      %1185 = vrot.lane.b32.xlu0 %v906, 16
      %v1186 = vpop.permute.xlu0 %1185
      %1187 = vrot.lane.b32.xlu0 %v908, 16
      %v1188 = vpop.permute.xlu0 %1187
      %1189 = vrot.lane.b32.xlu0 %v910, 16
      %v1190 = vpop.permute.xlu0 %1189
      %1191 = vrot.lane.b32.xlu0 %v912, 16
      %v1192 = vpop.permute.xlu0 %1191
      %1193 = vrot.lane.b32.xlu0 %v915, 16
      %v1194 = vpop.permute.xlu0 %1193
      %1195 = vrot.lane.b32.xlu0 %v917, 16
      %v1196 = vpop.permute.xlu0 %1195
      %1197 = vrot.lane.b32.xlu0 %v919, 16
      %v1198 = vpop.permute.xlu0 %1197
      %1199 = vrot.lane.b32.xlu0 %v921, 16
      %v1200 = vpop.permute.xlu0 %1199
      %1201 = vrot.lane.b32.xlu0 %v924, 16
      %v1202 = vpop.permute.xlu0 %1201
      %1203 = vrot.lane.b32.xlu0 %v926, 16
      %v1204 = vpop.permute.xlu0 %1203
      %1205 = vrot.lane.b32.xlu0 %v928, 16
      %v1206 = vpop.permute.xlu0 %1205
      %1207 = vrot.lane.b32.xlu0 %v930, 16
      %v1208 = vpop.permute.xlu0 %1207
      %1209 = vrot.lane.b32.xlu0 %v933, 16
      %v1210 = vpop.permute.xlu0 %1209
      %1211 = vrot.lane.b32.xlu0 %v935, 16
      %v1212 = vpop.permute.xlu0 %1211
      %1213 = vrot.lane.b32.xlu0 %v937, 16
      %v1214 = vpop.permute.xlu0 %1213
      %1215 = vrot.lane.b32.xlu0 %v939, 16
      %v1216 = vpop.permute.xlu0 %1215
      %1217 = vrot.lane.b32.xlu0 %v942, 16
      %v1218 = vpop.permute.xlu0 %1217
      %1219 = vrot.lane.b32.xlu0 %v944, 16
      %v1220 = vpop.permute.xlu0 %1219
      %1221 = vrot.lane.b32.xlu0 %v946, 16
      %v1222 = vpop.permute.xlu0 %1221
      %1223 = vrot.lane.b32.xlu0 %v948, 16
      %v1224 = vpop.permute.xlu0 %1223
      %1225 = vrot.lane.b32.xlu0 %v951, 16
      %v1226 = vpop.permute.xlu0 %1225
      %1227 = vrot.lane.b32.xlu0 %v953, 16
      %v1228 = vpop.permute.xlu0 %1227
      %1229 = vrot.lane.b32.xlu0 %v955, 16
      %v1230 = vpop.permute.xlu0 %1229
      %1231 = vrot.lane.b32.xlu0 %v957, 16
      %v1232 = vpop.permute.xlu0 %1231
      %1233 = vrot.lane.b32.xlu0 %v960, 16
      %v1234 = vpop.permute.xlu0 %1233
      %1235 = vrot.lane.b32.xlu0 %v962, 16
      %v1236 = vpop.permute.xlu0 %1235
      %1237 = vrot.lane.b32.xlu0 %v964, 16
      %v1238 = vpop.permute.xlu0 %1237
      %1239 = vrot.lane.b32.xlu0 %v966, 16
      %v1240 = vpop.permute.xlu0 %1239
      %1241 = vrot.lane.b32.xlu0 %v969, 16
      %v1242 = vpop.permute.xlu0 %1241
      %1243 = vrot.lane.b32.xlu0 %v971, 16
      %v1244 = vpop.permute.xlu0 %1243
      %1245 = vrot.lane.b32.xlu0 %v973, 16
      %v1246 = vpop.permute.xlu0 %1245
      %1247 = vrot.lane.b32.xlu0 %v975, 16
      %v1248 = vpop.permute.xlu0 %1247
      %1249 = vrot.lane.b32.xlu0 %v978, 16
      %v1250 = vpop.permute.xlu0 %1249
      %1251 = vrot.lane.b32.xlu0 %v980, 16
      %v1252 = vpop.permute.xlu0 %1251
      %1253 = vrot.lane.b32.xlu0 %v982, 16
      %v1254 = vpop.permute.xlu0 %1253
      %1255 = vrot.lane.b32.xlu0 %v984, 16
      %v1256 = vpop.permute.xlu0 %1255
      %1257 = vrot.lane.b32.xlu0 %v987, 16
      %v1258 = vpop.permute.xlu0 %1257
      %1259 = vrot.lane.b32.xlu0 %v989, 16
      %v1260 = vpop.permute.xlu0 %1259
      %1261 = vrot.lane.b32.xlu0 %v991, 16
      %v1262 = vpop.permute.xlu0 %1261
      %1263 = vrot.lane.b32.xlu0 %v993, 16
      %v1264 = vpop.permute.xlu0 %1263
      %1265 = vrot.lane.b32.xlu0 %v996, 16
      %v1266 = vpop.permute.xlu0 %1265
      %1267 = vrot.lane.b32.xlu0 %v998, 16
      %v1268 = vpop.permute.xlu0 %1267
      %1269 = vrot.lane.b32.xlu0 %v1000, 16
      %v1270 = vpop.permute.xlu0 %1269
      %1271 = vrot.lane.b32.xlu0 %v1002, 16
      %v1272 = vpop.permute.xlu0 %1271
      %1273 = vrot.lane.b32.xlu0 %v1005, 16
      %v1274 = vpop.permute.xlu0 %1273
      %1275 = vrot.lane.b32.xlu0 %v1007, 16
      %v1276 = vpop.permute.xlu0 %1275
      %1277 = vrot.lane.b32.xlu0 %v1009, 16
      %v1278 = vpop.permute.xlu0 %1277
      %1279 = vrot.lane.b32.xlu0 %v1011, 16
      %v1280 = vpop.permute.xlu0 %1279
      %1281 = vrot.lane.b32.xlu0 %v1014, 16
      %v1282 = vpop.permute.xlu0 %1281
      %1283 = vrot.lane.b32.xlu0 %v1016, 16
      %v1284 = vpop.permute.xlu0 %1283
      %1285 = vrot.lane.b32.xlu0 %v1018, 16
      %v1286 = vpop.permute.xlu0 %1285
      %1287 = vrot.lane.b32.xlu0 %v1020, 16
      %v1288 = vpop.permute.xlu0 %1287
      %1289 = vrot.lane.b32.xlu0 %v1023, 16
      %v1290 = vpop.permute.xlu0 %1289
      %1291 = vrot.lane.b32.xlu0 %v1025, 16
      %v1292 = vpop.permute.xlu0 %1291
      %1293 = vrot.lane.b32.xlu0 %v1027, 16
      %v1294 = vpop.permute.xlu0 %1293
      %1295 = vrot.lane.b32.xlu0 %v1029, 16
      %v1296 = vpop.permute.xlu0 %1295
      %1297 = vrot.lane.b32.xlu0 %v1032, 16
      %v1298 = vpop.permute.xlu0 %1297
      %1299 = vrot.lane.b32.xlu0 %v1034, 16
      %v1300 = vpop.permute.xlu0 %1299
      %1301 = vrot.lane.b32.xlu0 %v1036, 16
      %v1302 = vpop.permute.xlu0 %1301
      %1303 = vrot.lane.b32.xlu0 %v1038, 16
      %v1304 = vpop.permute.xlu0 %1303
      %1305 = vrot.lane.b32.xlu0 %v1041, 16
      %v1306 = vpop.permute.xlu0 %1305
      %1307 = vrot.lane.b32.xlu0 %v1043, 16
      %v1308 = vpop.permute.xlu0 %1307
      %1309 = vrot.lane.b32.xlu0 %v1045, 16
      %v1310 = vpop.permute.xlu0 %1309
      %1311 = vrot.lane.b32.xlu0 %v1047, 16
      %v1312 = vpop.permute.xlu0 %1311
      %1313 = vrot.lane.b32.xlu0 %v1050, 16
      %v1314 = vpop.permute.xlu0 %1313
      %1315 = vrot.lane.b32.xlu0 %v1052, 16
      %v1316 = vpop.permute.xlu0 %1315
      %1317 = vrot.lane.b32.xlu0 %v1054, 16
      %v1318 = vpop.permute.xlu0 %1317
      %1319 = vrot.lane.b32.xlu0 %v1056, 16
      %v1320 = vpop.permute.xlu0 %1319
      %1321 = vrot.lane.b32.xlu0 %v1059, 16
      %v1322 = vpop.permute.xlu0 %1321
      %1323 = vrot.lane.b32.xlu0 %v1061, 16
      %v1324 = vpop.permute.xlu0 %1323
      %1325 = vrot.lane.b32.xlu0 %v1063, 16
      %v1326 = vpop.permute.xlu0 %1325
      %1327 = vrot.lane.b32.xlu0 %v1065, 16
      %v1328 = vpop.permute.xlu0 %1327
      %1329 = vrot.lane.b32.xlu0 %v1068, 16
      %v1330 = vpop.permute.xlu0 %1329
      %1331 = vrot.lane.b32.xlu0 %v1070, 16
      %v1332 = vpop.permute.xlu0 %1331
      %1333 = vrot.lane.b32.xlu0 %v1072, 16
      %v1334 = vpop.permute.xlu0 %1333
      %1335 = vrot.lane.b32.xlu0 %v1074, 16
      %v1336 = vpop.permute.xlu0 %1335
      %1337 = vrot.lane.b32.xlu0 %v1077, 16
      %v1338 = vpop.permute.xlu0 %1337
      %1339 = vrot.lane.b32.xlu0 %v1079, 16
      %v1340 = vpop.permute.xlu0 %1339
      %1341 = vrot.lane.b32.xlu0 %v1081, 16
      %v1342 = vpop.permute.xlu0 %1341
      %1343 = vrot.lane.b32.xlu0 %v1083, 16
      %v1344 = vpop.permute.xlu0 %1343
      %1345 = vrot.lane.b32.xlu0 %v1086, 16
      %v1346 = vpop.permute.xlu0 %1345
      %1347 = vrot.lane.b32.xlu0 %v1088, 16
      %v1348 = vpop.permute.xlu0 %1347
      %1349 = vrot.lane.b32.xlu0 %v1090, 16
      %v1350 = vpop.permute.xlu0 %1349
      %1351 = vrot.lane.b32.xlu0 %v1092, 16
      %v1352 = vpop.permute.xlu0 %1351
      %1353 = vrot.lane.b32.xlu0 %v1095, 16
      %v1354 = vpop.permute.xlu0 %1353
      %1355 = vrot.lane.b32.xlu0 %v1097, 16
      %v1356 = vpop.permute.xlu0 %1355
      %1357 = vrot.lane.b32.xlu0 %v1099, 16
      %v1358 = vpop.permute.xlu0 %1357
      %1359 = vrot.lane.b32.xlu0 %v1101, 16
      %v1360 = vpop.permute.xlu0 %1359
      %1361 = vrot.lane.b32.xlu0 %v1104, 16
      %v1362 = vpop.permute.xlu0 %1361
      %1363 = vrot.lane.b32.xlu0 %v1106, 16
      %v1364 = vpop.permute.xlu0 %1363
      %1365 = vrot.lane.b32.xlu0 %v1108, 16
      %v1366 = vpop.permute.xlu0 %1365
      %1367 = vrot.lane.b32.xlu0 %v1110, 16
      %v1368 = vpop.permute.xlu0 %1367
      %1369 = vrot.lane.b32.xlu0 %v1113, 16
      %v1370 = vpop.permute.xlu0 %1369
      %1371 = vrot.lane.b32.xlu0 %v1115, 16
      %v1372 = vpop.permute.xlu0 %1371
      %1373 = vrot.lane.b32.xlu0 %v1117, 16
      %v1374 = vpop.permute.xlu0 %1373
      %1375 = vrot.lane.b32.xlu0 %v1119, 16
      %v1376 = vpop.permute.xlu0 %1375
      %1377 = vrot.lane.b32.xlu0 %v1122, 16
      %v1378 = vpop.permute.xlu0 %1377
      %1379 = vrot.lane.b32.xlu0 %v1124, 16
      %v1380 = vpop.permute.xlu0 %1379
      %1381 = vrot.lane.b32.xlu0 %v1126, 16
      %v1382 = vpop.permute.xlu0 %1381
      %1383 = vrot.lane.b32.xlu0 %v1128, 16
      %v1384 = vpop.permute.xlu0 %1383
      %vm1513 = vcmask 1045504
      %v1514 = vrot.slane %v510, 2
      %v1515 = vrot.slane %v511, 2
      %v1516 = vsel %vm1513, %v1514, %v1515
      %v1517 = vrot.slane %v512, 2
      %v1518 = vsel %vm1513, %v1515, %v1517
      %v1519 = vrot.slane %v513, 2
      %v1520 = vsel %vm1513, %v1517, %v1519
      %v1521 = vrot.slane %v514, 2
      %v1522 = vsel %vm1513, %v1519, %v1521
      %v1523 = vrot.slane %v515, 2
      %v1524 = vrot.slane %v516, 2
      %v1525 = vsel %vm1513, %v1523, %v1524
      %v1526 = vrot.slane %v517, 2
      %v1527 = vsel %vm1513, %v1524, %v1526
      %v1528 = vrot.slane %v518, 2
      %v1529 = vsel %vm1513, %v1526, %v1528
      %v1530 = vrot.slane %v519, 2
      %v1531 = vsel %vm1513, %v1528, %v1530
      %v1532 = vrot.slane %v520, 2
      %v1533 = vrot.slane %v521, 2
      %v1534 = vsel %vm1513, %v1532, %v1533
      %v1535 = vrot.slane %v522, 2
      %v1536 = vsel %vm1513, %v1533, %v1535
      %v1537 = vrot.slane %v523, 2
      %v1538 = vsel %vm1513, %v1535, %v1537
      %v1539 = vrot.slane %v524, 2
      %v1540 = vsel %vm1513, %v1537, %v1539
      %v1541 = vrot.slane %v525, 2
      %v1542 = vrot.slane %v526, 2
      %v1543 = vsel %vm1513, %v1541, %v1542
      %v1544 = vrot.slane %v527, 2
      %v1545 = vsel %vm1513, %v1542, %v1544
      %v1546 = vrot.slane %v528, 2
      %v1547 = vsel %vm1513, %v1544, %v1546
      %v1548 = vrot.slane %v529, 2
      %v1549 = vsel %vm1513, %v1546, %v1548
      %v1550 = vrot.slane %v530, 2
      %v1551 = vrot.slane %v531, 2
      %v1552 = vsel %vm1513, %v1550, %v1551
      %v1553 = vrot.slane %v532, 2
      %v1554 = vsel %vm1513, %v1551, %v1553
      %v1555 = vrot.slane %v533, 2
      %v1556 = vsel %vm1513, %v1553, %v1555
      %v1557 = vrot.slane %v534, 2
      %v1558 = vsel %vm1513, %v1555, %v1557
      %v1559 = vrot.slane %v535, 2
      %v1560 = vrot.slane %v536, 2
      %v1561 = vsel %vm1513, %v1559, %v1560
      %v1562 = vrot.slane %v537, 2
      %v1563 = vsel %vm1513, %v1560, %v1562
      %v1564 = vrot.slane %v538, 2
      %v1565 = vsel %vm1513, %v1562, %v1564
      %v1566 = vrot.slane %v539, 2
      %v1567 = vsel %vm1513, %v1564, %v1566
      %v1568 = vrot.slane %v540, 2
      %v1569 = vrot.slane %v541, 2
      %v1570 = vsel %vm1513, %v1568, %v1569
      %v1571 = vrot.slane %v542, 2
      %v1572 = vsel %vm1513, %v1569, %v1571
      %v1573 = vrot.slane %v543, 2
      %v1574 = vsel %vm1513, %v1571, %v1573
      %v1575 = vrot.slane %v544, 2
      %v1576 = vsel %vm1513, %v1573, %v1575
      %v1577 = vrot.slane %v545, 2
      %v1578 = vrot.slane %v546, 2
      %v1579 = vsel %vm1513, %v1577, %v1578
      %v1580 = vrot.slane %v547, 2
      %v1581 = vsel %vm1513, %v1578, %v1580
      %v1582 = vrot.slane %v548, 2
      %v1583 = vsel %vm1513, %v1580, %v1582
      %v1584 = vrot.slane %v549, 2
      %v1585 = vsel %vm1513, %v1582, %v1584
      %v1586 = vrot.slane %v550, 2
      %v1587 = vrot.slane %v551, 2
      %v1588 = vsel %vm1513, %v1586, %v1587
      %v1589 = vrot.slane %v552, 2
      %v1590 = vsel %vm1513, %v1587, %v1589
      %v1591 = vrot.slane %v553, 2
      %v1592 = vsel %vm1513, %v1589, %v1591
      %v1593 = vrot.slane %v554, 2
      %v1594 = vsel %vm1513, %v1591, %v1593
      %v1595 = vrot.slane %v555, 2
      %v1596 = vrot.slane %v556, 2
      %v1597 = vsel %vm1513, %v1595, %v1596
      %v1598 = vrot.slane %v557, 2
      %v1599 = vsel %vm1513, %v1596, %v1598
      %v1600 = vrot.slane %v558, 2
      %v1601 = vsel %vm1513, %v1598, %v1600
      %v1602 = vrot.slane %v559, 2
      %v1603 = vsel %vm1513, %v1600, %v1602
      %v1604 = vrot.slane %v560, 2
      %v1605 = vrot.slane %v561, 2
      %v1606 = vsel %vm1513, %v1604, %v1605
      %v1607 = vrot.slane %v562, 2
      %v1608 = vsel %vm1513, %v1605, %v1607
      %v1609 = vrot.slane %v563, 2
      %v1610 = vsel %vm1513, %v1607, %v1609
      %v1611 = vrot.slane %v564, 2
      %v1612 = vsel %vm1513, %v1609, %v1611
      %v1613 = vrot.slane %v565, 2
      %v1614 = vrot.slane %v566, 2
      %v1615 = vsel %vm1513, %v1613, %v1614
      %v1616 = vrot.slane %v567, 2
      %v1617 = vsel %vm1513, %v1614, %v1616
      %v1618 = vrot.slane %v568, 2
      %v1619 = vsel %vm1513, %v1616, %v1618
      %v1620 = vrot.slane %v569, 2
      %v1621 = vsel %vm1513, %v1618, %v1620
      %v1622 = vrot.slane %v570, 2
      %v1623 = vrot.slane %v571, 2
      %v1624 = vsel %vm1513, %v1622, %v1623
      %v1625 = vrot.slane %v572, 2
      %v1626 = vsel %vm1513, %v1623, %v1625
      %v1627 = vrot.slane %v573, 2
      %v1628 = vsel %vm1513, %v1625, %v1627
      %v1629 = vrot.slane %v574, 2
      %v1630 = vsel %vm1513, %v1627, %v1629
      %v1631 = vrot.slane %v575, 2
      %v1632 = vrot.slane %v576, 2
      %v1633 = vsel %vm1513, %v1631, %v1632
      %v1634 = vrot.slane %v577, 2
      %v1635 = vsel %vm1513, %v1632, %v1634
      %v1636 = vrot.slane %v578, 2
      %v1637 = vsel %vm1513, %v1634, %v1636
      %v1638 = vrot.slane %v579, 2
      %v1639 = vsel %vm1513, %v1636, %v1638
      %v1640 = vrot.slane %v580, 2
      %v1641 = vrot.slane %v581, 2
      %v1642 = vsel %vm1513, %v1640, %v1641
      %v1643 = vrot.slane %v582, 2
      %v1644 = vsel %vm1513, %v1641, %v1643
      %v1645 = vrot.slane %v583, 2
      %v1646 = vsel %vm1513, %v1643, %v1645
      %v1647 = vrot.slane %v584, 2
      %v1648 = vsel %vm1513, %v1645, %v1647
      %v1649 = vrot.slane %v585, 2
      %v1650 = vrot.slane %v586, 2
      %v1651 = vsel %vm1513, %v1649, %v1650
      %v1652 = vrot.slane %v587, 2
      %v1653 = vsel %vm1513, %v1650, %v1652
      %v1654 = vrot.slane %v588, 2
      %v1655 = vsel %vm1513, %v1652, %v1654
      %v1656 = vrot.slane %v589, 2
      %v1657 = vsel %vm1513, %v1654, %v1656
      %v1658 = vrot.slane %v590, 2
      %v1659 = vrot.slane %v591, 2
      %v1660 = vsel %vm1513, %v1658, %v1659
      %v1661 = vrot.slane %v592, 2
      %v1662 = vsel %vm1513, %v1659, %v1661
      %v1663 = vrot.slane %v593, 2
      %v1664 = vsel %vm1513, %v1661, %v1663
      %v1665 = vrot.slane %v594, 2
      %v1666 = vsel %vm1513, %v1663, %v1665
      %v1667 = vrot.slane %v595, 2
      %v1668 = vrot.slane %v596, 2
      %v1669 = vsel %vm1513, %v1667, %v1668
      %v1670 = vrot.slane %v597, 2
      %v1671 = vsel %vm1513, %v1668, %v1670
      %v1672 = vrot.slane %v598, 2
      %v1673 = vsel %vm1513, %v1670, %v1672
      %v1674 = vrot.slane %v599, 2
      %v1675 = vsel %vm1513, %v1672, %v1674
      %v1676 = vrot.slane %v600, 2
      %v1677 = vrot.slane %v601, 2
      %v1678 = vsel %vm1513, %v1676, %v1677
      %v1679 = vrot.slane %v602, 2
      %v1680 = vsel %vm1513, %v1677, %v1679
      %v1681 = vrot.slane %v603, 2
      %v1682 = vsel %vm1513, %v1679, %v1681
      %v1683 = vrot.slane %v604, 2
      %v1684 = vsel %vm1513, %v1681, %v1683
      %v1685 = vrot.slane %v605, 2
      %v1686 = vrot.slane %v606, 2
      %v1687 = vsel %vm1513, %v1685, %v1686
      %v1688 = vrot.slane %v607, 2
      %v1689 = vsel %vm1513, %v1686, %v1688
      %v1690 = vrot.slane %v608, 2
      %v1691 = vsel %vm1513, %v1688, %v1690
      %v1692 = vrot.slane %v609, 2
      %v1693 = vsel %vm1513, %v1690, %v1692
      %v1694 = vrot.slane %v610, 2
      %v1695 = vrot.slane %v611, 2
      %v1696 = vsel %vm1513, %v1694, %v1695
      %v1697 = vrot.slane %v612, 2
      %v1698 = vsel %vm1513, %v1695, %v1697
      %v1699 = vrot.slane %v613, 2
      %v1700 = vsel %vm1513, %v1697, %v1699
      %v1701 = vrot.slane %v614, 2
      %v1702 = vsel %vm1513, %v1699, %v1701
      %v1703 = vrot.slane %v615, 2
      %v1704 = vrot.slane %v616, 2
      %v1705 = vsel %vm1513, %v1703, %v1704
      %v1706 = vrot.slane %v617, 2
      %v1707 = vsel %vm1513, %v1704, %v1706
      %v1708 = vrot.slane %v618, 2
      %v1709 = vsel %vm1513, %v1706, %v1708
      %v1710 = vrot.slane %v619, 2
      %v1711 = vsel %vm1513, %v1708, %v1710
      %v1712 = vrot.slane %v620, 2
      %v1713 = vrot.slane %v621, 2
      %v1714 = vsel %vm1513, %v1712, %v1713
      %v1715 = vrot.slane %v622, 2
      %v1716 = vsel %vm1513, %v1713, %v1715
      %v1717 = vrot.slane %v623, 2
      %v1718 = vsel %vm1513, %v1715, %v1717
      %v1719 = vrot.slane %v624, 2
      %v1720 = vsel %vm1513, %v1717, %v1719
      %v1721 = vrot.slane %v625, 2
      %v1722 = vrot.slane %v626, 2
      %v1723 = vsel %vm1513, %v1721, %v1722
      %v1724 = vrot.slane %v627, 2
      %v1725 = vsel %vm1513, %v1722, %v1724
      %v1726 = vrot.slane %v628, 2
      %v1727 = vsel %vm1513, %v1724, %v1726
      %v1728 = vrot.slane %v629, 2
      %v1729 = vsel %vm1513, %v1726, %v1728
      %v1730 = vrot.slane %v630, 2
      %v1731 = vrot.slane %v631, 2
      %v1732 = vsel %vm1513, %v1730, %v1731
      %v1733 = vrot.slane %v632, 2
      %v1734 = vsel %vm1513, %v1731, %v1733
      %v1735 = vrot.slane %v633, 2
      %v1736 = vsel %vm1513, %v1733, %v1735
      %v1737 = vrot.slane %v634, 2
      %v1738 = vsel %vm1513, %v1735, %v1737
      %v1739 = vrot.slane %v635, 2
      %v1740 = vrot.slane %v636, 2
      %v1741 = vsel %vm1513, %v1739, %v1740
      %v1742 = vrot.slane %v637, 2
      %v1743 = vsel %vm1513, %v1740, %v1742
      %v1744 = vrot.slane %v638, 2
      %v1745 = vsel %vm1513, %v1742, %v1744
      %v1746 = vrot.slane %v639, 2
      %v1747 = vsel %vm1513, %v1744, %v1746
      %v1748 = vrot.slane %v640, 2
      %v1749 = vrot.slane %v641, 2
      %v1750 = vsel %vm1513, %v1748, %v1749
      %v1751 = vrot.slane %v642, 2
      %v1752 = vsel %vm1513, %v1749, %v1751
      %v1753 = vrot.slane %v643, 2
      %v1754 = vsel %vm1513, %v1751, %v1753
      %v1755 = vrot.slane %v644, 2
      %v1756 = vsel %vm1513, %v1753, %v1755
      %v1757 = vrot.slane %v645, 2
      %v1758 = vrot.slane %v646, 2
      %v1759 = vsel %vm1513, %v1757, %v1758
      %v1760 = vrot.slane %v647, 2
      %v1761 = vsel %vm1513, %v1758, %v1760
      %v1762 = vrot.slane %v648, 2
      %v1763 = vsel %vm1513, %v1760, %v1762
      %v1764 = vrot.slane %v649, 2
      %v1765 = vsel %vm1513, %v1762, %v1764
      %v1766 = vrot.slane %v650, 2
      %v1767 = vrot.slane %v651, 2
      %v1768 = vsel %vm1513, %v1766, %v1767
      %v1769 = vrot.slane %v652, 2
      %v1770 = vsel %vm1513, %v1767, %v1769
      %v1771 = vrot.slane %v653, 2
      %v1772 = vsel %vm1513, %v1769, %v1771
      %v1773 = vrot.slane %v654, 2
      %v1774 = vsel %vm1513, %v1771, %v1773
      %v1775 = vrot.slane %v655, 2
      %v1776 = vrot.slane %v656, 2
      %v1777 = vsel %vm1513, %v1775, %v1776
      %v1778 = vrot.slane %v657, 2
      %v1779 = vsel %vm1513, %v1776, %v1778
      %v1780 = vrot.slane %v658, 2
      %v1781 = vsel %vm1513, %v1778, %v1780
      %v1782 = vrot.slane %v659, 2
      %v1783 = vsel %vm1513, %v1780, %v1782
      %v1784 = vrot.slane %v660, 2
      %v1785 = vrot.slane %v661, 2
      %v1786 = vsel %vm1513, %v1784, %v1785
      %v1787 = vrot.slane %v662, 2
      %v1788 = vsel %vm1513, %v1785, %v1787
      %v1789 = vrot.slane %v663, 2
      %v1790 = vsel %vm1513, %v1787, %v1789
      %v1791 = vrot.slane %v664, 2
      %v1792 = vsel %vm1513, %v1789, %v1791
      %v1793 = vrot.slane %v665, 2
      %v1794 = vrot.slane %v666, 2
      %v1795 = vsel %vm1513, %v1793, %v1794
      %v1796 = vrot.slane %v667, 2
      %v1797 = vsel %vm1513, %v1794, %v1796
      %v1798 = vrot.slane %v668, 2
      %v1799 = vsel %vm1513, %v1796, %v1798
      %v1800 = vrot.slane %v669, 2
      %v1801 = vsel %vm1513, %v1798, %v1800
      %1802 = vrot.lane.b32.xlu0 %v1516, 32
      %v1803 = vpop.permute.xlu0 %1802
      %1804 = vrot.lane.b32.xlu0 %v1518, 32
      %v1805 = vpop.permute.xlu0 %1804
      %1806 = vrot.lane.b32.xlu0 %v1520, 32
      %v1807 = vpop.permute.xlu0 %1806
      %1808 = vrot.lane.b32.xlu0 %v1522, 32
      %v1809 = vpop.permute.xlu0 %1808
      %1810 = vrot.lane.b32.xlu0 %v1525, 32
      %v1811 = vpop.permute.xlu0 %1810
      %1812 = vrot.lane.b32.xlu0 %v1527, 32
      %v1813 = vpop.permute.xlu0 %1812
      %1814 = vrot.lane.b32.xlu0 %v1529, 32
      %v1815 = vpop.permute.xlu0 %1814
      %1816 = vrot.lane.b32.xlu0 %v1531, 32
      %v1817 = vpop.permute.xlu0 %1816
      %1818 = vrot.lane.b32.xlu0 %v1534, 32
      %v1819 = vpop.permute.xlu0 %1818
      %1820 = vrot.lane.b32.xlu0 %v1536, 32
      %v1821 = vpop.permute.xlu0 %1820
      %1822 = vrot.lane.b32.xlu0 %v1538, 32
      %v1823 = vpop.permute.xlu0 %1822
      %1824 = vrot.lane.b32.xlu0 %v1540, 32
      %v1825 = vpop.permute.xlu0 %1824
      %1826 = vrot.lane.b32.xlu0 %v1543, 32
      %v1827 = vpop.permute.xlu0 %1826
      %1828 = vrot.lane.b32.xlu0 %v1545, 32
      %v1829 = vpop.permute.xlu0 %1828
      %1830 = vrot.lane.b32.xlu0 %v1547, 32
      %v1831 = vpop.permute.xlu0 %1830
      %1832 = vrot.lane.b32.xlu0 %v1549, 32
      %v1833 = vpop.permute.xlu0 %1832
      %1834 = vrot.lane.b32.xlu0 %v1552, 32
      %v1835 = vpop.permute.xlu0 %1834
      %1836 = vrot.lane.b32.xlu0 %v1554, 32
      %v1837 = vpop.permute.xlu0 %1836
      %1838 = vrot.lane.b32.xlu0 %v1556, 32
      %v1839 = vpop.permute.xlu0 %1838
      %1840 = vrot.lane.b32.xlu0 %v1558, 32
      %v1841 = vpop.permute.xlu0 %1840
      %1842 = vrot.lane.b32.xlu0 %v1561, 32
      %v1843 = vpop.permute.xlu0 %1842
      %1844 = vrot.lane.b32.xlu0 %v1563, 32
      %v1845 = vpop.permute.xlu0 %1844
      %1846 = vrot.lane.b32.xlu0 %v1565, 32
      %v1847 = vpop.permute.xlu0 %1846
      %1848 = vrot.lane.b32.xlu0 %v1567, 32
      %v1849 = vpop.permute.xlu0 %1848
      %1850 = vrot.lane.b32.xlu0 %v1570, 32
      %v1851 = vpop.permute.xlu0 %1850
      %1852 = vrot.lane.b32.xlu0 %v1572, 32
      %v1853 = vpop.permute.xlu0 %1852
      %1854 = vrot.lane.b32.xlu0 %v1574, 32
      %v1855 = vpop.permute.xlu0 %1854
      %1856 = vrot.lane.b32.xlu0 %v1576, 32
      %v1857 = vpop.permute.xlu0 %1856
      %1858 = vrot.lane.b32.xlu0 %v1579, 32
      %v1859 = vpop.permute.xlu0 %1858
      %1860 = vrot.lane.b32.xlu0 %v1581, 32
      %v1861 = vpop.permute.xlu0 %1860
      %1862 = vrot.lane.b32.xlu0 %v1583, 32
      %v1863 = vpop.permute.xlu0 %1862
      %1864 = vrot.lane.b32.xlu0 %v1585, 32
      %v1865 = vpop.permute.xlu0 %1864
      %1866 = vrot.lane.b32.xlu0 %v1588, 32
      %v1867 = vpop.permute.xlu0 %1866
      %1868 = vrot.lane.b32.xlu0 %v1590, 32
      %v1869 = vpop.permute.xlu0 %1868
      %1870 = vrot.lane.b32.xlu0 %v1592, 32
      %v1871 = vpop.permute.xlu0 %1870
      %1872 = vrot.lane.b32.xlu0 %v1594, 32
      %v1873 = vpop.permute.xlu0 %1872
      %1874 = vrot.lane.b32.xlu0 %v1597, 32
      %v1875 = vpop.permute.xlu0 %1874
      %1876 = vrot.lane.b32.xlu0 %v1599, 32
      %v1877 = vpop.permute.xlu0 %1876
      %1878 = vrot.lane.b32.xlu0 %v1601, 32
      %v1879 = vpop.permute.xlu0 %1878
      %1880 = vrot.lane.b32.xlu0 %v1603, 32
      %v1881 = vpop.permute.xlu0 %1880
      %1882 = vrot.lane.b32.xlu0 %v1606, 32
      %v1883 = vpop.permute.xlu0 %1882
      %1884 = vrot.lane.b32.xlu0 %v1608, 32
      %v1885 = vpop.permute.xlu0 %1884
      %1886 = vrot.lane.b32.xlu0 %v1610, 32
      %v1887 = vpop.permute.xlu0 %1886
      %1888 = vrot.lane.b32.xlu0 %v1612, 32
      %v1889 = vpop.permute.xlu0 %1888
      %1890 = vrot.lane.b32.xlu0 %v1615, 32
      %v1891 = vpop.permute.xlu0 %1890
      %1892 = vrot.lane.b32.xlu0 %v1617, 32
      %v1893 = vpop.permute.xlu0 %1892
      %1894 = vrot.lane.b32.xlu0 %v1619, 32
      %v1895 = vpop.permute.xlu0 %1894
      %1896 = vrot.lane.b32.xlu0 %v1621, 32
      %v1897 = vpop.permute.xlu0 %1896
      %1898 = vrot.lane.b32.xlu0 %v1624, 32
      %v1899 = vpop.permute.xlu0 %1898
      %1900 = vrot.lane.b32.xlu0 %v1626, 32
      %v1901 = vpop.permute.xlu0 %1900
      %1902 = vrot.lane.b32.xlu0 %v1628, 32
      %v1903 = vpop.permute.xlu0 %1902
      %1904 = vrot.lane.b32.xlu0 %v1630, 32
      %v1905 = vpop.permute.xlu0 %1904
      %1906 = vrot.lane.b32.xlu0 %v1633, 32
      %v1907 = vpop.permute.xlu0 %1906
      %1908 = vrot.lane.b32.xlu0 %v1635, 32
      %v1909 = vpop.permute.xlu0 %1908
      %1910 = vrot.lane.b32.xlu0 %v1637, 32
      %v1911 = vpop.permute.xlu0 %1910
      %1912 = vrot.lane.b32.xlu0 %v1639, 32
      %v1913 = vpop.permute.xlu0 %1912
      %1914 = vrot.lane.b32.xlu0 %v1642, 32
      %v1915 = vpop.permute.xlu0 %1914
      %1916 = vrot.lane.b32.xlu0 %v1644, 32
      %v1917 = vpop.permute.xlu0 %1916
      %1918 = vrot.lane.b32.xlu0 %v1646, 32
      %v1919 = vpop.permute.xlu0 %1918
      %1920 = vrot.lane.b32.xlu0 %v1648, 32
      %v1921 = vpop.permute.xlu0 %1920
      %1922 = vrot.lane.b32.xlu0 %v1651, 32
      %v1923 = vpop.permute.xlu0 %1922
      %1924 = vrot.lane.b32.xlu0 %v1653, 32
      %v1925 = vpop.permute.xlu0 %1924
      %1926 = vrot.lane.b32.xlu0 %v1655, 32
      %v1927 = vpop.permute.xlu0 %1926
      %1928 = vrot.lane.b32.xlu0 %v1657, 32
      %v1929 = vpop.permute.xlu0 %1928
      %1930 = vrot.lane.b32.xlu0 %v1660, 32
      %v1931 = vpop.permute.xlu0 %1930
      %1932 = vrot.lane.b32.xlu0 %v1662, 32
      %v1933 = vpop.permute.xlu0 %1932
      %1934 = vrot.lane.b32.xlu0 %v1664, 32
      %v1935 = vpop.permute.xlu0 %1934
      %1936 = vrot.lane.b32.xlu0 %v1666, 32
      %v1937 = vpop.permute.xlu0 %1936
      %1938 = vrot.lane.b32.xlu0 %v1669, 32
      %v1939 = vpop.permute.xlu0 %1938
      %1940 = vrot.lane.b32.xlu0 %v1671, 32
      %v1941 = vpop.permute.xlu0 %1940
      %1942 = vrot.lane.b32.xlu0 %v1673, 32
      %v1943 = vpop.permute.xlu0 %1942
      %1944 = vrot.lane.b32.xlu0 %v1675, 32
      %v1945 = vpop.permute.xlu0 %1944
      %1946 = vrot.lane.b32.xlu0 %v1678, 32
      %v1947 = vpop.permute.xlu0 %1946
      %1948 = vrot.lane.b32.xlu0 %v1680, 32
      %v1949 = vpop.permute.xlu0 %1948
      %1950 = vrot.lane.b32.xlu0 %v1682, 32
      %v1951 = vpop.permute.xlu0 %1950
      %1952 = vrot.lane.b32.xlu0 %v1684, 32
      %v1953 = vpop.permute.xlu0 %1952
      %1954 = vrot.lane.b32.xlu0 %v1687, 32
      %v1955 = vpop.permute.xlu0 %1954
      %1956 = vrot.lane.b32.xlu0 %v1689, 32
      %v1957 = vpop.permute.xlu0 %1956
      %1958 = vrot.lane.b32.xlu0 %v1691, 32
      %v1959 = vpop.permute.xlu0 %1958
      %1960 = vrot.lane.b32.xlu0 %v1693, 32
      %v1961 = vpop.permute.xlu0 %1960
      %1962 = vrot.lane.b32.xlu0 %v1696, 32
      %v1963 = vpop.permute.xlu0 %1962
      %1964 = vrot.lane.b32.xlu0 %v1698, 32
      %v1965 = vpop.permute.xlu0 %1964
      %1966 = vrot.lane.b32.xlu0 %v1700, 32
      %v1967 = vpop.permute.xlu0 %1966
      %1968 = vrot.lane.b32.xlu0 %v1702, 32
      %v1969 = vpop.permute.xlu0 %1968
      %1970 = vrot.lane.b32.xlu0 %v1705, 32
      %v1971 = vpop.permute.xlu0 %1970
      %1972 = vrot.lane.b32.xlu0 %v1707, 32
      %v1973 = vpop.permute.xlu0 %1972
      %1974 = vrot.lane.b32.xlu0 %v1709, 32
      %v1975 = vpop.permute.xlu0 %1974
      %1976 = vrot.lane.b32.xlu0 %v1711, 32
      %v1977 = vpop.permute.xlu0 %1976
      %1978 = vrot.lane.b32.xlu0 %v1714, 32
      %v1979 = vpop.permute.xlu0 %1978
      %1980 = vrot.lane.b32.xlu0 %v1716, 32
      %v1981 = vpop.permute.xlu0 %1980
      %1982 = vrot.lane.b32.xlu0 %v1718, 32
      %v1983 = vpop.permute.xlu0 %1982
      %1984 = vrot.lane.b32.xlu0 %v1720, 32
      %v1985 = vpop.permute.xlu0 %1984
      %1986 = vrot.lane.b32.xlu0 %v1723, 32
      %v1987 = vpop.permute.xlu0 %1986
      %1988 = vrot.lane.b32.xlu0 %v1725, 32
      %v1989 = vpop.permute.xlu0 %1988
      %1990 = vrot.lane.b32.xlu0 %v1727, 32
      %v1991 = vpop.permute.xlu0 %1990
      %1992 = vrot.lane.b32.xlu0 %v1729, 32
      %v1993 = vpop.permute.xlu0 %1992
      %1994 = vrot.lane.b32.xlu0 %v1732, 32
      %v1995 = vpop.permute.xlu0 %1994
      %1996 = vrot.lane.b32.xlu0 %v1734, 32
      %v1997 = vpop.permute.xlu0 %1996
      %1998 = vrot.lane.b32.xlu0 %v1736, 32
      %v1999 = vpop.permute.xlu0 %1998
      %2000 = vrot.lane.b32.xlu0 %v1738, 32
      %v2001 = vpop.permute.xlu0 %2000
      %2002 = vrot.lane.b32.xlu0 %v1741, 32
      %v2003 = vpop.permute.xlu0 %2002
      %2004 = vrot.lane.b32.xlu0 %v1743, 32
      %v2005 = vpop.permute.xlu0 %2004
      %2006 = vrot.lane.b32.xlu0 %v1745, 32
      %v2007 = vpop.permute.xlu0 %2006
      %2008 = vrot.lane.b32.xlu0 %v1747, 32
      %v2009 = vpop.permute.xlu0 %2008
      %2010 = vrot.lane.b32.xlu0 %v1750, 32
      %v2011 = vpop.permute.xlu0 %2010
      %2012 = vrot.lane.b32.xlu0 %v1752, 32
      %v2013 = vpop.permute.xlu0 %2012
      %2014 = vrot.lane.b32.xlu0 %v1754, 32
      %v2015 = vpop.permute.xlu0 %2014
      %2016 = vrot.lane.b32.xlu0 %v1756, 32
      %v2017 = vpop.permute.xlu0 %2016
      %2018 = vrot.lane.b32.xlu0 %v1759, 32
      %v2019 = vpop.permute.xlu0 %2018
      %2020 = vrot.lane.b32.xlu0 %v1761, 32
      %v2021 = vpop.permute.xlu0 %2020
      %2022 = vrot.lane.b32.xlu0 %v1763, 32
      %v2023 = vpop.permute.xlu0 %2022
      %2024 = vrot.lane.b32.xlu0 %v1765, 32
      %v2025 = vpop.permute.xlu0 %2024
      %2026 = vrot.lane.b32.xlu0 %v1768, 32
      %v2027 = vpop.permute.xlu0 %2026
      %2028 = vrot.lane.b32.xlu0 %v1770, 32
      %v2029 = vpop.permute.xlu0 %2028
      %2030 = vrot.lane.b32.xlu0 %v1772, 32
      %v2031 = vpop.permute.xlu0 %2030
      %2032 = vrot.lane.b32.xlu0 %v1774, 32
      %v2033 = vpop.permute.xlu0 %2032
      %2034 = vrot.lane.b32.xlu0 %v1777, 32
      %v2035 = vpop.permute.xlu0 %2034
      %2036 = vrot.lane.b32.xlu0 %v1779, 32
      %v2037 = vpop.permute.xlu0 %2036
      %2038 = vrot.lane.b32.xlu0 %v1781, 32
      %v2039 = vpop.permute.xlu0 %2038
      %2040 = vrot.lane.b32.xlu0 %v1783, 32
      %v2041 = vpop.permute.xlu0 %2040
      %2042 = vrot.lane.b32.xlu0 %v1786, 32
      %v2043 = vpop.permute.xlu0 %2042
      %2044 = vrot.lane.b32.xlu0 %v1788, 32
      %v2045 = vpop.permute.xlu0 %2044
      %2046 = vrot.lane.b32.xlu0 %v1790, 32
      %v2047 = vpop.permute.xlu0 %2046
      %2048 = vrot.lane.b32.xlu0 %v1792, 32
      %v2049 = vpop.permute.xlu0 %2048
      %2050 = vrot.lane.b32.xlu0 %v1795, 32
      %v2051 = vpop.permute.xlu0 %2050
      %2052 = vrot.lane.b32.xlu0 %v1797, 32
      %v2053 = vpop.permute.xlu0 %2052
      %2054 = vrot.lane.b32.xlu0 %v1799, 32
      %v2055 = vpop.permute.xlu0 %2054
      %2056 = vrot.lane.b32.xlu0 %v1801, 32
      %v2057 = vpop.permute.xlu0 %2056
      %2190 = vrot.lane.b32.xlu0 %v515, 48
      %v2191 = vpop.permute.xlu0 %2190
      %2192 = vrot.lane.b32.xlu0 %v516, 48
      %v2193 = vpop.permute.xlu0 %2192
      %2194 = vrot.lane.b32.xlu0 %v517, 48
      %v2195 = vpop.permute.xlu0 %2194
      %2196 = vrot.lane.b32.xlu0 %v518, 48
      %v2197 = vpop.permute.xlu0 %2196
      %2198 = vrot.lane.b32.xlu0 %v520, 48
      %v2199 = vpop.permute.xlu0 %2198
      %2200 = vrot.lane.b32.xlu0 %v521, 48
      %v2201 = vpop.permute.xlu0 %2200
      %2202 = vrot.lane.b32.xlu0 %v522, 48
      %v2203 = vpop.permute.xlu0 %2202
      %2204 = vrot.lane.b32.xlu0 %v523, 48
      %v2205 = vpop.permute.xlu0 %2204
      %2206 = vrot.lane.b32.xlu0 %v525, 48
      %v2207 = vpop.permute.xlu0 %2206
      %2208 = vrot.lane.b32.xlu0 %v526, 48
      %v2209 = vpop.permute.xlu0 %2208
      %2210 = vrot.lane.b32.xlu0 %v527, 48
      %v2211 = vpop.permute.xlu0 %2210
      %2212 = vrot.lane.b32.xlu0 %v528, 48
      %v2213 = vpop.permute.xlu0 %2212
      %2214 = vrot.lane.b32.xlu0 %v530, 48
      %v2215 = vpop.permute.xlu0 %2214
      %2216 = vrot.lane.b32.xlu0 %v531, 48
      %v2217 = vpop.permute.xlu0 %2216
      %2218 = vrot.lane.b32.xlu0 %v532, 48
      %v2219 = vpop.permute.xlu0 %2218
      %2220 = vrot.lane.b32.xlu0 %v533, 48
      %v2221 = vpop.permute.xlu0 %2220
      %2222 = vrot.lane.b32.xlu0 %v535, 48
      %v2223 = vpop.permute.xlu0 %2222
      %2224 = vrot.lane.b32.xlu0 %v536, 48
      %v2225 = vpop.permute.xlu0 %2224
      %2226 = vrot.lane.b32.xlu0 %v537, 48
      %v2227 = vpop.permute.xlu0 %2226
      %2228 = vrot.lane.b32.xlu0 %v538, 48
      %v2229 = vpop.permute.xlu0 %2228
      %2230 = vrot.lane.b32.xlu0 %v540, 48
      %v2231 = vpop.permute.xlu0 %2230
      %2232 = vrot.lane.b32.xlu0 %v541, 48
      %v2233 = vpop.permute.xlu0 %2232
      %2234 = vrot.lane.b32.xlu0 %v542, 48
      %v2235 = vpop.permute.xlu0 %2234
      %2236 = vrot.lane.b32.xlu0 %v543, 48
      %v2237 = vpop.permute.xlu0 %2236
      %2238 = vrot.lane.b32.xlu0 %v545, 48
      %v2239 = vpop.permute.xlu0 %2238
      %2240 = vrot.lane.b32.xlu0 %v546, 48
      %v2241 = vpop.permute.xlu0 %2240
      %2242 = vrot.lane.b32.xlu0 %v547, 48
      %v2243 = vpop.permute.xlu0 %2242
      %2244 = vrot.lane.b32.xlu0 %v548, 48
      %v2245 = vpop.permute.xlu0 %2244
      %2246 = vrot.lane.b32.xlu0 %v550, 48
      %v2247 = vpop.permute.xlu0 %2246
      %2248 = vrot.lane.b32.xlu0 %v551, 48
      %v2249 = vpop.permute.xlu0 %2248
      %2250 = vrot.lane.b32.xlu0 %v552, 48
      %v2251 = vpop.permute.xlu0 %2250
      %2252 = vrot.lane.b32.xlu0 %v553, 48
      %v2253 = vpop.permute.xlu0 %2252
      %2254 = vrot.lane.b32.xlu0 %v555, 48
      %v2255 = vpop.permute.xlu0 %2254
      %2256 = vrot.lane.b32.xlu0 %v556, 48
      %v2257 = vpop.permute.xlu0 %2256
      %2258 = vrot.lane.b32.xlu0 %v557, 48
      %v2259 = vpop.permute.xlu0 %2258
      %2260 = vrot.lane.b32.xlu0 %v558, 48
      %v2261 = vpop.permute.xlu0 %2260
      %2262 = vrot.lane.b32.xlu0 %v560, 48
      %v2263 = vpop.permute.xlu0 %2262
      %2264 = vrot.lane.b32.xlu0 %v561, 48
      %v2265 = vpop.permute.xlu0 %2264
      %2266 = vrot.lane.b32.xlu0 %v562, 48
      %v2267 = vpop.permute.xlu0 %2266
      %2268 = vrot.lane.b32.xlu0 %v563, 48
      %v2269 = vpop.permute.xlu0 %2268
      %2270 = vrot.lane.b32.xlu0 %v565, 48
      %v2271 = vpop.permute.xlu0 %2270
      %2272 = vrot.lane.b32.xlu0 %v566, 48
      %v2273 = vpop.permute.xlu0 %2272
      %2274 = vrot.lane.b32.xlu0 %v567, 48
      %v2275 = vpop.permute.xlu0 %2274
      %2276 = vrot.lane.b32.xlu0 %v568, 48
      %v2277 = vpop.permute.xlu0 %2276
      %2278 = vrot.lane.b32.xlu0 %v570, 48
      %v2279 = vpop.permute.xlu0 %2278
      %2280 = vrot.lane.b32.xlu0 %v571, 48
      %v2281 = vpop.permute.xlu0 %2280
      %2282 = vrot.lane.b32.xlu0 %v572, 48
      %v2283 = vpop.permute.xlu0 %2282
      %2284 = vrot.lane.b32.xlu0 %v573, 48
      %v2285 = vpop.permute.xlu0 %2284
      %2286 = vrot.lane.b32.xlu0 %v575, 48
      %v2287 = vpop.permute.xlu0 %2286
      %2288 = vrot.lane.b32.xlu0 %v576, 48
      %v2289 = vpop.permute.xlu0 %2288
      %2290 = vrot.lane.b32.xlu0 %v577, 48
      %v2291 = vpop.permute.xlu0 %2290
      %2292 = vrot.lane.b32.xlu0 %v578, 48
      %v2293 = vpop.permute.xlu0 %2292
      %2294 = vrot.lane.b32.xlu0 %v580, 48
      %v2295 = vpop.permute.xlu0 %2294
      %2296 = vrot.lane.b32.xlu0 %v581, 48
      %v2297 = vpop.permute.xlu0 %2296
      %2298 = vrot.lane.b32.xlu0 %v582, 48
      %v2299 = vpop.permute.xlu0 %2298
      %2300 = vrot.lane.b32.xlu0 %v583, 48
      %v2301 = vpop.permute.xlu0 %2300
      %2302 = vrot.lane.b32.xlu0 %v585, 48
      %v2303 = vpop.permute.xlu0 %2302
      %2304 = vrot.lane.b32.xlu0 %v586, 48
      %v2305 = vpop.permute.xlu0 %2304
      %2306 = vrot.lane.b32.xlu0 %v587, 48
      %v2307 = vpop.permute.xlu0 %2306
      %2308 = vrot.lane.b32.xlu0 %v588, 48
      %v2309 = vpop.permute.xlu0 %2308
      %2310 = vrot.lane.b32.xlu0 %v590, 48
      %v2311 = vpop.permute.xlu0 %2310
      %2312 = vrot.lane.b32.xlu0 %v591, 48
      %v2313 = vpop.permute.xlu0 %2312
      %2314 = vrot.lane.b32.xlu0 %v592, 48
      %v2315 = vpop.permute.xlu0 %2314
      %2316 = vrot.lane.b32.xlu0 %v593, 48
      %v2317 = vpop.permute.xlu0 %2316
      %2318 = vrot.lane.b32.xlu0 %v595, 48
      %v2319 = vpop.permute.xlu0 %2318
      %2320 = vrot.lane.b32.xlu0 %v596, 48
      %v2321 = vpop.permute.xlu0 %2320
      %2322 = vrot.lane.b32.xlu0 %v597, 48
      %v2323 = vpop.permute.xlu0 %2322
      %2324 = vrot.lane.b32.xlu0 %v598, 48
      %v2325 = vpop.permute.xlu0 %2324
      %2326 = vrot.lane.b32.xlu0 %v600, 48
      %v2327 = vpop.permute.xlu0 %2326
      %2328 = vrot.lane.b32.xlu0 %v601, 48
      %v2329 = vpop.permute.xlu0 %2328
      %2330 = vrot.lane.b32.xlu0 %v602, 48
      %v2331 = vpop.permute.xlu0 %2330
      %2332 = vrot.lane.b32.xlu0 %v603, 48
      %v2333 = vpop.permute.xlu0 %2332
      %2334 = vrot.lane.b32.xlu0 %v605, 48
      %v2335 = vpop.permute.xlu0 %2334
      %2336 = vrot.lane.b32.xlu0 %v606, 48
      %v2337 = vpop.permute.xlu0 %2336
      %2338 = vrot.lane.b32.xlu0 %v607, 48
      %v2339 = vpop.permute.xlu0 %2338
      %2340 = vrot.lane.b32.xlu0 %v608, 48
      %v2341 = vpop.permute.xlu0 %2340
      %2342 = vrot.lane.b32.xlu0 %v610, 48
      %v2343 = vpop.permute.xlu0 %2342
      %2344 = vrot.lane.b32.xlu0 %v611, 48
      %v2345 = vpop.permute.xlu0 %2344
      %2346 = vrot.lane.b32.xlu0 %v612, 48
      %v2347 = vpop.permute.xlu0 %2346
      %2348 = vrot.lane.b32.xlu0 %v613, 48
      %v2349 = vpop.permute.xlu0 %2348
      %2350 = vrot.lane.b32.xlu0 %v615, 48
      %v2351 = vpop.permute.xlu0 %2350
      %2352 = vrot.lane.b32.xlu0 %v616, 48
      %v2353 = vpop.permute.xlu0 %2352
      %2354 = vrot.lane.b32.xlu0 %v617, 48
      %v2355 = vpop.permute.xlu0 %2354
      %2356 = vrot.lane.b32.xlu0 %v618, 48
      %v2357 = vpop.permute.xlu0 %2356
      %2358 = vrot.lane.b32.xlu0 %v620, 48
      %v2359 = vpop.permute.xlu0 %2358
      %2360 = vrot.lane.b32.xlu0 %v621, 48
      %v2361 = vpop.permute.xlu0 %2360
      %2362 = vrot.lane.b32.xlu0 %v622, 48
      %v2363 = vpop.permute.xlu0 %2362
      %2364 = vrot.lane.b32.xlu0 %v623, 48
      %v2365 = vpop.permute.xlu0 %2364
      %2366 = vrot.lane.b32.xlu0 %v625, 48
      %v2367 = vpop.permute.xlu0 %2366
      %2368 = vrot.lane.b32.xlu0 %v626, 48
      %v2369 = vpop.permute.xlu0 %2368
      %2370 = vrot.lane.b32.xlu0 %v627, 48
      %v2371 = vpop.permute.xlu0 %2370
      %2372 = vrot.lane.b32.xlu0 %v628, 48
      %v2373 = vpop.permute.xlu0 %2372
      %2374 = vrot.lane.b32.xlu0 %v630, 48
      %v2375 = vpop.permute.xlu0 %2374
      %2376 = vrot.lane.b32.xlu0 %v631, 48
      %v2377 = vpop.permute.xlu0 %2376
      %2378 = vrot.lane.b32.xlu0 %v632, 48
      %v2379 = vpop.permute.xlu0 %2378
      %2380 = vrot.lane.b32.xlu0 %v633, 48
      %v2381 = vpop.permute.xlu0 %2380
      %2382 = vrot.lane.b32.xlu0 %v635, 48
      %v2383 = vpop.permute.xlu0 %2382
      %2384 = vrot.lane.b32.xlu0 %v636, 48
      %v2385 = vpop.permute.xlu0 %2384
      %2386 = vrot.lane.b32.xlu0 %v637, 48
      %v2387 = vpop.permute.xlu0 %2386
      %2388 = vrot.lane.b32.xlu0 %v638, 48
      %v2389 = vpop.permute.xlu0 %2388
      %2390 = vrot.lane.b32.xlu0 %v640, 48
      %v2391 = vpop.permute.xlu0 %2390
      %2392 = vrot.lane.b32.xlu0 %v641, 48
      %v2393 = vpop.permute.xlu0 %2392
      %2394 = vrot.lane.b32.xlu0 %v642, 48
      %v2395 = vpop.permute.xlu0 %2394
      %2396 = vrot.lane.b32.xlu0 %v643, 48
      %v2397 = vpop.permute.xlu0 %2396
      %2398 = vrot.lane.b32.xlu0 %v645, 48
      %v2399 = vpop.permute.xlu0 %2398
      %2400 = vrot.lane.b32.xlu0 %v646, 48
      %v2401 = vpop.permute.xlu0 %2400
      %2402 = vrot.lane.b32.xlu0 %v647, 48
      %v2403 = vpop.permute.xlu0 %2402
      %2404 = vrot.lane.b32.xlu0 %v648, 48
      %v2405 = vpop.permute.xlu0 %2404
      %2406 = vrot.lane.b32.xlu0 %v650, 48
      %v2407 = vpop.permute.xlu0 %2406
      %2408 = vrot.lane.b32.xlu0 %v651, 48
      %v2409 = vpop.permute.xlu0 %2408
      %2410 = vrot.lane.b32.xlu0 %v652, 48
      %v2411 = vpop.permute.xlu0 %2410
      %2412 = vrot.lane.b32.xlu0 %v653, 48
      %v2413 = vpop.permute.xlu0 %2412
      %2414 = vrot.lane.b32.xlu0 %v655, 48
      %v2415 = vpop.permute.xlu0 %2414
      %2416 = vrot.lane.b32.xlu0 %v656, 48
      %v2417 = vpop.permute.xlu0 %2416
      %2418 = vrot.lane.b32.xlu0 %v657, 48
      %v2419 = vpop.permute.xlu0 %2418
      %2420 = vrot.lane.b32.xlu0 %v658, 48
      %v2421 = vpop.permute.xlu0 %2420
      %2422 = vrot.lane.b32.xlu0 %v660, 48
      %v2423 = vpop.permute.xlu0 %2422
      %2424 = vrot.lane.b32.xlu0 %v661, 48
      %v2425 = vpop.permute.xlu0 %2424
      %2426 = vrot.lane.b32.xlu0 %v662, 48
      %v2427 = vpop.permute.xlu0 %2426
      %2428 = vrot.lane.b32.xlu0 %v663, 48
      %v2429 = vpop.permute.xlu0 %2428
      %2430 = vrot.lane.b32.xlu0 %v665, 48
      %v2431 = vpop.permute.xlu0 %2430
      %2432 = vrot.lane.b32.xlu0 %v666, 48
      %v2433 = vpop.permute.xlu0 %2432
      %2434 = vrot.lane.b32.xlu0 %v667, 48
      %v2435 = vpop.permute.xlu0 %2434
      %2436 = vrot.lane.b32.xlu0 %v668, 48
      %v2437 = vpop.permute.xlu0 %2436
      %2438 = vrot.lane.b32.xlu0 %v670, 48
      %v2439 = vpop.permute.xlu0 %2438
      %2440 = vrot.lane.b32.xlu0 %v671, 48
      %v2441 = vpop.permute.xlu0 %2440
      %2442 = vrot.lane.b32.xlu0 %v672, 48
      %v2443 = vpop.permute.xlu0 %2442
      %2444 = vrot.lane.b32.xlu0 %v673, 48
      %v2445 = vpop.permute.xlu0 %2444
      %v2575 = vrot.slane %v670, 1
      %v2576 = vrot.slane %v671, 1
      %v2577 = vsel %vm840, %v2575, %v2576
      %v2578 = vrot.slane %v672, 1
      %v2579 = vsel %vm840, %v2576, %v2578
      %v2580 = vrot.slane %v673, 1
      %v2581 = vsel %vm840, %v2578, %v2580
      %v2582 = vrot.slane %v674, 1
      %v2583 = vsel %vm840, %v2580, %v2582
      %2584 = vrot.lane.b32.xlu0 %v852, 64
      %v2585 = vpop.permute.xlu0 %2584
      %2586 = vrot.lane.b32.xlu0 %v854, 64
      %v2587 = vpop.permute.xlu0 %2586
      %2588 = vrot.lane.b32.xlu0 %v856, 64
      %v2589 = vpop.permute.xlu0 %2588
      %2590 = vrot.lane.b32.xlu0 %v858, 64
      %v2591 = vpop.permute.xlu0 %2590
      %2592 = vrot.lane.b32.xlu0 %v861, 64
      %v2593 = vpop.permute.xlu0 %2592
      %2594 = vrot.lane.b32.xlu0 %v863, 64
      %v2595 = vpop.permute.xlu0 %2594
      %2596 = vrot.lane.b32.xlu0 %v865, 64
      %v2597 = vpop.permute.xlu0 %2596
      %2598 = vrot.lane.b32.xlu0 %v867, 64
      %v2599 = vpop.permute.xlu0 %2598
      %2600 = vrot.lane.b32.xlu0 %v870, 64
      %v2601 = vpop.permute.xlu0 %2600
      %2602 = vrot.lane.b32.xlu0 %v872, 64
      %v2603 = vpop.permute.xlu0 %2602
      %2604 = vrot.lane.b32.xlu0 %v874, 64
      %v2605 = vpop.permute.xlu0 %2604
      %2606 = vrot.lane.b32.xlu0 %v876, 64
      %v2607 = vpop.permute.xlu0 %2606
      %2608 = vrot.lane.b32.xlu0 %v879, 64
      %v2609 = vpop.permute.xlu0 %2608
      %2610 = vrot.lane.b32.xlu0 %v881, 64
      %v2611 = vpop.permute.xlu0 %2610
      %2612 = vrot.lane.b32.xlu0 %v883, 64
      %v2613 = vpop.permute.xlu0 %2612
      %2614 = vrot.lane.b32.xlu0 %v885, 64
      %v2615 = vpop.permute.xlu0 %2614
      %2616 = vrot.lane.b32.xlu0 %v888, 64
      %v2617 = vpop.permute.xlu0 %2616
      %2618 = vrot.lane.b32.xlu0 %v890, 64
      %v2619 = vpop.permute.xlu0 %2618
      %2620 = vrot.lane.b32.xlu0 %v892, 64
      %v2621 = vpop.permute.xlu0 %2620
      %2622 = vrot.lane.b32.xlu0 %v894, 64
      %v2623 = vpop.permute.xlu0 %2622
      %2624 = vrot.lane.b32.xlu0 %v897, 64
      %v2625 = vpop.permute.xlu0 %2624
      %2626 = vrot.lane.b32.xlu0 %v899, 64
      %v2627 = vpop.permute.xlu0 %2626
      %2628 = vrot.lane.b32.xlu0 %v901, 64
      %v2629 = vpop.permute.xlu0 %2628
      %2630 = vrot.lane.b32.xlu0 %v903, 64
      %v2631 = vpop.permute.xlu0 %2630
      %2632 = vrot.lane.b32.xlu0 %v906, 64
      %v2633 = vpop.permute.xlu0 %2632
      %2634 = vrot.lane.b32.xlu0 %v908, 64
      %v2635 = vpop.permute.xlu0 %2634
      %2636 = vrot.lane.b32.xlu0 %v910, 64
      %v2637 = vpop.permute.xlu0 %2636
      %2638 = vrot.lane.b32.xlu0 %v912, 64
      %v2639 = vpop.permute.xlu0 %2638
      %2640 = vrot.lane.b32.xlu0 %v915, 64
      %v2641 = vpop.permute.xlu0 %2640
      %2642 = vrot.lane.b32.xlu0 %v917, 64
      %v2643 = vpop.permute.xlu0 %2642
      %2644 = vrot.lane.b32.xlu0 %v919, 64
      %v2645 = vpop.permute.xlu0 %2644
      %2646 = vrot.lane.b32.xlu0 %v921, 64
      %v2647 = vpop.permute.xlu0 %2646
      %2648 = vrot.lane.b32.xlu0 %v924, 64
      %v2649 = vpop.permute.xlu0 %2648
      %2650 = vrot.lane.b32.xlu0 %v926, 64
      %v2651 = vpop.permute.xlu0 %2650
      %2652 = vrot.lane.b32.xlu0 %v928, 64
      %v2653 = vpop.permute.xlu0 %2652
      %2654 = vrot.lane.b32.xlu0 %v930, 64
      %v2655 = vpop.permute.xlu0 %2654
      %2656 = vrot.lane.b32.xlu0 %v933, 64
      %v2657 = vpop.permute.xlu0 %2656
      %2658 = vrot.lane.b32.xlu0 %v935, 64
      %v2659 = vpop.permute.xlu0 %2658
      %2660 = vrot.lane.b32.xlu0 %v937, 64
      %v2661 = vpop.permute.xlu0 %2660
      %2662 = vrot.lane.b32.xlu0 %v939, 64
      %v2663 = vpop.permute.xlu0 %2662
      %2664 = vrot.lane.b32.xlu0 %v942, 64
      %v2665 = vpop.permute.xlu0 %2664
      %2666 = vrot.lane.b32.xlu0 %v944, 64
      %v2667 = vpop.permute.xlu0 %2666
      %2668 = vrot.lane.b32.xlu0 %v946, 64
      %v2669 = vpop.permute.xlu0 %2668
      %2670 = vrot.lane.b32.xlu0 %v948, 64
      %v2671 = vpop.permute.xlu0 %2670
      %2672 = vrot.lane.b32.xlu0 %v951, 64
      %v2673 = vpop.permute.xlu0 %2672
      %2674 = vrot.lane.b32.xlu0 %v953, 64
      %v2675 = vpop.permute.xlu0 %2674
      %2676 = vrot.lane.b32.xlu0 %v955, 64
      %v2677 = vpop.permute.xlu0 %2676
      %2678 = vrot.lane.b32.xlu0 %v957, 64
      %v2679 = vpop.permute.xlu0 %2678
      %2680 = vrot.lane.b32.xlu0 %v960, 64
      %v2681 = vpop.permute.xlu0 %2680
      %2682 = vrot.lane.b32.xlu0 %v962, 64
      %v2683 = vpop.permute.xlu0 %2682
      %2684 = vrot.lane.b32.xlu0 %v964, 64
      %v2685 = vpop.permute.xlu0 %2684
      %2686 = vrot.lane.b32.xlu0 %v966, 64
      %v2687 = vpop.permute.xlu0 %2686
      %2688 = vrot.lane.b32.xlu0 %v969, 64
      %v2689 = vpop.permute.xlu0 %2688
      %2690 = vrot.lane.b32.xlu0 %v971, 64
      %v2691 = vpop.permute.xlu0 %2690
      %2692 = vrot.lane.b32.xlu0 %v973, 64
      %v2693 = vpop.permute.xlu0 %2692
      %2694 = vrot.lane.b32.xlu0 %v975, 64
      %v2695 = vpop.permute.xlu0 %2694
      %2696 = vrot.lane.b32.xlu0 %v978, 64
      %v2697 = vpop.permute.xlu0 %2696
      %2698 = vrot.lane.b32.xlu0 %v980, 64
      %v2699 = vpop.permute.xlu0 %2698
      %2700 = vrot.lane.b32.xlu0 %v982, 64
      %v2701 = vpop.permute.xlu0 %2700
      %2702 = vrot.lane.b32.xlu0 %v984, 64
      %v2703 = vpop.permute.xlu0 %2702
      %2704 = vrot.lane.b32.xlu0 %v987, 64
      %v2705 = vpop.permute.xlu0 %2704
      %2706 = vrot.lane.b32.xlu0 %v989, 64
      %v2707 = vpop.permute.xlu0 %2706
      %2708 = vrot.lane.b32.xlu0 %v991, 64
      %v2709 = vpop.permute.xlu0 %2708
      %2710 = vrot.lane.b32.xlu0 %v993, 64
      %v2711 = vpop.permute.xlu0 %2710
      %2712 = vrot.lane.b32.xlu0 %v996, 64
      %v2713 = vpop.permute.xlu0 %2712
      %2714 = vrot.lane.b32.xlu0 %v998, 64
      %v2715 = vpop.permute.xlu0 %2714
      %2716 = vrot.lane.b32.xlu0 %v1000, 64
      %v2717 = vpop.permute.xlu0 %2716
      %2718 = vrot.lane.b32.xlu0 %v1002, 64
      %v2719 = vpop.permute.xlu0 %2718
      %2720 = vrot.lane.b32.xlu0 %v1005, 64
      %v2721 = vpop.permute.xlu0 %2720
      %2722 = vrot.lane.b32.xlu0 %v1007, 64
      %v2723 = vpop.permute.xlu0 %2722
      %2724 = vrot.lane.b32.xlu0 %v1009, 64
      %v2725 = vpop.permute.xlu0 %2724
      %2726 = vrot.lane.b32.xlu0 %v1011, 64
      %v2727 = vpop.permute.xlu0 %2726
      %2728 = vrot.lane.b32.xlu0 %v1014, 64
      %v2729 = vpop.permute.xlu0 %2728
      %2730 = vrot.lane.b32.xlu0 %v1016, 64
      %v2731 = vpop.permute.xlu0 %2730
      %2732 = vrot.lane.b32.xlu0 %v1018, 64
      %v2733 = vpop.permute.xlu0 %2732
      %2734 = vrot.lane.b32.xlu0 %v1020, 64
      %v2735 = vpop.permute.xlu0 %2734
      %2736 = vrot.lane.b32.xlu0 %v1023, 64
      %v2737 = vpop.permute.xlu0 %2736
      %2738 = vrot.lane.b32.xlu0 %v1025, 64
      %v2739 = vpop.permute.xlu0 %2738
      %2740 = vrot.lane.b32.xlu0 %v1027, 64
      %v2741 = vpop.permute.xlu0 %2740
      %2742 = vrot.lane.b32.xlu0 %v1029, 64
      %v2743 = vpop.permute.xlu0 %2742
      %2744 = vrot.lane.b32.xlu0 %v1032, 64
      %v2745 = vpop.permute.xlu0 %2744
      %2746 = vrot.lane.b32.xlu0 %v1034, 64
      %v2747 = vpop.permute.xlu0 %2746
      %2748 = vrot.lane.b32.xlu0 %v1036, 64
      %v2749 = vpop.permute.xlu0 %2748
      %2750 = vrot.lane.b32.xlu0 %v1038, 64
      %v2751 = vpop.permute.xlu0 %2750
      %2752 = vrot.lane.b32.xlu0 %v1041, 64
      %v2753 = vpop.permute.xlu0 %2752
      %2754 = vrot.lane.b32.xlu0 %v1043, 64
      %v2755 = vpop.permute.xlu0 %2754
      %2756 = vrot.lane.b32.xlu0 %v1045, 64
      %v2757 = vpop.permute.xlu0 %2756
      %2758 = vrot.lane.b32.xlu0 %v1047, 64
      %v2759 = vpop.permute.xlu0 %2758
      %2760 = vrot.lane.b32.xlu0 %v1050, 64
      %v2761 = vpop.permute.xlu0 %2760
      %2762 = vrot.lane.b32.xlu0 %v1052, 64
      %v2763 = vpop.permute.xlu0 %2762
      %2764 = vrot.lane.b32.xlu0 %v1054, 64
      %v2765 = vpop.permute.xlu0 %2764
      %2766 = vrot.lane.b32.xlu0 %v1056, 64
      %v2767 = vpop.permute.xlu0 %2766
      %2768 = vrot.lane.b32.xlu0 %v1059, 64
      %v2769 = vpop.permute.xlu0 %2768
      %2770 = vrot.lane.b32.xlu0 %v1061, 64
      %v2771 = vpop.permute.xlu0 %2770
      %2772 = vrot.lane.b32.xlu0 %v1063, 64
      %v2773 = vpop.permute.xlu0 %2772
      %2774 = vrot.lane.b32.xlu0 %v1065, 64
      %v2775 = vpop.permute.xlu0 %2774
      %2776 = vrot.lane.b32.xlu0 %v1068, 64
      %v2777 = vpop.permute.xlu0 %2776
      %2778 = vrot.lane.b32.xlu0 %v1070, 64
      %v2779 = vpop.permute.xlu0 %2778
      %2780 = vrot.lane.b32.xlu0 %v1072, 64
      %v2781 = vpop.permute.xlu0 %2780
      %2782 = vrot.lane.b32.xlu0 %v1074, 64
      %v2783 = vpop.permute.xlu0 %2782
      %2784 = vrot.lane.b32.xlu0 %v1077, 64
      %v2785 = vpop.permute.xlu0 %2784
      %2786 = vrot.lane.b32.xlu0 %v1079, 64
      %v2787 = vpop.permute.xlu0 %2786
      %2788 = vrot.lane.b32.xlu0 %v1081, 64
      %v2789 = vpop.permute.xlu0 %2788
      %2790 = vrot.lane.b32.xlu0 %v1083, 64
      %v2791 = vpop.permute.xlu0 %2790
      %2792 = vrot.lane.b32.xlu0 %v1086, 64
      %v2793 = vpop.permute.xlu0 %2792
      %2794 = vrot.lane.b32.xlu0 %v1088, 64
      %v2795 = vpop.permute.xlu0 %2794
      %2796 = vrot.lane.b32.xlu0 %v1090, 64
      %v2797 = vpop.permute.xlu0 %2796
      %2798 = vrot.lane.b32.xlu0 %v1092, 64
      %v2799 = vpop.permute.xlu0 %2798
      %2800 = vrot.lane.b32.xlu0 %v1095, 64
      %v2801 = vpop.permute.xlu0 %2800
      %2802 = vrot.lane.b32.xlu0 %v1097, 64
      %v2803 = vpop.permute.xlu0 %2802
      %2804 = vrot.lane.b32.xlu0 %v1099, 64
      %v2805 = vpop.permute.xlu0 %2804
      %2806 = vrot.lane.b32.xlu0 %v1101, 64
      %v2807 = vpop.permute.xlu0 %2806
      %2808 = vrot.lane.b32.xlu0 %v1104, 64
      %v2809 = vpop.permute.xlu0 %2808
      %2810 = vrot.lane.b32.xlu0 %v1106, 64
      %v2811 = vpop.permute.xlu0 %2810
      %2812 = vrot.lane.b32.xlu0 %v1108, 64
      %v2813 = vpop.permute.xlu0 %2812
      %2814 = vrot.lane.b32.xlu0 %v1110, 64
      %v2815 = vpop.permute.xlu0 %2814
      %2816 = vrot.lane.b32.xlu0 %v1113, 64
      %v2817 = vpop.permute.xlu0 %2816
      %2818 = vrot.lane.b32.xlu0 %v1115, 64
      %v2819 = vpop.permute.xlu0 %2818
      %2820 = vrot.lane.b32.xlu0 %v1117, 64
      %v2821 = vpop.permute.xlu0 %2820
      %2822 = vrot.lane.b32.xlu0 %v1119, 64
      %v2823 = vpop.permute.xlu0 %2822
      %2824 = vrot.lane.b32.xlu0 %v1122, 64
      %v2825 = vpop.permute.xlu0 %2824
      %2826 = vrot.lane.b32.xlu0 %v1124, 64
      %v2827 = vpop.permute.xlu0 %2826
      %2828 = vrot.lane.b32.xlu0 %v1126, 64
      %v2829 = vpop.permute.xlu0 %2828
      %2830 = vrot.lane.b32.xlu0 %v1128, 64
      %v2831 = vpop.permute.xlu0 %2830
      %2832 = vrot.lane.b32.xlu0 %v2577, 64
      %v2833 = vpop.permute.xlu0 %2832
      %2834 = vrot.lane.b32.xlu0 %v2579, 64
      %v2835 = vpop.permute.xlu0 %2834
      %2836 = vrot.lane.b32.xlu0 %v2581, 64
      %v2837 = vpop.permute.xlu0 %2836
      %2838 = vrot.lane.b32.xlu0 %v2583, 64
      %v2839 = vpop.permute.xlu0 %2838
      %v2968 = vrot.slane %v670, 2
      %v2969 = vrot.slane %v671, 2
      %v2970 = vsel %vm1513, %v2968, %v2969
      %v2971 = vrot.slane %v672, 2
      %v2972 = vsel %vm1513, %v2969, %v2971
      %v2973 = vrot.slane %v673, 2
      %v2974 = vsel %vm1513, %v2971, %v2973
      %v2975 = vrot.slane %v674, 2
      %v2976 = vsel %vm1513, %v2973, %v2975
      %2977 = vrot.lane.b32.xlu0 %v1525, 80
      %v2978 = vpop.permute.xlu0 %2977
      %2979 = vrot.lane.b32.xlu0 %v1527, 80
      %v2980 = vpop.permute.xlu0 %2979
      %2981 = vrot.lane.b32.xlu0 %v1529, 80
      %v2982 = vpop.permute.xlu0 %2981
      %2983 = vrot.lane.b32.xlu0 %v1531, 80
      %v2984 = vpop.permute.xlu0 %2983
      %2985 = vrot.lane.b32.xlu0 %v1534, 80
      %v2986 = vpop.permute.xlu0 %2985
      %2987 = vrot.lane.b32.xlu0 %v1536, 80
      %v2988 = vpop.permute.xlu0 %2987
      %2989 = vrot.lane.b32.xlu0 %v1538, 80
      %v2990 = vpop.permute.xlu0 %2989
      %2991 = vrot.lane.b32.xlu0 %v1540, 80
      %v2992 = vpop.permute.xlu0 %2991
      %2993 = vrot.lane.b32.xlu0 %v1543, 80
      %v2994 = vpop.permute.xlu0 %2993
      %2995 = vrot.lane.b32.xlu0 %v1545, 80
      %v2996 = vpop.permute.xlu0 %2995
      %2997 = vrot.lane.b32.xlu0 %v1547, 80
      %v2998 = vpop.permute.xlu0 %2997
      %2999 = vrot.lane.b32.xlu0 %v1549, 80
      %v3000 = vpop.permute.xlu0 %2999
      %3001 = vrot.lane.b32.xlu0 %v1552, 80
      %v3002 = vpop.permute.xlu0 %3001
      %3003 = vrot.lane.b32.xlu0 %v1554, 80
      %v3004 = vpop.permute.xlu0 %3003
      %3005 = vrot.lane.b32.xlu0 %v1556, 80
      %v3006 = vpop.permute.xlu0 %3005
      %3007 = vrot.lane.b32.xlu0 %v1558, 80
      %v3008 = vpop.permute.xlu0 %3007
      %3009 = vrot.lane.b32.xlu0 %v1561, 80
      %v3010 = vpop.permute.xlu0 %3009
      %3011 = vrot.lane.b32.xlu0 %v1563, 80
      %v3012 = vpop.permute.xlu0 %3011
      %3013 = vrot.lane.b32.xlu0 %v1565, 80
      %v3014 = vpop.permute.xlu0 %3013
      %3015 = vrot.lane.b32.xlu0 %v1567, 80
      %v3016 = vpop.permute.xlu0 %3015
      %3017 = vrot.lane.b32.xlu0 %v1570, 80
      %v3018 = vpop.permute.xlu0 %3017
      %3019 = vrot.lane.b32.xlu0 %v1572, 80
      %v3020 = vpop.permute.xlu0 %3019
      %3021 = vrot.lane.b32.xlu0 %v1574, 80
      %v3022 = vpop.permute.xlu0 %3021
      %3023 = vrot.lane.b32.xlu0 %v1576, 80
      %v3024 = vpop.permute.xlu0 %3023
      %3025 = vrot.lane.b32.xlu0 %v1579, 80
      %v3026 = vpop.permute.xlu0 %3025
      %3027 = vrot.lane.b32.xlu0 %v1581, 80
      %v3028 = vpop.permute.xlu0 %3027
      %3029 = vrot.lane.b32.xlu0 %v1583, 80
      %v3030 = vpop.permute.xlu0 %3029
      %3031 = vrot.lane.b32.xlu0 %v1585, 80
      %v3032 = vpop.permute.xlu0 %3031
      %3033 = vrot.lane.b32.xlu0 %v1588, 80
      %v3034 = vpop.permute.xlu0 %3033
      %3035 = vrot.lane.b32.xlu0 %v1590, 80
      %v3036 = vpop.permute.xlu0 %3035
      %3037 = vrot.lane.b32.xlu0 %v1592, 80
      %v3038 = vpop.permute.xlu0 %3037
      %3039 = vrot.lane.b32.xlu0 %v1594, 80
      %v3040 = vpop.permute.xlu0 %3039
      %3041 = vrot.lane.b32.xlu0 %v1597, 80
      %v3042 = vpop.permute.xlu0 %3041
      %3043 = vrot.lane.b32.xlu0 %v1599, 80
      %v3044 = vpop.permute.xlu0 %3043
      %3045 = vrot.lane.b32.xlu0 %v1601, 80
      %v3046 = vpop.permute.xlu0 %3045
      %3047 = vrot.lane.b32.xlu0 %v1603, 80
      %v3048 = vpop.permute.xlu0 %3047
      %3049 = vrot.lane.b32.xlu0 %v1606, 80
      %v3050 = vpop.permute.xlu0 %3049
      %3051 = vrot.lane.b32.xlu0 %v1608, 80
      %v3052 = vpop.permute.xlu0 %3051
      %3053 = vrot.lane.b32.xlu0 %v1610, 80
      %v3054 = vpop.permute.xlu0 %3053
      %3055 = vrot.lane.b32.xlu0 %v1612, 80
      %v3056 = vpop.permute.xlu0 %3055
      %3057 = vrot.lane.b32.xlu0 %v1615, 80
      %v3058 = vpop.permute.xlu0 %3057
      %3059 = vrot.lane.b32.xlu0 %v1617, 80
      %v3060 = vpop.permute.xlu0 %3059
      %3061 = vrot.lane.b32.xlu0 %v1619, 80
      %v3062 = vpop.permute.xlu0 %3061
      %3063 = vrot.lane.b32.xlu0 %v1621, 80
      %v3064 = vpop.permute.xlu0 %3063
      %3065 = vrot.lane.b32.xlu0 %v1624, 80
      %v3066 = vpop.permute.xlu0 %3065
      %3067 = vrot.lane.b32.xlu0 %v1626, 80
      %v3068 = vpop.permute.xlu0 %3067
      %3069 = vrot.lane.b32.xlu0 %v1628, 80
      %v3070 = vpop.permute.xlu0 %3069
      %3071 = vrot.lane.b32.xlu0 %v1630, 80
      %v3072 = vpop.permute.xlu0 %3071
      %3073 = vrot.lane.b32.xlu0 %v1633, 80
      %v3074 = vpop.permute.xlu0 %3073
      %3075 = vrot.lane.b32.xlu0 %v1635, 80
      %v3076 = vpop.permute.xlu0 %3075
      %3077 = vrot.lane.b32.xlu0 %v1637, 80
      %v3078 = vpop.permute.xlu0 %3077
      %3079 = vrot.lane.b32.xlu0 %v1639, 80
      %v3080 = vpop.permute.xlu0 %3079
      %3081 = vrot.lane.b32.xlu0 %v1642, 80
      %v3082 = vpop.permute.xlu0 %3081
      %3083 = vrot.lane.b32.xlu0 %v1644, 80
      %v3084 = vpop.permute.xlu0 %3083
      %3085 = vrot.lane.b32.xlu0 %v1646, 80
      %v3086 = vpop.permute.xlu0 %3085
      %3087 = vrot.lane.b32.xlu0 %v1648, 80
      %v3088 = vpop.permute.xlu0 %3087
      %3089 = vrot.lane.b32.xlu0 %v1651, 80
      %v3090 = vpop.permute.xlu0 %3089
      %3091 = vrot.lane.b32.xlu0 %v1653, 80
      %v3092 = vpop.permute.xlu0 %3091
      %3093 = vrot.lane.b32.xlu0 %v1655, 80
      %v3094 = vpop.permute.xlu0 %3093
      %3095 = vrot.lane.b32.xlu0 %v1657, 80
      %v3096 = vpop.permute.xlu0 %3095
      %3097 = vrot.lane.b32.xlu0 %v1660, 80
      %v3098 = vpop.permute.xlu0 %3097
      %3099 = vrot.lane.b32.xlu0 %v1662, 80
      %v3100 = vpop.permute.xlu0 %3099
      %3101 = vrot.lane.b32.xlu0 %v1664, 80
      %v3102 = vpop.permute.xlu0 %3101
      %3103 = vrot.lane.b32.xlu0 %v1666, 80
      %v3104 = vpop.permute.xlu0 %3103
      %3105 = vrot.lane.b32.xlu0 %v1669, 80
      %v3106 = vpop.permute.xlu0 %3105
      %3107 = vrot.lane.b32.xlu0 %v1671, 80
      %v3108 = vpop.permute.xlu0 %3107
      %3109 = vrot.lane.b32.xlu0 %v1673, 80
      %v3110 = vpop.permute.xlu0 %3109
      %3111 = vrot.lane.b32.xlu0 %v1675, 80
      %v3112 = vpop.permute.xlu0 %3111
      %3113 = vrot.lane.b32.xlu0 %v1678, 80
      %v3114 = vpop.permute.xlu0 %3113
      %3115 = vrot.lane.b32.xlu0 %v1680, 80
      %v3116 = vpop.permute.xlu0 %3115
      %3117 = vrot.lane.b32.xlu0 %v1682, 80
      %v3118 = vpop.permute.xlu0 %3117
      %3119 = vrot.lane.b32.xlu0 %v1684, 80
      %v3120 = vpop.permute.xlu0 %3119
      %3121 = vrot.lane.b32.xlu0 %v1687, 80
      %v3122 = vpop.permute.xlu0 %3121
      %3123 = vrot.lane.b32.xlu0 %v1689, 80
      %v3124 = vpop.permute.xlu0 %3123
      %3125 = vrot.lane.b32.xlu0 %v1691, 80
      %v3126 = vpop.permute.xlu0 %3125
      %3127 = vrot.lane.b32.xlu0 %v1693, 80
      %v3128 = vpop.permute.xlu0 %3127
      %3129 = vrot.lane.b32.xlu0 %v1696, 80
      %v3130 = vpop.permute.xlu0 %3129
      %3131 = vrot.lane.b32.xlu0 %v1698, 80
      %v3132 = vpop.permute.xlu0 %3131
      %3133 = vrot.lane.b32.xlu0 %v1700, 80
      %v3134 = vpop.permute.xlu0 %3133
      %3135 = vrot.lane.b32.xlu0 %v1702, 80
      %v3136 = vpop.permute.xlu0 %3135
      %3137 = vrot.lane.b32.xlu0 %v1705, 80
      %v3138 = vpop.permute.xlu0 %3137
      %3139 = vrot.lane.b32.xlu0 %v1707, 80
      %v3140 = vpop.permute.xlu0 %3139
      %3141 = vrot.lane.b32.xlu0 %v1709, 80
      %v3142 = vpop.permute.xlu0 %3141
      %3143 = vrot.lane.b32.xlu0 %v1711, 80
      %v3144 = vpop.permute.xlu0 %3143
      %3145 = vrot.lane.b32.xlu0 %v1714, 80
      %v3146 = vpop.permute.xlu0 %3145
      %3147 = vrot.lane.b32.xlu0 %v1716, 80
      %v3148 = vpop.permute.xlu0 %3147
      %3149 = vrot.lane.b32.xlu0 %v1718, 80
      %v3150 = vpop.permute.xlu0 %3149
      %3151 = vrot.lane.b32.xlu0 %v1720, 80
      %v3152 = vpop.permute.xlu0 %3151
      %3153 = vrot.lane.b32.xlu0 %v1723, 80
      %v3154 = vpop.permute.xlu0 %3153
      %3155 = vrot.lane.b32.xlu0 %v1725, 80
      %v3156 = vpop.permute.xlu0 %3155
      %3157 = vrot.lane.b32.xlu0 %v1727, 80
      %v3158 = vpop.permute.xlu0 %3157
      %3159 = vrot.lane.b32.xlu0 %v1729, 80
      %v3160 = vpop.permute.xlu0 %3159
      %3161 = vrot.lane.b32.xlu0 %v1732, 80
      %v3162 = vpop.permute.xlu0 %3161
      %3163 = vrot.lane.b32.xlu0 %v1734, 80
      %v3164 = vpop.permute.xlu0 %3163
      %3165 = vrot.lane.b32.xlu0 %v1736, 80
      %v3166 = vpop.permute.xlu0 %3165
      %3167 = vrot.lane.b32.xlu0 %v1738, 80
      %v3168 = vpop.permute.xlu0 %3167
      %3169 = vrot.lane.b32.xlu0 %v1741, 80
      %v3170 = vpop.permute.xlu0 %3169
      %3171 = vrot.lane.b32.xlu0 %v1743, 80
      %v3172 = vpop.permute.xlu0 %3171
      %3173 = vrot.lane.b32.xlu0 %v1745, 80
      %v3174 = vpop.permute.xlu0 %3173
      %3175 = vrot.lane.b32.xlu0 %v1747, 80
      %v3176 = vpop.permute.xlu0 %3175
      %3177 = vrot.lane.b32.xlu0 %v1750, 80
      %v3178 = vpop.permute.xlu0 %3177
      %3179 = vrot.lane.b32.xlu0 %v1752, 80
      %v3180 = vpop.permute.xlu0 %3179
      %3181 = vrot.lane.b32.xlu0 %v1754, 80
      %v3182 = vpop.permute.xlu0 %3181
      %3183 = vrot.lane.b32.xlu0 %v1756, 80
      %v3184 = vpop.permute.xlu0 %3183
      %3185 = vrot.lane.b32.xlu0 %v1759, 80
      %v3186 = vpop.permute.xlu0 %3185
      %3187 = vrot.lane.b32.xlu0 %v1761, 80
      %v3188 = vpop.permute.xlu0 %3187
      %3189 = vrot.lane.b32.xlu0 %v1763, 80
      %v3190 = vpop.permute.xlu0 %3189
      %3191 = vrot.lane.b32.xlu0 %v1765, 80
      %v3192 = vpop.permute.xlu0 %3191
      %3193 = vrot.lane.b32.xlu0 %v1768, 80
      %v3194 = vpop.permute.xlu0 %3193
      %3195 = vrot.lane.b32.xlu0 %v1770, 80
      %v3196 = vpop.permute.xlu0 %3195
      %3197 = vrot.lane.b32.xlu0 %v1772, 80
      %v3198 = vpop.permute.xlu0 %3197
      %3199 = vrot.lane.b32.xlu0 %v1774, 80
      %v3200 = vpop.permute.xlu0 %3199
      %3201 = vrot.lane.b32.xlu0 %v1777, 80
      %v3202 = vpop.permute.xlu0 %3201
      %3203 = vrot.lane.b32.xlu0 %v1779, 80
      %v3204 = vpop.permute.xlu0 %3203
      %3205 = vrot.lane.b32.xlu0 %v1781, 80
      %v3206 = vpop.permute.xlu0 %3205
      %3207 = vrot.lane.b32.xlu0 %v1783, 80
      %v3208 = vpop.permute.xlu0 %3207
      %3209 = vrot.lane.b32.xlu0 %v1786, 80
      %v3210 = vpop.permute.xlu0 %3209
      %3211 = vrot.lane.b32.xlu0 %v1788, 80
      %v3212 = vpop.permute.xlu0 %3211
      %3213 = vrot.lane.b32.xlu0 %v1790, 80
      %v3214 = vpop.permute.xlu0 %3213
      %3215 = vrot.lane.b32.xlu0 %v1792, 80
      %v3216 = vpop.permute.xlu0 %3215
      %3217 = vrot.lane.b32.xlu0 %v1795, 80
      %v3218 = vpop.permute.xlu0 %3217
      %3219 = vrot.lane.b32.xlu0 %v1797, 80
      %v3220 = vpop.permute.xlu0 %3219
      %3221 = vrot.lane.b32.xlu0 %v1799, 80
      %v3222 = vpop.permute.xlu0 %3221
      %3223 = vrot.lane.b32.xlu0 %v1801, 80
      %v3224 = vpop.permute.xlu0 %3223
      %3225 = vrot.lane.b32.xlu0 %v2970, 80
      %v3226 = vpop.permute.xlu0 %3225
      %3227 = vrot.lane.b32.xlu0 %v2972, 80
      %v3228 = vpop.permute.xlu0 %3227
      %3229 = vrot.lane.b32.xlu0 %v2974, 80
      %v3230 = vpop.permute.xlu0 %3229
      %3231 = vrot.lane.b32.xlu0 %v2976, 80
      %v3232 = vpop.permute.xlu0 %3231
      %3365 = vrot.lane.b32.xlu0 %v520, 96
      %v3366 = vpop.permute.xlu0 %3365
      %3367 = vrot.lane.b32.xlu0 %v521, 96
      %v3368 = vpop.permute.xlu0 %3367
      %3369 = vrot.lane.b32.xlu0 %v522, 96
      %v3370 = vpop.permute.xlu0 %3369
      %3371 = vrot.lane.b32.xlu0 %v523, 96
      %v3372 = vpop.permute.xlu0 %3371
      %3373 = vrot.lane.b32.xlu0 %v525, 96
      %v3374 = vpop.permute.xlu0 %3373
      %3375 = vrot.lane.b32.xlu0 %v526, 96
      %v3376 = vpop.permute.xlu0 %3375
      %3377 = vrot.lane.b32.xlu0 %v527, 96
      %v3378 = vpop.permute.xlu0 %3377
      %3379 = vrot.lane.b32.xlu0 %v528, 96
      %v3380 = vpop.permute.xlu0 %3379
      %3381 = vrot.lane.b32.xlu0 %v530, 96
      %v3382 = vpop.permute.xlu0 %3381
      %3383 = vrot.lane.b32.xlu0 %v531, 96
      %v3384 = vpop.permute.xlu0 %3383
      %3385 = vrot.lane.b32.xlu0 %v532, 96
      %v3386 = vpop.permute.xlu0 %3385
      %3387 = vrot.lane.b32.xlu0 %v533, 96
      %v3388 = vpop.permute.xlu0 %3387
      %3389 = vrot.lane.b32.xlu0 %v535, 96
      %v3390 = vpop.permute.xlu0 %3389
      %3391 = vrot.lane.b32.xlu0 %v536, 96
      %v3392 = vpop.permute.xlu0 %3391
      %3393 = vrot.lane.b32.xlu0 %v537, 96
      %v3394 = vpop.permute.xlu0 %3393
      %3395 = vrot.lane.b32.xlu0 %v538, 96
      %v3396 = vpop.permute.xlu0 %3395
      %3397 = vrot.lane.b32.xlu0 %v540, 96
      %v3398 = vpop.permute.xlu0 %3397
      %3399 = vrot.lane.b32.xlu0 %v541, 96
      %v3400 = vpop.permute.xlu0 %3399
      %3401 = vrot.lane.b32.xlu0 %v542, 96
      %v3402 = vpop.permute.xlu0 %3401
      %3403 = vrot.lane.b32.xlu0 %v543, 96
      %v3404 = vpop.permute.xlu0 %3403
      %3405 = vrot.lane.b32.xlu0 %v545, 96
      %v3406 = vpop.permute.xlu0 %3405
      %3407 = vrot.lane.b32.xlu0 %v546, 96
      %v3408 = vpop.permute.xlu0 %3407
      %3409 = vrot.lane.b32.xlu0 %v547, 96
      %v3410 = vpop.permute.xlu0 %3409
      %3411 = vrot.lane.b32.xlu0 %v548, 96
      %v3412 = vpop.permute.xlu0 %3411
      %3413 = vrot.lane.b32.xlu0 %v550, 96
      %v3414 = vpop.permute.xlu0 %3413
      %3415 = vrot.lane.b32.xlu0 %v551, 96
      %v3416 = vpop.permute.xlu0 %3415
      %3417 = vrot.lane.b32.xlu0 %v552, 96
      %v3418 = vpop.permute.xlu0 %3417
      %3419 = vrot.lane.b32.xlu0 %v553, 96
      %v3420 = vpop.permute.xlu0 %3419
      %3421 = vrot.lane.b32.xlu0 %v555, 96
      %v3422 = vpop.permute.xlu0 %3421
      %3423 = vrot.lane.b32.xlu0 %v556, 96
      %v3424 = vpop.permute.xlu0 %3423
      %3425 = vrot.lane.b32.xlu0 %v557, 96
      %v3426 = vpop.permute.xlu0 %3425
      %3427 = vrot.lane.b32.xlu0 %v558, 96
      %v3428 = vpop.permute.xlu0 %3427
      %3429 = vrot.lane.b32.xlu0 %v560, 96
      %v3430 = vpop.permute.xlu0 %3429
      %3431 = vrot.lane.b32.xlu0 %v561, 96
      %v3432 = vpop.permute.xlu0 %3431
      %3433 = vrot.lane.b32.xlu0 %v562, 96
      %v3434 = vpop.permute.xlu0 %3433
      %3435 = vrot.lane.b32.xlu0 %v563, 96
      %v3436 = vpop.permute.xlu0 %3435
      %3437 = vrot.lane.b32.xlu0 %v565, 96
      %v3438 = vpop.permute.xlu0 %3437
      %3439 = vrot.lane.b32.xlu0 %v566, 96
      %v3440 = vpop.permute.xlu0 %3439
      %3441 = vrot.lane.b32.xlu0 %v567, 96
      %v3442 = vpop.permute.xlu0 %3441
      %3443 = vrot.lane.b32.xlu0 %v568, 96
      %v3444 = vpop.permute.xlu0 %3443
      %3445 = vrot.lane.b32.xlu0 %v570, 96
      %v3446 = vpop.permute.xlu0 %3445
      %3447 = vrot.lane.b32.xlu0 %v571, 96
      %v3448 = vpop.permute.xlu0 %3447
      %3449 = vrot.lane.b32.xlu0 %v572, 96
      %v3450 = vpop.permute.xlu0 %3449
      %3451 = vrot.lane.b32.xlu0 %v573, 96
      %v3452 = vpop.permute.xlu0 %3451
      %3453 = vrot.lane.b32.xlu0 %v575, 96
      %v3454 = vpop.permute.xlu0 %3453
      %3455 = vrot.lane.b32.xlu0 %v576, 96
      %v3456 = vpop.permute.xlu0 %3455
      %3457 = vrot.lane.b32.xlu0 %v577, 96
      %v3458 = vpop.permute.xlu0 %3457
      %3459 = vrot.lane.b32.xlu0 %v578, 96
      %v3460 = vpop.permute.xlu0 %3459
      %3461 = vrot.lane.b32.xlu0 %v580, 96
      %v3462 = vpop.permute.xlu0 %3461
      %3463 = vrot.lane.b32.xlu0 %v581, 96
      %v3464 = vpop.permute.xlu0 %3463
      %3465 = vrot.lane.b32.xlu0 %v582, 96
      %v3466 = vpop.permute.xlu0 %3465
      %3467 = vrot.lane.b32.xlu0 %v583, 96
      %v3468 = vpop.permute.xlu0 %3467
      %3469 = vrot.lane.b32.xlu0 %v585, 96
      %v3470 = vpop.permute.xlu0 %3469
      %3471 = vrot.lane.b32.xlu0 %v586, 96
      %v3472 = vpop.permute.xlu0 %3471
      %3473 = vrot.lane.b32.xlu0 %v587, 96
      %v3474 = vpop.permute.xlu0 %3473
      %3475 = vrot.lane.b32.xlu0 %v588, 96
      %v3476 = vpop.permute.xlu0 %3475
      %3477 = vrot.lane.b32.xlu0 %v590, 96
      %v3478 = vpop.permute.xlu0 %3477
      %3479 = vrot.lane.b32.xlu0 %v591, 96
      %v3480 = vpop.permute.xlu0 %3479
      %3481 = vrot.lane.b32.xlu0 %v592, 96
      %v3482 = vpop.permute.xlu0 %3481
      %3483 = vrot.lane.b32.xlu0 %v593, 96
      %v3484 = vpop.permute.xlu0 %3483
      %3485 = vrot.lane.b32.xlu0 %v595, 96
      %v3486 = vpop.permute.xlu0 %3485
      %3487 = vrot.lane.b32.xlu0 %v596, 96
      %v3488 = vpop.permute.xlu0 %3487
      %3489 = vrot.lane.b32.xlu0 %v597, 96
      %v3490 = vpop.permute.xlu0 %3489
      %3491 = vrot.lane.b32.xlu0 %v598, 96
      %v3492 = vpop.permute.xlu0 %3491
      %3493 = vrot.lane.b32.xlu0 %v600, 96
      %v3494 = vpop.permute.xlu0 %3493
      %3495 = vrot.lane.b32.xlu0 %v601, 96
      %v3496 = vpop.permute.xlu0 %3495
      %3497 = vrot.lane.b32.xlu0 %v602, 96
      %v3498 = vpop.permute.xlu0 %3497
      %3499 = vrot.lane.b32.xlu0 %v603, 96
      %v3500 = vpop.permute.xlu0 %3499
      %3501 = vrot.lane.b32.xlu0 %v605, 96
      %v3502 = vpop.permute.xlu0 %3501
      %3503 = vrot.lane.b32.xlu0 %v606, 96
      %v3504 = vpop.permute.xlu0 %3503
      %3505 = vrot.lane.b32.xlu0 %v607, 96
      %v3506 = vpop.permute.xlu0 %3505
      %3507 = vrot.lane.b32.xlu0 %v608, 96
      %v3508 = vpop.permute.xlu0 %3507
      %3509 = vrot.lane.b32.xlu0 %v610, 96
      %v3510 = vpop.permute.xlu0 %3509
      %3511 = vrot.lane.b32.xlu0 %v611, 96
      %v3512 = vpop.permute.xlu0 %3511
      %3513 = vrot.lane.b32.xlu0 %v612, 96
      %v3514 = vpop.permute.xlu0 %3513
      %3515 = vrot.lane.b32.xlu0 %v613, 96
      %v3516 = vpop.permute.xlu0 %3515
      %3517 = vrot.lane.b32.xlu0 %v615, 96
      %v3518 = vpop.permute.xlu0 %3517
      %3519 = vrot.lane.b32.xlu0 %v616, 96
      %v3520 = vpop.permute.xlu0 %3519
      %3521 = vrot.lane.b32.xlu0 %v617, 96
      %v3522 = vpop.permute.xlu0 %3521
      %3523 = vrot.lane.b32.xlu0 %v618, 96
      %v3524 = vpop.permute.xlu0 %3523
      %3525 = vrot.lane.b32.xlu0 %v620, 96
      %v3526 = vpop.permute.xlu0 %3525
      %3527 = vrot.lane.b32.xlu0 %v621, 96
      %v3528 = vpop.permute.xlu0 %3527
      %3529 = vrot.lane.b32.xlu0 %v622, 96
      %v3530 = vpop.permute.xlu0 %3529
      %3531 = vrot.lane.b32.xlu0 %v623, 96
      %v3532 = vpop.permute.xlu0 %3531
      %3533 = vrot.lane.b32.xlu0 %v625, 96
      %v3534 = vpop.permute.xlu0 %3533
      %3535 = vrot.lane.b32.xlu0 %v626, 96
      %v3536 = vpop.permute.xlu0 %3535
      %3537 = vrot.lane.b32.xlu0 %v627, 96
      %v3538 = vpop.permute.xlu0 %3537
      %3539 = vrot.lane.b32.xlu0 %v628, 96
      %v3540 = vpop.permute.xlu0 %3539
      %3541 = vrot.lane.b32.xlu0 %v630, 96
      %v3542 = vpop.permute.xlu0 %3541
      %3543 = vrot.lane.b32.xlu0 %v631, 96
      %v3544 = vpop.permute.xlu0 %3543
      %3545 = vrot.lane.b32.xlu0 %v632, 96
      %v3546 = vpop.permute.xlu0 %3545
      %3547 = vrot.lane.b32.xlu0 %v633, 96
      %v3548 = vpop.permute.xlu0 %3547
      %3549 = vrot.lane.b32.xlu0 %v635, 96
      %v3550 = vpop.permute.xlu0 %3549
      %3551 = vrot.lane.b32.xlu0 %v636, 96
      %v3552 = vpop.permute.xlu0 %3551
      %3553 = vrot.lane.b32.xlu0 %v637, 96
      %v3554 = vpop.permute.xlu0 %3553
      %3555 = vrot.lane.b32.xlu0 %v638, 96
      %v3556 = vpop.permute.xlu0 %3555
      %3557 = vrot.lane.b32.xlu0 %v640, 96
      %v3558 = vpop.permute.xlu0 %3557
      %3559 = vrot.lane.b32.xlu0 %v641, 96
      %v3560 = vpop.permute.xlu0 %3559
      %3561 = vrot.lane.b32.xlu0 %v642, 96
      %v3562 = vpop.permute.xlu0 %3561
      %3563 = vrot.lane.b32.xlu0 %v643, 96
      %v3564 = vpop.permute.xlu0 %3563
      %3565 = vrot.lane.b32.xlu0 %v645, 96
      %v3566 = vpop.permute.xlu0 %3565
      %3567 = vrot.lane.b32.xlu0 %v646, 96
      %v3568 = vpop.permute.xlu0 %3567
      %3569 = vrot.lane.b32.xlu0 %v647, 96
      %v3570 = vpop.permute.xlu0 %3569
      %3571 = vrot.lane.b32.xlu0 %v648, 96
      %v3572 = vpop.permute.xlu0 %3571
      %3573 = vrot.lane.b32.xlu0 %v650, 96
      %v3574 = vpop.permute.xlu0 %3573
      %3575 = vrot.lane.b32.xlu0 %v651, 96
      %v3576 = vpop.permute.xlu0 %3575
      %3577 = vrot.lane.b32.xlu0 %v652, 96
      %v3578 = vpop.permute.xlu0 %3577
      %3579 = vrot.lane.b32.xlu0 %v653, 96
      %v3580 = vpop.permute.xlu0 %3579
      %3581 = vrot.lane.b32.xlu0 %v655, 96
      %v3582 = vpop.permute.xlu0 %3581
      %3583 = vrot.lane.b32.xlu0 %v656, 96
      %v3584 = vpop.permute.xlu0 %3583
      %3585 = vrot.lane.b32.xlu0 %v657, 96
      %v3586 = vpop.permute.xlu0 %3585
      %3587 = vrot.lane.b32.xlu0 %v658, 96
      %v3588 = vpop.permute.xlu0 %3587
      %3589 = vrot.lane.b32.xlu0 %v660, 96
      %v3590 = vpop.permute.xlu0 %3589
      %3591 = vrot.lane.b32.xlu0 %v661, 96
      %v3592 = vpop.permute.xlu0 %3591
      %3593 = vrot.lane.b32.xlu0 %v662, 96
      %v3594 = vpop.permute.xlu0 %3593
      %3595 = vrot.lane.b32.xlu0 %v663, 96
      %v3596 = vpop.permute.xlu0 %3595
      %3597 = vrot.lane.b32.xlu0 %v665, 96
      %v3598 = vpop.permute.xlu0 %3597
      %3599 = vrot.lane.b32.xlu0 %v666, 96
      %v3600 = vpop.permute.xlu0 %3599
      %3601 = vrot.lane.b32.xlu0 %v667, 96
      %v3602 = vpop.permute.xlu0 %3601
      %3603 = vrot.lane.b32.xlu0 %v668, 96
      %v3604 = vpop.permute.xlu0 %3603
      %3605 = vrot.lane.b32.xlu0 %v670, 96
      %v3606 = vpop.permute.xlu0 %3605
      %3607 = vrot.lane.b32.xlu0 %v671, 96
      %v3608 = vpop.permute.xlu0 %3607
      %3609 = vrot.lane.b32.xlu0 %v672, 96
      %v3610 = vpop.permute.xlu0 %3609
      %3611 = vrot.lane.b32.xlu0 %v673, 96
      %v3612 = vpop.permute.xlu0 %3611
      %3613 = vrot.lane.b32.xlu0 %v675, 96
      %v3614 = vpop.permute.xlu0 %3613
      %3615 = vrot.lane.b32.xlu0 %v676, 96
      %v3616 = vpop.permute.xlu0 %3615
      %3617 = vrot.lane.b32.xlu0 %v677, 96
      %v3618 = vpop.permute.xlu0 %3617
      %3619 = vrot.lane.b32.xlu0 %v678, 96
      %v3620 = vpop.permute.xlu0 %3619
      %v3750 = vrot.slane %v675, 1
      %v3751 = vrot.slane %v676, 1
      %v3752 = vsel %vm840, %v3750, %v3751
      %v3753 = vrot.slane %v677, 1
      %v3754 = vsel %vm840, %v3751, %v3753
      %v3755 = vrot.slane %v678, 1
      %v3756 = vsel %vm840, %v3753, %v3755
      %v3757 = vrot.slane %v679, 1
      %v3758 = vsel %vm840, %v3755, %v3757
      %3759 = vrot.lane.b32.xlu0 %v861, 112
      %v3760 = vpop.permute.xlu0 %3759
      %3761 = vrot.lane.b32.xlu0 %v863, 112
      %v3762 = vpop.permute.xlu0 %3761
      %3763 = vrot.lane.b32.xlu0 %v865, 112
      %v3764 = vpop.permute.xlu0 %3763
      %3765 = vrot.lane.b32.xlu0 %v867, 112
      %v3766 = vpop.permute.xlu0 %3765
      %3767 = vrot.lane.b32.xlu0 %v870, 112
      %v3768 = vpop.permute.xlu0 %3767
      %3769 = vrot.lane.b32.xlu0 %v872, 112
      %v3770 = vpop.permute.xlu0 %3769
      %3771 = vrot.lane.b32.xlu0 %v874, 112
      %v3772 = vpop.permute.xlu0 %3771
      %3773 = vrot.lane.b32.xlu0 %v876, 112
      %v3774 = vpop.permute.xlu0 %3773
      %3775 = vrot.lane.b32.xlu0 %v879, 112
      %v3776 = vpop.permute.xlu0 %3775
      %3777 = vrot.lane.b32.xlu0 %v881, 112
      %v3778 = vpop.permute.xlu0 %3777
      %3779 = vrot.lane.b32.xlu0 %v883, 112
      %v3780 = vpop.permute.xlu0 %3779
      %3781 = vrot.lane.b32.xlu0 %v885, 112
      %v3782 = vpop.permute.xlu0 %3781
      %3783 = vrot.lane.b32.xlu0 %v888, 112
      %v3784 = vpop.permute.xlu0 %3783
      %3785 = vrot.lane.b32.xlu0 %v890, 112
      %v3786 = vpop.permute.xlu0 %3785
      %3787 = vrot.lane.b32.xlu0 %v892, 112
      %v3788 = vpop.permute.xlu0 %3787
      %3789 = vrot.lane.b32.xlu0 %v894, 112
      %v3790 = vpop.permute.xlu0 %3789
      %3791 = vrot.lane.b32.xlu0 %v897, 112
      %v3792 = vpop.permute.xlu0 %3791
      %3793 = vrot.lane.b32.xlu0 %v899, 112
      %v3794 = vpop.permute.xlu0 %3793
      %3795 = vrot.lane.b32.xlu0 %v901, 112
      %v3796 = vpop.permute.xlu0 %3795
      %3797 = vrot.lane.b32.xlu0 %v903, 112
      %v3798 = vpop.permute.xlu0 %3797
      %3799 = vrot.lane.b32.xlu0 %v906, 112
      %v3800 = vpop.permute.xlu0 %3799
      %3801 = vrot.lane.b32.xlu0 %v908, 112
      %v3802 = vpop.permute.xlu0 %3801
      %3803 = vrot.lane.b32.xlu0 %v910, 112
      %v3804 = vpop.permute.xlu0 %3803
      %3805 = vrot.lane.b32.xlu0 %v912, 112
      %v3806 = vpop.permute.xlu0 %3805
      %3807 = vrot.lane.b32.xlu0 %v915, 112
      %v3808 = vpop.permute.xlu0 %3807
      %3809 = vrot.lane.b32.xlu0 %v917, 112
      %v3810 = vpop.permute.xlu0 %3809
      %3811 = vrot.lane.b32.xlu0 %v919, 112
      %v3812 = vpop.permute.xlu0 %3811
      %3813 = vrot.lane.b32.xlu0 %v921, 112
      %v3814 = vpop.permute.xlu0 %3813
      %3815 = vrot.lane.b32.xlu0 %v924, 112
      %v3816 = vpop.permute.xlu0 %3815
      %3817 = vrot.lane.b32.xlu0 %v926, 112
      %v3818 = vpop.permute.xlu0 %3817
      %3819 = vrot.lane.b32.xlu0 %v928, 112
      %v3820 = vpop.permute.xlu0 %3819
      %3821 = vrot.lane.b32.xlu0 %v930, 112
      %v3822 = vpop.permute.xlu0 %3821
      %3823 = vrot.lane.b32.xlu0 %v933, 112
      %v3824 = vpop.permute.xlu0 %3823
      %3825 = vrot.lane.b32.xlu0 %v935, 112
      %v3826 = vpop.permute.xlu0 %3825
      %3827 = vrot.lane.b32.xlu0 %v937, 112
      %v3828 = vpop.permute.xlu0 %3827
      %3829 = vrot.lane.b32.xlu0 %v939, 112
      %v3830 = vpop.permute.xlu0 %3829
      %3831 = vrot.lane.b32.xlu0 %v942, 112
      %v3832 = vpop.permute.xlu0 %3831
      %3833 = vrot.lane.b32.xlu0 %v944, 112
      %v3834 = vpop.permute.xlu0 %3833
      %3835 = vrot.lane.b32.xlu0 %v946, 112
      %v3836 = vpop.permute.xlu0 %3835
      %3837 = vrot.lane.b32.xlu0 %v948, 112
      %v3838 = vpop.permute.xlu0 %3837
      %3839 = vrot.lane.b32.xlu0 %v951, 112
      %v3840 = vpop.permute.xlu0 %3839
      %3841 = vrot.lane.b32.xlu0 %v953, 112
      %v3842 = vpop.permute.xlu0 %3841
      %3843 = vrot.lane.b32.xlu0 %v955, 112
      %v3844 = vpop.permute.xlu0 %3843
      %3845 = vrot.lane.b32.xlu0 %v957, 112
      %v3846 = vpop.permute.xlu0 %3845
      %3847 = vrot.lane.b32.xlu0 %v960, 112
      %v3848 = vpop.permute.xlu0 %3847
      %3849 = vrot.lane.b32.xlu0 %v962, 112
      %v3850 = vpop.permute.xlu0 %3849
      %3851 = vrot.lane.b32.xlu0 %v964, 112
      %v3852 = vpop.permute.xlu0 %3851
      %3853 = vrot.lane.b32.xlu0 %v966, 112
      %v3854 = vpop.permute.xlu0 %3853
      %3855 = vrot.lane.b32.xlu0 %v969, 112
      %v3856 = vpop.permute.xlu0 %3855
      %3857 = vrot.lane.b32.xlu0 %v971, 112
      %v3858 = vpop.permute.xlu0 %3857
      %3859 = vrot.lane.b32.xlu0 %v973, 112
      %v3860 = vpop.permute.xlu0 %3859
      %3861 = vrot.lane.b32.xlu0 %v975, 112
      %v3862 = vpop.permute.xlu0 %3861
      %3863 = vrot.lane.b32.xlu0 %v978, 112
      %v3864 = vpop.permute.xlu0 %3863
      %3865 = vrot.lane.b32.xlu0 %v980, 112
      %v3866 = vpop.permute.xlu0 %3865
      %3867 = vrot.lane.b32.xlu0 %v982, 112
      %v3868 = vpop.permute.xlu0 %3867
      %3869 = vrot.lane.b32.xlu0 %v984, 112
      %v3870 = vpop.permute.xlu0 %3869
      %3871 = vrot.lane.b32.xlu0 %v987, 112
      %v3872 = vpop.permute.xlu0 %3871
      %3873 = vrot.lane.b32.xlu0 %v989, 112
      %v3874 = vpop.permute.xlu0 %3873
      %3875 = vrot.lane.b32.xlu0 %v991, 112
      %v3876 = vpop.permute.xlu0 %3875
      %3877 = vrot.lane.b32.xlu0 %v993, 112
      %v3878 = vpop.permute.xlu0 %3877
      %3879 = vrot.lane.b32.xlu0 %v996, 112
      %v3880 = vpop.permute.xlu0 %3879
      %3881 = vrot.lane.b32.xlu0 %v998, 112
      %v3882 = vpop.permute.xlu0 %3881
      %3883 = vrot.lane.b32.xlu0 %v1000, 112
      %v3884 = vpop.permute.xlu0 %3883
      %3885 = vrot.lane.b32.xlu0 %v1002, 112
      %v3886 = vpop.permute.xlu0 %3885
      %3887 = vrot.lane.b32.xlu0 %v1005, 112
      %v3888 = vpop.permute.xlu0 %3887
      %3889 = vrot.lane.b32.xlu0 %v1007, 112
      %v3890 = vpop.permute.xlu0 %3889
      %3891 = vrot.lane.b32.xlu0 %v1009, 112
      %v3892 = vpop.permute.xlu0 %3891
      %3893 = vrot.lane.b32.xlu0 %v1011, 112
      %v3894 = vpop.permute.xlu0 %3893
      %3895 = vrot.lane.b32.xlu0 %v1014, 112
      %v3896 = vpop.permute.xlu0 %3895
      %3897 = vrot.lane.b32.xlu0 %v1016, 112
      %v3898 = vpop.permute.xlu0 %3897
      %3899 = vrot.lane.b32.xlu0 %v1018, 112
      %v3900 = vpop.permute.xlu0 %3899
      %3901 = vrot.lane.b32.xlu0 %v1020, 112
      %v3902 = vpop.permute.xlu0 %3901
      %3903 = vrot.lane.b32.xlu0 %v1023, 112
      %v3904 = vpop.permute.xlu0 %3903
      %3905 = vrot.lane.b32.xlu0 %v1025, 112
      %v3906 = vpop.permute.xlu0 %3905
      %3907 = vrot.lane.b32.xlu0 %v1027, 112
      %v3908 = vpop.permute.xlu0 %3907
      %3909 = vrot.lane.b32.xlu0 %v1029, 112
      %v3910 = vpop.permute.xlu0 %3909
      %3911 = vrot.lane.b32.xlu0 %v1032, 112
      %v3912 = vpop.permute.xlu0 %3911
      %3913 = vrot.lane.b32.xlu0 %v1034, 112
      %v3914 = vpop.permute.xlu0 %3913
      %3915 = vrot.lane.b32.xlu0 %v1036, 112
      %v3916 = vpop.permute.xlu0 %3915
      %3917 = vrot.lane.b32.xlu0 %v1038, 112
      %v3918 = vpop.permute.xlu0 %3917
      %3919 = vrot.lane.b32.xlu0 %v1041, 112
      %v3920 = vpop.permute.xlu0 %3919
      %3921 = vrot.lane.b32.xlu0 %v1043, 112
      %v3922 = vpop.permute.xlu0 %3921
      %3923 = vrot.lane.b32.xlu0 %v1045, 112
      %v3924 = vpop.permute.xlu0 %3923
      %3925 = vrot.lane.b32.xlu0 %v1047, 112
      %v3926 = vpop.permute.xlu0 %3925
      %3927 = vrot.lane.b32.xlu0 %v1050, 112
      %v3928 = vpop.permute.xlu0 %3927
      %3929 = vrot.lane.b32.xlu0 %v1052, 112
      %v3930 = vpop.permute.xlu0 %3929
      %3931 = vrot.lane.b32.xlu0 %v1054, 112
      %v3932 = vpop.permute.xlu0 %3931
      %3933 = vrot.lane.b32.xlu0 %v1056, 112
      %v3934 = vpop.permute.xlu0 %3933
      %3935 = vrot.lane.b32.xlu0 %v1059, 112
      %v3936 = vpop.permute.xlu0 %3935
      %3937 = vrot.lane.b32.xlu0 %v1061, 112
      %v3938 = vpop.permute.xlu0 %3937
      %3939 = vrot.lane.b32.xlu0 %v1063, 112
      %v3940 = vpop.permute.xlu0 %3939
      %3941 = vrot.lane.b32.xlu0 %v1065, 112
      %v3942 = vpop.permute.xlu0 %3941
      %3943 = vrot.lane.b32.xlu0 %v1068, 112
      %v3944 = vpop.permute.xlu0 %3943
      %3945 = vrot.lane.b32.xlu0 %v1070, 112
      %v3946 = vpop.permute.xlu0 %3945
      %3947 = vrot.lane.b32.xlu0 %v1072, 112
      %v3948 = vpop.permute.xlu0 %3947
      %3949 = vrot.lane.b32.xlu0 %v1074, 112
      %v3950 = vpop.permute.xlu0 %3949
      %3951 = vrot.lane.b32.xlu0 %v1077, 112
      %v3952 = vpop.permute.xlu0 %3951
      %3953 = vrot.lane.b32.xlu0 %v1079, 112
      %v3954 = vpop.permute.xlu0 %3953
      %3955 = vrot.lane.b32.xlu0 %v1081, 112
      %v3956 = vpop.permute.xlu0 %3955
      %3957 = vrot.lane.b32.xlu0 %v1083, 112
      %v3958 = vpop.permute.xlu0 %3957
      %3959 = vrot.lane.b32.xlu0 %v1086, 112
      %v3960 = vpop.permute.xlu0 %3959
      %3961 = vrot.lane.b32.xlu0 %v1088, 112
      %v3962 = vpop.permute.xlu0 %3961
      %3963 = vrot.lane.b32.xlu0 %v1090, 112
      %v3964 = vpop.permute.xlu0 %3963
      %3965 = vrot.lane.b32.xlu0 %v1092, 112
      %v3966 = vpop.permute.xlu0 %3965
      %3967 = vrot.lane.b32.xlu0 %v1095, 112
      %v3968 = vpop.permute.xlu0 %3967
      %3969 = vrot.lane.b32.xlu0 %v1097, 112
      %v3970 = vpop.permute.xlu0 %3969
      %3971 = vrot.lane.b32.xlu0 %v1099, 112
      %v3972 = vpop.permute.xlu0 %3971
      %3973 = vrot.lane.b32.xlu0 %v1101, 112
      %v3974 = vpop.permute.xlu0 %3973
      %3975 = vrot.lane.b32.xlu0 %v1104, 112
      %v3976 = vpop.permute.xlu0 %3975
      %3977 = vrot.lane.b32.xlu0 %v1106, 112
      %v3978 = vpop.permute.xlu0 %3977
      %3979 = vrot.lane.b32.xlu0 %v1108, 112
      %v3980 = vpop.permute.xlu0 %3979
      %3981 = vrot.lane.b32.xlu0 %v1110, 112
      %v3982 = vpop.permute.xlu0 %3981
      %3983 = vrot.lane.b32.xlu0 %v1113, 112
      %v3984 = vpop.permute.xlu0 %3983
      %3985 = vrot.lane.b32.xlu0 %v1115, 112
      %v3986 = vpop.permute.xlu0 %3985
      %3987 = vrot.lane.b32.xlu0 %v1117, 112
      %v3988 = vpop.permute.xlu0 %3987
      %3989 = vrot.lane.b32.xlu0 %v1119, 112
      %v3990 = vpop.permute.xlu0 %3989
      %3991 = vrot.lane.b32.xlu0 %v1122, 112
      %v3992 = vpop.permute.xlu0 %3991
      %3993 = vrot.lane.b32.xlu0 %v1124, 112
      %v3994 = vpop.permute.xlu0 %3993
      %3995 = vrot.lane.b32.xlu0 %v1126, 112
      %v3996 = vpop.permute.xlu0 %3995
      %3997 = vrot.lane.b32.xlu0 %v1128, 112
      %v3998 = vpop.permute.xlu0 %3997
      %3999 = vrot.lane.b32.xlu0 %v2577, 112
      %v4000 = vpop.permute.xlu0 %3999
      %4001 = vrot.lane.b32.xlu0 %v2579, 112
      %v4002 = vpop.permute.xlu0 %4001
      %4003 = vrot.lane.b32.xlu0 %v2581, 112
      %v4004 = vpop.permute.xlu0 %4003
      %4005 = vrot.lane.b32.xlu0 %v2583, 112
      %v4006 = vpop.permute.xlu0 %4005
      %4007 = vrot.lane.b32.xlu0 %v3752, 112
      %v4008 = vpop.permute.xlu0 %4007
      %4009 = vrot.lane.b32.xlu0 %v3754, 112
      %v4010 = vpop.permute.xlu0 %4009
      %4011 = vrot.lane.b32.xlu0 %v3756, 112
      %v4012 = vpop.permute.xlu0 %4011
      %4013 = vrot.lane.b32.xlu0 %v3758, 112
      %v4014 = vpop.permute.xlu0 %4013
      %v4143 = vrot.slane %v675, 2
      %v4144 = vrot.slane %v676, 2
      %v4145 = vsel %vm1513, %v4143, %v4144
      %v4146 = vrot.slane %v677, 2
      %v4147 = vsel %vm1513, %v4144, %v4146
      %v4148 = vrot.slane %v678, 2
      %v4149 = vsel %vm1513, %v4146, %v4148
      %v4150 = vrot.slane %v679, 2
      %v4151 = vsel %vm1513, %v4148, %v4150
      %v4152 = vsel %vm171, %v510, %v1130
      %v4153 = vsel %vm171, %v511, %v1132
      %v4154 = vsel %vm171, %v512, %v1134
      %v4155 = vsel %vm171, %v513, %v1136
      %v4156 = vsel %vm171, %v515, %v1138
      %v4157 = vsel %vm171, %v516, %v1140
      %v4158 = vsel %vm171, %v517, %v1142
      %v4159 = vsel %vm171, %v518, %v1144
      %v4160 = vsel %vm171, %v520, %v1146
      %v4161 = vsel %vm171, %v521, %v1148
      %v4162 = vsel %vm171, %v522, %v1150
      %v4163 = vsel %vm171, %v523, %v1152
      %v4164 = vsel %vm171, %v525, %v1154
      %v4165 = vsel %vm171, %v526, %v1156
      %v4166 = vsel %vm171, %v527, %v1158
      %v4167 = vsel %vm171, %v528, %v1160
      %v4168 = vsel %vm171, %v530, %v1162
      %v4169 = vsel %vm171, %v531, %v1164
      %v4170 = vsel %vm171, %v532, %v1166
      %v4171 = vsel %vm171, %v533, %v1168
      %v4172 = vsel %vm171, %v535, %v1170
      %v4173 = vsel %vm171, %v536, %v1172
      %v4174 = vsel %vm171, %v537, %v1174
      %v4175 = vsel %vm171, %v538, %v1176
      %v4176 = vsel %vm171, %v540, %v1178
      %v4177 = vsel %vm171, %v541, %v1180
      %v4178 = vsel %vm171, %v542, %v1182
      %v4179 = vsel %vm171, %v543, %v1184
      %v4180 = vsel %vm171, %v545, %v1186
      %v4181 = vsel %vm171, %v546, %v1188
      %v4182 = vsel %vm171, %v547, %v1190
      %v4183 = vsel %vm171, %v548, %v1192
      %v4184 = vsel %vm171, %v550, %v1194
      %v4185 = vsel %vm171, %v551, %v1196
      %v4186 = vsel %vm171, %v552, %v1198
      %v4187 = vsel %vm171, %v553, %v1200
      %v4188 = vsel %vm171, %v555, %v1202
      %v4189 = vsel %vm171, %v556, %v1204
      %v4190 = vsel %vm171, %v557, %v1206
      %v4191 = vsel %vm171, %v558, %v1208
      %v4192 = vsel %vm171, %v560, %v1210
      %v4193 = vsel %vm171, %v561, %v1212
      %v4194 = vsel %vm171, %v562, %v1214
      %v4195 = vsel %vm171, %v563, %v1216
      %v4196 = vsel %vm171, %v565, %v1218
      %v4197 = vsel %vm171, %v566, %v1220
      %v4198 = vsel %vm171, %v567, %v1222
      %v4199 = vsel %vm171, %v568, %v1224
      %v4200 = vsel %vm171, %v570, %v1226
      %v4201 = vsel %vm171, %v571, %v1228
      %v4202 = vsel %vm171, %v572, %v1230
      %v4203 = vsel %vm171, %v573, %v1232
      %v4204 = vsel %vm171, %v575, %v1234
      %v4205 = vsel %vm171, %v576, %v1236
      %v4206 = vsel %vm171, %v577, %v1238
      %v4207 = vsel %vm171, %v578, %v1240
      %v4208 = vsel %vm171, %v580, %v1242
      %v4209 = vsel %vm171, %v581, %v1244
      %v4210 = vsel %vm171, %v582, %v1246
      %v4211 = vsel %vm171, %v583, %v1248
      %v4212 = vsel %vm171, %v585, %v1250
      %v4213 = vsel %vm171, %v586, %v1252
      %v4214 = vsel %vm171, %v587, %v1254
      %v4215 = vsel %vm171, %v588, %v1256
      %v4216 = vsel %vm171, %v590, %v1258
      %v4217 = vsel %vm171, %v591, %v1260
      %v4218 = vsel %vm171, %v592, %v1262
      %v4219 = vsel %vm171, %v593, %v1264
      %v4220 = vsel %vm171, %v595, %v1266
      %v4221 = vsel %vm171, %v596, %v1268
      %v4222 = vsel %vm171, %v597, %v1270
      %v4223 = vsel %vm171, %v598, %v1272
      %v4224 = vsel %vm171, %v600, %v1274
      %v4225 = vsel %vm171, %v601, %v1276
      %v4226 = vsel %vm171, %v602, %v1278
      %v4227 = vsel %vm171, %v603, %v1280
      %v4228 = vsel %vm171, %v605, %v1282
      %v4229 = vsel %vm171, %v606, %v1284
      %v4230 = vsel %vm171, %v607, %v1286
      %v4231 = vsel %vm171, %v608, %v1288
      %v4232 = vsel %vm171, %v610, %v1290
      %v4233 = vsel %vm171, %v611, %v1292
      %v4234 = vsel %vm171, %v612, %v1294
      %v4235 = vsel %vm171, %v613, %v1296
      %v4236 = vsel %vm171, %v615, %v1298
      %v4237 = vsel %vm171, %v616, %v1300
      %v4238 = vsel %vm171, %v617, %v1302
      %v4239 = vsel %vm171, %v618, %v1304
      %v4240 = vsel %vm171, %v620, %v1306
      %v4241 = vsel %vm171, %v621, %v1308
      %v4242 = vsel %vm171, %v622, %v1310
      %v4243 = vsel %vm171, %v623, %v1312
      %v4244 = vsel %vm171, %v625, %v1314
      %v4245 = vsel %vm171, %v626, %v1316
      %v4246 = vsel %vm171, %v627, %v1318
      %v4247 = vsel %vm171, %v628, %v1320
      %v4248 = vsel %vm171, %v630, %v1322
      %v4249 = vsel %vm171, %v631, %v1324
      %v4250 = vsel %vm171, %v632, %v1326
      %v4251 = vsel %vm171, %v633, %v1328
      %v4252 = vsel %vm171, %v635, %v1330
      %v4253 = vsel %vm171, %v636, %v1332
      %v4254 = vsel %vm171, %v637, %v1334
      %v4255 = vsel %vm171, %v638, %v1336
      %v4256 = vsel %vm171, %v640, %v1338
      %v4257 = vsel %vm171, %v641, %v1340
      %v4258 = vsel %vm171, %v642, %v1342
      %v4259 = vsel %vm171, %v643, %v1344
      %v4260 = vsel %vm171, %v645, %v1346
      %v4261 = vsel %vm171, %v646, %v1348
      %v4262 = vsel %vm171, %v647, %v1350
      %v4263 = vsel %vm171, %v648, %v1352
      %v4264 = vsel %vm171, %v650, %v1354
      %v4265 = vsel %vm171, %v651, %v1356
      %v4266 = vsel %vm171, %v652, %v1358
      %v4267 = vsel %vm171, %v653, %v1360
      %v4268 = vsel %vm171, %v655, %v1362
      %v4269 = vsel %vm171, %v656, %v1364
      %v4270 = vsel %vm171, %v657, %v1366
      %v4271 = vsel %vm171, %v658, %v1368
      %v4272 = vsel %vm171, %v660, %v1370
      %v4273 = vsel %vm171, %v661, %v1372
      %v4274 = vsel %vm171, %v662, %v1374
      %v4275 = vsel %vm171, %v663, %v1376
      %v4276 = vsel %vm171, %v665, %v1378
      %v4277 = vsel %vm171, %v666, %v1380
      %v4278 = vsel %vm171, %v667, %v1382
      %v4279 = vsel %vm171, %v668, %v1384
      %vm4280 = vcmask 261120
      %v4281 = vsel %vm4280, %v4152, %v1803
      %v4282 = vsel %vm4280, %v4153, %v1805
      %v4283 = vsel %vm4280, %v4154, %v1807
      %v4284 = vsel %vm4280, %v4155, %v1809
      %v4285 = vsel %vm4280, %v4156, %v1811
      %v4286 = vsel %vm4280, %v4157, %v1813
      %v4287 = vsel %vm4280, %v4158, %v1815
      %v4288 = vsel %vm4280, %v4159, %v1817
      %v4289 = vsel %vm4280, %v4160, %v1819
      %v4290 = vsel %vm4280, %v4161, %v1821
      %v4291 = vsel %vm4280, %v4162, %v1823
      %v4292 = vsel %vm4280, %v4163, %v1825
      %v4293 = vsel %vm4280, %v4164, %v1827
      %v4294 = vsel %vm4280, %v4165, %v1829
      %v4295 = vsel %vm4280, %v4166, %v1831
      %v4296 = vsel %vm4280, %v4167, %v1833
      %v4297 = vsel %vm4280, %v4168, %v1835
      %v4298 = vsel %vm4280, %v4169, %v1837
      %v4299 = vsel %vm4280, %v4170, %v1839
      %v4300 = vsel %vm4280, %v4171, %v1841
      %v4301 = vsel %vm4280, %v4172, %v1843
      %v4302 = vsel %vm4280, %v4173, %v1845
      %v4303 = vsel %vm4280, %v4174, %v1847
      %v4304 = vsel %vm4280, %v4175, %v1849
      %v4305 = vsel %vm4280, %v4176, %v1851
      %v4306 = vsel %vm4280, %v4177, %v1853
      %v4307 = vsel %vm4280, %v4178, %v1855
      %v4308 = vsel %vm4280, %v4179, %v1857
      %v4309 = vsel %vm4280, %v4180, %v1859
      %v4310 = vsel %vm4280, %v4181, %v1861
      %v4311 = vsel %vm4280, %v4182, %v1863
      %v4312 = vsel %vm4280, %v4183, %v1865
      %v4313 = vsel %vm4280, %v4184, %v1867
      %v4314 = vsel %vm4280, %v4185, %v1869
      %v4315 = vsel %vm4280, %v4186, %v1871
      %v4316 = vsel %vm4280, %v4187, %v1873
      %v4317 = vsel %vm4280, %v4188, %v1875
      %v4318 = vsel %vm4280, %v4189, %v1877
      %v4319 = vsel %vm4280, %v4190, %v1879
      %v4320 = vsel %vm4280, %v4191, %v1881
      %v4321 = vsel %vm4280, %v4192, %v1883
      %v4322 = vsel %vm4280, %v4193, %v1885
      %v4323 = vsel %vm4280, %v4194, %v1887
      %v4324 = vsel %vm4280, %v4195, %v1889
      %v4325 = vsel %vm4280, %v4196, %v1891
      %v4326 = vsel %vm4280, %v4197, %v1893
      %v4327 = vsel %vm4280, %v4198, %v1895
      %v4328 = vsel %vm4280, %v4199, %v1897
      %v4329 = vsel %vm4280, %v4200, %v1899
      %v4330 = vsel %vm4280, %v4201, %v1901
      %v4331 = vsel %vm4280, %v4202, %v1903
      %v4332 = vsel %vm4280, %v4203, %v1905
      %v4333 = vsel %vm4280, %v4204, %v1907
      %v4334 = vsel %vm4280, %v4205, %v1909
      %v4335 = vsel %vm4280, %v4206, %v1911
      %v4336 = vsel %vm4280, %v4207, %v1913
      %v4337 = vsel %vm4280, %v4208, %v1915
      %v4338 = vsel %vm4280, %v4209, %v1917
      %v4339 = vsel %vm4280, %v4210, %v1919
      %v4340 = vsel %vm4280, %v4211, %v1921
      %v4341 = vsel %vm4280, %v4212, %v1923
      %v4342 = vsel %vm4280, %v4213, %v1925
      %v4343 = vsel %vm4280, %v4214, %v1927
      %v4344 = vsel %vm4280, %v4215, %v1929
      %v4345 = vsel %vm4280, %v4216, %v1931
      %v4346 = vsel %vm4280, %v4217, %v1933
      %v4347 = vsel %vm4280, %v4218, %v1935
      %v4348 = vsel %vm4280, %v4219, %v1937
      %v4349 = vsel %vm4280, %v4220, %v1939
      %v4350 = vsel %vm4280, %v4221, %v1941
      %v4351 = vsel %vm4280, %v4222, %v1943
      %v4352 = vsel %vm4280, %v4223, %v1945
      %v4353 = vsel %vm4280, %v4224, %v1947
      %v4354 = vsel %vm4280, %v4225, %v1949
      %v4355 = vsel %vm4280, %v4226, %v1951
      %v4356 = vsel %vm4280, %v4227, %v1953
      %v4357 = vsel %vm4280, %v4228, %v1955
      %v4358 = vsel %vm4280, %v4229, %v1957
      %v4359 = vsel %vm4280, %v4230, %v1959
      %v4360 = vsel %vm4280, %v4231, %v1961
      %v4361 = vsel %vm4280, %v4232, %v1963
      %v4362 = vsel %vm4280, %v4233, %v1965
      %v4363 = vsel %vm4280, %v4234, %v1967
      %v4364 = vsel %vm4280, %v4235, %v1969
      %v4365 = vsel %vm4280, %v4236, %v1971
      %v4366 = vsel %vm4280, %v4237, %v1973
      %v4367 = vsel %vm4280, %v4238, %v1975
      %v4368 = vsel %vm4280, %v4239, %v1977
      %v4369 = vsel %vm4280, %v4240, %v1979
      %v4370 = vsel %vm4280, %v4241, %v1981
      %v4371 = vsel %vm4280, %v4242, %v1983
      %v4372 = vsel %vm4280, %v4243, %v1985
      %v4373 = vsel %vm4280, %v4244, %v1987
      %v4374 = vsel %vm4280, %v4245, %v1989
      %v4375 = vsel %vm4280, %v4246, %v1991
      %v4376 = vsel %vm4280, %v4247, %v1993
      %v4377 = vsel %vm4280, %v4248, %v1995
      %v4378 = vsel %vm4280, %v4249, %v1997
      %v4379 = vsel %vm4280, %v4250, %v1999
      %v4380 = vsel %vm4280, %v4251, %v2001
      %v4381 = vsel %vm4280, %v4252, %v2003
      %v4382 = vsel %vm4280, %v4253, %v2005
      %v4383 = vsel %vm4280, %v4254, %v2007
      %v4384 = vsel %vm4280, %v4255, %v2009
      %v4385 = vsel %vm4280, %v4256, %v2011
      %v4386 = vsel %vm4280, %v4257, %v2013
      %v4387 = vsel %vm4280, %v4258, %v2015
      %v4388 = vsel %vm4280, %v4259, %v2017
      %v4389 = vsel %vm4280, %v4260, %v2019
      %v4390 = vsel %vm4280, %v4261, %v2021
      %v4391 = vsel %vm4280, %v4262, %v2023
      %v4392 = vsel %vm4280, %v4263, %v2025
      %v4393 = vsel %vm4280, %v4264, %v2027
      %v4394 = vsel %vm4280, %v4265, %v2029
      %v4395 = vsel %vm4280, %v4266, %v2031
      %v4396 = vsel %vm4280, %v4267, %v2033
      %v4397 = vsel %vm4280, %v4268, %v2035
      %v4398 = vsel %vm4280, %v4269, %v2037
      %v4399 = vsel %vm4280, %v4270, %v2039
      %v4400 = vsel %vm4280, %v4271, %v2041
      %v4401 = vsel %vm4280, %v4272, %v2043
      %v4402 = vsel %vm4280, %v4273, %v2045
      %v4403 = vsel %vm4280, %v4274, %v2047
      %v4404 = vsel %vm4280, %v4275, %v2049
      %v4405 = vsel %vm4280, %v4276, %v2051
      %v4406 = vsel %vm4280, %v4277, %v2053
      %v4407 = vsel %vm4280, %v4278, %v2055
      %v4408 = vsel %vm4280, %v4279, %v2057
      %vm4409 = vcmask 392192
      %v4410 = vsel %vm4409, %v4281, %v2191
      %v4411 = vsel %vm4409, %v4282, %v2193
      %v4412 = vsel %vm4409, %v4283, %v2195
      %v4413 = vsel %vm4409, %v4284, %v2197
      %v4414 = vsel %vm4409, %v4285, %v2199
      %v4415 = vsel %vm4409, %v4286, %v2201
      %v4416 = vsel %vm4409, %v4287, %v2203
      %v4417 = vsel %vm4409, %v4288, %v2205
      %v4418 = vsel %vm4409, %v4289, %v2207
      %v4419 = vsel %vm4409, %v4290, %v2209
      %v4420 = vsel %vm4409, %v4291, %v2211
      %v4421 = vsel %vm4409, %v4292, %v2213
      %v4422 = vsel %vm4409, %v4293, %v2215
      %v4423 = vsel %vm4409, %v4294, %v2217
      %v4424 = vsel %vm4409, %v4295, %v2219
      %v4425 = vsel %vm4409, %v4296, %v2221
      %v4426 = vsel %vm4409, %v4297, %v2223
      %v4427 = vsel %vm4409, %v4298, %v2225
      %v4428 = vsel %vm4409, %v4299, %v2227
      %v4429 = vsel %vm4409, %v4300, %v2229
      %v4430 = vsel %vm4409, %v4301, %v2231
      %v4431 = vsel %vm4409, %v4302, %v2233
      %v4432 = vsel %vm4409, %v4303, %v2235
      %v4433 = vsel %vm4409, %v4304, %v2237
      %v4434 = vsel %vm4409, %v4305, %v2239
      %v4435 = vsel %vm4409, %v4306, %v2241
      %v4436 = vsel %vm4409, %v4307, %v2243
      %v4437 = vsel %vm4409, %v4308, %v2245
      %v4438 = vsel %vm4409, %v4309, %v2247
      %v4439 = vsel %vm4409, %v4310, %v2249
      %v4440 = vsel %vm4409, %v4311, %v2251
      %v4441 = vsel %vm4409, %v4312, %v2253
      %v4442 = vsel %vm4409, %v4313, %v2255
      %v4443 = vsel %vm4409, %v4314, %v2257
      %v4444 = vsel %vm4409, %v4315, %v2259
      %v4445 = vsel %vm4409, %v4316, %v2261
      %v4446 = vsel %vm4409, %v4317, %v2263
      %v4447 = vsel %vm4409, %v4318, %v2265
      %v4448 = vsel %vm4409, %v4319, %v2267
      %v4449 = vsel %vm4409, %v4320, %v2269
      %v4450 = vsel %vm4409, %v4321, %v2271
      %v4451 = vsel %vm4409, %v4322, %v2273
      %v4452 = vsel %vm4409, %v4323, %v2275
      %v4453 = vsel %vm4409, %v4324, %v2277
      %v4454 = vsel %vm4409, %v4325, %v2279
      %v4455 = vsel %vm4409, %v4326, %v2281
      %v4456 = vsel %vm4409, %v4327, %v2283
      %v4457 = vsel %vm4409, %v4328, %v2285
      %v4458 = vsel %vm4409, %v4329, %v2287
      %v4459 = vsel %vm4409, %v4330, %v2289
      %v4460 = vsel %vm4409, %v4331, %v2291
      %v4461 = vsel %vm4409, %v4332, %v2293
      %v4462 = vsel %vm4409, %v4333, %v2295
      %v4463 = vsel %vm4409, %v4334, %v2297
      %v4464 = vsel %vm4409, %v4335, %v2299
      %v4465 = vsel %vm4409, %v4336, %v2301
      %v4466 = vsel %vm4409, %v4337, %v2303
      %v4467 = vsel %vm4409, %v4338, %v2305
      %v4468 = vsel %vm4409, %v4339, %v2307
      %v4469 = vsel %vm4409, %v4340, %v2309
      %v4470 = vsel %vm4409, %v4341, %v2311
      %v4471 = vsel %vm4409, %v4342, %v2313
      %v4472 = vsel %vm4409, %v4343, %v2315
      %v4473 = vsel %vm4409, %v4344, %v2317
      %v4474 = vsel %vm4409, %v4345, %v2319
      %v4475 = vsel %vm4409, %v4346, %v2321
      %v4476 = vsel %vm4409, %v4347, %v2323
      %v4477 = vsel %vm4409, %v4348, %v2325
      %v4478 = vsel %vm4409, %v4349, %v2327
      %v4479 = vsel %vm4409, %v4350, %v2329
      %v4480 = vsel %vm4409, %v4351, %v2331
      %v4481 = vsel %vm4409, %v4352, %v2333
      %v4482 = vsel %vm4409, %v4353, %v2335
      %v4483 = vsel %vm4409, %v4354, %v2337
      %v4484 = vsel %vm4409, %v4355, %v2339
      %v4485 = vsel %vm4409, %v4356, %v2341
      %v4486 = vsel %vm4409, %v4357, %v2343
      %v4487 = vsel %vm4409, %v4358, %v2345
      %v4488 = vsel %vm4409, %v4359, %v2347
      %v4489 = vsel %vm4409, %v4360, %v2349
      %v4490 = vsel %vm4409, %v4361, %v2351
      %v4491 = vsel %vm4409, %v4362, %v2353
      %v4492 = vsel %vm4409, %v4363, %v2355
      %v4493 = vsel %vm4409, %v4364, %v2357
      %v4494 = vsel %vm4409, %v4365, %v2359
      %v4495 = vsel %vm4409, %v4366, %v2361
      %v4496 = vsel %vm4409, %v4367, %v2363
      %v4497 = vsel %vm4409, %v4368, %v2365
      %v4498 = vsel %vm4409, %v4369, %v2367
      %v4499 = vsel %vm4409, %v4370, %v2369
      %v4500 = vsel %vm4409, %v4371, %v2371
      %v4501 = vsel %vm4409, %v4372, %v2373
      %v4502 = vsel %vm4409, %v4373, %v2375
      %v4503 = vsel %vm4409, %v4374, %v2377
      %v4504 = vsel %vm4409, %v4375, %v2379
      %v4505 = vsel %vm4409, %v4376, %v2381
      %v4506 = vsel %vm4409, %v4377, %v2383
      %v4507 = vsel %vm4409, %v4378, %v2385
      %v4508 = vsel %vm4409, %v4379, %v2387
      %v4509 = vsel %vm4409, %v4380, %v2389
      %v4510 = vsel %vm4409, %v4381, %v2391
      %v4511 = vsel %vm4409, %v4382, %v2393
      %v4512 = vsel %vm4409, %v4383, %v2395
      %v4513 = vsel %vm4409, %v4384, %v2397
      %v4514 = vsel %vm4409, %v4385, %v2399
      %v4515 = vsel %vm4409, %v4386, %v2401
      %v4516 = vsel %vm4409, %v4387, %v2403
      %v4517 = vsel %vm4409, %v4388, %v2405
      %v4518 = vsel %vm4409, %v4389, %v2407
      %v4519 = vsel %vm4409, %v4390, %v2409
      %v4520 = vsel %vm4409, %v4391, %v2411
      %v4521 = vsel %vm4409, %v4392, %v2413
      %v4522 = vsel %vm4409, %v4393, %v2415
      %v4523 = vsel %vm4409, %v4394, %v2417
      %v4524 = vsel %vm4409, %v4395, %v2419
      %v4525 = vsel %vm4409, %v4396, %v2421
      %v4526 = vsel %vm4409, %v4397, %v2423
      %v4527 = vsel %vm4409, %v4398, %v2425
      %v4528 = vsel %vm4409, %v4399, %v2427
      %v4529 = vsel %vm4409, %v4400, %v2429
      %v4530 = vsel %vm4409, %v4401, %v2431
      %v4531 = vsel %vm4409, %v4402, %v2433
      %v4532 = vsel %vm4409, %v4403, %v2435
      %v4533 = vsel %vm4409, %v4404, %v2437
      %v4534 = vsel %vm4409, %v4405, %v2439
      %v4535 = vsel %vm4409, %v4406, %v2441
      %v4536 = vsel %vm4409, %v4407, %v2443
      %v4537 = vsel %vm4409, %v4408, %v2445
      %vm4538 = vcmask 523264
      %v4539 = vsel %vm4538, %v4410, %v2585
      %v4540 = vsel %vm4538, %v4411, %v2587
      %v4541 = vsel %vm4538, %v4412, %v2589
      %v4542 = vsel %vm4538, %v4413, %v2591
      %v4543 = vsel %vm4538, %v4414, %v2593
      %v4544 = vsel %vm4538, %v4415, %v2595
      %v4545 = vsel %vm4538, %v4416, %v2597
      %v4546 = vsel %vm4538, %v4417, %v2599
      %v4547 = vsel %vm4538, %v4418, %v2601
      %v4548 = vsel %vm4538, %v4419, %v2603
      %v4549 = vsel %vm4538, %v4420, %v2605
      %v4550 = vsel %vm4538, %v4421, %v2607
      %v4551 = vsel %vm4538, %v4422, %v2609
      %v4552 = vsel %vm4538, %v4423, %v2611
      %v4553 = vsel %vm4538, %v4424, %v2613
      %v4554 = vsel %vm4538, %v4425, %v2615
      %v4555 = vsel %vm4538, %v4426, %v2617
      %v4556 = vsel %vm4538, %v4427, %v2619
      %v4557 = vsel %vm4538, %v4428, %v2621
      %v4558 = vsel %vm4538, %v4429, %v2623
      %v4559 = vsel %vm4538, %v4430, %v2625
      %v4560 = vsel %vm4538, %v4431, %v2627
      %v4561 = vsel %vm4538, %v4432, %v2629
      %v4562 = vsel %vm4538, %v4433, %v2631
      %v4563 = vsel %vm4538, %v4434, %v2633
      %v4564 = vsel %vm4538, %v4435, %v2635
      %v4565 = vsel %vm4538, %v4436, %v2637
      %v4566 = vsel %vm4538, %v4437, %v2639
      %v4567 = vsel %vm4538, %v4438, %v2641
      %v4568 = vsel %vm4538, %v4439, %v2643
      %v4569 = vsel %vm4538, %v4440, %v2645
      %v4570 = vsel %vm4538, %v4441, %v2647
      %v4571 = vsel %vm4538, %v4442, %v2649
      %v4572 = vsel %vm4538, %v4443, %v2651
      %v4573 = vsel %vm4538, %v4444, %v2653
      %v4574 = vsel %vm4538, %v4445, %v2655
      %v4575 = vsel %vm4538, %v4446, %v2657
      %v4576 = vsel %vm4538, %v4447, %v2659
      %v4577 = vsel %vm4538, %v4448, %v2661
      %v4578 = vsel %vm4538, %v4449, %v2663
      %v4579 = vsel %vm4538, %v4450, %v2665
      %v4580 = vsel %vm4538, %v4451, %v2667
      %v4581 = vsel %vm4538, %v4452, %v2669
      %v4582 = vsel %vm4538, %v4453, %v2671
      %v4583 = vsel %vm4538, %v4454, %v2673
      %v4584 = vsel %vm4538, %v4455, %v2675
      %v4585 = vsel %vm4538, %v4456, %v2677
      %v4586 = vsel %vm4538, %v4457, %v2679
      %v4587 = vsel %vm4538, %v4458, %v2681
      %v4588 = vsel %vm4538, %v4459, %v2683
      %v4589 = vsel %vm4538, %v4460, %v2685
      %v4590 = vsel %vm4538, %v4461, %v2687
      %v4591 = vsel %vm4538, %v4462, %v2689
      %v4592 = vsel %vm4538, %v4463, %v2691
      %v4593 = vsel %vm4538, %v4464, %v2693
      %v4594 = vsel %vm4538, %v4465, %v2695
      %v4595 = vsel %vm4538, %v4466, %v2697
      %v4596 = vsel %vm4538, %v4467, %v2699
      %v4597 = vsel %vm4538, %v4468, %v2701
      %v4598 = vsel %vm4538, %v4469, %v2703
      %v4599 = vsel %vm4538, %v4470, %v2705
      %v4600 = vsel %vm4538, %v4471, %v2707
      %v4601 = vsel %vm4538, %v4472, %v2709
      %v4602 = vsel %vm4538, %v4473, %v2711
      %v4603 = vsel %vm4538, %v4474, %v2713
      %v4604 = vsel %vm4538, %v4475, %v2715
      %v4605 = vsel %vm4538, %v4476, %v2717
      %v4606 = vsel %vm4538, %v4477, %v2719
      %v4607 = vsel %vm4538, %v4478, %v2721
      %v4608 = vsel %vm4538, %v4479, %v2723
      %v4609 = vsel %vm4538, %v4480, %v2725
      %v4610 = vsel %vm4538, %v4481, %v2727
      %v4611 = vsel %vm4538, %v4482, %v2729
      %v4612 = vsel %vm4538, %v4483, %v2731
      %v4613 = vsel %vm4538, %v4484, %v2733
      %v4614 = vsel %vm4538, %v4485, %v2735
      %v4615 = vsel %vm4538, %v4486, %v2737
      %v4616 = vsel %vm4538, %v4487, %v2739
      %v4617 = vsel %vm4538, %v4488, %v2741
      %v4618 = vsel %vm4538, %v4489, %v2743
      %v4619 = vsel %vm4538, %v4490, %v2745
      %v4620 = vsel %vm4538, %v4491, %v2747
      %v4621 = vsel %vm4538, %v4492, %v2749
      %v4622 = vsel %vm4538, %v4493, %v2751
      %v4623 = vsel %vm4538, %v4494, %v2753
      %v4624 = vsel %vm4538, %v4495, %v2755
      %v4625 = vsel %vm4538, %v4496, %v2757
      %v4626 = vsel %vm4538, %v4497, %v2759
      %v4627 = vsel %vm4538, %v4498, %v2761
      %v4628 = vsel %vm4538, %v4499, %v2763
      %v4629 = vsel %vm4538, %v4500, %v2765
      %v4630 = vsel %vm4538, %v4501, %v2767
      %v4631 = vsel %vm4538, %v4502, %v2769
      %v4632 = vsel %vm4538, %v4503, %v2771
      %v4633 = vsel %vm4538, %v4504, %v2773
      %v4634 = vsel %vm4538, %v4505, %v2775
      %v4635 = vsel %vm4538, %v4506, %v2777
      %v4636 = vsel %vm4538, %v4507, %v2779
      %v4637 = vsel %vm4538, %v4508, %v2781
      %v4638 = vsel %vm4538, %v4509, %v2783
      %v4639 = vsel %vm4538, %v4510, %v2785
      %v4640 = vsel %vm4538, %v4511, %v2787
      %v4641 = vsel %vm4538, %v4512, %v2789
      %v4642 = vsel %vm4538, %v4513, %v2791
      %v4643 = vsel %vm4538, %v4514, %v2793
      %v4644 = vsel %vm4538, %v4515, %v2795
      %v4645 = vsel %vm4538, %v4516, %v2797
      %v4646 = vsel %vm4538, %v4517, %v2799
      %v4647 = vsel %vm4538, %v4518, %v2801
      %v4648 = vsel %vm4538, %v4519, %v2803
      %v4649 = vsel %vm4538, %v4520, %v2805
      %v4650 = vsel %vm4538, %v4521, %v2807
      %v4651 = vsel %vm4538, %v4522, %v2809
      %v4652 = vsel %vm4538, %v4523, %v2811
      %v4653 = vsel %vm4538, %v4524, %v2813
      %v4654 = vsel %vm4538, %v4525, %v2815
      %v4655 = vsel %vm4538, %v4526, %v2817
      %v4656 = vsel %vm4538, %v4527, %v2819
      %v4657 = vsel %vm4538, %v4528, %v2821
      %v4658 = vsel %vm4538, %v4529, %v2823
      %v4659 = vsel %vm4538, %v4530, %v2825
      %v4660 = vsel %vm4538, %v4531, %v2827
      %v4661 = vsel %vm4538, %v4532, %v2829
      %v4662 = vsel %vm4538, %v4533, %v2831
      %v4663 = vsel %vm4538, %v4534, %v2833
      %v4664 = vsel %vm4538, %v4535, %v2835
      %v4665 = vsel %vm4538, %v4536, %v2837
      %v4666 = vsel %vm4538, %v4537, %v2839
      %vm4667 = vcmask 654336
      %v4668 = vsel %vm4667, %v4539, %v2978
      %v4669 = vsel %vm4667, %v4540, %v2980
      %v4670 = vsel %vm4667, %v4541, %v2982
      %v4671 = vsel %vm4667, %v4542, %v2984
      %v4672 = vsel %vm4667, %v4543, %v2986
      %v4673 = vsel %vm4667, %v4544, %v2988
      %v4674 = vsel %vm4667, %v4545, %v2990
      %v4675 = vsel %vm4667, %v4546, %v2992
      %v4676 = vsel %vm4667, %v4547, %v2994
      %v4677 = vsel %vm4667, %v4548, %v2996
      %v4678 = vsel %vm4667, %v4549, %v2998
      %v4679 = vsel %vm4667, %v4550, %v3000
      %v4680 = vsel %vm4667, %v4551, %v3002
      %v4681 = vsel %vm4667, %v4552, %v3004
      %v4682 = vsel %vm4667, %v4553, %v3006
      %v4683 = vsel %vm4667, %v4554, %v3008
      %v4684 = vsel %vm4667, %v4555, %v3010
      %v4685 = vsel %vm4667, %v4556, %v3012
      %v4686 = vsel %vm4667, %v4557, %v3014
      %v4687 = vsel %vm4667, %v4558, %v3016
      %v4688 = vsel %vm4667, %v4559, %v3018
      %v4689 = vsel %vm4667, %v4560, %v3020
      %v4690 = vsel %vm4667, %v4561, %v3022
      %v4691 = vsel %vm4667, %v4562, %v3024
      %v4692 = vsel %vm4667, %v4563, %v3026
      %v4693 = vsel %vm4667, %v4564, %v3028
      %v4694 = vsel %vm4667, %v4565, %v3030
      %v4695 = vsel %vm4667, %v4566, %v3032
      %v4696 = vsel %vm4667, %v4567, %v3034
      %v4697 = vsel %vm4667, %v4568, %v3036
      %v4698 = vsel %vm4667, %v4569, %v3038
      %v4699 = vsel %vm4667, %v4570, %v3040
      %v4700 = vsel %vm4667, %v4571, %v3042
      %v4701 = vsel %vm4667, %v4572, %v3044
      %v4702 = vsel %vm4667, %v4573, %v3046
      %v4703 = vsel %vm4667, %v4574, %v3048
      %v4704 = vsel %vm4667, %v4575, %v3050
      %v4705 = vsel %vm4667, %v4576, %v3052
      %v4706 = vsel %vm4667, %v4577, %v3054
      %v4707 = vsel %vm4667, %v4578, %v3056
      %v4708 = vsel %vm4667, %v4579, %v3058
      %v4709 = vsel %vm4667, %v4580, %v3060
      %v4710 = vsel %vm4667, %v4581, %v3062
      %v4711 = vsel %vm4667, %v4582, %v3064
      %v4712 = vsel %vm4667, %v4583, %v3066
      %v4713 = vsel %vm4667, %v4584, %v3068
      %v4714 = vsel %vm4667, %v4585, %v3070
      %v4715 = vsel %vm4667, %v4586, %v3072
      %v4716 = vsel %vm4667, %v4587, %v3074
      %v4717 = vsel %vm4667, %v4588, %v3076
      %v4718 = vsel %vm4667, %v4589, %v3078
      %v4719 = vsel %vm4667, %v4590, %v3080
      %v4720 = vsel %vm4667, %v4591, %v3082
      %v4721 = vsel %vm4667, %v4592, %v3084
      %v4722 = vsel %vm4667, %v4593, %v3086
      %v4723 = vsel %vm4667, %v4594, %v3088
      %v4724 = vsel %vm4667, %v4595, %v3090
      %v4725 = vsel %vm4667, %v4596, %v3092
      %v4726 = vsel %vm4667, %v4597, %v3094
      %v4727 = vsel %vm4667, %v4598, %v3096
      %v4728 = vsel %vm4667, %v4599, %v3098
      %v4729 = vsel %vm4667, %v4600, %v3100
      %v4730 = vsel %vm4667, %v4601, %v3102
      %v4731 = vsel %vm4667, %v4602, %v3104
      %v4732 = vsel %vm4667, %v4603, %v3106
      %v4733 = vsel %vm4667, %v4604, %v3108
      %v4734 = vsel %vm4667, %v4605, %v3110
      %v4735 = vsel %vm4667, %v4606, %v3112
      %v4736 = vsel %vm4667, %v4607, %v3114
      %v4737 = vsel %vm4667, %v4608, %v3116
      %v4738 = vsel %vm4667, %v4609, %v3118
      %v4739 = vsel %vm4667, %v4610, %v3120
      %v4740 = vsel %vm4667, %v4611, %v3122
      %v4741 = vsel %vm4667, %v4612, %v3124
      %v4742 = vsel %vm4667, %v4613, %v3126
      %v4743 = vsel %vm4667, %v4614, %v3128
      %v4744 = vsel %vm4667, %v4615, %v3130
      %v4745 = vsel %vm4667, %v4616, %v3132
      %v4746 = vsel %vm4667, %v4617, %v3134
      %v4747 = vsel %vm4667, %v4618, %v3136
      %v4748 = vsel %vm4667, %v4619, %v3138
      %v4749 = vsel %vm4667, %v4620, %v3140
      %v4750 = vsel %vm4667, %v4621, %v3142
      %v4751 = vsel %vm4667, %v4622, %v3144
      %v4752 = vsel %vm4667, %v4623, %v3146
      %v4753 = vsel %vm4667, %v4624, %v3148
      %v4754 = vsel %vm4667, %v4625, %v3150
      %v4755 = vsel %vm4667, %v4626, %v3152
      %v4756 = vsel %vm4667, %v4627, %v3154
      %v4757 = vsel %vm4667, %v4628, %v3156
      %v4758 = vsel %vm4667, %v4629, %v3158
      %v4759 = vsel %vm4667, %v4630, %v3160
      %v4760 = vsel %vm4667, %v4631, %v3162
      %v4761 = vsel %vm4667, %v4632, %v3164
      %v4762 = vsel %vm4667, %v4633, %v3166
      %v4763 = vsel %vm4667, %v4634, %v3168
      %v4764 = vsel %vm4667, %v4635, %v3170
      %v4765 = vsel %vm4667, %v4636, %v3172
      %v4766 = vsel %vm4667, %v4637, %v3174
      %v4767 = vsel %vm4667, %v4638, %v3176
      %v4768 = vsel %vm4667, %v4639, %v3178
      %v4769 = vsel %vm4667, %v4640, %v3180
      %v4770 = vsel %vm4667, %v4641, %v3182
      %v4771 = vsel %vm4667, %v4642, %v3184
      %v4772 = vsel %vm4667, %v4643, %v3186
      %v4773 = vsel %vm4667, %v4644, %v3188
      %v4774 = vsel %vm4667, %v4645, %v3190
      %v4775 = vsel %vm4667, %v4646, %v3192
      %v4776 = vsel %vm4667, %v4647, %v3194
      %v4777 = vsel %vm4667, %v4648, %v3196
      %v4778 = vsel %vm4667, %v4649, %v3198
      %v4779 = vsel %vm4667, %v4650, %v3200
      %v4780 = vsel %vm4667, %v4651, %v3202
      %v4781 = vsel %vm4667, %v4652, %v3204
      %v4782 = vsel %vm4667, %v4653, %v3206
      %v4783 = vsel %vm4667, %v4654, %v3208
      %v4784 = vsel %vm4667, %v4655, %v3210
      %v4785 = vsel %vm4667, %v4656, %v3212
      %v4786 = vsel %vm4667, %v4657, %v3214
      %v4787 = vsel %vm4667, %v4658, %v3216
      %v4788 = vsel %vm4667, %v4659, %v3218
      %v4789 = vsel %vm4667, %v4660, %v3220
      %v4790 = vsel %vm4667, %v4661, %v3222
      %v4791 = vsel %vm4667, %v4662, %v3224
      %v4792 = vsel %vm4667, %v4663, %v3226
      %v4793 = vsel %vm4667, %v4664, %v3228
      %v4794 = vsel %vm4667, %v4665, %v3230
      %v4795 = vsel %vm4667, %v4666, %v3232
      %vm4796 = vcmask 785408
      %v4797 = vsel %vm4796, %v4668, %v3366
      %v4798 = vsel %vm4796, %v4669, %v3368
      %v4799 = vsel %vm4796, %v4670, %v3370
      %v4800 = vsel %vm4796, %v4671, %v3372
      %v4801 = vsel %vm4796, %v4672, %v3374
      %v4802 = vsel %vm4796, %v4673, %v3376
      %v4803 = vsel %vm4796, %v4674, %v3378
      %v4804 = vsel %vm4796, %v4675, %v3380
      %v4805 = vsel %vm4796, %v4676, %v3382
      %v4806 = vsel %vm4796, %v4677, %v3384
      %v4807 = vsel %vm4796, %v4678, %v3386
      %v4808 = vsel %vm4796, %v4679, %v3388
      %v4809 = vsel %vm4796, %v4680, %v3390
      %v4810 = vsel %vm4796, %v4681, %v3392
      %v4811 = vsel %vm4796, %v4682, %v3394
      %v4812 = vsel %vm4796, %v4683, %v3396
      %v4813 = vsel %vm4796, %v4684, %v3398
      %v4814 = vsel %vm4796, %v4685, %v3400
      %v4815 = vsel %vm4796, %v4686, %v3402
      %v4816 = vsel %vm4796, %v4687, %v3404
      %v4817 = vsel %vm4796, %v4688, %v3406
      %v4818 = vsel %vm4796, %v4689, %v3408
      %v4819 = vsel %vm4796, %v4690, %v3410
      %v4820 = vsel %vm4796, %v4691, %v3412
      %v4821 = vsel %vm4796, %v4692, %v3414
      %v4822 = vsel %vm4796, %v4693, %v3416
      %v4823 = vsel %vm4796, %v4694, %v3418
      %v4824 = vsel %vm4796, %v4695, %v3420
      %v4825 = vsel %vm4796, %v4696, %v3422
      %v4826 = vsel %vm4796, %v4697, %v3424
      %v4827 = vsel %vm4796, %v4698, %v3426
      %v4828 = vsel %vm4796, %v4699, %v3428
      %v4829 = vsel %vm4796, %v4700, %v3430
      %v4830 = vsel %vm4796, %v4701, %v3432
      %v4831 = vsel %vm4796, %v4702, %v3434
      %v4832 = vsel %vm4796, %v4703, %v3436
      %v4833 = vsel %vm4796, %v4704, %v3438
      %v4834 = vsel %vm4796, %v4705, %v3440
      %v4835 = vsel %vm4796, %v4706, %v3442
      %v4836 = vsel %vm4796, %v4707, %v3444
      %v4837 = vsel %vm4796, %v4708, %v3446
      %v4838 = vsel %vm4796, %v4709, %v3448
      %v4839 = vsel %vm4796, %v4710, %v3450
      %v4840 = vsel %vm4796, %v4711, %v3452
      %v4841 = vsel %vm4796, %v4712, %v3454
      %v4842 = vsel %vm4796, %v4713, %v3456
      %v4843 = vsel %vm4796, %v4714, %v3458
      %v4844 = vsel %vm4796, %v4715, %v3460
      %v4845 = vsel %vm4796, %v4716, %v3462
      %v4846 = vsel %vm4796, %v4717, %v3464
      %v4847 = vsel %vm4796, %v4718, %v3466
      %v4848 = vsel %vm4796, %v4719, %v3468
      %v4849 = vsel %vm4796, %v4720, %v3470
      %v4850 = vsel %vm4796, %v4721, %v3472
      %v4851 = vsel %vm4796, %v4722, %v3474
      %v4852 = vsel %vm4796, %v4723, %v3476
      %v4853 = vsel %vm4796, %v4724, %v3478
      %v4854 = vsel %vm4796, %v4725, %v3480
      %v4855 = vsel %vm4796, %v4726, %v3482
      %v4856 = vsel %vm4796, %v4727, %v3484
      %v4857 = vsel %vm4796, %v4728, %v3486
      %v4858 = vsel %vm4796, %v4729, %v3488
      %v4859 = vsel %vm4796, %v4730, %v3490
      %v4860 = vsel %vm4796, %v4731, %v3492
      %v4861 = vsel %vm4796, %v4732, %v3494
      %v4862 = vsel %vm4796, %v4733, %v3496
      %v4863 = vsel %vm4796, %v4734, %v3498
      %v4864 = vsel %vm4796, %v4735, %v3500
      %v4865 = vsel %vm4796, %v4736, %v3502
      %v4866 = vsel %vm4796, %v4737, %v3504
      %v4867 = vsel %vm4796, %v4738, %v3506
      %v4868 = vsel %vm4796, %v4739, %v3508
      %v4869 = vsel %vm4796, %v4740, %v3510
      %v4870 = vsel %vm4796, %v4741, %v3512
      %v4871 = vsel %vm4796, %v4742, %v3514
      %v4872 = vsel %vm4796, %v4743, %v3516
      %v4873 = vsel %vm4796, %v4744, %v3518
      %v4874 = vsel %vm4796, %v4745, %v3520
      %v4875 = vsel %vm4796, %v4746, %v3522
      %v4876 = vsel %vm4796, %v4747, %v3524
      %v4877 = vsel %vm4796, %v4748, %v3526
      %v4878 = vsel %vm4796, %v4749, %v3528
      %v4879 = vsel %vm4796, %v4750, %v3530
      %v4880 = vsel %vm4796, %v4751, %v3532
      %v4881 = vsel %vm4796, %v4752, %v3534
      %v4882 = vsel %vm4796, %v4753, %v3536
      %v4883 = vsel %vm4796, %v4754, %v3538
      %v4884 = vsel %vm4796, %v4755, %v3540
      %v4885 = vsel %vm4796, %v4756, %v3542
      %v4886 = vsel %vm4796, %v4757, %v3544
      %v4887 = vsel %vm4796, %v4758, %v3546
      %v4888 = vsel %vm4796, %v4759, %v3548
      %v4889 = vsel %vm4796, %v4760, %v3550
      %v4890 = vsel %vm4796, %v4761, %v3552
      %v4891 = vsel %vm4796, %v4762, %v3554
      %v4892 = vsel %vm4796, %v4763, %v3556
      %v4893 = vsel %vm4796, %v4764, %v3558
      %v4894 = vsel %vm4796, %v4765, %v3560
      %v4895 = vsel %vm4796, %v4766, %v3562
      %v4896 = vsel %vm4796, %v4767, %v3564
      %v4897 = vsel %vm4796, %v4768, %v3566
      %v4898 = vsel %vm4796, %v4769, %v3568
      %v4899 = vsel %vm4796, %v4770, %v3570
      %v4900 = vsel %vm4796, %v4771, %v3572
      %v4901 = vsel %vm4796, %v4772, %v3574
      %v4902 = vsel %vm4796, %v4773, %v3576
      %v4903 = vsel %vm4796, %v4774, %v3578
      %v4904 = vsel %vm4796, %v4775, %v3580
      %v4905 = vsel %vm4796, %v4776, %v3582
      %v4906 = vsel %vm4796, %v4777, %v3584
      %v4907 = vsel %vm4796, %v4778, %v3586
      %v4908 = vsel %vm4796, %v4779, %v3588
      %v4909 = vsel %vm4796, %v4780, %v3590
      %v4910 = vsel %vm4796, %v4781, %v3592
      %v4911 = vsel %vm4796, %v4782, %v3594
      %v4912 = vsel %vm4796, %v4783, %v3596
      %v4913 = vsel %vm4796, %v4784, %v3598
      %v4914 = vsel %vm4796, %v4785, %v3600
      %v4915 = vsel %vm4796, %v4786, %v3602
      %v4916 = vsel %vm4796, %v4787, %v3604
      %v4917 = vsel %vm4796, %v4788, %v3606
      %v4918 = vsel %vm4796, %v4789, %v3608
      %v4919 = vsel %vm4796, %v4790, %v3610
      %v4920 = vsel %vm4796, %v4791, %v3612
      %v4921 = vsel %vm4796, %v4792, %v3614
      %v4922 = vsel %vm4796, %v4793, %v3616
      %v4923 = vsel %vm4796, %v4794, %v3618
      %v4924 = vsel %vm4796, %v4795, %v3620
      %vm4925 = vcmask 916480
      %v4926 = vsel %vm4925, %v4797, %v3760
      %v4927 = vsel %vm4925, %v4798, %v3762
      %v4928 = vsel %vm4925, %v4799, %v3764
      %v4929 = vsel %vm4925, %v4800, %v3766
      %v4930 = vsel %vm4925, %v4801, %v3768
      %v4931 = vsel %vm4925, %v4802, %v3770
      %v4932 = vsel %vm4925, %v4803, %v3772
      %v4933 = vsel %vm4925, %v4804, %v3774
      %v4934 = vsel %vm4925, %v4805, %v3776
      %v4935 = vsel %vm4925, %v4806, %v3778
      %v4936 = vsel %vm4925, %v4807, %v3780
      %v4937 = vsel %vm4925, %v4808, %v3782
      %v4938 = vsel %vm4925, %v4809, %v3784
      %v4939 = vsel %vm4925, %v4810, %v3786
      %v4940 = vsel %vm4925, %v4811, %v3788
      %v4941 = vsel %vm4925, %v4812, %v3790
      %v4942 = vsel %vm4925, %v4813, %v3792
      %v4943 = vsel %vm4925, %v4814, %v3794
      %v4944 = vsel %vm4925, %v4815, %v3796
      %v4945 = vsel %vm4925, %v4816, %v3798
      %v4946 = vsel %vm4925, %v4817, %v3800
      %v4947 = vsel %vm4925, %v4818, %v3802
      %v4948 = vsel %vm4925, %v4819, %v3804
      %v4949 = vsel %vm4925, %v4820, %v3806
      %v4950 = vsel %vm4925, %v4821, %v3808
      %v4951 = vsel %vm4925, %v4822, %v3810
      %v4952 = vsel %vm4925, %v4823, %v3812
      %v4953 = vsel %vm4925, %v4824, %v3814
      %v4954 = vsel %vm4925, %v4825, %v3816
      %v4955 = vsel %vm4925, %v4826, %v3818
      %v4956 = vsel %vm4925, %v4827, %v3820
      %v4957 = vsel %vm4925, %v4828, %v3822
      %v4958 = vsel %vm4925, %v4829, %v3824
      %v4959 = vsel %vm4925, %v4830, %v3826
      %v4960 = vsel %vm4925, %v4831, %v3828
      %v4961 = vsel %vm4925, %v4832, %v3830
      %v4962 = vsel %vm4925, %v4833, %v3832
      %v4963 = vsel %vm4925, %v4834, %v3834
      %v4964 = vsel %vm4925, %v4835, %v3836
      %v4965 = vsel %vm4925, %v4836, %v3838
      %v4966 = vsel %vm4925, %v4837, %v3840
      %v4967 = vsel %vm4925, %v4838, %v3842
      %v4968 = vsel %vm4925, %v4839, %v3844
      %v4969 = vsel %vm4925, %v4840, %v3846
      %v4970 = vsel %vm4925, %v4841, %v3848
      %v4971 = vsel %vm4925, %v4842, %v3850
      %v4972 = vsel %vm4925, %v4843, %v3852
      %v4973 = vsel %vm4925, %v4844, %v3854
      %v4974 = vsel %vm4925, %v4845, %v3856
      %v4975 = vsel %vm4925, %v4846, %v3858
      %v4976 = vsel %vm4925, %v4847, %v3860
      %v4977 = vsel %vm4925, %v4848, %v3862
      %v4978 = vsel %vm4925, %v4849, %v3864
      %v4979 = vsel %vm4925, %v4850, %v3866
      %v4980 = vsel %vm4925, %v4851, %v3868
      %v4981 = vsel %vm4925, %v4852, %v3870
      %v4982 = vsel %vm4925, %v4853, %v3872
      %v4983 = vsel %vm4925, %v4854, %v3874
      %v4984 = vsel %vm4925, %v4855, %v3876
      %v4985 = vsel %vm4925, %v4856, %v3878
      %v4986 = vsel %vm4925, %v4857, %v3880
      %v4987 = vsel %vm4925, %v4858, %v3882
      %v4988 = vsel %vm4925, %v4859, %v3884
      %v4989 = vsel %vm4925, %v4860, %v3886
      %v4990 = vsel %vm4925, %v4861, %v3888
      %v4991 = vsel %vm4925, %v4862, %v3890
      %v4992 = vsel %vm4925, %v4863, %v3892
      %v4993 = vsel %vm4925, %v4864, %v3894
      %v4994 = vsel %vm4925, %v4865, %v3896
      %v4995 = vsel %vm4925, %v4866, %v3898
      %v4996 = vsel %vm4925, %v4867, %v3900
      %v4997 = vsel %vm4925, %v4868, %v3902
      %v4998 = vsel %vm4925, %v4869, %v3904
      %v4999 = vsel %vm4925, %v4870, %v3906
      %v5000 = vsel %vm4925, %v4871, %v3908
      %v5001 = vsel %vm4925, %v4872, %v3910
      %v5002 = vsel %vm4925, %v4873, %v3912
      %v5003 = vsel %vm4925, %v4874, %v3914
      %v5004 = vsel %vm4925, %v4875, %v3916
      %v5005 = vsel %vm4925, %v4876, %v3918
      %v5006 = vsel %vm4925, %v4877, %v3920
      %v5007 = vsel %vm4925, %v4878, %v3922
      %v5008 = vsel %vm4925, %v4879, %v3924
      %v5009 = vsel %vm4925, %v4880, %v3926
      %v5010 = vsel %vm4925, %v4881, %v3928
      %v5011 = vsel %vm4925, %v4882, %v3930
      %v5012 = vsel %vm4925, %v4883, %v3932
      %v5013 = vsel %vm4925, %v4884, %v3934
      %v5014 = vsel %vm4925, %v4885, %v3936
      %v5015 = vsel %vm4925, %v4886, %v3938
      %v5016 = vsel %vm4925, %v4887, %v3940
      %v5017 = vsel %vm4925, %v4888, %v3942
      %v5018 = vsel %vm4925, %v4889, %v3944
      %v5019 = vsel %vm4925, %v4890, %v3946
      %v5020 = vsel %vm4925, %v4891, %v3948
      %v5021 = vsel %vm4925, %v4892, %v3950
      %v5022 = vsel %vm4925, %v4893, %v3952
      %v5023 = vsel %vm4925, %v4894, %v3954
      %v5024 = vsel %vm4925, %v4895, %v3956
      %v5025 = vsel %vm4925, %v4896, %v3958
      %v5026 = vsel %vm4925, %v4897, %v3960
      %v5027 = vsel %vm4925, %v4898, %v3962
      %v5028 = vsel %vm4925, %v4899, %v3964
      %v5029 = vsel %vm4925, %v4900, %v3966
      %v5030 = vsel %vm4925, %v4901, %v3968
      %v5031 = vsel %vm4925, %v4902, %v3970
      %v5032 = vsel %vm4925, %v4903, %v3972
      %v5033 = vsel %vm4925, %v4904, %v3974
      %v5034 = vsel %vm4925, %v4905, %v3976
      %v5035 = vsel %vm4925, %v4906, %v3978
      %v5036 = vsel %vm4925, %v4907, %v3980
      %v5037 = vsel %vm4925, %v4908, %v3982
      %v5038 = vsel %vm4925, %v4909, %v3984
      %v5039 = vsel %vm4925, %v4910, %v3986
      %v5040 = vsel %vm4925, %v4911, %v3988
      %v5041 = vsel %vm4925, %v4912, %v3990
      %v5042 = vsel %vm4925, %v4913, %v3992
      %v5043 = vsel %vm4925, %v4914, %v3994
      %v5044 = vsel %vm4925, %v4915, %v3996
      %v5045 = vsel %vm4925, %v4916, %v3998
      %v5046 = vsel %vm4925, %v4917, %v4000
      %v5047 = vsel %vm4925, %v4918, %v4002
      %v5048 = vsel %vm4925, %v4919, %v4004
      %v5049 = vsel %vm4925, %v4920, %v4006
      %v5050 = vsel %vm4925, %v4921, %v4008
      %v5051 = vsel %vm4925, %v4922, %v4010
      %v5052 = vsel %vm4925, %v4923, %v4012
      %v5053 = vsel %vm4925, %v4924, %v4014
      %v5054 = vld [vmem:[%s1] sm:$0xff]
      %v5055 = vld [vmem:[%s1 + $0x8] sm:$0xff]
      %v5056 = vld [vmem:[%s1 + $0x10] sm:$0xff]
      %v5057 = vld [vmem:[%s1 + $0x18] sm:$0xff]
      %v5058 = vld [vmem:[%s1 + $0x20] sm:$0xff]
      %v5059 = vld [vmem:[%s1 + $0x28] sm:$0xff]
      %v5060 = vld [vmem:[%s1 + $0x30] sm:$0xff]
      %v5061 = vld [vmem:[%s1 + $0x38] sm:$0xff]
      %v5062 = vld [vmem:[%s1 + $0x40] sm:$0xff]
      %v5063 = vld [vmem:[%s1 + $0x48] sm:$0xff]
      %v5064 = vld [vmem:[%s1 + $0x50] sm:$0xff]
      %v5065 = vld [vmem:[%s1 + $0x58] sm:$0xff]
      %v5066 = vld [vmem:[%s1 + $0x60] sm:$0xff]
      %v5067 = vld [vmem:[%s1 + $0x68] sm:$0xff]
      %v5068 = vld [vmem:[%s1 + $0x70] sm:$0xff]
      %v5069 = vld [vmem:[%s1 + $0x78] sm:$0xff]
      %v5070 = vld [vmem:[%s1 + $0x80] sm:$0xff]
      %v5071 = vld [vmem:[%s1 + $0x88] sm:$0xff]
      %v5072 = vld [vmem:[%s2] sm:$0x1]
      %v5074 = vperm.slane %v5072, 0
      %v5076 = vsel %vm171, %v1534, 0
      %v5078 = vsel %vm171, %v1536, 0
      %v5080 = vsel %vm171, %v1538, 0
      %v5082 = vsel %vm171, %v1540, 0
      %v5084 = vsel %vm171, %v1543, 0
      %v5086 = vsel %vm171, %v1545, 0
      %v5088 = vsel %vm171, %v1547, 0
      %v5090 = vsel %vm171, %v1549, 0
      %v5092 = vsel %vm171, %v1552, 0
      %v5094 = vsel %vm171, %v1554, 0
      %v5096 = vsel %vm171, %v1556, 0
      %v5098 = vsel %vm171, %v1558, 0
      %v5100 = vsel %vm171, %v1561, 0
      %v5102 = vsel %vm171, %v1563, 0
      %v5104 = vsel %vm171, %v1565, 0
      %v5106 = vsel %vm171, %v1567, 0
      %v5108 = vsel %vm171, %v1570, 0
      %v5110 = vsel %vm171, %v1572, 0
      %v5112 = vsel %vm171, %v1574, 0
      %v5114 = vsel %vm171, %v1576, 0
      %v5116 = vsel %vm171, %v1579, 0
      %v5118 = vsel %vm171, %v1581, 0
      %v5120 = vsel %vm171, %v1583, 0
      %v5122 = vsel %vm171, %v1585, 0
      %v5124 = vsel %vm171, %v1588, 0
      %v5126 = vsel %vm171, %v1590, 0
      %v5128 = vsel %vm171, %v1592, 0
      %v5130 = vsel %vm171, %v1594, 0
      %v5132 = vsel %vm171, %v1597, 0
      %v5134 = vsel %vm171, %v1599, 0
      %v5136 = vsel %vm171, %v1601, 0
      %v5138 = vsel %vm171, %v1603, 0
      %v5140 = vsel %vm171, %v1606, 0
      %v5142 = vsel %vm171, %v1608, 0
      %v5144 = vsel %vm171, %v1610, 0
      %v5146 = vsel %vm171, %v1612, 0
      %v5148 = vsel %vm171, %v1615, 0
      %v5150 = vsel %vm171, %v1617, 0
      %v5152 = vsel %vm171, %v1619, 0
      %v5154 = vsel %vm171, %v1621, 0
      %v5156 = vsel %vm171, %v1624, 0
      %v5158 = vsel %vm171, %v1626, 0
      %v5160 = vsel %vm171, %v1628, 0
      %v5162 = vsel %vm171, %v1630, 0
      %v5164 = vsel %vm171, %v1633, 0
      %v5166 = vsel %vm171, %v1635, 0
      %v5168 = vsel %vm171, %v1637, 0
      %v5170 = vsel %vm171, %v1639, 0
      %v5172 = vsel %vm171, %v1642, 0
      %v5174 = vsel %vm171, %v1644, 0
      %v5176 = vsel %vm171, %v1646, 0
      %v5178 = vsel %vm171, %v1648, 0
      %v5180 = vsel %vm171, %v1651, 0
      %v5182 = vsel %vm171, %v1653, 0
      %v5184 = vsel %vm171, %v1655, 0
      %v5186 = vsel %vm171, %v1657, 0
      %v5188 = vsel %vm171, %v1660, 0
      %v5190 = vsel %vm171, %v1662, 0
      %v5192 = vsel %vm171, %v1664, 0
      %v5194 = vsel %vm171, %v1666, 0
      %v5196 = vsel %vm171, %v1669, 0
      %v5198 = vsel %vm171, %v1671, 0
      %v5200 = vsel %vm171, %v1673, 0
      %v5202 = vsel %vm171, %v1675, 0
      %v5204 = vsel %vm171, %v1678, 0
      %v5206 = vsel %vm171, %v1680, 0
      %v5208 = vsel %vm171, %v1682, 0
      %v5210 = vsel %vm171, %v1684, 0
      %v5212 = vsel %vm171, %v1687, 0
      %v5214 = vsel %vm171, %v1689, 0
      %v5216 = vsel %vm171, %v1691, 0
      %v5218 = vsel %vm171, %v1693, 0
      %v5220 = vsel %vm171, %v1696, 0
      %v5222 = vsel %vm171, %v1698, 0
      %v5224 = vsel %vm171, %v1700, 0
      %v5226 = vsel %vm171, %v1702, 0
      %v5228 = vsel %vm171, %v1705, 0
      %v5230 = vsel %vm171, %v1707, 0
      %v5232 = vsel %vm171, %v1709, 0
      %v5234 = vsel %vm171, %v1711, 0
      %v5236 = vsel %vm171, %v1714, 0
      %v5238 = vsel %vm171, %v1716, 0
      %v5240 = vsel %vm171, %v1718, 0
      %v5242 = vsel %vm171, %v1720, 0
      %v5244 = vsel %vm171, %v1723, 0
      %v5246 = vsel %vm171, %v1725, 0
      %v5248 = vsel %vm171, %v1727, 0
      %v5250 = vsel %vm171, %v1729, 0
      %v5252 = vsel %vm171, %v1732, 0
      %v5254 = vsel %vm171, %v1734, 0
      %v5256 = vsel %vm171, %v1736, 0
      %v5258 = vsel %vm171, %v1738, 0
      %v5260 = vsel %vm171, %v1741, 0
      %v5262 = vsel %vm171, %v1743, 0
      %v5264 = vsel %vm171, %v1745, 0
      %v5266 = vsel %vm171, %v1747, 0
      %v5268 = vsel %vm171, %v1750, 0
      %v5270 = vsel %vm171, %v1752, 0
      %v5272 = vsel %vm171, %v1754, 0
      %v5274 = vsel %vm171, %v1756, 0
      %v5276 = vsel %vm171, %v1759, 0
      %v5278 = vsel %vm171, %v1761, 0
      %v5280 = vsel %vm171, %v1763, 0
      %v5282 = vsel %vm171, %v1765, 0
      %v5284 = vsel %vm171, %v1768, 0
      %v5286 = vsel %vm171, %v1770, 0
      %v5288 = vsel %vm171, %v1772, 0
      %v5290 = vsel %vm171, %v1774, 0
      %v5292 = vsel %vm171, %v1777, 0
      %v5294 = vsel %vm171, %v1779, 0
      %v5296 = vsel %vm171, %v1781, 0
      %v5298 = vsel %vm171, %v1783, 0
      %v5300 = vsel %vm171, %v1786, 0
      %v5302 = vsel %vm171, %v1788, 0
      %v5304 = vsel %vm171, %v1790, 0
      %v5306 = vsel %vm171, %v1792, 0
      %v5308 = vsel %vm171, %v1795, 0
      %v5310 = vsel %vm171, %v1797, 0
      %v5312 = vsel %vm171, %v1799, 0
      %v5314 = vsel %vm171, %v1801, 0
      %v5316 = vsel %vm171, %v2970, 0
      %v5318 = vsel %vm171, %v2972, 0
      %v5320 = vsel %vm171, %v2974, 0
      %v5322 = vsel %vm171, %v2976, 0
      %v5324 = vsel %vm171, %v4145, 0
      %v5326 = vsel %vm171, %v4147, 0
      %v5328 = vsel %vm171, %v4149, 0
      %v5330 = vsel %vm171, %v4151, 0
      %5332 = vmatpush.msra.mxu0 %v5069
      %5333 = vmatpush.msra.mxu0 %v5068
      %5334 = vmatpush.msra.mxu0 %v5067
      %5335 = vmatpush.msra.mxu0 %v5066
      %5336 = vmatpush.msra.mxu0 %v5065
      %5337 = vmatpush.msra.mxu0 %v5064
      %5338 = vmatpush.msra.mxu0 %v5063
      %5339 = vmatpush.msra.mxu0 %v5062
      %5340 = vmatpush.msra.mxu0 %v5061
      %5341 = vmatpush.msra.mxu0 %v5060
      %5342 = vmatpush.msra.mxu0 %v5059
      %5343 = vmatpush.msra.mxu0 %v5058
      %5344 = vmatpush.msra.mxu0 %v5057
      %5345 = vmatpush.msra.mxu0 %v5056
      %5346 = vmatpush.msra.mxu0 %v5055
      %5347 = vmatpush.msra.mxu0 %v5054
      %5348 = vmatmul.f32.gmra.mxu0 %v4926
      %v5349 = vpop.f32.mrf.mxu0
      %v5350 = vadd.f32 %v5074, %v5349
      %5351 = vmatmul.f32.gmra.mxu0 %v4927
      %v5352 = vpop.f32.mrf.mxu0
      %v5353 = vadd.f32 %v5074, %v5352
      %5354 = vmatmul.f32.gmra.mxu0 %v4928
      %v5355 = vpop.f32.mrf.mxu0
      %v5356 = vadd.f32 %v5074, %v5355
      %5357 = vmatmul.f32.gmra.mxu0 %v4929
      %v5358 = vpop.f32.mrf.mxu0
      %v5359 = vadd.f32 %v5074, %v5358
      %5360 = vmatmul.f32.gmra.mxu0 %v4930
      %v5361 = vpop.f32.mrf.mxu0
      %v5362 = vadd.f32 %v5074, %v5361
      %5363 = vmatmul.f32.gmra.mxu0 %v4931
      %v5364 = vpop.f32.mrf.mxu0
      %v5365 = vadd.f32 %v5074, %v5364
      %5366 = vmatmul.f32.gmra.mxu0 %v4932
      %v5367 = vpop.f32.mrf.mxu0
      %v5368 = vadd.f32 %v5074, %v5367
      %5369 = vmatmul.f32.gmra.mxu0 %v4933
      %v5370 = vpop.f32.mrf.mxu0
      %v5371 = vadd.f32 %v5074, %v5370
      %5372 = vmatmul.f32.gmra.mxu0 %v4934
      %v5373 = vpop.f32.mrf.mxu0
      %v5374 = vadd.f32 %v5074, %v5373
      %5375 = vmatmul.f32.gmra.mxu0 %v4935
      %v5376 = vpop.f32.mrf.mxu0
      %v5377 = vadd.f32 %v5074, %v5376
      %5378 = vmatmul.f32.gmra.mxu0 %v4936
      %v5379 = vpop.f32.mrf.mxu0
      %v5380 = vadd.f32 %v5074, %v5379
      %5381 = vmatmul.f32.gmra.mxu0 %v4937
      %v5382 = vpop.f32.mrf.mxu0
      %v5383 = vadd.f32 %v5074, %v5382
      %5384 = vmatmul.f32.gmra.mxu0 %v4938
      %v5385 = vpop.f32.mrf.mxu0
      %v5386 = vadd.f32 %v5074, %v5385
      %5387 = vmatmul.f32.gmra.mxu0 %v4939
      %v5388 = vpop.f32.mrf.mxu0
      %v5389 = vadd.f32 %v5074, %v5388
      %5390 = vmatmul.f32.gmra.mxu0 %v4940
      %v5391 = vpop.f32.mrf.mxu0
      %v5392 = vadd.f32 %v5074, %v5391
      %5393 = vmatmul.f32.gmra.mxu0 %v4941
      %v5394 = vpop.f32.mrf.mxu0
      %v5395 = vadd.f32 %v5074, %v5394
      %5396 = vmatmul.f32.gmra.mxu0 %v4942
      %v5397 = vpop.f32.mrf.mxu0
      %v5398 = vadd.f32 %v5074, %v5397
      %5399 = vmatmul.f32.gmra.mxu0 %v4943
      %v5400 = vpop.f32.mrf.mxu0
      %v5401 = vadd.f32 %v5074, %v5400
      %5402 = vmatmul.f32.gmra.mxu0 %v4944
      %v5403 = vpop.f32.mrf.mxu0
      %v5404 = vadd.f32 %v5074, %v5403
      %5405 = vmatmul.f32.gmra.mxu0 %v4945
      %v5406 = vpop.f32.mrf.mxu0
      %v5407 = vadd.f32 %v5074, %v5406
      %5408 = vmatmul.f32.gmra.mxu0 %v4946
      %v5409 = vpop.f32.mrf.mxu0
      %v5410 = vadd.f32 %v5074, %v5409
      %5411 = vmatmul.f32.gmra.mxu0 %v4947
      %v5412 = vpop.f32.mrf.mxu0
      %v5413 = vadd.f32 %v5074, %v5412
      %5414 = vmatmul.f32.gmra.mxu0 %v4948
      %v5415 = vpop.f32.mrf.mxu0
      %v5416 = vadd.f32 %v5074, %v5415
      %5417 = vmatmul.f32.gmra.mxu0 %v4949
      %v5418 = vpop.f32.mrf.mxu0
      %v5419 = vadd.f32 %v5074, %v5418
      %5420 = vmatmul.f32.gmra.mxu0 %v4950
      %v5421 = vpop.f32.mrf.mxu0
      %v5422 = vadd.f32 %v5074, %v5421
      %5423 = vmatmul.f32.gmra.mxu0 %v4951
      %v5424 = vpop.f32.mrf.mxu0
      %v5425 = vadd.f32 %v5074, %v5424
      %5426 = vmatmul.f32.gmra.mxu0 %v4952
      %v5427 = vpop.f32.mrf.mxu0
      %v5428 = vadd.f32 %v5074, %v5427
      %5429 = vmatmul.f32.gmra.mxu0 %v4953
      %v5430 = vpop.f32.mrf.mxu0
      %v5431 = vadd.f32 %v5074, %v5430
      %5432 = vmatmul.f32.gmra.mxu0 %v4954
      %v5433 = vpop.f32.mrf.mxu0
      %v5434 = vadd.f32 %v5074, %v5433
      %5435 = vmatmul.f32.gmra.mxu0 %v4955
      %v5436 = vpop.f32.mrf.mxu0
      %v5437 = vadd.f32 %v5074, %v5436
      %5438 = vmatmul.f32.gmra.mxu0 %v4956
      %v5439 = vpop.f32.mrf.mxu0
      %v5440 = vadd.f32 %v5074, %v5439
      %5441 = vmatmul.f32.gmra.mxu0 %v4957
      %v5442 = vpop.f32.mrf.mxu0
      %v5443 = vadd.f32 %v5074, %v5442
      %5444 = vmatmul.f32.gmra.mxu0 %v4958
      %v5445 = vpop.f32.mrf.mxu0
      %v5446 = vadd.f32 %v5074, %v5445
      %5447 = vmatmul.f32.gmra.mxu0 %v4959
      %v5448 = vpop.f32.mrf.mxu0
      %v5449 = vadd.f32 %v5074, %v5448
      %5450 = vmatmul.f32.gmra.mxu0 %v4960
      %v5451 = vpop.f32.mrf.mxu0
      %v5452 = vadd.f32 %v5074, %v5451
      %5453 = vmatmul.f32.gmra.mxu0 %v4961
      %v5454 = vpop.f32.mrf.mxu0
      %v5455 = vadd.f32 %v5074, %v5454
      %5456 = vmatmul.f32.gmra.mxu0 %v4962
      %v5457 = vpop.f32.mrf.mxu0
      %v5458 = vadd.f32 %v5074, %v5457
      %5459 = vmatmul.f32.gmra.mxu0 %v4963
      %v5460 = vpop.f32.mrf.mxu0
      %v5461 = vadd.f32 %v5074, %v5460
      %5462 = vmatmul.f32.gmra.mxu0 %v4964
      %v5463 = vpop.f32.mrf.mxu0
      %v5464 = vadd.f32 %v5074, %v5463
      %5465 = vmatmul.f32.gmra.mxu0 %v4965
      %v5466 = vpop.f32.mrf.mxu0
      %v5467 = vadd.f32 %v5074, %v5466
      %5468 = vmatmul.f32.gmra.mxu0 %v4966
      %v5469 = vpop.f32.mrf.mxu0
      %v5470 = vadd.f32 %v5074, %v5469
      %5471 = vmatmul.f32.gmra.mxu0 %v4967
      %v5472 = vpop.f32.mrf.mxu0
      %v5473 = vadd.f32 %v5074, %v5472
      %5474 = vmatmul.f32.gmra.mxu0 %v4968
      %v5475 = vpop.f32.mrf.mxu0
      %v5476 = vadd.f32 %v5074, %v5475
      %5477 = vmatmul.f32.gmra.mxu0 %v4969
      %v5478 = vpop.f32.mrf.mxu0
      %v5479 = vadd.f32 %v5074, %v5478
      %5480 = vmatmul.f32.gmra.mxu0 %v4970
      %v5481 = vpop.f32.mrf.mxu0
      %v5482 = vadd.f32 %v5074, %v5481
      %5483 = vmatmul.f32.gmra.mxu0 %v4971
      %v5484 = vpop.f32.mrf.mxu0
      %v5485 = vadd.f32 %v5074, %v5484
      %5486 = vmatmul.f32.gmra.mxu0 %v4972
      %v5487 = vpop.f32.mrf.mxu0
      %v5488 = vadd.f32 %v5074, %v5487
      %5489 = vmatmul.f32.gmra.mxu0 %v4973
      %v5490 = vpop.f32.mrf.mxu0
      %v5491 = vadd.f32 %v5074, %v5490
      %5492 = vmatmul.f32.gmra.mxu0 %v4974
      %v5493 = vpop.f32.mrf.mxu0
      %v5494 = vadd.f32 %v5074, %v5493
      %5495 = vmatmul.f32.gmra.mxu0 %v4975
      %v5496 = vpop.f32.mrf.mxu0
      %v5497 = vadd.f32 %v5074, %v5496
      %5498 = vmatmul.f32.gmra.mxu0 %v4976
      %v5499 = vpop.f32.mrf.mxu0
      %v5500 = vadd.f32 %v5074, %v5499
      %5501 = vmatmul.f32.gmra.mxu0 %v4977
      %v5502 = vpop.f32.mrf.mxu0
      %v5503 = vadd.f32 %v5074, %v5502
      %5504 = vmatmul.f32.gmra.mxu0 %v4978
      %v5505 = vpop.f32.mrf.mxu0
      %v5506 = vadd.f32 %v5074, %v5505
      %5507 = vmatmul.f32.gmra.mxu0 %v4979
      %v5508 = vpop.f32.mrf.mxu0
      %v5509 = vadd.f32 %v5074, %v5508
      %5510 = vmatmul.f32.gmra.mxu0 %v4980
      %v5511 = vpop.f32.mrf.mxu0
      %v5512 = vadd.f32 %v5074, %v5511
      %5513 = vmatmul.f32.gmra.mxu0 %v4981
      %v5514 = vpop.f32.mrf.mxu0
      %v5515 = vadd.f32 %v5074, %v5514
      %5516 = vmatmul.f32.gmra.mxu0 %v4982
      %v5517 = vpop.f32.mrf.mxu0
      %v5518 = vadd.f32 %v5074, %v5517
      %5519 = vmatmul.f32.gmra.mxu0 %v4983
      %v5520 = vpop.f32.mrf.mxu0
      %v5521 = vadd.f32 %v5074, %v5520
      %5522 = vmatmul.f32.gmra.mxu0 %v4984
      %v5523 = vpop.f32.mrf.mxu0
      %v5524 = vadd.f32 %v5074, %v5523
      %5525 = vmatmul.f32.gmra.mxu0 %v4985
      %v5526 = vpop.f32.mrf.mxu0
      %v5527 = vadd.f32 %v5074, %v5526
      %5528 = vmatmul.f32.gmra.mxu0 %v4986
      %v5529 = vpop.f32.mrf.mxu0
      %v5530 = vadd.f32 %v5074, %v5529
      %5531 = vmatmul.f32.gmra.mxu0 %v4987
      %v5532 = vpop.f32.mrf.mxu0
      %v5533 = vadd.f32 %v5074, %v5532
      %5534 = vmatmul.f32.gmra.mxu0 %v4988
      %v5535 = vpop.f32.mrf.mxu0
      %v5536 = vadd.f32 %v5074, %v5535
      %5537 = vmatmul.f32.gmra.mxu0 %v4989
      %v5538 = vpop.f32.mrf.mxu0
      %v5539 = vadd.f32 %v5074, %v5538
      %5540 = vmatmul.f32.gmra.mxu0 %v4990
      %v5541 = vpop.f32.mrf.mxu0
      %v5542 = vadd.f32 %v5074, %v5541
      %5543 = vmatmul.f32.gmra.mxu0 %v4991
      %v5544 = vpop.f32.mrf.mxu0
      %v5545 = vadd.f32 %v5074, %v5544
      %5546 = vmatmul.f32.gmra.mxu0 %v4992
      %v5547 = vpop.f32.mrf.mxu0
      %v5548 = vadd.f32 %v5074, %v5547
      %5549 = vmatmul.f32.gmra.mxu0 %v4993
      %v5550 = vpop.f32.mrf.mxu0
      %v5551 = vadd.f32 %v5074, %v5550
      %5552 = vmatmul.f32.gmra.mxu0 %v4994
      %v5553 = vpop.f32.mrf.mxu0
      %v5554 = vadd.f32 %v5074, %v5553
      %5555 = vmatmul.f32.gmra.mxu0 %v4995
      %v5556 = vpop.f32.mrf.mxu0
      %v5557 = vadd.f32 %v5074, %v5556
      %5558 = vmatmul.f32.gmra.mxu0 %v4996
      %v5559 = vpop.f32.mrf.mxu0
      %v5560 = vadd.f32 %v5074, %v5559
      %5561 = vmatmul.f32.gmra.mxu0 %v4997
      %v5562 = vpop.f32.mrf.mxu0
      %v5563 = vadd.f32 %v5074, %v5562
      %5564 = vmatmul.f32.gmra.mxu0 %v4998
      %v5565 = vpop.f32.mrf.mxu0
      %v5566 = vadd.f32 %v5074, %v5565
      %5567 = vmatmul.f32.gmra.mxu0 %v4999
      %v5568 = vpop.f32.mrf.mxu0
      %v5569 = vadd.f32 %v5074, %v5568
      %5570 = vmatmul.f32.gmra.mxu0 %v5000
      %v5571 = vpop.f32.mrf.mxu0
      %v5572 = vadd.f32 %v5074, %v5571
      %5573 = vmatmul.f32.gmra.mxu0 %v5001
      %v5574 = vpop.f32.mrf.mxu0
      %v5575 = vadd.f32 %v5074, %v5574
      %5576 = vmatmul.f32.gmra.mxu0 %v5002
      %v5577 = vpop.f32.mrf.mxu0
      %v5578 = vadd.f32 %v5074, %v5577
      %5579 = vmatmul.f32.gmra.mxu0 %v5003
      %v5580 = vpop.f32.mrf.mxu0
      %v5581 = vadd.f32 %v5074, %v5580
      %5582 = vmatmul.f32.gmra.mxu0 %v5004
      %v5583 = vpop.f32.mrf.mxu0
      %v5584 = vadd.f32 %v5074, %v5583
      %5585 = vmatmul.f32.gmra.mxu0 %v5005
      %v5586 = vpop.f32.mrf.mxu0
      %v5587 = vadd.f32 %v5074, %v5586
      %5588 = vmatmul.f32.gmra.mxu0 %v5006
      %v5589 = vpop.f32.mrf.mxu0
      %v5590 = vadd.f32 %v5074, %v5589
      %5591 = vmatmul.f32.gmra.mxu0 %v5007
      %v5592 = vpop.f32.mrf.mxu0
      %v5593 = vadd.f32 %v5074, %v5592
      %5594 = vmatmul.f32.gmra.mxu0 %v5008
      %v5595 = vpop.f32.mrf.mxu0
      %v5596 = vadd.f32 %v5074, %v5595
      %5597 = vmatmul.f32.gmra.mxu0 %v5009
      %v5598 = vpop.f32.mrf.mxu0
      %v5599 = vadd.f32 %v5074, %v5598
      %5600 = vmatmul.f32.gmra.mxu0 %v5010
      %v5601 = vpop.f32.mrf.mxu0
      %v5602 = vadd.f32 %v5074, %v5601
      %5603 = vmatmul.f32.gmra.mxu0 %v5011
      %v5604 = vpop.f32.mrf.mxu0
      %v5605 = vadd.f32 %v5074, %v5604
      %5606 = vmatmul.f32.gmra.mxu0 %v5012
      %v5607 = vpop.f32.mrf.mxu0
      %v5608 = vadd.f32 %v5074, %v5607
      %5609 = vmatmul.f32.gmra.mxu0 %v5013
      %v5610 = vpop.f32.mrf.mxu0
      %v5611 = vadd.f32 %v5074, %v5610
      %5612 = vmatmul.f32.gmra.mxu0 %v5014
      %v5613 = vpop.f32.mrf.mxu0
      %v5614 = vadd.f32 %v5074, %v5613
      %5615 = vmatmul.f32.gmra.mxu0 %v5015
      %v5616 = vpop.f32.mrf.mxu0
      %v5617 = vadd.f32 %v5074, %v5616
      %5618 = vmatmul.f32.gmra.mxu0 %v5016
      %v5619 = vpop.f32.mrf.mxu0
      %v5620 = vadd.f32 %v5074, %v5619
      %5621 = vmatmul.f32.gmra.mxu0 %v5017
      %v5622 = vpop.f32.mrf.mxu0
      %v5623 = vadd.f32 %v5074, %v5622
      %5624 = vmatmul.f32.gmra.mxu0 %v5018
      %v5625 = vpop.f32.mrf.mxu0
      %v5626 = vadd.f32 %v5074, %v5625
      %5627 = vmatmul.f32.gmra.mxu0 %v5019
      %v5628 = vpop.f32.mrf.mxu0
      %v5629 = vadd.f32 %v5074, %v5628
      %5630 = vmatmul.f32.gmra.mxu0 %v5020
      %v5631 = vpop.f32.mrf.mxu0
      %v5632 = vadd.f32 %v5074, %v5631
      %5633 = vmatmul.f32.gmra.mxu0 %v5021
      %v5634 = vpop.f32.mrf.mxu0
      %v5635 = vadd.f32 %v5074, %v5634
      %5636 = vmatmul.f32.gmra.mxu0 %v5022
      %v5637 = vpop.f32.mrf.mxu0
      %v5638 = vadd.f32 %v5074, %v5637
      %5639 = vmatmul.f32.gmra.mxu0 %v5023
      %v5640 = vpop.f32.mrf.mxu0
      %v5641 = vadd.f32 %v5074, %v5640
      %5642 = vmatmul.f32.gmra.mxu0 %v5024
      %v5643 = vpop.f32.mrf.mxu0
      %v5644 = vadd.f32 %v5074, %v5643
      %5645 = vmatmul.f32.gmra.mxu0 %v5025
      %v5646 = vpop.f32.mrf.mxu0
      %v5647 = vadd.f32 %v5074, %v5646
      %5648 = vmatmul.f32.gmra.mxu0 %v5026
      %v5649 = vpop.f32.mrf.mxu0
      %v5650 = vadd.f32 %v5074, %v5649
      %5651 = vmatmul.f32.gmra.mxu0 %v5027
      %v5652 = vpop.f32.mrf.mxu0
      %v5653 = vadd.f32 %v5074, %v5652
      %5654 = vmatmul.f32.gmra.mxu0 %v5028
      %v5655 = vpop.f32.mrf.mxu0
      %v5656 = vadd.f32 %v5074, %v5655
      %5657 = vmatmul.f32.gmra.mxu0 %v5029
      %v5658 = vpop.f32.mrf.mxu0
      %v5659 = vadd.f32 %v5074, %v5658
      %5660 = vmatmul.f32.gmra.mxu0 %v5030
      %v5661 = vpop.f32.mrf.mxu0
      %v5662 = vadd.f32 %v5074, %v5661
      %5663 = vmatmul.f32.gmra.mxu0 %v5031
      %v5664 = vpop.f32.mrf.mxu0
      %v5665 = vadd.f32 %v5074, %v5664
      %5666 = vmatmul.f32.gmra.mxu0 %v5032
      %v5667 = vpop.f32.mrf.mxu0
      %v5668 = vadd.f32 %v5074, %v5667
      %5669 = vmatmul.f32.gmra.mxu0 %v5033
      %v5670 = vpop.f32.mrf.mxu0
      %v5671 = vadd.f32 %v5074, %v5670
      %5672 = vmatmul.f32.gmra.mxu0 %v5034
      %v5673 = vpop.f32.mrf.mxu0
      %v5674 = vadd.f32 %v5074, %v5673
      %5675 = vmatmul.f32.gmra.mxu0 %v5035
      %v5676 = vpop.f32.mrf.mxu0
      %v5677 = vadd.f32 %v5074, %v5676
      %5678 = vmatmul.f32.gmra.mxu0 %v5036
      %v5679 = vpop.f32.mrf.mxu0
      %v5680 = vadd.f32 %v5074, %v5679
      %5681 = vmatmul.f32.gmra.mxu0 %v5037
      %v5682 = vpop.f32.mrf.mxu0
      %v5683 = vadd.f32 %v5074, %v5682
      %5684 = vmatmul.f32.gmra.mxu0 %v5038
      %v5685 = vpop.f32.mrf.mxu0
      %v5686 = vadd.f32 %v5074, %v5685
      %5687 = vmatmul.f32.gmra.mxu0 %v5039
      %v5688 = vpop.f32.mrf.mxu0
      %v5689 = vadd.f32 %v5074, %v5688
      %5690 = vmatmul.f32.gmra.mxu0 %v5040
      %v5691 = vpop.f32.mrf.mxu0
      %v5692 = vadd.f32 %v5074, %v5691
      %5693 = vmatmul.f32.gmra.mxu0 %v5041
      %v5694 = vpop.f32.mrf.mxu0
      %v5695 = vadd.f32 %v5074, %v5694
      %5696 = vmatmul.f32.gmra.mxu0 %v5042
      %v5697 = vpop.f32.mrf.mxu0
      %v5698 = vadd.f32 %v5074, %v5697
      %5699 = vmatmul.f32.gmra.mxu0 %v5043
      %v5700 = vpop.f32.mrf.mxu0
      %v5701 = vadd.f32 %v5074, %v5700
      %5702 = vmatmul.f32.gmra.mxu0 %v5044
      %v5703 = vpop.f32.mrf.mxu0
      %v5704 = vadd.f32 %v5074, %v5703
      %5705 = vmatmul.f32.gmra.mxu0 %v5045
      %v5706 = vpop.f32.mrf.mxu0
      %v5707 = vadd.f32 %v5074, %v5706
      %5708 = vmatmul.f32.gmra.mxu0 %v5046
      %v5709 = vpop.f32.mrf.mxu0
      %v5710 = vadd.f32 %v5074, %v5709
      %5711 = vmatmul.f32.gmra.mxu0 %v5047
      %v5712 = vpop.f32.mrf.mxu0
      %v5713 = vadd.f32 %v5074, %v5712
      %5714 = vmatmul.f32.gmra.mxu0 %v5048
      %v5715 = vpop.f32.mrf.mxu0
      %v5716 = vadd.f32 %v5074, %v5715
      %5717 = vmatmul.f32.gmra.mxu0 %v5049
      %v5718 = vpop.f32.mrf.mxu0
      %v5719 = vadd.f32 %v5074, %v5718
      %5720 = vmatmul.f32.gmra.mxu0 %v5050
      %v5721 = vpop.f32.mrf.mxu0
      %v5722 = vadd.f32 %v5074, %v5721
      %5723 = vmatmul.f32.gmra.mxu0 %v5051
      %v5724 = vpop.f32.mrf.mxu0
      %v5725 = vadd.f32 %v5074, %v5724
      %5726 = vmatmul.f32.gmra.mxu0 %v5052
      %v5727 = vpop.f32.mrf.mxu0
      %v5728 = vadd.f32 %v5074, %v5727
      %5729 = vmatmul.f32.gmra.mxu0 %v5053
      %v5730 = vpop.f32.mrf.mxu0
      %v5731 = vadd.f32 %v5074, %v5730
      %5732 = vdwg.mxu0
      %5733 = vmatpush.msra.mxu0 0.0
      %5734 = vmatpush.msra.mxu0 0.0
      %5735 = vmatpush.msra.mxu0 0.0
      %5736 = vmatpush.msra.mxu0 0.0
      %5737 = vmatpush.msra.mxu0 0.0
      %5738 = vmatpush.msra.mxu0 0.0
      %5739 = vmatpush.msra.mxu0 0.0
      %5740 = vmatpush.msra.mxu0 0.0
      %5741 = vmatpush.msra.mxu0 0.0
      %5742 = vmatpush.msra.mxu0 0.0
      %5743 = vmatpush.msra.mxu0 0.0
      %5744 = vmatpush.msra.mxu0 0.0
      %5745 = vmatpush.msra.mxu0 0.0
      %5746 = vmatpush.msra.mxu0 0.0
      %5747 = vmatpush.msra.mxu0 %v5071
      %5748 = vmatpush.msra.mxu0 %v5070
      %5749 = vmatmul.f32.gmra.mxu0 %v5076
      %v5750 = vpop.f32.mrf.mxu0
      %v5751 = vadd.f32 %v5350, %v5750
      %5752 = vmatmul.f32.gmra.mxu0 %v5078
      %v5753 = vpop.f32.mrf.mxu0
      %v5754 = vadd.f32 %v5353, %v5753
      %5755 = vmatmul.f32.gmra.mxu0 %v5080
      %v5756 = vpop.f32.mrf.mxu0
      %v5757 = vadd.f32 %v5356, %v5756
      %5758 = vmatmul.f32.gmra.mxu0 %v5082
      %v5759 = vpop.f32.mrf.mxu0
      %v5760 = vadd.f32 %v5359, %v5759
      %5761 = vmatmul.f32.gmra.mxu0 %v5084
      %v5762 = vpop.f32.mrf.mxu0
      %v5763 = vadd.f32 %v5362, %v5762
      %5764 = vmatmul.f32.gmra.mxu0 %v5086
      %v5765 = vpop.f32.mrf.mxu0
      %v5766 = vadd.f32 %v5365, %v5765
      %5767 = vmatmul.f32.gmra.mxu0 %v5088
      %v5768 = vpop.f32.mrf.mxu0
      %v5769 = vadd.f32 %v5368, %v5768
      %5770 = vmatmul.f32.gmra.mxu0 %v5090
      %v5771 = vpop.f32.mrf.mxu0
      %v5772 = vadd.f32 %v5371, %v5771
      %5773 = vmatmul.f32.gmra.mxu0 %v5092
      %v5774 = vpop.f32.mrf.mxu0
      %v5775 = vadd.f32 %v5374, %v5774
      %5776 = vmatmul.f32.gmra.mxu0 %v5094
      %v5777 = vpop.f32.mrf.mxu0
      %v5778 = vadd.f32 %v5377, %v5777
      %5779 = vmatmul.f32.gmra.mxu0 %v5096
      %v5780 = vpop.f32.mrf.mxu0
      %v5781 = vadd.f32 %v5380, %v5780
      %5782 = vmatmul.f32.gmra.mxu0 %v5098
      %v5783 = vpop.f32.mrf.mxu0
      %v5784 = vadd.f32 %v5383, %v5783
      %5785 = vmatmul.f32.gmra.mxu0 %v5100
      %v5786 = vpop.f32.mrf.mxu0
      %v5787 = vadd.f32 %v5386, %v5786
      %5788 = vmatmul.f32.gmra.mxu0 %v5102
      %v5789 = vpop.f32.mrf.mxu0
      %v5790 = vadd.f32 %v5389, %v5789
      %5791 = vmatmul.f32.gmra.mxu0 %v5104
      %v5792 = vpop.f32.mrf.mxu0
      %v5793 = vadd.f32 %v5392, %v5792
      %5794 = vmatmul.f32.gmra.mxu0 %v5106
      %v5795 = vpop.f32.mrf.mxu0
      %v5796 = vadd.f32 %v5395, %v5795
      %5797 = vmatmul.f32.gmra.mxu0 %v5108
      %v5798 = vpop.f32.mrf.mxu0
      %v5799 = vadd.f32 %v5398, %v5798
      %5800 = vmatmul.f32.gmra.mxu0 %v5110
      %v5801 = vpop.f32.mrf.mxu0
      %v5802 = vadd.f32 %v5401, %v5801
      %5803 = vmatmul.f32.gmra.mxu0 %v5112
      %v5804 = vpop.f32.mrf.mxu0
      %v5805 = vadd.f32 %v5404, %v5804
      %5806 = vmatmul.f32.gmra.mxu0 %v5114
      %v5807 = vpop.f32.mrf.mxu0
      %v5808 = vadd.f32 %v5407, %v5807
      %5809 = vmatmul.f32.gmra.mxu0 %v5116
      %v5810 = vpop.f32.mrf.mxu0
      %v5811 = vadd.f32 %v5410, %v5810
      %5812 = vmatmul.f32.gmra.mxu0 %v5118
      %v5813 = vpop.f32.mrf.mxu0
      %v5814 = vadd.f32 %v5413, %v5813
      %5815 = vmatmul.f32.gmra.mxu0 %v5120
      %v5816 = vpop.f32.mrf.mxu0
      %v5817 = vadd.f32 %v5416, %v5816
      %5818 = vmatmul.f32.gmra.mxu0 %v5122
      %v5819 = vpop.f32.mrf.mxu0
      %v5820 = vadd.f32 %v5419, %v5819
      %5821 = vmatmul.f32.gmra.mxu0 %v5124
      %v5822 = vpop.f32.mrf.mxu0
      %v5823 = vadd.f32 %v5422, %v5822
      %5824 = vmatmul.f32.gmra.mxu0 %v5126
      %v5825 = vpop.f32.mrf.mxu0
      %v5826 = vadd.f32 %v5425, %v5825
      %5827 = vmatmul.f32.gmra.mxu0 %v5128
      %v5828 = vpop.f32.mrf.mxu0
      %v5829 = vadd.f32 %v5428, %v5828
      %5830 = vmatmul.f32.gmra.mxu0 %v5130
      %v5831 = vpop.f32.mrf.mxu0
      %v5832 = vadd.f32 %v5431, %v5831
      %5833 = vmatmul.f32.gmra.mxu0 %v5132
      %v5834 = vpop.f32.mrf.mxu0
      %v5835 = vadd.f32 %v5434, %v5834
      %5836 = vmatmul.f32.gmra.mxu0 %v5134
      %v5837 = vpop.f32.mrf.mxu0
      %v5838 = vadd.f32 %v5437, %v5837
      %5839 = vmatmul.f32.gmra.mxu0 %v5136
      %v5840 = vpop.f32.mrf.mxu0
      %v5841 = vadd.f32 %v5440, %v5840
      %5842 = vmatmul.f32.gmra.mxu0 %v5138
      %v5843 = vpop.f32.mrf.mxu0
      %v5844 = vadd.f32 %v5443, %v5843
      %5845 = vmatmul.f32.gmra.mxu0 %v5140
      %v5846 = vpop.f32.mrf.mxu0
      %v5847 = vadd.f32 %v5446, %v5846
      %5848 = vmatmul.f32.gmra.mxu0 %v5142
      %v5849 = vpop.f32.mrf.mxu0
      %v5850 = vadd.f32 %v5449, %v5849
      %5851 = vmatmul.f32.gmra.mxu0 %v5144
      %v5852 = vpop.f32.mrf.mxu0
      %v5853 = vadd.f32 %v5452, %v5852
      %5854 = vmatmul.f32.gmra.mxu0 %v5146
      %v5855 = vpop.f32.mrf.mxu0
      %v5856 = vadd.f32 %v5455, %v5855
      %5857 = vmatmul.f32.gmra.mxu0 %v5148
      %v5858 = vpop.f32.mrf.mxu0
      %v5859 = vadd.f32 %v5458, %v5858
      %5860 = vmatmul.f32.gmra.mxu0 %v5150
      %v5861 = vpop.f32.mrf.mxu0
      %v5862 = vadd.f32 %v5461, %v5861
      %5863 = vmatmul.f32.gmra.mxu0 %v5152
      %v5864 = vpop.f32.mrf.mxu0
      %v5865 = vadd.f32 %v5464, %v5864
      %5866 = vmatmul.f32.gmra.mxu0 %v5154
      %v5867 = vpop.f32.mrf.mxu0
      %v5868 = vadd.f32 %v5467, %v5867
      %5869 = vmatmul.f32.gmra.mxu0 %v5156
      %v5870 = vpop.f32.mrf.mxu0
      %v5871 = vadd.f32 %v5470, %v5870
      %5872 = vmatmul.f32.gmra.mxu0 %v5158
      %v5873 = vpop.f32.mrf.mxu0
      %v5874 = vadd.f32 %v5473, %v5873
      %5875 = vmatmul.f32.gmra.mxu0 %v5160
      %v5876 = vpop.f32.mrf.mxu0
      %v5877 = vadd.f32 %v5476, %v5876
      %5878 = vmatmul.f32.gmra.mxu0 %v5162
      %v5879 = vpop.f32.mrf.mxu0
      %v5880 = vadd.f32 %v5479, %v5879
      %5881 = vmatmul.f32.gmra.mxu0 %v5164
      %v5882 = vpop.f32.mrf.mxu0
      %v5883 = vadd.f32 %v5482, %v5882
      %5884 = vmatmul.f32.gmra.mxu0 %v5166
      %v5885 = vpop.f32.mrf.mxu0
      %v5886 = vadd.f32 %v5485, %v5885
      %5887 = vmatmul.f32.gmra.mxu0 %v5168
      %v5888 = vpop.f32.mrf.mxu0
      %v5889 = vadd.f32 %v5488, %v5888
      %5890 = vmatmul.f32.gmra.mxu0 %v5170
      %v5891 = vpop.f32.mrf.mxu0
      %v5892 = vadd.f32 %v5491, %v5891
      %5893 = vmatmul.f32.gmra.mxu0 %v5172
      %v5894 = vpop.f32.mrf.mxu0
      %v5895 = vadd.f32 %v5494, %v5894
      %5896 = vmatmul.f32.gmra.mxu0 %v5174
      %v5897 = vpop.f32.mrf.mxu0
      %v5898 = vadd.f32 %v5497, %v5897
      %5899 = vmatmul.f32.gmra.mxu0 %v5176
      %v5900 = vpop.f32.mrf.mxu0
      %v5901 = vadd.f32 %v5500, %v5900
      %5902 = vmatmul.f32.gmra.mxu0 %v5178
      %v5903 = vpop.f32.mrf.mxu0
      %v5904 = vadd.f32 %v5503, %v5903
      %5905 = vmatmul.f32.gmra.mxu0 %v5180
      %v5906 = vpop.f32.mrf.mxu0
      %v5907 = vadd.f32 %v5506, %v5906
      %5908 = vmatmul.f32.gmra.mxu0 %v5182
      %v5909 = vpop.f32.mrf.mxu0
      %v5910 = vadd.f32 %v5509, %v5909
      %5911 = vmatmul.f32.gmra.mxu0 %v5184
      %v5912 = vpop.f32.mrf.mxu0
      %v5913 = vadd.f32 %v5512, %v5912
      %5914 = vmatmul.f32.gmra.mxu0 %v5186
      %v5915 = vpop.f32.mrf.mxu0
      %v5916 = vadd.f32 %v5515, %v5915
      %5917 = vmatmul.f32.gmra.mxu0 %v5188
      %v5918 = vpop.f32.mrf.mxu0
      %v5919 = vadd.f32 %v5518, %v5918
      %5920 = vmatmul.f32.gmra.mxu0 %v5190
      %v5921 = vpop.f32.mrf.mxu0
      %v5922 = vadd.f32 %v5521, %v5921
      %5923 = vmatmul.f32.gmra.mxu0 %v5192
      %v5924 = vpop.f32.mrf.mxu0
      %v5925 = vadd.f32 %v5524, %v5924
      %5926 = vmatmul.f32.gmra.mxu0 %v5194
      %v5927 = vpop.f32.mrf.mxu0
      %v5928 = vadd.f32 %v5527, %v5927
      %5929 = vmatmul.f32.gmra.mxu0 %v5196
      %v5930 = vpop.f32.mrf.mxu0
      %v5931 = vadd.f32 %v5530, %v5930
      %5932 = vmatmul.f32.gmra.mxu0 %v5198
      %v5933 = vpop.f32.mrf.mxu0
      %v5934 = vadd.f32 %v5533, %v5933
      %5935 = vmatmul.f32.gmra.mxu0 %v5200
      %v5936 = vpop.f32.mrf.mxu0
      %v5937 = vadd.f32 %v5536, %v5936
      %5938 = vmatmul.f32.gmra.mxu0 %v5202
      %v5939 = vpop.f32.mrf.mxu0
      %v5940 = vadd.f32 %v5539, %v5939
      %5941 = vmatmul.f32.gmra.mxu0 %v5204
      %v5942 = vpop.f32.mrf.mxu0
      %v5943 = vadd.f32 %v5542, %v5942
      %5944 = vmatmul.f32.gmra.mxu0 %v5206
      %v5945 = vpop.f32.mrf.mxu0
      %v5946 = vadd.f32 %v5545, %v5945
      %5947 = vmatmul.f32.gmra.mxu0 %v5208
      %v5948 = vpop.f32.mrf.mxu0
      %v5949 = vadd.f32 %v5548, %v5948
      %5950 = vmatmul.f32.gmra.mxu0 %v5210
      %v5951 = vpop.f32.mrf.mxu0
      %v5952 = vadd.f32 %v5551, %v5951
      %5953 = vmatmul.f32.gmra.mxu0 %v5212
      %v5954 = vpop.f32.mrf.mxu0
      %v5955 = vadd.f32 %v5554, %v5954
      %5956 = vmatmul.f32.gmra.mxu0 %v5214
      %v5957 = vpop.f32.mrf.mxu0
      %v5958 = vadd.f32 %v5557, %v5957
      %5959 = vmatmul.f32.gmra.mxu0 %v5216
      %v5960 = vpop.f32.mrf.mxu0
      %v5961 = vadd.f32 %v5560, %v5960
      %5962 = vmatmul.f32.gmra.mxu0 %v5218
      %v5963 = vpop.f32.mrf.mxu0
      %v5964 = vadd.f32 %v5563, %v5963
      %5965 = vmatmul.f32.gmra.mxu0 %v5220
      %v5966 = vpop.f32.mrf.mxu0
      %v5967 = vadd.f32 %v5566, %v5966
      %5968 = vmatmul.f32.gmra.mxu0 %v5222
      %v5969 = vpop.f32.mrf.mxu0
      %v5970 = vadd.f32 %v5569, %v5969
      %5971 = vmatmul.f32.gmra.mxu0 %v5224
      %v5972 = vpop.f32.mrf.mxu0
      %v5973 = vadd.f32 %v5572, %v5972
      %5974 = vmatmul.f32.gmra.mxu0 %v5226
      %v5975 = vpop.f32.mrf.mxu0
      %v5976 = vadd.f32 %v5575, %v5975
      %5977 = vmatmul.f32.gmra.mxu0 %v5228
      %v5978 = vpop.f32.mrf.mxu0
      %v5979 = vadd.f32 %v5578, %v5978
      %5980 = vmatmul.f32.gmra.mxu0 %v5230
      %v5981 = vpop.f32.mrf.mxu0
      %v5982 = vadd.f32 %v5581, %v5981
      %5983 = vmatmul.f32.gmra.mxu0 %v5232
      %v5984 = vpop.f32.mrf.mxu0
      %v5985 = vadd.f32 %v5584, %v5984
      %5986 = vmatmul.f32.gmra.mxu0 %v5234
      %v5987 = vpop.f32.mrf.mxu0
      %v5988 = vadd.f32 %v5587, %v5987
      %5989 = vmatmul.f32.gmra.mxu0 %v5236
      %v5990 = vpop.f32.mrf.mxu0
      %v5991 = vadd.f32 %v5590, %v5990
      %5992 = vmatmul.f32.gmra.mxu0 %v5238
      %v5993 = vpop.f32.mrf.mxu0
      %v5994 = vadd.f32 %v5593, %v5993
      %5995 = vmatmul.f32.gmra.mxu0 %v5240
      %v5996 = vpop.f32.mrf.mxu0
      %v5997 = vadd.f32 %v5596, %v5996
      %5998 = vmatmul.f32.gmra.mxu0 %v5242
      %v5999 = vpop.f32.mrf.mxu0
      %v6000 = vadd.f32 %v5599, %v5999
      %6001 = vmatmul.f32.gmra.mxu0 %v5244
      %v6002 = vpop.f32.mrf.mxu0
      %v6003 = vadd.f32 %v5602, %v6002
      %6004 = vmatmul.f32.gmra.mxu0 %v5246
      %v6005 = vpop.f32.mrf.mxu0
      %v6006 = vadd.f32 %v5605, %v6005
      %6007 = vmatmul.f32.gmra.mxu0 %v5248
      %v6008 = vpop.f32.mrf.mxu0
      %v6009 = vadd.f32 %v5608, %v6008
      %6010 = vmatmul.f32.gmra.mxu0 %v5250
      %v6011 = vpop.f32.mrf.mxu0
      %v6012 = vadd.f32 %v5611, %v6011
      %6013 = vmatmul.f32.gmra.mxu0 %v5252
      %v6014 = vpop.f32.mrf.mxu0
      %v6015 = vadd.f32 %v5614, %v6014
      %6016 = vmatmul.f32.gmra.mxu0 %v5254
      %v6017 = vpop.f32.mrf.mxu0
      %v6018 = vadd.f32 %v5617, %v6017
      %6019 = vmatmul.f32.gmra.mxu0 %v5256
      %v6020 = vpop.f32.mrf.mxu0
      %v6021 = vadd.f32 %v5620, %v6020
      %6022 = vmatmul.f32.gmra.mxu0 %v5258
      %v6023 = vpop.f32.mrf.mxu0
      %v6024 = vadd.f32 %v5623, %v6023
      %6025 = vmatmul.f32.gmra.mxu0 %v5260
      %v6026 = vpop.f32.mrf.mxu0
      %v6027 = vadd.f32 %v5626, %v6026
      %6028 = vmatmul.f32.gmra.mxu0 %v5262
      %v6029 = vpop.f32.mrf.mxu0
      %v6030 = vadd.f32 %v5629, %v6029
      %6031 = vmatmul.f32.gmra.mxu0 %v5264
      %v6032 = vpop.f32.mrf.mxu0
      %v6033 = vadd.f32 %v5632, %v6032
      %6034 = vmatmul.f32.gmra.mxu0 %v5266
      %v6035 = vpop.f32.mrf.mxu0
      %v6036 = vadd.f32 %v5635, %v6035
      %6037 = vmatmul.f32.gmra.mxu0 %v5268
      %v6038 = vpop.f32.mrf.mxu0
      %v6039 = vadd.f32 %v5638, %v6038
      %6040 = vmatmul.f32.gmra.mxu0 %v5270
      %v6041 = vpop.f32.mrf.mxu0
      %v6042 = vadd.f32 %v5641, %v6041
      %6043 = vmatmul.f32.gmra.mxu0 %v5272
      %v6044 = vpop.f32.mrf.mxu0
      %v6045 = vadd.f32 %v5644, %v6044
      %6046 = vmatmul.f32.gmra.mxu0 %v5274
      %v6047 = vpop.f32.mrf.mxu0
      %v6048 = vadd.f32 %v5647, %v6047
      %6049 = vmatmul.f32.gmra.mxu0 %v5276
      %v6050 = vpop.f32.mrf.mxu0
      %v6051 = vadd.f32 %v5650, %v6050
      %6052 = vmatmul.f32.gmra.mxu0 %v5278
      %v6053 = vpop.f32.mrf.mxu0
      %v6054 = vadd.f32 %v5653, %v6053
      %6055 = vmatmul.f32.gmra.mxu0 %v5280
      %v6056 = vpop.f32.mrf.mxu0
      %v6057 = vadd.f32 %v5656, %v6056
      %6058 = vmatmul.f32.gmra.mxu0 %v5282
      %v6059 = vpop.f32.mrf.mxu0
      %v6060 = vadd.f32 %v5659, %v6059
      %6061 = vmatmul.f32.gmra.mxu0 %v5284
      %v6062 = vpop.f32.mrf.mxu0
      %v6063 = vadd.f32 %v5662, %v6062
      %6064 = vmatmul.f32.gmra.mxu0 %v5286
      %v6065 = vpop.f32.mrf.mxu0
      %v6066 = vadd.f32 %v5665, %v6065
      %6067 = vmatmul.f32.gmra.mxu0 %v5288
      %v6068 = vpop.f32.mrf.mxu0
      %v6069 = vadd.f32 %v5668, %v6068
      %6070 = vmatmul.f32.gmra.mxu0 %v5290
      %v6071 = vpop.f32.mrf.mxu0
      %v6072 = vadd.f32 %v5671, %v6071
      %6073 = vmatmul.f32.gmra.mxu0 %v5292
      %v6074 = vpop.f32.mrf.mxu0
      %v6075 = vadd.f32 %v5674, %v6074
      %6076 = vmatmul.f32.gmra.mxu0 %v5294
      %v6077 = vpop.f32.mrf.mxu0
      %v6078 = vadd.f32 %v5677, %v6077
      %6079 = vmatmul.f32.gmra.mxu0 %v5296
      %v6080 = vpop.f32.mrf.mxu0
      %v6081 = vadd.f32 %v5680, %v6080
      %6082 = vmatmul.f32.gmra.mxu0 %v5298
      %v6083 = vpop.f32.mrf.mxu0
      %v6084 = vadd.f32 %v5683, %v6083
      %6085 = vmatmul.f32.gmra.mxu0 %v5300
      %v6086 = vpop.f32.mrf.mxu0
      %v6087 = vadd.f32 %v5686, %v6086
      %6088 = vmatmul.f32.gmra.mxu0 %v5302
      %v6089 = vpop.f32.mrf.mxu0
      %v6090 = vadd.f32 %v5689, %v6089
      %6091 = vmatmul.f32.gmra.mxu0 %v5304
      %v6092 = vpop.f32.mrf.mxu0
      %v6093 = vadd.f32 %v5692, %v6092
      %6094 = vmatmul.f32.gmra.mxu0 %v5306
      %v6095 = vpop.f32.mrf.mxu0
      %v6096 = vadd.f32 %v5695, %v6095
      %6097 = vmatmul.f32.gmra.mxu0 %v5308
      %v6098 = vpop.f32.mrf.mxu0
      %v6099 = vadd.f32 %v5698, %v6098
      %6100 = vmatmul.f32.gmra.mxu0 %v5310
      %v6101 = vpop.f32.mrf.mxu0
      %v6102 = vadd.f32 %v5701, %v6101
      %6103 = vmatmul.f32.gmra.mxu0 %v5312
      %v6104 = vpop.f32.mrf.mxu0
      %v6105 = vadd.f32 %v5704, %v6104
      %6106 = vmatmul.f32.gmra.mxu0 %v5314
      %v6107 = vpop.f32.mrf.mxu0
      %v6108 = vadd.f32 %v5707, %v6107
      %6109 = vmatmul.f32.gmra.mxu0 %v5316
      %v6110 = vpop.f32.mrf.mxu0
      %v6111 = vadd.f32 %v5710, %v6110
      %6112 = vmatmul.f32.gmra.mxu0 %v5318
      %v6113 = vpop.f32.mrf.mxu0
      %v6114 = vadd.f32 %v5713, %v6113
      %6115 = vmatmul.f32.gmra.mxu0 %v5320
      %v6116 = vpop.f32.mrf.mxu0
      %v6117 = vadd.f32 %v5716, %v6116
      %6118 = vmatmul.f32.gmra.mxu0 %v5322
      %v6119 = vpop.f32.mrf.mxu0
      %v6120 = vadd.f32 %v5719, %v6119
      %6121 = vmatmul.f32.gmra.mxu0 %v5324
      %v6122 = vpop.f32.mrf.mxu0
      %v6123 = vadd.f32 %v5722, %v6122
      %6124 = vmatmul.f32.gmra.mxu0 %v5326
      %v6125 = vpop.f32.mrf.mxu0
      %v6126 = vadd.f32 %v5725, %v6125
      %6127 = vmatmul.f32.gmra.mxu0 %v5328
      %v6128 = vpop.f32.mrf.mxu0
      %v6129 = vadd.f32 %v5728, %v6128
      %6130 = vmatmul.f32.gmra.mxu0 %v5330
      %v6131 = vpop.f32.mrf.mxu0
      %v6132 = vadd.f32 %v5731, %v6131
      %6133 = vdwg.mxu0
      %v6134 = vmax.f32 %v5751, 0.0
      %v6135 = vmax.f32 %v5754, 0.0
      %v6136 = vmax.f32 %v5757, 0.0
      %v6137 = vmax.f32 %v5760, 0.0
      %v6138 = vmax.f32 %v5763, 0.0
      %v6139 = vmax.f32 %v5766, 0.0
      %v6140 = vmax.f32 %v5769, 0.0
      %v6141 = vmax.f32 %v5772, 0.0
      %v6142 = vmax.f32 %v5775, 0.0
      %v6143 = vmax.f32 %v5778, 0.0
      %v6144 = vmax.f32 %v5781, 0.0
      %v6145 = vmax.f32 %v5784, 0.0
      %v6146 = vmax.f32 %v5787, 0.0
      %v6147 = vmax.f32 %v5790, 0.0
      %v6148 = vmax.f32 %v5793, 0.0
      %v6149 = vmax.f32 %v5796, 0.0
      %v6150 = vmax.f32 %v5799, 0.0
      %v6151 = vmax.f32 %v5802, 0.0
      %v6152 = vmax.f32 %v5805, 0.0
      %v6153 = vmax.f32 %v5808, 0.0
      %v6154 = vmax.f32 %v5811, 0.0
      %v6155 = vmax.f32 %v5814, 0.0
      %v6156 = vmax.f32 %v5817, 0.0
      %v6157 = vmax.f32 %v5820, 0.0
      %v6158 = vmax.f32 %v5823, 0.0
      %v6159 = vmax.f32 %v5826, 0.0
      %v6160 = vmax.f32 %v5829, 0.0
      %v6161 = vmax.f32 %v5832, 0.0
      %v6162 = vmax.f32 %v5835, 0.0
      %v6163 = vmax.f32 %v5838, 0.0
      %v6164 = vmax.f32 %v5841, 0.0
      %v6165 = vmax.f32 %v5844, 0.0
      %v6166 = vmax.f32 %v5847, 0.0
      %v6167 = vmax.f32 %v5850, 0.0
      %v6168 = vmax.f32 %v5853, 0.0
      %v6169 = vmax.f32 %v5856, 0.0
      %v6170 = vmax.f32 %v5859, 0.0
      %v6171 = vmax.f32 %v5862, 0.0
      %v6172 = vmax.f32 %v5865, 0.0
      %v6173 = vmax.f32 %v5868, 0.0
      %v6174 = vmax.f32 %v5871, 0.0
      %v6175 = vmax.f32 %v5874, 0.0
      %v6176 = vmax.f32 %v5877, 0.0
      %v6177 = vmax.f32 %v5880, 0.0
      %v6178 = vmax.f32 %v5883, 0.0
      %v6179 = vmax.f32 %v5886, 0.0
      %v6180 = vmax.f32 %v5889, 0.0
      %v6181 = vmax.f32 %v5892, 0.0
      %v6182 = vmax.f32 %v5895, 0.0
      %v6183 = vmax.f32 %v5898, 0.0
      %v6184 = vmax.f32 %v5901, 0.0
      %v6185 = vmax.f32 %v5904, 0.0
      %v6186 = vmax.f32 %v5907, 0.0
      %v6187 = vmax.f32 %v5910, 0.0
      %v6188 = vmax.f32 %v5913, 0.0
      %v6189 = vmax.f32 %v5916, 0.0
      %v6190 = vmax.f32 %v5919, 0.0
      %v6191 = vmax.f32 %v5922, 0.0
      %v6192 = vmax.f32 %v5925, 0.0
      %v6193 = vmax.f32 %v5928, 0.0
      %v6194 = vmax.f32 %v5931, 0.0
      %v6195 = vmax.f32 %v5934, 0.0
      %v6196 = vmax.f32 %v5937, 0.0
      %v6197 = vmax.f32 %v5940, 0.0
      %v6198 = vmax.f32 %v5943, 0.0
      %v6199 = vmax.f32 %v5946, 0.0
      %v6200 = vmax.f32 %v5949, 0.0
      %v6201 = vmax.f32 %v5952, 0.0
      %v6202 = vmax.f32 %v5955, 0.0
      %v6203 = vmax.f32 %v5958, 0.0
      %v6204 = vmax.f32 %v5961, 0.0
      %v6205 = vmax.f32 %v5964, 0.0
      %v6206 = vmax.f32 %v5967, 0.0
      %v6207 = vmax.f32 %v5970, 0.0
      %v6208 = vmax.f32 %v5973, 0.0
      %v6209 = vmax.f32 %v5976, 0.0
      %v6210 = vmax.f32 %v5979, 0.0
      %v6211 = vmax.f32 %v5982, 0.0
      %v6212 = vmax.f32 %v5985, 0.0
      %v6213 = vmax.f32 %v5988, 0.0
      %v6214 = vmax.f32 %v5991, 0.0
      %v6215 = vmax.f32 %v5994, 0.0
      %v6216 = vmax.f32 %v5997, 0.0
      %v6217 = vmax.f32 %v6000, 0.0
      %v6218 = vmax.f32 %v6003, 0.0
      %v6219 = vmax.f32 %v6006, 0.0
      %v6220 = vmax.f32 %v6009, 0.0
      %v6221 = vmax.f32 %v6012, 0.0
      %v6222 = vmax.f32 %v6015, 0.0
      %v6223 = vmax.f32 %v6018, 0.0
      %v6224 = vmax.f32 %v6021, 0.0
      %v6225 = vmax.f32 %v6024, 0.0
      %v6226 = vmax.f32 %v6027, 0.0
      %v6227 = vmax.f32 %v6030, 0.0
      %v6228 = vmax.f32 %v6033, 0.0
      %v6229 = vmax.f32 %v6036, 0.0
      %v6230 = vmax.f32 %v6039, 0.0
      %v6231 = vmax.f32 %v6042, 0.0
      %v6232 = vmax.f32 %v6045, 0.0
      %v6233 = vmax.f32 %v6048, 0.0
      %v6234 = vmax.f32 %v6051, 0.0
      %v6235 = vmax.f32 %v6054, 0.0
      %v6236 = vmax.f32 %v6057, 0.0
      %v6237 = vmax.f32 %v6060, 0.0
      %v6238 = vmax.f32 %v6063, 0.0
      %v6239 = vmax.f32 %v6066, 0.0
      %v6240 = vmax.f32 %v6069, 0.0
      %v6241 = vmax.f32 %v6072, 0.0
      %v6242 = vmax.f32 %v6075, 0.0
      %v6243 = vmax.f32 %v6078, 0.0
      %v6244 = vmax.f32 %v6081, 0.0
      %v6245 = vmax.f32 %v6084, 0.0
      %v6246 = vmax.f32 %v6087, 0.0
      %v6247 = vmax.f32 %v6090, 0.0
      %v6248 = vmax.f32 %v6093, 0.0
      %v6249 = vmax.f32 %v6096, 0.0
      %v6250 = vmax.f32 %v6099, 0.0
      %v6251 = vmax.f32 %v6102, 0.0
      %v6252 = vmax.f32 %v6105, 0.0
      %v6253 = vmax.f32 %v6108, 0.0
      %v6254 = vmax.f32 %v6111, 0.0
      %v6255 = vmax.f32 %v6114, 0.0
      %v6256 = vmax.f32 %v6117, 0.0
      %v6257 = vmax.f32 %v6120, 0.0
      %v6258 = vmax.f32 %v6123, 0.0
      %v6259 = vmax.f32 %v6126, 0.0
      %v6260 = vmax.f32 %v6129, 0.0
      %v6261 = vmax.f32 %v6132, 0.0
      %6262 = vst.msk [vmem:[%s170] sm:$0xff] %vm4280, %v6134
      %6263 = vst.msk [vmem:[%s170 + $0x8] sm:$0xff] %vm4280, %v6135
      %6264 = vst.msk [vmem:[%s170 + $0x10] sm:$0xff] %vm4280, %v6136
      %6265 = vst.msk [vmem:[%s170 + $0x18] sm:$0xff] %vm4280, %v6137
      %6266 = vst.msk [vmem:[%s170 + $0x40] sm:$0xff] %vm4280, %v6138
      %6267 = vst.msk [vmem:[%s170 + $0x48] sm:$0xff] %vm4280, %v6139
      %6268 = vst.msk [vmem:[%s170 + $0x50] sm:$0xff] %vm4280, %v6140
      %6269 = vst.msk [vmem:[%s170 + $0x58] sm:$0xff] %vm4280, %v6141
      %6270 = vst.msk [vmem:[%s170 + $0x80] sm:$0xff] %vm4280, %v6142
      %6271 = vst.msk [vmem:[%s170 + $0x88] sm:$0xff] %vm4280, %v6143
      %6272 = vst.msk [vmem:[%s170 + $0x90] sm:$0xff] %vm4280, %v6144
      %6273 = vst.msk [vmem:[%s170 + $0x98] sm:$0xff] %vm4280, %v6145
      %6274 = vst.msk [vmem:[%s170 + $0xc0] sm:$0xff] %vm4280, %v6146
      %6275 = vst.msk [vmem:[%s170 + $0xc8] sm:$0xff] %vm4280, %v6147
      %6276 = vst.msk [vmem:[%s170 + $0xd0] sm:$0xff] %vm4280, %v6148
      %6277 = vst.msk [vmem:[%s170 + $0xd8] sm:$0xff] %vm4280, %v6149
      %6278 = vst.msk [vmem:[%s170 + $0x100] sm:$0xff] %vm4280, %v6150
      %6279 = vst.msk [vmem:[%s170 + $0x108] sm:$0xff] %vm4280, %v6151
      %6280 = vst.msk [vmem:[%s170 + $0x110] sm:$0xff] %vm4280, %v6152
      %6281 = vst.msk [vmem:[%s170 + $0x118] sm:$0xff] %vm4280, %v6153
      %6282 = vst.msk [vmem:[%s170 + $0x140] sm:$0xff] %vm4280, %v6154
      %6283 = vst.msk [vmem:[%s170 + $0x148] sm:$0xff] %vm4280, %v6155
      %6284 = vst.msk [vmem:[%s170 + $0x150] sm:$0xff] %vm4280, %v6156
      %6285 = vst.msk [vmem:[%s170 + $0x158] sm:$0xff] %vm4280, %v6157
      %6286 = vst.msk [vmem:[%s170 + $0x180] sm:$0xff] %vm4280, %v6158
      %6287 = vst.msk [vmem:[%s170 + $0x188] sm:$0xff] %vm4280, %v6159
      %6288 = vst.msk [vmem:[%s170 + $0x190] sm:$0xff] %vm4280, %v6160
      %6289 = vst.msk [vmem:[%s170 + $0x198] sm:$0xff] %vm4280, %v6161
      %6290 = vst.msk [vmem:[%s170 + $0x1c0] sm:$0xff] %vm4280, %v6162
      %6291 = vst.msk [vmem:[%s170 + $0x1c8] sm:$0xff] %vm4280, %v6163
      %6292 = vst.msk [vmem:[%s170 + $0x1d0] sm:$0xff] %vm4280, %v6164
      %6293 = vst.msk [vmem:[%s170 + $0x1d8] sm:$0xff] %vm4280, %v6165
      %6294 = vst.msk [vmem:[%s170 + $0x200] sm:$0xff] %vm4280, %v6166
      %6295 = vst.msk [vmem:[%s170 + $0x208] sm:$0xff] %vm4280, %v6167
      %6296 = vst.msk [vmem:[%s170 + $0x210] sm:$0xff] %vm4280, %v6168
      %6297 = vst.msk [vmem:[%s170 + $0x218] sm:$0xff] %vm4280, %v6169
      %6298 = vst.msk [vmem:[%s170 + $0x240] sm:$0xff] %vm4280, %v6170
      %6299 = vst.msk [vmem:[%s170 + $0x248] sm:$0xff] %vm4280, %v6171
      %6300 = vst.msk [vmem:[%s170 + $0x250] sm:$0xff] %vm4280, %v6172
      %6301 = vst.msk [vmem:[%s170 + $0x258] sm:$0xff] %vm4280, %v6173
      %6302 = vst.msk [vmem:[%s170 + $0x280] sm:$0xff] %vm4280, %v6174
      %6303 = vst.msk [vmem:[%s170 + $0x288] sm:$0xff] %vm4280, %v6175
      %6304 = vst.msk [vmem:[%s170 + $0x290] sm:$0xff] %vm4280, %v6176
      %6305 = vst.msk [vmem:[%s170 + $0x298] sm:$0xff] %vm4280, %v6177
      %6306 = vst.msk [vmem:[%s170 + $0x2c0] sm:$0xff] %vm4280, %v6178
      %6307 = vst.msk [vmem:[%s170 + $0x2c8] sm:$0xff] %vm4280, %v6179
      %6308 = vst.msk [vmem:[%s170 + $0x2d0] sm:$0xff] %vm4280, %v6180
      %6309 = vst.msk [vmem:[%s170 + $0x2d8] sm:$0xff] %vm4280, %v6181
      %6310 = vst.msk [vmem:[%s170 + $0x300] sm:$0xff] %vm4280, %v6182
      %6311 = vst.msk [vmem:[%s170 + $0x308] sm:$0xff] %vm4280, %v6183
      %6312 = vst.msk [vmem:[%s170 + $0x310] sm:$0xff] %vm4280, %v6184
      %6313 = vst.msk [vmem:[%s170 + $0x318] sm:$0xff] %vm4280, %v6185
      %6314 = vst.msk [vmem:[%s170 + $0x340] sm:$0xff] %vm4280, %v6186
      %6315 = vst.msk [vmem:[%s170 + $0x348] sm:$0xff] %vm4280, %v6187
      %6316 = vst.msk [vmem:[%s170 + $0x350] sm:$0xff] %vm4280, %v6188
      %6317 = vst.msk [vmem:[%s170 + $0x358] sm:$0xff] %vm4280, %v6189
      %6318 = vst.msk [vmem:[%s170 + $0x380] sm:$0xff] %vm4280, %v6190
      %6319 = vst.msk [vmem:[%s170 + $0x388] sm:$0xff] %vm4280, %v6191
      %6320 = vst.msk [vmem:[%s170 + $0x390] sm:$0xff] %vm4280, %v6192
      %6321 = vst.msk [vmem:[%s170 + $0x398] sm:$0xff] %vm4280, %v6193
      %6322 = vst.msk [vmem:[%s170 + $0x3c0] sm:$0xff] %vm4280, %v6194
      %6323 = vst.msk [vmem:[%s170 + $0x3c8] sm:$0xff] %vm4280, %v6195
      %6324 = vst.msk [vmem:[%s170 + $0x3d0] sm:$0xff] %vm4280, %v6196
      %6325 = vst.msk [vmem:[%s170 + $0x3d8] sm:$0xff] %vm4280, %v6197
      %6326 = vst.msk [vmem:[%s170 + $0x400] sm:$0xff] %vm4280, %v6198
      %6327 = vst.msk [vmem:[%s170 + $0x408] sm:$0xff] %vm4280, %v6199
      %6328 = vst.msk [vmem:[%s170 + $0x410] sm:$0xff] %vm4280, %v6200
      %6329 = vst.msk [vmem:[%s170 + $0x418] sm:$0xff] %vm4280, %v6201
      %6330 = vst.msk [vmem:[%s170 + $0x440] sm:$0xff] %vm4280, %v6202
      %6331 = vst.msk [vmem:[%s170 + $0x448] sm:$0xff] %vm4280, %v6203
      %6332 = vst.msk [vmem:[%s170 + $0x450] sm:$0xff] %vm4280, %v6204
      %6333 = vst.msk [vmem:[%s170 + $0x458] sm:$0xff] %vm4280, %v6205
      %6334 = vst.msk [vmem:[%s170 + $0x480] sm:$0xff] %vm4280, %v6206
      %6335 = vst.msk [vmem:[%s170 + $0x488] sm:$0xff] %vm4280, %v6207
      %6336 = vst.msk [vmem:[%s170 + $0x490] sm:$0xff] %vm4280, %v6208
      %6337 = vst.msk [vmem:[%s170 + $0x498] sm:$0xff] %vm4280, %v6209
      %6338 = vst.msk [vmem:[%s170 + $0x4c0] sm:$0xff] %vm4280, %v6210
      %6339 = vst.msk [vmem:[%s170 + $0x4c8] sm:$0xff] %vm4280, %v6211
      %6340 = vst.msk [vmem:[%s170 + $0x4d0] sm:$0xff] %vm4280, %v6212
      %6341 = vst.msk [vmem:[%s170 + $0x4d8] sm:$0xff] %vm4280, %v6213
      %6342 = vst.msk [vmem:[%s170 + $0x500] sm:$0xff] %vm4280, %v6214
      %6343 = vst.msk [vmem:[%s170 + $0x508] sm:$0xff] %vm4280, %v6215
      %6344 = vst.msk [vmem:[%s170 + $0x510] sm:$0xff] %vm4280, %v6216
      %6345 = vst.msk [vmem:[%s170 + $0x518] sm:$0xff] %vm4280, %v6217
      %6346 = vst.msk [vmem:[%s170 + $0x540] sm:$0xff] %vm4280, %v6218
      %6347 = vst.msk [vmem:[%s170 + $0x548] sm:$0xff] %vm4280, %v6219
      %6348 = vst.msk [vmem:[%s170 + $0x550] sm:$0xff] %vm4280, %v6220
      %6349 = vst.msk [vmem:[%s170 + $0x558] sm:$0xff] %vm4280, %v6221
      %6350 = vst.msk [vmem:[%s170 + $0x580] sm:$0xff] %vm4280, %v6222
      %6351 = vst.msk [vmem:[%s170 + $0x588] sm:$0xff] %vm4280, %v6223
      %6352 = vst.msk [vmem:[%s170 + $0x590] sm:$0xff] %vm4280, %v6224
      %6353 = vst.msk [vmem:[%s170 + $0x598] sm:$0xff] %vm4280, %v6225
      %6354 = vst.msk [vmem:[%s170 + $0x5c0] sm:$0xff] %vm4280, %v6226
      %6355 = vst.msk [vmem:[%s170 + $0x5c8] sm:$0xff] %vm4280, %v6227
      %6356 = vst.msk [vmem:[%s170 + $0x5d0] sm:$0xff] %vm4280, %v6228
      %6357 = vst.msk [vmem:[%s170 + $0x5d8] sm:$0xff] %vm4280, %v6229
      %6358 = vst.msk [vmem:[%s170 + $0x600] sm:$0xff] %vm4280, %v6230
      %6359 = vst.msk [vmem:[%s170 + $0x608] sm:$0xff] %vm4280, %v6231
      %6360 = vst.msk [vmem:[%s170 + $0x610] sm:$0xff] %vm4280, %v6232
      %6361 = vst.msk [vmem:[%s170 + $0x618] sm:$0xff] %vm4280, %v6233
      %6362 = vst.msk [vmem:[%s170 + $0x640] sm:$0xff] %vm4280, %v6234
      %6363 = vst.msk [vmem:[%s170 + $0x648] sm:$0xff] %vm4280, %v6235
      %6364 = vst.msk [vmem:[%s170 + $0x650] sm:$0xff] %vm4280, %v6236
      %6365 = vst.msk [vmem:[%s170 + $0x658] sm:$0xff] %vm4280, %v6237
      %6366 = vst.msk [vmem:[%s170 + $0x680] sm:$0xff] %vm4280, %v6238
      %6367 = vst.msk [vmem:[%s170 + $0x688] sm:$0xff] %vm4280, %v6239
      %6368 = vst.msk [vmem:[%s170 + $0x690] sm:$0xff] %vm4280, %v6240
      %6369 = vst.msk [vmem:[%s170 + $0x698] sm:$0xff] %vm4280, %v6241
      %6370 = vst.msk [vmem:[%s170 + $0x6c0] sm:$0xff] %vm4280, %v6242
      %6371 = vst.msk [vmem:[%s170 + $0x6c8] sm:$0xff] %vm4280, %v6243
      %6372 = vst.msk [vmem:[%s170 + $0x6d0] sm:$0xff] %vm4280, %v6244
      %6373 = vst.msk [vmem:[%s170 + $0x6d8] sm:$0xff] %vm4280, %v6245
      %6374 = vst.msk [vmem:[%s170 + $0x700] sm:$0xff] %vm4280, %v6246
      %6375 = vst.msk [vmem:[%s170 + $0x708] sm:$0xff] %vm4280, %v6247
      %6376 = vst.msk [vmem:[%s170 + $0x710] sm:$0xff] %vm4280, %v6248
      %6377 = vst.msk [vmem:[%s170 + $0x718] sm:$0xff] %vm4280, %v6249
      %6378 = vst.msk [vmem:[%s170 + $0x740] sm:$0xff] %vm4280, %v6250
      %6379 = vst.msk [vmem:[%s170 + $0x748] sm:$0xff] %vm4280, %v6251
      %6380 = vst.msk [vmem:[%s170 + $0x750] sm:$0xff] %vm4280, %v6252
      %6381 = vst.msk [vmem:[%s170 + $0x758] sm:$0xff] %vm4280, %v6253
      %6382 = vst.msk [vmem:[%s170 + $0x780] sm:$0xff] %vm4280, %v6254
      %6383 = vst.msk [vmem:[%s170 + $0x788] sm:$0xff] %vm4280, %v6255
      %6384 = vst.msk [vmem:[%s170 + $0x790] sm:$0xff] %vm4280, %v6256
      %6385 = vst.msk [vmem:[%s170 + $0x798] sm:$0xff] %vm4280, %v6257
      %6386 = vst.msk [vmem:[%s170 + $0x7c0] sm:$0xff] %vm4280, %v6258
      %6387 = vst.msk [vmem:[%s170 + $0x7c8] sm:$0xff] %vm4280, %v6259
      %6388 = vst.msk [vmem:[%s170 + $0x7d0] sm:$0xff] %vm4280, %v6260
      %6389 = vst.msk [vmem:[%s170 + $0x7d8] sm:$0xff] %vm4280, %v6261
      %6518 = vrot.lane.b32.xlu0 %v6134, 96
      %v6519 = vpop.permute.xlu0 %6518
      %6520 = vrot.lane.b32.xlu0 %v6135, 96
      %v6521 = vpop.permute.xlu0 %6520
      %6522 = vrot.lane.b32.xlu0 %v6136, 96
      %v6523 = vpop.permute.xlu0 %6522
      %6524 = vrot.lane.b32.xlu0 %v6137, 96
      %v6525 = vpop.permute.xlu0 %6524
      %6526 = vrot.lane.b32.xlu0 %v6138, 96
      %v6527 = vpop.permute.xlu0 %6526
      %6528 = vrot.lane.b32.xlu0 %v6139, 96
      %v6529 = vpop.permute.xlu0 %6528
      %6530 = vrot.lane.b32.xlu0 %v6140, 96
      %v6531 = vpop.permute.xlu0 %6530
      %6532 = vrot.lane.b32.xlu0 %v6141, 96
      %v6533 = vpop.permute.xlu0 %6532
      %6534 = vrot.lane.b32.xlu0 %v6142, 96
      %v6535 = vpop.permute.xlu0 %6534
      %6536 = vrot.lane.b32.xlu0 %v6143, 96
      %v6537 = vpop.permute.xlu0 %6536
      %6538 = vrot.lane.b32.xlu0 %v6144, 96
      %v6539 = vpop.permute.xlu0 %6538
      %6540 = vrot.lane.b32.xlu0 %v6145, 96
      %v6541 = vpop.permute.xlu0 %6540
      %6542 = vrot.lane.b32.xlu0 %v6146, 96
      %v6543 = vpop.permute.xlu0 %6542
      %6544 = vrot.lane.b32.xlu0 %v6147, 96
      %v6545 = vpop.permute.xlu0 %6544
      %6546 = vrot.lane.b32.xlu0 %v6148, 96
      %v6547 = vpop.permute.xlu0 %6546
      %6548 = vrot.lane.b32.xlu0 %v6149, 96
      %v6549 = vpop.permute.xlu0 %6548
      %6550 = vrot.lane.b32.xlu0 %v6150, 96
      %v6551 = vpop.permute.xlu0 %6550
      %6552 = vrot.lane.b32.xlu0 %v6151, 96
      %v6553 = vpop.permute.xlu0 %6552
      %6554 = vrot.lane.b32.xlu0 %v6152, 96
      %v6555 = vpop.permute.xlu0 %6554
      %6556 = vrot.lane.b32.xlu0 %v6153, 96
      %v6557 = vpop.permute.xlu0 %6556
      %6558 = vrot.lane.b32.xlu0 %v6154, 96
      %v6559 = vpop.permute.xlu0 %6558
      %6560 = vrot.lane.b32.xlu0 %v6155, 96
      %v6561 = vpop.permute.xlu0 %6560
      %6562 = vrot.lane.b32.xlu0 %v6156, 96
      %v6563 = vpop.permute.xlu0 %6562
      %6564 = vrot.lane.b32.xlu0 %v6157, 96
      %v6565 = vpop.permute.xlu0 %6564
      %6566 = vrot.lane.b32.xlu0 %v6158, 96
      %v6567 = vpop.permute.xlu0 %6566
      %6568 = vrot.lane.b32.xlu0 %v6159, 96
      %v6569 = vpop.permute.xlu0 %6568
      %6570 = vrot.lane.b32.xlu0 %v6160, 96
      %v6571 = vpop.permute.xlu0 %6570
      %6572 = vrot.lane.b32.xlu0 %v6161, 96
      %v6573 = vpop.permute.xlu0 %6572
      %6574 = vrot.lane.b32.xlu0 %v6162, 96
      %v6575 = vpop.permute.xlu0 %6574
      %6576 = vrot.lane.b32.xlu0 %v6163, 96
      %v6577 = vpop.permute.xlu0 %6576
      %6578 = vrot.lane.b32.xlu0 %v6164, 96
      %v6579 = vpop.permute.xlu0 %6578
      %6580 = vrot.lane.b32.xlu0 %v6165, 96
      %v6581 = vpop.permute.xlu0 %6580
      %6582 = vrot.lane.b32.xlu0 %v6166, 96
      %v6583 = vpop.permute.xlu0 %6582
      %6584 = vrot.lane.b32.xlu0 %v6167, 96
      %v6585 = vpop.permute.xlu0 %6584
      %6586 = vrot.lane.b32.xlu0 %v6168, 96
      %v6587 = vpop.permute.xlu0 %6586
      %6588 = vrot.lane.b32.xlu0 %v6169, 96
      %v6589 = vpop.permute.xlu0 %6588
      %6590 = vrot.lane.b32.xlu0 %v6170, 96
      %v6591 = vpop.permute.xlu0 %6590
      %6592 = vrot.lane.b32.xlu0 %v6171, 96
      %v6593 = vpop.permute.xlu0 %6592
      %6594 = vrot.lane.b32.xlu0 %v6172, 96
      %v6595 = vpop.permute.xlu0 %6594
      %6596 = vrot.lane.b32.xlu0 %v6173, 96
      %v6597 = vpop.permute.xlu0 %6596
      %6598 = vrot.lane.b32.xlu0 %v6174, 96
      %v6599 = vpop.permute.xlu0 %6598
      %6600 = vrot.lane.b32.xlu0 %v6175, 96
      %v6601 = vpop.permute.xlu0 %6600
      %6602 = vrot.lane.b32.xlu0 %v6176, 96
      %v6603 = vpop.permute.xlu0 %6602
      %6604 = vrot.lane.b32.xlu0 %v6177, 96
      %v6605 = vpop.permute.xlu0 %6604
      %6606 = vrot.lane.b32.xlu0 %v6178, 96
      %v6607 = vpop.permute.xlu0 %6606
      %6608 = vrot.lane.b32.xlu0 %v6179, 96
      %v6609 = vpop.permute.xlu0 %6608
      %6610 = vrot.lane.b32.xlu0 %v6180, 96
      %v6611 = vpop.permute.xlu0 %6610
      %6612 = vrot.lane.b32.xlu0 %v6181, 96
      %v6613 = vpop.permute.xlu0 %6612
      %6614 = vrot.lane.b32.xlu0 %v6182, 96
      %v6615 = vpop.permute.xlu0 %6614
      %6616 = vrot.lane.b32.xlu0 %v6183, 96
      %v6617 = vpop.permute.xlu0 %6616
      %6618 = vrot.lane.b32.xlu0 %v6184, 96
      %v6619 = vpop.permute.xlu0 %6618
      %6620 = vrot.lane.b32.xlu0 %v6185, 96
      %v6621 = vpop.permute.xlu0 %6620
      %6622 = vrot.lane.b32.xlu0 %v6186, 96
      %v6623 = vpop.permute.xlu0 %6622
      %6624 = vrot.lane.b32.xlu0 %v6187, 96
      %v6625 = vpop.permute.xlu0 %6624
      %6626 = vrot.lane.b32.xlu0 %v6188, 96
      %v6627 = vpop.permute.xlu0 %6626
      %6628 = vrot.lane.b32.xlu0 %v6189, 96
      %v6629 = vpop.permute.xlu0 %6628
      %6630 = vrot.lane.b32.xlu0 %v6190, 96
      %v6631 = vpop.permute.xlu0 %6630
      %6632 = vrot.lane.b32.xlu0 %v6191, 96
      %v6633 = vpop.permute.xlu0 %6632
      %6634 = vrot.lane.b32.xlu0 %v6192, 96
      %v6635 = vpop.permute.xlu0 %6634
      %6636 = vrot.lane.b32.xlu0 %v6193, 96
      %v6637 = vpop.permute.xlu0 %6636
      %6638 = vrot.lane.b32.xlu0 %v6194, 96
      %v6639 = vpop.permute.xlu0 %6638
      %6640 = vrot.lane.b32.xlu0 %v6195, 96
      %v6641 = vpop.permute.xlu0 %6640
      %6642 = vrot.lane.b32.xlu0 %v6196, 96
      %v6643 = vpop.permute.xlu0 %6642
      %6644 = vrot.lane.b32.xlu0 %v6197, 96
      %v6645 = vpop.permute.xlu0 %6644
      %6646 = vrot.lane.b32.xlu0 %v6198, 96
      %v6647 = vpop.permute.xlu0 %6646
      %6648 = vrot.lane.b32.xlu0 %v6199, 96
      %v6649 = vpop.permute.xlu0 %6648
      %6650 = vrot.lane.b32.xlu0 %v6200, 96
      %v6651 = vpop.permute.xlu0 %6650
      %6652 = vrot.lane.b32.xlu0 %v6201, 96
      %v6653 = vpop.permute.xlu0 %6652
      %6654 = vrot.lane.b32.xlu0 %v6202, 96
      %v6655 = vpop.permute.xlu0 %6654
      %6656 = vrot.lane.b32.xlu0 %v6203, 96
      %v6657 = vpop.permute.xlu0 %6656
      %6658 = vrot.lane.b32.xlu0 %v6204, 96
      %v6659 = vpop.permute.xlu0 %6658
      %6660 = vrot.lane.b32.xlu0 %v6205, 96
      %v6661 = vpop.permute.xlu0 %6660
      %6662 = vrot.lane.b32.xlu0 %v6206, 96
      %v6663 = vpop.permute.xlu0 %6662
      %6664 = vrot.lane.b32.xlu0 %v6207, 96
      %v6665 = vpop.permute.xlu0 %6664
      %6666 = vrot.lane.b32.xlu0 %v6208, 96
      %v6667 = vpop.permute.xlu0 %6666
      %6668 = vrot.lane.b32.xlu0 %v6209, 96
      %v6669 = vpop.permute.xlu0 %6668
      %6670 = vrot.lane.b32.xlu0 %v6210, 96
      %v6671 = vpop.permute.xlu0 %6670
      %6672 = vrot.lane.b32.xlu0 %v6211, 96
      %v6673 = vpop.permute.xlu0 %6672
      %6674 = vrot.lane.b32.xlu0 %v6212, 96
      %v6675 = vpop.permute.xlu0 %6674
      %6676 = vrot.lane.b32.xlu0 %v6213, 96
      %v6677 = vpop.permute.xlu0 %6676
      %6678 = vrot.lane.b32.xlu0 %v6214, 96
      %v6679 = vpop.permute.xlu0 %6678
      %6680 = vrot.lane.b32.xlu0 %v6215, 96
      %v6681 = vpop.permute.xlu0 %6680
      %6682 = vrot.lane.b32.xlu0 %v6216, 96
      %v6683 = vpop.permute.xlu0 %6682
      %6684 = vrot.lane.b32.xlu0 %v6217, 96
      %v6685 = vpop.permute.xlu0 %6684
      %6686 = vrot.lane.b32.xlu0 %v6218, 96
      %v6687 = vpop.permute.xlu0 %6686
      %6688 = vrot.lane.b32.xlu0 %v6219, 96
      %v6689 = vpop.permute.xlu0 %6688
      %6690 = vrot.lane.b32.xlu0 %v6220, 96
      %v6691 = vpop.permute.xlu0 %6690
      %6692 = vrot.lane.b32.xlu0 %v6221, 96
      %v6693 = vpop.permute.xlu0 %6692
      %6694 = vrot.lane.b32.xlu0 %v6222, 96
      %v6695 = vpop.permute.xlu0 %6694
      %6696 = vrot.lane.b32.xlu0 %v6223, 96
      %v6697 = vpop.permute.xlu0 %6696
      %6698 = vrot.lane.b32.xlu0 %v6224, 96
      %v6699 = vpop.permute.xlu0 %6698
      %6700 = vrot.lane.b32.xlu0 %v6225, 96
      %v6701 = vpop.permute.xlu0 %6700
      %6702 = vrot.lane.b32.xlu0 %v6226, 96
      %v6703 = vpop.permute.xlu0 %6702
      %6704 = vrot.lane.b32.xlu0 %v6227, 96
      %v6705 = vpop.permute.xlu0 %6704
      %6706 = vrot.lane.b32.xlu0 %v6228, 96
      %v6707 = vpop.permute.xlu0 %6706
      %6708 = vrot.lane.b32.xlu0 %v6229, 96
      %v6709 = vpop.permute.xlu0 %6708
      %6710 = vrot.lane.b32.xlu0 %v6230, 96
      %v6711 = vpop.permute.xlu0 %6710
      %6712 = vrot.lane.b32.xlu0 %v6231, 96
      %v6713 = vpop.permute.xlu0 %6712
      %6714 = vrot.lane.b32.xlu0 %v6232, 96
      %v6715 = vpop.permute.xlu0 %6714
      %6716 = vrot.lane.b32.xlu0 %v6233, 96
      %v6717 = vpop.permute.xlu0 %6716
      %6718 = vrot.lane.b32.xlu0 %v6234, 96
      %v6719 = vpop.permute.xlu0 %6718
      %6720 = vrot.lane.b32.xlu0 %v6235, 96
      %v6721 = vpop.permute.xlu0 %6720
      %6722 = vrot.lane.b32.xlu0 %v6236, 96
      %v6723 = vpop.permute.xlu0 %6722
      %6724 = vrot.lane.b32.xlu0 %v6237, 96
      %v6725 = vpop.permute.xlu0 %6724
      %6726 = vrot.lane.b32.xlu0 %v6238, 96
      %v6727 = vpop.permute.xlu0 %6726
      %6728 = vrot.lane.b32.xlu0 %v6239, 96
      %v6729 = vpop.permute.xlu0 %6728
      %6730 = vrot.lane.b32.xlu0 %v6240, 96
      %v6731 = vpop.permute.xlu0 %6730
      %6732 = vrot.lane.b32.xlu0 %v6241, 96
      %v6733 = vpop.permute.xlu0 %6732
      %6734 = vrot.lane.b32.xlu0 %v6242, 96
      %v6735 = vpop.permute.xlu0 %6734
      %6736 = vrot.lane.b32.xlu0 %v6243, 96
      %v6737 = vpop.permute.xlu0 %6736
      %6738 = vrot.lane.b32.xlu0 %v6244, 96
      %v6739 = vpop.permute.xlu0 %6738
      %6740 = vrot.lane.b32.xlu0 %v6245, 96
      %v6741 = vpop.permute.xlu0 %6740
      %6742 = vrot.lane.b32.xlu0 %v6246, 96
      %v6743 = vpop.permute.xlu0 %6742
      %6744 = vrot.lane.b32.xlu0 %v6247, 96
      %v6745 = vpop.permute.xlu0 %6744
      %6746 = vrot.lane.b32.xlu0 %v6248, 96
      %v6747 = vpop.permute.xlu0 %6746
      %6748 = vrot.lane.b32.xlu0 %v6249, 96
      %v6749 = vpop.permute.xlu0 %6748
      %6750 = vrot.lane.b32.xlu0 %v6250, 96
      %v6751 = vpop.permute.xlu0 %6750
      %6752 = vrot.lane.b32.xlu0 %v6251, 96
      %v6753 = vpop.permute.xlu0 %6752
      %6754 = vrot.lane.b32.xlu0 %v6252, 96
      %v6755 = vpop.permute.xlu0 %6754
      %6756 = vrot.lane.b32.xlu0 %v6253, 96
      %v6757 = vpop.permute.xlu0 %6756
      %6758 = vrot.lane.b32.xlu0 %v6254, 96
      %v6759 = vpop.permute.xlu0 %6758
      %6760 = vrot.lane.b32.xlu0 %v6255, 96
      %v6761 = vpop.permute.xlu0 %6760
      %6762 = vrot.lane.b32.xlu0 %v6256, 96
      %v6763 = vpop.permute.xlu0 %6762
      %6764 = vrot.lane.b32.xlu0 %v6257, 96
      %v6765 = vpop.permute.xlu0 %6764
      %6766 = vrot.lane.b32.xlu0 %v6258, 96
      %v6767 = vpop.permute.xlu0 %6766
      %6768 = vrot.lane.b32.xlu0 %v6259, 96
      %v6769 = vpop.permute.xlu0 %6768
      %6770 = vrot.lane.b32.xlu0 %v6260, 96
      %v6771 = vpop.permute.xlu0 %6770
      %6772 = vrot.lane.b32.xlu0 %v6261, 96
      %v6773 = vpop.permute.xlu0 %6772
      %s6902 = scalar_lea.vmem %s170, 32
      %6903 = vst.msk [vmem:[%s6902] sm:$0xff] %vm4280, %v6519
      %6904 = vst.msk [vmem:[%s6902 + $0x8] sm:$0xff] %vm4280, %v6521
      %6905 = vst.msk [vmem:[%s6902 + $0x10] sm:$0xff] %vm4280, %v6523
      %6906 = vst.msk [vmem:[%s6902 + $0x18] sm:$0xff] %vm4280, %v6525
      %6907 = vst.msk [vmem:[%s6902 + $0x40] sm:$0xff] %vm4280, %v6527
      %6908 = vst.msk [vmem:[%s6902 + $0x48] sm:$0xff] %vm4280, %v6529
      %6909 = vst.msk [vmem:[%s6902 + $0x50] sm:$0xff] %vm4280, %v6531
      %6910 = vst.msk [vmem:[%s6902 + $0x58] sm:$0xff] %vm4280, %v6533
      %6911 = vst.msk [vmem:[%s6902 + $0x80] sm:$0xff] %vm4280, %v6535
      %6912 = vst.msk [vmem:[%s6902 + $0x88] sm:$0xff] %vm4280, %v6537
      %6913 = vst.msk [vmem:[%s6902 + $0x90] sm:$0xff] %vm4280, %v6539
      %6914 = vst.msk [vmem:[%s6902 + $0x98] sm:$0xff] %vm4280, %v6541
      %6915 = vst.msk [vmem:[%s6902 + $0xc0] sm:$0xff] %vm4280, %v6543
      %6916 = vst.msk [vmem:[%s6902 + $0xc8] sm:$0xff] %vm4280, %v6545
      %6917 = vst.msk [vmem:[%s6902 + $0xd0] sm:$0xff] %vm4280, %v6547
      %6918 = vst.msk [vmem:[%s6902 + $0xd8] sm:$0xff] %vm4280, %v6549
      %6919 = vst.msk [vmem:[%s6902 + $0x100] sm:$0xff] %vm4280, %v6551
      %6920 = vst.msk [vmem:[%s6902 + $0x108] sm:$0xff] %vm4280, %v6553
      %6921 = vst.msk [vmem:[%s6902 + $0x110] sm:$0xff] %vm4280, %v6555
      %6922 = vst.msk [vmem:[%s6902 + $0x118] sm:$0xff] %vm4280, %v6557
      %6923 = vst.msk [vmem:[%s6902 + $0x140] sm:$0xff] %vm4280, %v6559
      %6924 = vst.msk [vmem:[%s6902 + $0x148] sm:$0xff] %vm4280, %v6561
      %6925 = vst.msk [vmem:[%s6902 + $0x150] sm:$0xff] %vm4280, %v6563
      %6926 = vst.msk [vmem:[%s6902 + $0x158] sm:$0xff] %vm4280, %v6565
      %6927 = vst.msk [vmem:[%s6902 + $0x180] sm:$0xff] %vm4280, %v6567
      %6928 = vst.msk [vmem:[%s6902 + $0x188] sm:$0xff] %vm4280, %v6569
      %6929 = vst.msk [vmem:[%s6902 + $0x190] sm:$0xff] %vm4280, %v6571
      %6930 = vst.msk [vmem:[%s6902 + $0x198] sm:$0xff] %vm4280, %v6573
      %6931 = vst.msk [vmem:[%s6902 + $0x1c0] sm:$0xff] %vm4280, %v6575
      %6932 = vst.msk [vmem:[%s6902 + $0x1c8] sm:$0xff] %vm4280, %v6577
      %6933 = vst.msk [vmem:[%s6902 + $0x1d0] sm:$0xff] %vm4280, %v6579
      %6934 = vst.msk [vmem:[%s6902 + $0x1d8] sm:$0xff] %vm4280, %v6581
      %6935 = vst.msk [vmem:[%s6902 + $0x200] sm:$0xff] %vm4280, %v6583
      %6936 = vst.msk [vmem:[%s6902 + $0x208] sm:$0xff] %vm4280, %v6585
      %6937 = vst.msk [vmem:[%s6902 + $0x210] sm:$0xff] %vm4280, %v6587
      %6938 = vst.msk [vmem:[%s6902 + $0x218] sm:$0xff] %vm4280, %v6589
      %6939 = vst.msk [vmem:[%s6902 + $0x240] sm:$0xff] %vm4280, %v6591
      %6940 = vst.msk [vmem:[%s6902 + $0x248] sm:$0xff] %vm4280, %v6593
      %6941 = vst.msk [vmem:[%s6902 + $0x250] sm:$0xff] %vm4280, %v6595
      %6942 = vst.msk [vmem:[%s6902 + $0x258] sm:$0xff] %vm4280, %v6597
      %6943 = vst.msk [vmem:[%s6902 + $0x280] sm:$0xff] %vm4280, %v6599
      %6944 = vst.msk [vmem:[%s6902 + $0x288] sm:$0xff] %vm4280, %v6601
      %6945 = vst.msk [vmem:[%s6902 + $0x290] sm:$0xff] %vm4280, %v6603
      %6946 = vst.msk [vmem:[%s6902 + $0x298] sm:$0xff] %vm4280, %v6605
      %6947 = vst.msk [vmem:[%s6902 + $0x2c0] sm:$0xff] %vm4280, %v6607
      %6948 = vst.msk [vmem:[%s6902 + $0x2c8] sm:$0xff] %vm4280, %v6609
      %6949 = vst.msk [vmem:[%s6902 + $0x2d0] sm:$0xff] %vm4280, %v6611
      %6950 = vst.msk [vmem:[%s6902 + $0x2d8] sm:$0xff] %vm4280, %v6613
      %6951 = vst.msk [vmem:[%s6902 + $0x300] sm:$0xff] %vm4280, %v6615
      %6952 = vst.msk [vmem:[%s6902 + $0x308] sm:$0xff] %vm4280, %v6617
      %6953 = vst.msk [vmem:[%s6902 + $0x310] sm:$0xff] %vm4280, %v6619
      %6954 = vst.msk [vmem:[%s6902 + $0x318] sm:$0xff] %vm4280, %v6621
      %6955 = vst.msk [vmem:[%s6902 + $0x340] sm:$0xff] %vm4280, %v6623
      %6956 = vst.msk [vmem:[%s6902 + $0x348] sm:$0xff] %vm4280, %v6625
      %6957 = vst.msk [vmem:[%s6902 + $0x350] sm:$0xff] %vm4280, %v6627
      %6958 = vst.msk [vmem:[%s6902 + $0x358] sm:$0xff] %vm4280, %v6629
      %6959 = vst.msk [vmem:[%s6902 + $0x380] sm:$0xff] %vm4280, %v6631
      %6960 = vst.msk [vmem:[%s6902 + $0x388] sm:$0xff] %vm4280, %v6633
      %6961 = vst.msk [vmem:[%s6902 + $0x390] sm:$0xff] %vm4280, %v6635
      %6962 = vst.msk [vmem:[%s6902 + $0x398] sm:$0xff] %vm4280, %v6637
      %6963 = vst.msk [vmem:[%s6902 + $0x3c0] sm:$0xff] %vm4280, %v6639
      %6964 = vst.msk [vmem:[%s6902 + $0x3c8] sm:$0xff] %vm4280, %v6641
      %6965 = vst.msk [vmem:[%s6902 + $0x3d0] sm:$0xff] %vm4280, %v6643
      %6966 = vst.msk [vmem:[%s6902 + $0x3d8] sm:$0xff] %vm4280, %v6645
      %6967 = vst.msk [vmem:[%s6902 + $0x400] sm:$0xff] %vm4280, %v6647
      %6968 = vst.msk [vmem:[%s6902 + $0x408] sm:$0xff] %vm4280, %v6649
      %6969 = vst.msk [vmem:[%s6902 + $0x410] sm:$0xff] %vm4280, %v6651
      %6970 = vst.msk [vmem:[%s6902 + $0x418] sm:$0xff] %vm4280, %v6653
      %6971 = vst.msk [vmem:[%s6902 + $0x440] sm:$0xff] %vm4280, %v6655
      %6972 = vst.msk [vmem:[%s6902 + $0x448] sm:$0xff] %vm4280, %v6657
      %6973 = vst.msk [vmem:[%s6902 + $0x450] sm:$0xff] %vm4280, %v6659
      %6974 = vst.msk [vmem:[%s6902 + $0x458] sm:$0xff] %vm4280, %v6661
      %6975 = vst.msk [vmem:[%s6902 + $0x480] sm:$0xff] %vm4280, %v6663
      %6976 = vst.msk [vmem:[%s6902 + $0x488] sm:$0xff] %vm4280, %v6665
      %6977 = vst.msk [vmem:[%s6902 + $0x490] sm:$0xff] %vm4280, %v6667
      %6978 = vst.msk [vmem:[%s6902 + $0x498] sm:$0xff] %vm4280, %v6669
      %6979 = vst.msk [vmem:[%s6902 + $0x4c0] sm:$0xff] %vm4280, %v6671
      %6980 = vst.msk [vmem:[%s6902 + $0x4c8] sm:$0xff] %vm4280, %v6673
      %6981 = vst.msk [vmem:[%s6902 + $0x4d0] sm:$0xff] %vm4280, %v6675
      %6982 = vst.msk [vmem:[%s6902 + $0x4d8] sm:$0xff] %vm4280, %v6677
      %6983 = vst.msk [vmem:[%s6902 + $0x500] sm:$0xff] %vm4280, %v6679
      %6984 = vst.msk [vmem:[%s6902 + $0x508] sm:$0xff] %vm4280, %v6681
      %6985 = vst.msk [vmem:[%s6902 + $0x510] sm:$0xff] %vm4280, %v6683
      %6986 = vst.msk [vmem:[%s6902 + $0x518] sm:$0xff] %vm4280, %v6685
      %6987 = vst.msk [vmem:[%s6902 + $0x540] sm:$0xff] %vm4280, %v6687
      %6988 = vst.msk [vmem:[%s6902 + $0x548] sm:$0xff] %vm4280, %v6689
      %6989 = vst.msk [vmem:[%s6902 + $0x550] sm:$0xff] %vm4280, %v6691
      %6990 = vst.msk [vmem:[%s6902 + $0x558] sm:$0xff] %vm4280, %v6693
      %6991 = vst.msk [vmem:[%s6902 + $0x580] sm:$0xff] %vm4280, %v6695
      %6992 = vst.msk [vmem:[%s6902 + $0x588] sm:$0xff] %vm4280, %v6697
      %6993 = vst.msk [vmem:[%s6902 + $0x590] sm:$0xff] %vm4280, %v6699
      %6994 = vst.msk [vmem:[%s6902 + $0x598] sm:$0xff] %vm4280, %v6701
      %6995 = vst.msk [vmem:[%s6902 + $0x5c0] sm:$0xff] %vm4280, %v6703
      %6996 = vst.msk [vmem:[%s6902 + $0x5c8] sm:$0xff] %vm4280, %v6705
      %6997 = vst.msk [vmem:[%s6902 + $0x5d0] sm:$0xff] %vm4280, %v6707
      %6998 = vst.msk [vmem:[%s6902 + $0x5d8] sm:$0xff] %vm4280, %v6709
      %6999 = vst.msk [vmem:[%s6902 + $0x600] sm:$0xff] %vm4280, %v6711
      %7000 = vst.msk [vmem:[%s6902 + $0x608] sm:$0xff] %vm4280, %v6713
      %7001 = vst.msk [vmem:[%s6902 + $0x610] sm:$0xff] %vm4280, %v6715
      %7002 = vst.msk [vmem:[%s6902 + $0x618] sm:$0xff] %vm4280, %v6717
      %7003 = vst.msk [vmem:[%s6902 + $0x640] sm:$0xff] %vm4280, %v6719
      %7004 = vst.msk [vmem:[%s6902 + $0x648] sm:$0xff] %vm4280, %v6721
      %7005 = vst.msk [vmem:[%s6902 + $0x650] sm:$0xff] %vm4280, %v6723
      %7006 = vst.msk [vmem:[%s6902 + $0x658] sm:$0xff] %vm4280, %v6725
      %7007 = vst.msk [vmem:[%s6902 + $0x680] sm:$0xff] %vm4280, %v6727
      %7008 = vst.msk [vmem:[%s6902 + $0x688] sm:$0xff] %vm4280, %v6729
      %7009 = vst.msk [vmem:[%s6902 + $0x690] sm:$0xff] %vm4280, %v6731
      %7010 = vst.msk [vmem:[%s6902 + $0x698] sm:$0xff] %vm4280, %v6733
      %7011 = vst.msk [vmem:[%s6902 + $0x6c0] sm:$0xff] %vm4280, %v6735
      %7012 = vst.msk [vmem:[%s6902 + $0x6c8] sm:$0xff] %vm4280, %v6737
      %7013 = vst.msk [vmem:[%s6902 + $0x6d0] sm:$0xff] %vm4280, %v6739
      %7014 = vst.msk [vmem:[%s6902 + $0x6d8] sm:$0xff] %vm4280, %v6741
      %7015 = vst.msk [vmem:[%s6902 + $0x700] sm:$0xff] %vm4280, %v6743
      %7016 = vst.msk [vmem:[%s6902 + $0x708] sm:$0xff] %vm4280, %v6745
      %7017 = vst.msk [vmem:[%s6902 + $0x710] sm:$0xff] %vm4280, %v6747
      %7018 = vst.msk [vmem:[%s6902 + $0x718] sm:$0xff] %vm4280, %v6749
      %7019 = vst.msk [vmem:[%s6902 + $0x740] sm:$0xff] %vm4280, %v6751
      %7020 = vst.msk [vmem:[%s6902 + $0x748] sm:$0xff] %vm4280, %v6753
      %7021 = vst.msk [vmem:[%s6902 + $0x750] sm:$0xff] %vm4280, %v6755
      %7022 = vst.msk [vmem:[%s6902 + $0x758] sm:$0xff] %vm4280, %v6757
      %7023 = vst.msk [vmem:[%s6902 + $0x780] sm:$0xff] %vm4280, %v6759
      %7024 = vst.msk [vmem:[%s6902 + $0x788] sm:$0xff] %vm4280, %v6761
      %7025 = vst.msk [vmem:[%s6902 + $0x790] sm:$0xff] %vm4280, %v6763
      %7026 = vst.msk [vmem:[%s6902 + $0x798] sm:$0xff] %vm4280, %v6765
      %7027 = vst.msk [vmem:[%s6902 + $0x7c0] sm:$0xff] %vm4280, %v6767
      %7028 = vst.msk [vmem:[%s6902 + $0x7c8] sm:$0xff] %vm4280, %v6769
      %7029 = vst.msk [vmem:[%s6902 + $0x7d0] sm:$0xff] %vm4280, %v6771
      %7030 = vst.msk [vmem:[%s6902 + $0x7d8] sm:$0xff] %vm4280, %v6773
      %p7031 = scmp.lt.s32.totalorder %s14, 1
      %s7032 = scalar_select %p7031, %s14, 1
      %s7033 = smul.addr %s7032, 256
      %s7034 = smul.addr %s7033, 8
      %s7035 = scalar_lea.vmem %s3, %s7034
      // Predicated region
      $region33: #{upsample_block.3} parent=31 // pred_check
        %p7036 = pneg %p100
      $region34: #{upsample_block.3} parent=31 // pred_check_branch
        %7038 = sbr.rel (%p7036) target = $region36
      $region35: #{upsample_block.3} parent=31 // pred_region
        _
      $region36: #{upsample_block.3} parent=31 // pred_fallthru
        _
    $region32: #{upsample_block.3} parent=5 // pred_fallthru
      _
    %p7039 = scmp.le.s32.totalorder 2, %s9
    // Predicated region
    $region37: #{upsample_block.3} parent=5 // pred_check
      %p7040 = pneg %p7039
    $region38: #{upsample_block.3} parent=5 // pred_check_branch
      %7042 = sbr.rel (%p7040) target = $region40
    $region39: #{upsample_block.3} parent=5 // pred_region
      %s7043 = ssub.s32 %s9, 2
      // Predicated region
      $region41: #{upsample_block.3} parent=39 // pred_check
        %p7044 = pneg %p106
      $region42: #{upsample_block.3} parent=39 // pred_check_branch
        %7046 = sbr.rel (%p7044) target = $region44
      $region43: #{upsample_block.3} parent=39 // pred_region
        %p7047 = scmp.lt.s32.totalorder %s15, 1
        %s7048 = scalar_select %p7047, %s15, 1
        %s7049 = smul.addr %s7048, 256
        %s7050 = smul.addr %s7049, 8
        %s7051 = scalar_lea.vmem %s3, %s7050
      $region44: #{upsample_block.3} parent=39 // pred_fallthru
        _
    $region40: #{upsample_block.3} parent=5 // pred_fallthru
      _
  $region6: #{upsample_block.3} parent=0 // loop_footer
    %s13 = sadd.s32 1, %s9
  $region7: #{upsample_block.3} parent=0 // loop_footer_branch
    %8 = sbr.rel target = $region3
  $region8: #{upsample_block.3} parent=0 // loop_exit
    _

</llo_original>
